<compile_context>
chip_gen: v7x
topology: tpu7x:2x2x1
jax: 0.10.0
libtpu: 0.0.40
codegen_flags: <defaults>
</compile_context>

<pallas_src>
import functools

import jax
import jax.numpy as jnp
import numpy as np
from jax import lax
from jax.experimental import pallas as pl
from jax.experimental.pallas import tpu as pltpu


def _round_up(x, m):
    return (x + m - 1) // m * m


def moco_loss_kernel(temperature,
                     fb_ref, fmT_ref, onehot_b_ref, neg_m_ref,
                     counts_ref, w_ref,
                     o_ref,
                     rmax_sc, acc_sc):
    j = pl.program_id(0)
    inv_t = jnp.float32(1.0 / temperature)

    @pl.when(j == 0)
    def _init():
        # Running max starts at 0: the zeroed self-diagonal is always part of
        # every row's logit set, so the true global row max is >= 0 and the
        # final max is unchanged by this initialization.
        rmax_sc[...] = jnp.zeros_like(rmax_sc)
        acc_sc[...] = jnp.zeros_like(acc_sc)

    # Row L2-normalize the batch (rsqrt -> EUP slot); fold 1/T into the LHS.
    # The clamp only affects all-zero padded rows (they stay exactly zero).
    fb = fb_ref[...]                                              # (Bp, Dp)
    inv_nb = lax.rsqrt(jnp.maximum(jnp.sum(fb * fb, axis=1, keepdims=True),
                                   jnp.float32(1e-30)))
    fbn = fb * inv_nb                                             # normalized
    fbn_s = fbn * inv_t                                           # scaled LHS

    # ---- online accumulation over this memory-bank tile -------------------
    # Memory bank arrives pre-normalized & pre-transposed as (Dp, TM): the MXU
    # sees a natural (M,K)@(K,N) contraction with the bank tile lane-dense.
    gfn = jnp.dot(fbn_s, fmT_ref[...],
                  precision=lax.Precision.HIGHEST,
                  preferred_element_type=jnp.float32)             # (Bp, TM)
    tile_max = jnp.max(gfn, axis=1, keepdims=True)                # (Bp, 1)
    new_max = jnp.maximum(rmax_sc[...], tile_max)
    alpha = jnp.exp(rmax_sc[...] - new_max)                       # <= 1
    e_fn = jnp.exp(gfn - new_max)                                 # <= 1
    # "usable negative" indicator matmul: per-class sum of exp over memory
    # rows that are valid and have a different label.
    acc_sc[...] = alpha * acc_sc[...] + jnp.dot(
        e_fn, neg_m_ref[...],
        precision=lax.Precision.HIGHEST,
        preferred_element_type=jnp.float32)                       # (Bp, NCp)
    rmax_sc[...] = new_max

    # ---- finalize on the last memory-bank tile -----------------------------
    @pl.when(j == pl.num_programs(0) - 1)
    def _finalize():
        bp = fb.shape[0]
        # Intra-batch Gram with zeroed diagonal.  The RHS here is only the
        # small (Bp, Dp) batch tile, so the N,K-form contraction is cheap.
        dn = (((1,), (1,)), ((), ()))
        gff = lax.dot_general(fbn_s, fbn, dn,
                              precision=lax.Precision.HIGHEST,
                              preferred_element_type=jnp.float32)  # (Bp, Bp)
        eye = (lax.broadcasted_iota(jnp.int32, (bp, bp), 0)
               == lax.broadcasted_iota(jnp.int32, (bp, bp), 1))
        ff_vals = jnp.where(eye, jnp.float32(0.0), gff)

        ff_max = jnp.max(ff_vals, axis=1, keepdims=True)
        final_max = jnp.maximum(rmax_sc[...], ff_max)              # global row max
        fn_part = acc_sc[...] * jnp.exp(rmax_sc[...] - final_max)  # rescale

        onehot_b = onehot_b_ref[...]                               # (Bp, NCp)
        e_ff = jnp.exp(ff_vals - final_max)                        # <= 1
        s_ff = jnp.dot(e_ff, onehot_b,
                       precision=lax.Precision.HIGHEST,
                       preferred_element_type=jnp.float32)         # (Bp, NCp)
        g_sum = jnp.dot(ff_vals, onehot_b,
                        precision=lax.Precision.HIGHEST,
                        preferred_element_type=jnp.float32)        # (Bp, NCp)

        # Denominator per (row, class); the clamp only guards (row, class)
        # pairs that are discarded by the onehot/weight selection below.
        z = jnp.maximum(s_ff + fn_part, jnp.float32(1e-30))
        log_z = final_max + jnp.log(z)                             # (Bp, NCp)

        # mean log-prob over positives: (sum_pos gff)/n_pos - log Z
        pos_cnt = jnp.maximum(counts_ref[...] - onehot_b, jnp.float32(1.0))
        mlpp = g_sum / pos_cnt - log_z

        # w[c] = -0.07 / count_c if count_c > 1 else 0  (precomputed in wrapper)
        total = jnp.sum(onehot_b * w_ref[...] * mlpp)
        o_ref[...] = jnp.reshape(total, (1, 1)).astype(o_ref.dtype)


def moco_loss(batch_examples, memory_bank, nclass, temperature):
    """batch_examples: (B, 1+D) f32, col 0 = class id; memory_bank: (M, 1+D) f32."""
    b, c = batch_examples.shape
    m, _ = memory_bank.shape
    d = c - 1
    f32 = jnp.float32

    # Lane-dense padding everywhere (zero-padding is exact: norms, dot products
    # and the indicator matmuls are unchanged; padded rows/classes select to 0).
    bp = _round_up(b, 128)
    dp = _round_up(d, 128)
    ncp = _round_up(nclass, 128)

    m_tile = 512                      # good for v5e/v6e, bounded for v7x VMEM
    if m <= m_tile:
        tm = _round_up(max(m, 1), 128)
        mp = tm
    else:
        tm = m_tile
        mp = _round_up(m, m_tile)
    n_m_tiles = mp // tm

    lab_b = batch_examples[:, 0].astype(f32)
    lab_m = memory_bank[:, 0].astype(f32)
    feat_b = batch_examples[:, 1:].astype(f32)
    feat_m = memory_bank[:, 1:].astype(f32)

    # Batch features, zero-padded.
    fb = jnp.zeros((bp, dp), f32).at[:b, :d].set(feat_b)

    # Memory bank: pre-normalize + pre-transpose (cheap XLA ops outside the
    # kernel) so the kernel consumes a natural (K, N) = (Dp, Mp) operand.
    nrm = jnp.sqrt(jnp.maximum(jnp.sum(feat_m * feat_m, axis=1, keepdims=True),
                               f32(1e-30)))
    fmT = jnp.zeros((dp, mp), f32).at[:d, :m].set((feat_m / nrm).T)

    class_ids = jnp.arange(nclass, dtype=f32)
    onehot_b = jnp.zeros((bp, ncp), f32).at[:b, :nclass].set(
        (lab_b[:, None] == class_ids[None, :]).astype(f32))
    # Usable-negative indicator: valid memory row whose label != class.
    neg_m = jnp.zeros((mp, ncp), f32).at[:m, :nclass].set(
        (lab_m[:, None] != class_ids[None, :]).astype(f32))

    counts = jnp.sum(onehot_b, axis=0, keepdims=True)              # (1, NCp)
    w = jnp.where(counts > 1.5,
                  f32(-0.07) / jnp.maximum(counts, f32(1.0)),
                  f32(0.0))                                        # (1, NCp)

    kernel = functools.partial(moco_loss_kernel, float(temperature))

    flops = int(2 * bp * dp * (bp + mp)            # Gram matmuls
                + 2 * bp * mp * ncp                # e_fn @ neg_m
                + 4 * bp * bp * ncp                # e_ff/ff_vals @ onehot_b
                + 10 * bp * (bp + mp + ncp))       # elementwise
    transcendentals = int(bp * (bp + mp) + bp * ncp + 4 * bp)
    bytes_accessed = int(4 * (bp * dp + dp * mp + bp * ncp + mp * ncp
                              + 2 * ncp + 1))

    out = pl.pallas_call(
        kernel,
        out_shape=jax.ShapeDtypeStruct((1, 1), f32),
        grid_spec=pltpu.PrefetchScalarGridSpec(
            num_scalar_prefetch=0,
            grid=(n_m_tiles,),
            in_specs=[
                pl.BlockSpec((bp, dp), lambda j: (0, 0)),    # batch features (resident)
                pl.BlockSpec((dp, tm), lambda j: (0, j)),    # memory bank tile (pipelined)
                pl.BlockSpec((bp, ncp), lambda j: (0, 0)),   # one-hot batch labels
                pl.BlockSpec((tm, ncp), lambda j: (j, 0)),   # negative indicator tile
                pl.BlockSpec((1, ncp), lambda j: (0, 0)),    # per-class counts
                pl.BlockSpec((1, ncp), lambda j: (0, 0)),    # per-class weights
            ],
            out_specs=pl.BlockSpec((1, 1), lambda j: (0, 0)),
            scratch_shapes=[
                pltpu.VMEM((bp, 1), f32),     # running row max
                pltpu.VMEM((bp, ncp), f32),   # running per-class exp-sum of negatives
            ]),
        compiler_params=pltpu.CompilerParams(
            dimension_semantics=("arbitrary",),
            vmem_limit_bytes=32 * 1024 * 1024),
        cost_estimate=pl.CostEstimate(
            flops=flops,
            transcendentals=transcendentals,
            bytes_accessed=bytes_accessed),
    )(fb, fmT, onehot_b, neg_m, counts, w)
    return out[0, 0]


def moco_loss_ref(batch_examples, memory_bank, nclass, temperature):
    """Pure numpy re-implementation mirroring the PyTorch module line by line."""
    be = np.asarray(batch_examples, dtype=np.float32)
    mb = np.asarray(memory_bank, dtype=np.float32)
    loss = 0.0
    for class_id in range(nclass):
        sel = be[:, 0] == class_id
        feature = be[sel][:, 1:]
        if feature.shape[0] <= 1:
            continue
        feature = feature / np.linalg.norm(feature, axis=1, keepdims=True)
        n = feature.shape[0]
        mask = 1.0 - np.eye(n, dtype=np.float32)
        fdf = (feature @ feature.T) / temperature
        neg_sel = mb[:, 0] != class_id
        neg = mb[neg_sel][:, 1:]
        if neg.shape[0] > 0:
            neg = neg / np.linalg.norm(neg, axis=1, keepdims=True)
        fdn = (feature @ neg.T) / temperature
        logits = np.concatenate([fdf, fdn], axis=1)
        positive_mask = np.concatenate([mask, np.zeros_like(fdn)], axis=1)
        logits_mask = np.concatenate([mask, np.ones_like(fdn)], axis=1)
        logits = logits * logits_mask
        logits = logits - logits.max(axis=1, keepdims=True)
        exp_logits = np.exp(logits)
        sums = exp_logits.sum(axis=1, keepdims=True)
        log_prob = logits - np.log(sums)
        mlpp = (positive_mask * log_prob).sum(axis=1) / positive_mask.sum(axis=1)
        loss += -1.0 * 0.07 * mlpp.mean()
    return np.float32(loss)


if __name__ == "__main__":
    # Small shapes consistent with the module: 16 batch rows, 32-dim features
    # (so batch_examples is (16, 33)), 32-row memory bank, 4 classes.
    nclass = 4
    temperature = 0.5
    batch, dim, bank = 16, 32, 32

    key = jax.random.PRNGKey(0)
    k1, k2, k3, k4 = jax.random.split(key, 4)
    lab_b = jax.random.randint(k1, (batch, 1), 0, nclass).astype(jnp.float32)
    feat_b = jax.random.normal(k2, (batch, dim), dtype=jnp.float32)
    lab_m = jax.random.randint(k3, (bank, 1), 0, nclass).astype(jnp.float32)
    feat_m = jax.random.normal(k4, (bank, dim), dtype=jnp.float32)

    batch_examples = jnp.concatenate([lab_b, feat_b], axis=1)   # (16, 33)
    memory_bank = jnp.concatenate([lab_m, feat_m], axis=1)      # (32, 33)

    loss = moco_loss(batch_examples, memory_bank, nclass, temperature)
    loss = jax.block_until_ready(loss)

    ref = moco_loss_ref(batch_examples, memory_bank, nclass, temperature)
    lv, rv = float(loss), float(ref)
    assert np.isfinite(lv), lv
    assert abs(lv - rv) <= 5e-5 + 5e-5 * abs(rv), (lv, rv)

    print("KERNEL_OK")
</pallas_src>

<mosaic_0001>
module attributes {stable_mosaic.version = 11 : i64} {
  func.func @moco_loss_kernel(%arg0: i32, %arg1: memref<128x128xf32, #tpu.memory_space<vmem>>, %arg2: memref<128x128xf32, #tpu.memory_space<vmem>>, %arg3: memref<128x128xf32, #tpu.memory_space<vmem>>, %arg4: memref<128x128xf32, #tpu.memory_space<vmem>>, %arg5: memref<1x128xf32, #tpu.memory_space<vmem>>, %arg6: memref<1x128xf32, #tpu.memory_space<vmem>>, %arg7: memref<1x1xf32, #tpu.memory_space<vmem>>, %arg8: memref<128x1xf32, #tpu.memory_space<vmem>>, %arg9: memref<128x128xf32, #tpu.memory_space<vmem>>) attributes {dimension_semantics = [#tpu.dimension_semantics<arbitrary>], iteration_bounds = array<i64: 1>, scalar_prefetch = 0 : i64, scratch_operands = 2 : i64, tpu.core_type = #tpu.core_type<tc>, window_params = [{pipeline_mode = #tpu.pipeline_mode<synchronous>, transform_indices = @transform_0, window_bounds = array<i64: 128, 128>}, {transform_indices = @transform_1, window_bounds = array<i64: 128, 128>}, {pipeline_mode = #tpu.pipeline_mode<synchronous>, transform_indices = @transform_2, window_bounds = array<i64: 128, 128>}, {transform_indices = @transform_3, window_bounds = array<i64: 128, 128>}, {pipeline_mode = #tpu.pipeline_mode<synchronous>, transform_indices = @transform_4, window_bounds = array<i64: 1, 128>}, {pipeline_mode = #tpu.pipeline_mode<synchronous>, transform_indices = @transform_5, window_bounds = array<i64: 1, 128>}, {pipeline_mode = #tpu.pipeline_mode<synchronous>, transform_indices = @transform_6, window_bounds = array<i64: 1, 1>}]} {
    %c0_i32 = arith.constant 0 : i32
    %0 = arith.cmpi eq, %arg0, %c0_i32 : i32
    %1 = arith.extui %0 : i1 to i32
    %c0_i32_0 = arith.constant 0 : i32
    %2 = arith.cmpi ne, %1, %c0_i32_0 : i32
    scf.if %2 {
      %cst_23 = arith.constant 0.000000e+00 : f32
      %37 = vector.broadcast %cst_23 : f32 to vector<128x1xf32>
      %c0_24 = arith.constant 0 : index
      %c0_25 = arith.constant 0 : index
      %38 = vector.load %arg8[%c0_24, %c0_25] : memref<128x1xf32, #tpu.memory_space<vmem>>, vector<128x1xf32>
      tpu.vector_store %arg8[%c0_24, %c0_25], %37 {strides = array<i32>} : memref<128x1xf32, #tpu.memory_space<vmem>>, vector<128x1xf32>,
      %cst_26 = arith.constant 0.000000e+00 : f32
      %39 = vector.broadcast %cst_26 : f32 to vector<128x128xf32>
      %c0_27 = arith.constant 0 : index
      %c0_28 = arith.constant 0 : index
      %40 = vector.load %arg9[%c0_27, %c0_28] : memref<128x128xf32, #tpu.memory_space<vmem>>, vector<128x128xf32>
      tpu.vector_store %arg9[%c0_27, %c0_28], %39 {strides = array<i32>} : memref<128x128xf32, #tpu.memory_space<vmem>>, vector<128x128xf32>,
    } else {
    }
    %c0 = arith.constant 0 : index
    %c0_1 = arith.constant 0 : index
    %3 = vector.load %arg1[%c0, %c0_1] : memref<128x128xf32, #tpu.memory_space<vmem>>, vector<128x128xf32>
    %4 = arith.mulf %3, %3 : vector<128x128xf32>
    %cst = arith.constant dense<0.000000e+00> : vector<128xf32>
    %5 = vector.multi_reduction <add>, %4, %cst [1] : vector<128x128xf32> to vector<128xf32>
    %6 = vector.shape_cast %5 : vector<128xf32> to vector<128x1xf32>
    %cst_2 = arith.constant 1.000000e-30 : f32
    %7 = vector.broadcast %cst_2 : f32 to vector<128x1xf32>
    %8 = arith.maximumf %6, %7 : vector<128x1xf32>
    %9 = math.rsqrt %8 : vector<128x1xf32>
    %10 = vector.broadcast %9 : vector<128x1xf32> to vector<128x128xf32>
    %11 = arith.mulf %3, %10 : vector<128x128xf32>
    %cst_3 = arith.constant 2.000000e+00 : f32
    %12 = vector.broadcast %cst_3 : f32 to vector<128x128xf32>
    %13 = arith.mulf %11, %12 : vector<128x128xf32>
    %c0_4 = arith.constant 0 : index
    %c0_5 = arith.constant 0 : index
    %14 = vector.load %arg2[%c0_4, %c0_5] : memref<128x128xf32, #tpu.memory_space<vmem>>, vector<128x128xf32>
    %cst_6 = arith.constant dense<0.000000e+00> : vector<128x128xf32>
    %15 = tpu.matmul %13, %14, %cst_6 {dimension_numbers = #tpu.dot_dimension_numbers<[1], [0], [0], [1], [0, 0, 1, 1], [], []>, precision = #tpu.contract_precision<fp32>} : vector<128x128xf32>, vector<128x128xf32>, vector<128x128xf32> -> vector<128x128xf32>
    %cst_7 = arith.constant dense<0xFF800000> : vector<128xf32>
    %16 = vector.multi_reduction <maximumf>, %15, %cst_7 [1] : vector<128x128xf32> to vector<128xf32>
    %17 = vector.shape_cast %16 : vector<128xf32> to vector<128x1xf32>
    %c0_8 = arith.constant 0 : index
    %c0_9 = arith.constant 0 : index
    %18 = vector.load %arg8[%c0_8, %c0_9] : memref<128x1xf32, #tpu.memory_space<vmem>>, vector<128x1xf32>
    %19 = arith.maximumf %18, %17 : vector<128x1xf32>
    %c0_10 = arith.constant 0 : index
    %c0_11 = arith.constant 0 : index
    %20 = vector.load %arg8[%c0_10, %c0_11] : memref<128x1xf32, #tpu.memory_space<vmem>>, vector<128x1xf32>
    %21 = arith.subf %20, %19 : vector<128x1xf32>
    %22 = math.exp %21 : vector<128x1xf32>
    %23 = vector.broadcast %19 : vector<128x1xf32> to vector<128x128xf32>
    %24 = arith.subf %15, %23 : vector<128x128xf32>
    %25 = math.exp %24 : vector<128x128xf32>
    %c0_12 = arith.constant 0 : index
    %c0_13 = arith.constant 0 : index
    %26 = vector.load %arg9[%c0_12, %c0_13] : memref<128x128xf32, #tpu.memory_space<vmem>>, vector<128x128xf32>
    %27 = vector.broadcast %22 : vector<128x1xf32> to vector<128x128xf32>
    %28 = arith.mulf %27, %26 : vector<128x128xf32>
    %c0_14 = arith.constant 0 : index
    %c0_15 = arith.constant 0 : index
    %29 = vector.load %arg4[%c0_14, %c0_15] : memref<128x128xf32, #tpu.memory_space<vmem>>, vector<128x128xf32>
    %cst_16 = arith.constant dense<0.000000e+00> : vector<128x128xf32>
    %30 = tpu.matmul %25, %29, %cst_16 {dimension_numbers = #tpu.dot_dimension_numbers<[1], [0], [0], [1], [0, 0, 1, 1], [], []>, precision = #tpu.contract_precision<fp32>} : vector<128x128xf32>, vector<128x128xf32>, vector<128x128xf32> -> vector<128x128xf32>
    %31 = arith.addf %28, %30 : vector<128x128xf32>
    %c0_17 = arith.constant 0 : index
    %c0_18 = arith.constant 0 : index
    %32 = vector.load %arg9[%c0_17, %c0_18] : memref<128x128xf32, #tpu.memory_space<vmem>>, vector<128x128xf32>
    tpu.vector_store %arg9[%c0_17, %c0_18], %31 {strides = array<i32>} : memref<128x128xf32, #tpu.memory_space<vmem>>, vector<128x128xf32>,
    %c0_19 = arith.constant 0 : index
    %c0_20 = arith.constant 0 : index
    %33 = vector.load %arg8[%c0_19, %c0_20] : memref<128x1xf32, #tpu.memory_space<vmem>>, vector<128x1xf32>
    tpu.vector_store %arg8[%c0_19, %c0_20], %19 {strides = array<i32>} : memref<128x1xf32, #tpu.memory_space<vmem>>, vector<128x1xf32>,
    %c0_i32_21 = arith.constant 0 : i32
    %34 = arith.cmpi eq, %arg0, %c0_i32_21 : i32
    %35 = arith.extui %34 : i1 to i32
    %c0_i32_22 = arith.constant 0 : i32
    %36 = arith.cmpi ne, %35, %c0_i32_22 : i32
    scf.if %36 {
      %cst_23 = arith.constant dense<0.000000e+00> : vector<128x128xf32>
      %37 = tpu.matmul %13, %11, %cst_23 {dimension_numbers = #tpu.dot_dimension_numbers<[1], [1], [0], [0], [0, 0, 1, 0], [], []>, precision = #tpu.contract_precision<fp32>} : vector<128x128xf32>, vector<128x128xf32>, vector<128x128xf32> -> vector<128x128xf32>
      %38 = tpu.iota {dimensions = array<i32: 0>} : vector<128x128xi32>
      %39 = tpu.iota {dimensions = array<i32: 1>} : vector<128x128xi32>
      %40 = arith.cmpi eq, %38, %39 : vector<128x128xi32>
      %cst_24 = arith.constant 0.000000e+00 : f32
      %41 = vector.broadcast %cst_24 : f32 to vector<128x128xf32>
      %42 = arith.select %40, %41, %37 : vector<128x128xi1>, vector<128x128xf32>
      %cst_25 = arith.constant dense<0xFF800000> : vector<128xf32>
      %43 = vector.multi_reduction <maximumf>, %42, %cst_25 [1] : vector<128x128xf32> to vector<128xf32>
      %44 = vector.shape_cast %43 : vector<128xf32> to vector<128x1xf32>
      %c0_26 = arith.constant 0 : index
      %c0_27 = arith.constant 0 : index
      %45 = vector.load %arg8[%c0_26, %c0_27] : memref<128x1xf32, #tpu.memory_space<vmem>>, vector<128x1xf32>
      %46 = arith.maximumf %45, %44 : vector<128x1xf32>
      %c0_28 = arith.constant 0 : index
      %c0_29 = arith.constant 0 : index
      %47 = vector.load %arg9[%c0_28, %c0_29] : memref<128x128xf32, #tpu.memory_space<vmem>>, vector<128x128xf32>
      %c0_30 = arith.constant 0 : index
      %c0_31 = arith.constant 0 : index
      %48 = vector.load %arg8[%c0_30, %c0_31] : memref<128x1xf32, #tpu.memory_space<vmem>>, vector<128x1xf32>
      %49 = arith.subf %48, %46 : vector<128x1xf32>
      %50 = math.exp %49 : vector<128x1xf32>
      %51 = vector.broadcast %50 : vector<128x1xf32> to vector<128x128xf32>
      %52 = arith.mulf %47, %51 : vector<128x128xf32>
      %c0_32 = arith.constant 0 : index
      %c0_33 = arith.constant 0 : index
      %53 = vector.load %arg3[%c0_32, %c0_33] : memref<128x128xf32, #tpu.memory_space<vmem>>, vector<128x128xf32>
      %54 = vector.broadcast %46 : vector<128x1xf32> to vector<128x128xf32>
      %55 = arith.subf %42, %54 : vector<128x128xf32>
      %56 = math.exp %55 : vector<128x128xf32>
      %cst_34 = arith.constant dense<0.000000e+00> : vector<128x128xf32>
      %57 = tpu.matmul %56, %53, %cst_34 {dimension_numbers = #tpu.dot_dimension_numbers<[1], [0], [0], [1], [0, 0, 1, 1], [], []>, precision = #tpu.contract_precision<fp32>} : vector<128x128xf32>, vector<128x128xf32>, vector<128x128xf32> -> vector<128x128xf32>
      %cst_35 = arith.constant dense<0.000000e+00> : vector<128x128xf32>
      %58 = tpu.matmul %42, %53, %cst_35 {dimension_numbers = #tpu.dot_dimension_numbers<[1], [0], [0], [1], [0, 0, 1, 1], [], []>, precision = #tpu.contract_precision<fp32>} : vector<128x128xf32>, vector<128x128xf32>, vector<128x128xf32> -> vector<128x128xf32>
      %59 = arith.addf %57, %52 : vector<128x128xf32>
      %cst_36 = arith.constant 1.000000e-30 : f32
      %60 = vector.broadcast %cst_36 : f32 to vector<128x128xf32>
      %61 = arith.maximumf %59, %60 : vector<128x128xf32>
      %62 = math.log %61 : vector<128x128xf32>
      %63 = vector.broadcast %46 : vector<128x1xf32> to vector<128x128xf32>
      %64 = arith.addf %63, %62 : vector<128x128xf32>
      %c0_37 = arith.constant 0 : index
      %c0_38 = arith.constant 0 : index
      %65 = vector.load %arg5[%c0_37, %c0_38] : memref<1x128xf32, #tpu.memory_space<vmem>>, vector<1x128xf32>
      %66 = vector.broadcast %65 : vector<1x128xf32> to vector<128x128xf32>
      %67 = arith.subf %66, %53 : vector<128x128xf32>
      %cst_39 = arith.constant 1.000000e+00 : f32
      %68 = vector.broadcast %cst_39 : f32 to vector<128x128xf32>
      %69 = arith.maximumf %67, %68 : vector<128x128xf32>
      %70 = arith.divf %58, %69 : vector<128x128xf32>
      %71 = arith.subf %70, %64 : vector<128x128xf32>
      %c0_40 = arith.constant 0 : index
      %c0_41 = arith.constant 0 : index
      %72 = vector.load %arg6[%c0_40, %c0_41] : memref<1x128xf32, #tpu.memory_space<vmem>>, vector<1x128xf32>
      %73 = vector.broadcast %72 : vector<1x128xf32> to vector<128x128xf32>
      %74 = arith.mulf %53, %73 : vector<128x128xf32>
      %75 = arith.mulf %74, %71 : vector<128x128xf32>
      %76 = vector.shape_cast %75 : vector<128x128xf32> to vector<1x128x128xf32>
      %cst_42 = arith.constant dense<0.000000e+00> : vector<1xf32>
      %77 = vector.multi_reduction <add>, %76, %cst_42 [1, 2] : vector<1x128x128xf32> to vector<1xf32>
      %78 = vector.shape_cast %77 : vector<1xf32> to vector<1x1x1xf32>
      %79 = vector.extract %78[0, 0, 0] : f32 from vector<1x1x1xf32>
      %80 = vector.broadcast %79 : f32 to vector<1x1xf32>
      %c0_43 = arith.constant 0 : index
      %c0_44 = arith.constant 0 : index
      %81 = vector.load %arg7[%c0_43, %c0_44] : memref<1x1xf32, #tpu.memory_space<vmem>>, vector<1x1xf32>
      tpu.vector_store %arg7[%c0_43, %c0_44], %80 {strides = array<i32>} : memref<1x1xf32, #tpu.memory_space<vmem>>, vector<1x1xf32>,
    } else {
    }
    return
  }
  func.func @transform_0(%arg0: i32) -> (i32, i32) {
    %c0_i32 = arith.constant 0 : i32
    %c0_i32_0 = arith.constant 0 : i32
    %c0_i32_1 = arith.constant 0 : i32
    return %c0_i32, %c0_i32_0 : i32, i32
  }
  func.func @transform_1(%arg0: i32) -> (i32, i32) {
    %c0_i32 = arith.constant 0 : i32
    %c0_i32_0 = arith.constant 0 : i32
    return %c0_i32, %arg0 : i32, i32
  }
  func.func @transform_2(%arg0: i32) -> (i32, i32) {
    %c0_i32 = arith.constant 0 : i32
    %c0_i32_0 = arith.constant 0 : i32
    %c0_i32_1 = arith.constant 0 : i32
    return %c0_i32, %c0_i32_0 : i32, i32
  }
  func.func @transform_3(%arg0: i32) -> (i32, i32) {
    %c0_i32 = arith.constant 0 : i32
    %c0_i32_0 = arith.constant 0 : i32
    return %arg0, %c0_i32 : i32, i32
  }
  func.func @transform_4(%arg0: i32) -> (i32, i32) {
    %c0_i32 = arith.constant 0 : i32
    %c0_i32_0 = arith.constant 0 : i32
    %c0_i32_1 = arith.constant 0 : i32
    return %c0_i32, %c0_i32_0 : i32, i32
  }
  func.func @transform_5(%arg0: i32) -> (i32, i32) {
    %c0_i32 = arith.constant 0 : i32
    %c0_i32_0 = arith.constant 0 : i32
    %c0_i32_1 = arith.constant 0 : i32
    return %c0_i32, %c0_i32_0 : i32, i32
  }
  func.func @transform_6(%arg0: i32) -> (i32, i32) {
    %c0_i32 = arith.constant 0 : i32
    %c0_i32_0 = arith.constant 0 : i32
    %c0_i32_1 = arith.constant 0 : i32
    return %c0_i32, %c0_i32_0 : i32, i32
  }
}

</mosaic_0001>

<llo_original>
// kernel: tpu_custom_call.1
$region0: #{tpu_custom_call.1}
  #allocation0 [shape = 'u32[]', space=smem, size = 0x4, offset = 0x4, fixed_abs, tag = 'smem constant byte address 0x4 - core index']
  #allocation1 [shape = 'u32[144,128]{1,0:T(1,128)}', space=vmem, size = 0x12000, scoped, tag = 'internal scratch']
  #allocation2 [shape = 'f32[128,1]{1,0:T(8,128)}', space=vmem, size = 0x10000, scoped, tag = 'scratch operand']
  #allocation3 [shape = 'f32[128,128]{1,0:T(8,128)}', space=vmem, size = 0x10000, scoped, tag = 'scratch operand']
  %s0 = inlined_call_operand.hbm [shape: f32[128,128], index: 0, kind: input, shape index: {}]
  %s1 = inlined_call_operand.hbm [shape: f32[128,128], index: 1, kind: input, shape index: {}]
  %s2 = inlined_call_operand.hbm [shape: f32[128,128], index: 2, kind: input, shape index: {}]
  %s3 = inlined_call_operand.hbm [shape: f32[128,128], index: 3, kind: input, shape index: {}]
  %s4 = inlined_call_operand.vmem [shape: f32[1,128], index: 4, kind: input, shape index: {}]
  %s5 = inlined_call_operand.vmem [shape: f32[1,128], index: 5, kind: input, shape index: {}]
  %s6 = inlined_call_operand.hbm [shape: f32[1,1], index: 6, kind: output, shape index: {}]
  %s7 = sld [smem:[#allocation0]]
  $region58: #{tpu_custom_call.1} parent=0
    _
  %s9 = ssub.s32 1, %s7
  %s10 = scalar_select 0, %s9, %s7
  $region1: #{tpu_custom_call.1} parent=0
    #allocation4 [shape = 'u8[65536]{0}', space=vmem, size = 0x10000, scoped, tag = 'input window, operand 0, single buffered']
    #allocation5 [shape = 's32[1]{0}', space=sflag, size = 0x4, scoped, tag = 'scoped memory for tpu_custom_call.1']
    #allocation6 [shape = 's32[1]{0}', space=sflag, size = 0x4, scoped, tag = 'scoped memory for tpu_custom_call.1']
    #allocation7 [shape = 'u8[65536]{0}', space=vmem, size = 0x10000, scoped, tag = 'input window, operand 1, single buffered']
    #allocation8 [shape = 's32[1]{0}', space=sflag, size = 0x4, scoped, tag = 'scoped memory for tpu_custom_call.1']
    #allocation9 [shape = 'u8[65536]{0}', space=vmem, size = 0x10000, scoped, tag = 'input window, operand 2, single buffered']
    #allocation10 [shape = 'u8[65536]{0}', space=vmem, size = 0x10000, scoped, tag = 'input window, operand 3, single buffered']
    #allocation11 [shape = 's32[1]{0}', space=sflag, size = 0x4, scoped, tag = 'scoped memory for tpu_custom_call.1']
    #allocation12 [shape = 'u8[512]{0}', space=vmem, size = 0x400, scoped, tag = 'output window, operand 0, single buffered']
    %11 = vsyncpa [#allocation5], 0
    %12 = vsyncpa [#allocation8], 0
    %13 = vsyncpa [#allocation11], 0
    %14 = vsyncpa [#allocation6], 0
    // Predicated region
    $region2: #{tpu_custom_call.1} parent=1 // pred_check
      _
    $region3: #{tpu_custom_call.1} parent=1 // pred_check_branch
      %16 = sbr.rel (0) target = $region5
    $region4: #{tpu_custom_call.1} parent=1 // pred_region
      %s18 = ssub.s32 2048, 2048
      %19 = vsyncadd [#allocation5], %s18
      %s20 = sshll.u32 [#allocation4], 4
      %s21 = int_to_ptr.vmem [resolvable:$true] %s20
      %26 = dma.hbm_to_vmem [thread:$0]  %s0, 2048, %s21, [#allocation5], 128, 128, 8
    $region5: #{tpu_custom_call.1} parent=1 // pred_fallthru
      _
    // Predicated region
    $region6: #{tpu_custom_call.1} parent=1 // pred_check
      _
    $region7: #{tpu_custom_call.1} parent=1 // pred_check_branch
      %28 = sbr.rel (0) target = $region9
    $region8: #{tpu_custom_call.1} parent=1 // pred_region
      %s30 = ssub.s32 2048, 2048
      %31 = vsyncadd [#allocation8], %s30
      %s32 = sshll.u32 [#allocation7], 4
      %s33 = int_to_ptr.vmem [resolvable:$true] %s32
      %38 = dma.hbm_to_vmem [thread:$0]  %s1, 2048, %s33, [#allocation8], 128, 128, 8
    $region9: #{tpu_custom_call.1} parent=1 // pred_fallthru
      _
    // Predicated region
    $region10: #{tpu_custom_call.1} parent=1 // pred_check
      _
    $region11: #{tpu_custom_call.1} parent=1 // pred_check_branch
      %40 = sbr.rel (0) target = $region13
    $region12: #{tpu_custom_call.1} parent=1 // pred_region
      %s42 = ssub.s32 2048, 2048
      %43 = vsyncadd [#allocation8], %s42
      %s44 = sshll.u32 [#allocation9], 4
      %s45 = int_to_ptr.vmem [resolvable:$true] %s44
      %50 = dma.hbm_to_vmem [thread:$0]  %s2, 2048, %s45, [#allocation8], 128, 128, 8
    $region13: #{tpu_custom_call.1} parent=1 // pred_fallthru
      _
    // Predicated region
    $region14: #{tpu_custom_call.1} parent=1 // pred_check
      _
    $region15: #{tpu_custom_call.1} parent=1 // pred_check_branch
      %52 = sbr.rel (0) target = $region17
    $region16: #{tpu_custom_call.1} parent=1 // pred_region
      %s54 = ssub.s32 2048, 2048
      %55 = vsyncadd [#allocation11], %s54
      %s56 = sshll.u32 [#allocation10], 4
      %s57 = int_to_ptr.vmem [resolvable:$true] %s56
      %62 = dma.hbm_to_vmem [thread:$0]  %s3, 2048, %s57, [#allocation11], 128, 128, 8
    $region17: #{tpu_custom_call.1} parent=1 // pred_fallthru
      _
    // Predicated region
    $region18: #{tpu_custom_call.1} parent=1 // pred_check
      _
    $region19: #{tpu_custom_call.1} parent=1 // pred_check_branch
      %64 = sbr.rel (0) target = $region21
    $region20: #{tpu_custom_call.1} parent=1 // pred_region
      _
    $region21: #{tpu_custom_call.1} parent=1 // pred_fallthru
      _
    // Predicated region
    $region22: #{tpu_custom_call.1} parent=1 // pred_check
      _
    $region23: #{tpu_custom_call.1} parent=1 // pred_check_branch
      %66 = sbr.rel (0) target = $region25
    $region24: #{tpu_custom_call.1} parent=1 // pred_region
      _
    $region25: #{tpu_custom_call.1} parent=1 // pred_fallthru
      _
    // Predicated region
    $region26: #{tpu_custom_call.1} parent=1 // pred_check
      _
    $region27: #{tpu_custom_call.1} parent=1 // pred_check_branch
      %68 = sbr.rel (0) target = $region29
    $region28: #{tpu_custom_call.1} parent=1 // pred_region
      %69 = dma.done [#allocation5], 2048
    $region29: #{tpu_custom_call.1} parent=1 // pred_fallthru
      _
    // Predicated region
    $region30: #{tpu_custom_call.1} parent=1 // pred_check
      _
    $region31: #{tpu_custom_call.1} parent=1 // pred_check_branch
      %71 = sbr.rel (0) target = $region33
    $region32: #{tpu_custom_call.1} parent=1 // pred_region
      %72 = dma.done [#allocation8], 2048
    $region33: #{tpu_custom_call.1} parent=1 // pred_fallthru
      _
    // Predicated region
    $region34: #{tpu_custom_call.1} parent=1 // pred_check
      _
    $region35: #{tpu_custom_call.1} parent=1 // pred_check_branch
      %74 = sbr.rel (0) target = $region37
    $region36: #{tpu_custom_call.1} parent=1 // pred_region
      %75 = dma.done [#allocation8], 2048
    $region37: #{tpu_custom_call.1} parent=1 // pred_fallthru
      _
    // Predicated region
    $region38: #{tpu_custom_call.1} parent=1 // pred_check
      _
    $region39: #{tpu_custom_call.1} parent=1 // pred_check_branch
      %77 = sbr.rel (0) target = $region41
    $region40: #{tpu_custom_call.1} parent=1 // pred_region
      %78 = dma.done [#allocation11], 2048
    $region41: #{tpu_custom_call.1} parent=1 // pred_fallthru
      _
    %p79 = scmp.eq.s32.totalorder 0, 0
    // Predicated region
    $region42: #{tpu_custom_call.1} parent=1 // pred_check
      %p80 = pneg %p79
    $region43: #{tpu_custom_call.1} parent=1 // pred_check_branch
      %82 = sbr.rel (%p80) target = $region45
    $region44: #{tpu_custom_call.1} parent=1 // pred_region
      %vm83 = vcmask 7168
      %84 = vst.msk [vmem:[#allocation2] sm:$0xff] %vm83, 0.0
      %85 = vst.msk [vmem:[#allocation2 + $0x8] sm:$0xff] %vm83, 0.0
      %86 = vst.msk [vmem:[#allocation2 + $0x10] sm:$0xff] %vm83, 0.0
      %87 = vst.msk [vmem:[#allocation2 + $0x18] sm:$0xff] %vm83, 0.0
      %88 = vst.msk [vmem:[#allocation2 + $0x20] sm:$0xff] %vm83, 0.0
      %89 = vst.msk [vmem:[#allocation2 + $0x28] sm:$0xff] %vm83, 0.0
      %90 = vst.msk [vmem:[#allocation2 + $0x30] sm:$0xff] %vm83, 0.0
      %91 = vst.msk [vmem:[#allocation2 + $0x38] sm:$0xff] %vm83, 0.0
      %92 = vst.msk [vmem:[#allocation2 + $0x40] sm:$0xff] %vm83, 0.0
      %93 = vst.msk [vmem:[#allocation2 + $0x48] sm:$0xff] %vm83, 0.0
      %94 = vst.msk [vmem:[#allocation2 + $0x50] sm:$0xff] %vm83, 0.0
      %95 = vst.msk [vmem:[#allocation2 + $0x58] sm:$0xff] %vm83, 0.0
      %96 = vst.msk [vmem:[#allocation2 + $0x60] sm:$0xff] %vm83, 0.0
      %97 = vst.msk [vmem:[#allocation2 + $0x68] sm:$0xff] %vm83, 0.0
      %98 = vst.msk [vmem:[#allocation2 + $0x70] sm:$0xff] %vm83, 0.0
      %99 = vst.msk [vmem:[#allocation2 + $0x78] sm:$0xff] %vm83, 0.0
      %100 = vst [vmem:[#allocation3] sm:$0xff] 0.0
      %101 = vst [vmem:[#allocation3 + $0x8] sm:$0xff] 0.0
      %102 = vst [vmem:[#allocation3 + $0x10] sm:$0xff] 0.0
      %103 = vst [vmem:[#allocation3 + $0x18] sm:$0xff] 0.0
      %104 = vst [vmem:[#allocation3 + $0x20] sm:$0xff] 0.0
      %105 = vst [vmem:[#allocation3 + $0x28] sm:$0xff] 0.0
      %106 = vst [vmem:[#allocation3 + $0x30] sm:$0xff] 0.0
      %107 = vst [vmem:[#allocation3 + $0x38] sm:$0xff] 0.0
      %108 = vst [vmem:[#allocation3 + $0x40] sm:$0xff] 0.0
      %109 = vst [vmem:[#allocation3 + $0x48] sm:$0xff] 0.0
      %110 = vst [vmem:[#allocation3 + $0x50] sm:$0xff] 0.0
      %111 = vst [vmem:[#allocation3 + $0x58] sm:$0xff] 0.0
      %112 = vst [vmem:[#allocation3 + $0x60] sm:$0xff] 0.0
      %113 = vst [vmem:[#allocation3 + $0x68] sm:$0xff] 0.0
      %114 = vst [vmem:[#allocation3 + $0x70] sm:$0xff] 0.0
      %115 = vst [vmem:[#allocation3 + $0x78] sm:$0xff] 0.0
    $region45: #{tpu_custom_call.1} parent=1 // pred_fallthru
      _
    %v116 = vld [vmem:[#allocation4] sm:$0xff]
    %v117 = vld [vmem:[#allocation4 + $0x8] sm:$0xff]
    %v118 = vld [vmem:[#allocation4 + $0x10] sm:$0xff]
    %v119 = vld [vmem:[#allocation4 + $0x18] sm:$0xff]
    %v120 = vld [vmem:[#allocation4 + $0x20] sm:$0xff]
    %v121 = vld [vmem:[#allocation4 + $0x28] sm:$0xff]
    %v122 = vld [vmem:[#allocation4 + $0x30] sm:$0xff]
    %v123 = vld [vmem:[#allocation4 + $0x38] sm:$0xff]
    %v124 = vld [vmem:[#allocation4 + $0x40] sm:$0xff]
    %v125 = vld [vmem:[#allocation4 + $0x48] sm:$0xff]
    %v126 = vld [vmem:[#allocation4 + $0x50] sm:$0xff]
    %v127 = vld [vmem:[#allocation4 + $0x58] sm:$0xff]
    %v128 = vld [vmem:[#allocation4 + $0x60] sm:$0xff]
    %v129 = vld [vmem:[#allocation4 + $0x68] sm:$0xff]
    %v130 = vld [vmem:[#allocation4 + $0x70] sm:$0xff]
    %v131 = vld [vmem:[#allocation4 + $0x78] sm:$0xff]
    %v132 = vmul.f32 %v116, %v116
    %v133 = vmul.f32 %v117, %v117
    %v134 = vmul.f32 %v118, %v118
    %v135 = vmul.f32 %v119, %v119
    %v136 = vmul.f32 %v120, %v120
    %v137 = vmul.f32 %v121, %v121
    %v138 = vmul.f32 %v122, %v122
    %v139 = vmul.f32 %v123, %v123
    %v140 = vmul.f32 %v124, %v124
    %v141 = vmul.f32 %v125, %v125
    %v142 = vmul.f32 %v126, %v126
    %v143 = vmul.f32 %v127, %v127
    %v144 = vmul.f32 %v128, %v128
    %v145 = vmul.f32 %v129, %v129
    %v146 = vmul.f32 %v130, %v130
    %v147 = vmul.f32 %v131, %v131
    %148 = vadd.xlane.f32.xlu0 %v132
    %v149 = vpop.xlane.xlu0 %148
    %150 = vadd.xlane.f32.xlu0 %v133
    %v151 = vpop.xlane.xlu0 %150
    %152 = vadd.xlane.f32.xlu0 %v134
    %v153 = vpop.xlane.xlu0 %152
    %154 = vadd.xlane.f32.xlu0 %v135
    %v155 = vpop.xlane.xlu0 %154
    %156 = vadd.xlane.f32.xlu0 %v136
    %v157 = vpop.xlane.xlu0 %156
    %158 = vadd.xlane.f32.xlu0 %v137
    %v159 = vpop.xlane.xlu0 %158
    %160 = vadd.xlane.f32.xlu0 %v138
    %v161 = vpop.xlane.xlu0 %160
    %162 = vadd.xlane.f32.xlu0 %v139
    %v163 = vpop.xlane.xlu0 %162
    %164 = vadd.xlane.f32.xlu0 %v140
    %v165 = vpop.xlane.xlu0 %164
    %166 = vadd.xlane.f32.xlu0 %v141
    %v167 = vpop.xlane.xlu0 %166
    %168 = vadd.xlane.f32.xlu0 %v142
    %v169 = vpop.xlane.xlu0 %168
    %170 = vadd.xlane.f32.xlu0 %v143
    %v171 = vpop.xlane.xlu0 %170
    %172 = vadd.xlane.f32.xlu0 %v144
    %v173 = vpop.xlane.xlu0 %172
    %174 = vadd.xlane.f32.xlu0 %v145
    %v175 = vpop.xlane.xlu0 %174
    %176 = vadd.xlane.f32.xlu0 %v146
    %v177 = vpop.xlane.xlu0 %176
    %178 = vadd.xlane.f32.xlu0 %v147
    %v179 = vpop.xlane.xlu0 %178
    %v180 = vmax.f32 %v149, 1e-30
    %v181 = vmax.f32 %v151, 1e-30
    %v182 = vmax.f32 %v153, 1e-30
    %v183 = vmax.f32 %v155, 1e-30
    %v184 = vmax.f32 %v157, 1e-30
    %v185 = vmax.f32 %v159, 1e-30
    %v186 = vmax.f32 %v161, 1e-30
    %v187 = vmax.f32 %v163, 1e-30
    %v188 = vmax.f32 %v165, 1e-30
    %v189 = vmax.f32 %v167, 1e-30
    %v190 = vmax.f32 %v169, 1e-30
    %v191 = vmax.f32 %v171, 1e-30
    %v192 = vmax.f32 %v173, 1e-30
    %v193 = vmax.f32 %v175, 1e-30
    %v194 = vmax.f32 %v177, 1e-30
    %v195 = vmax.f32 %v179, 1e-30
    %v196 = vrsqrt.pop %v180
    %v197 = vrsqrt.pop %v181
    %v198 = vrsqrt.pop %v182
    %v199 = vrsqrt.pop %v183
    %v200 = vrsqrt.pop %v184
    %v201 = vrsqrt.pop %v185
    %v202 = vrsqrt.pop %v186
    %v203 = vrsqrt.pop %v187
    %v204 = vrsqrt.pop %v188
    %v205 = vrsqrt.pop %v189
    %v206 = vrsqrt.pop %v190
    %v207 = vrsqrt.pop %v191
    %v208 = vrsqrt.pop %v192
    %v209 = vrsqrt.pop %v193
    %v210 = vrsqrt.pop %v194
    %v211 = vrsqrt.pop %v195
    %v212 = vmul.f32 %v116, %v196
    %v213 = vmul.f32 %v117, %v197
    %v214 = vmul.f32 %v118, %v198
    %v215 = vmul.f32 %v119, %v199
    %v216 = vmul.f32 %v120, %v200
    %v217 = vmul.f32 %v121, %v201
    %v218 = vmul.f32 %v122, %v202
    %v219 = vmul.f32 %v123, %v203
    %v220 = vmul.f32 %v124, %v204
    %v221 = vmul.f32 %v125, %v205
    %v222 = vmul.f32 %v126, %v206
    %v223 = vmul.f32 %v127, %v207
    %v224 = vmul.f32 %v128, %v208
    %v225 = vmul.f32 %v129, %v209
    %v226 = vmul.f32 %v130, %v210
    %v227 = vmul.f32 %v131, %v211
    %v228 = vmul.f32 %v212, 2.0
    %v229 = vmul.f32 %v213, 2.0
    %v230 = vmul.f32 %v214, 2.0
    %v231 = vmul.f32 %v215, 2.0
    %v232 = vmul.f32 %v216, 2.0
    %v233 = vmul.f32 %v217, 2.0
    %v234 = vmul.f32 %v218, 2.0
    %v235 = vmul.f32 %v219, 2.0
    %v236 = vmul.f32 %v220, 2.0
    %v237 = vmul.f32 %v221, 2.0
    %v238 = vmul.f32 %v222, 2.0
    %v239 = vmul.f32 %v223, 2.0
    %v240 = vmul.f32 %v224, 2.0
    %v241 = vmul.f32 %v225, 2.0
    %v242 = vmul.f32 %v226, 2.0
    %v243 = vmul.f32 %v227, 2.0
    %v244 = vld [vmem:[#allocation7] sm:$0xff]
    %v245 = vld [vmem:[#allocation7 + $0x8] sm:$0xff]
    %v246 = vld [vmem:[#allocation7 + $0x10] sm:$0xff]
    %v247 = vld [vmem:[#allocation7 + $0x18] sm:$0xff]
    %v248 = vld [vmem:[#allocation7 + $0x20] sm:$0xff]
    %v249 = vld [vmem:[#allocation7 + $0x28] sm:$0xff]
    %v250 = vld [vmem:[#allocation7 + $0x30] sm:$0xff]
    %v251 = vld [vmem:[#allocation7 + $0x38] sm:$0xff]
    %v252 = vld [vmem:[#allocation7 + $0x40] sm:$0xff]
    %v253 = vld [vmem:[#allocation7 + $0x48] sm:$0xff]
    %v254 = vld [vmem:[#allocation7 + $0x50] sm:$0xff]
    %v255 = vld [vmem:[#allocation7 + $0x58] sm:$0xff]
    %v256 = vld [vmem:[#allocation7 + $0x60] sm:$0xff]
    %v257 = vld [vmem:[#allocation7 + $0x68] sm:$0xff]
    %v258 = vld [vmem:[#allocation7 + $0x70] sm:$0xff]
    %v259 = vld [vmem:[#allocation7 + $0x78] sm:$0xff]
    %260 = vmatprep.subr.mxu0 0.0
    %v261 = vand.u32 %v244, 4294901760
    %262 = vmatpush1.msra.mxu0 %v261
    %263 = vmatprep.subr.mxu0 0.0
    %v264 = vand.u32 %v245, 4294901760
    %265 = vmatpush1.msra.mxu0 %v264
    %266 = vmatprep.subr.mxu0 0.0
    %v267 = vand.u32 %v246, 4294901760
    %268 = vmatpush1.msra.mxu0 %v267
    %269 = vmatprep.subr.mxu0 0.0
    %v270 = vand.u32 %v247, 4294901760
    %271 = vmatpush1.msra.mxu0 %v270
    %272 = vmatprep.subr.mxu0 0.0
    %v273 = vand.u32 %v248, 4294901760
    %274 = vmatpush1.msra.mxu0 %v273
    %275 = vmatprep.subr.mxu0 0.0
    %v276 = vand.u32 %v249, 4294901760
    %277 = vmatpush1.msra.mxu0 %v276
    %278 = vmatprep.subr.mxu0 0.0
    %v279 = vand.u32 %v250, 4294901760
    %280 = vmatpush1.msra.mxu0 %v279
    %281 = vmatprep.subr.mxu0 0.0
    %v282 = vand.u32 %v251, 4294901760
    %283 = vmatpush1.msra.mxu0 %v282
    %284 = vmatprep.subr.mxu0 0.0
    %v285 = vand.u32 %v252, 4294901760
    %286 = vmatpush1.msra.mxu0 %v285
    %287 = vmatprep.subr.mxu0 0.0
    %v288 = vand.u32 %v253, 4294901760
    %289 = vmatpush1.msra.mxu0 %v288
    %290 = vmatprep.subr.mxu0 0.0
    %v291 = vand.u32 %v254, 4294901760
    %292 = vmatpush1.msra.mxu0 %v291
    %293 = vmatprep.subr.mxu0 0.0
    %v294 = vand.u32 %v255, 4294901760
    %295 = vmatpush1.msra.mxu0 %v294
    %296 = vmatprep.subr.mxu0 0.0
    %v297 = vand.u32 %v256, 4294901760
    %298 = vmatpush1.msra.mxu0 %v297
    %299 = vmatprep.subr.mxu0 0.0
    %v300 = vand.u32 %v257, 4294901760
    %301 = vmatpush1.msra.mxu0 %v300
    %302 = vmatprep.subr.mxu0 0.0
    %v303 = vand.u32 %v258, 4294901760
    %304 = vmatpush1.msra.mxu0 %v303
    %305 = vmatprep.subr.mxu0 0.0
    %v306 = vand.u32 %v259, 4294901760
    %307 = vmatpush1.msra.mxu0 %v306
    %308 = vmatprep.subr.mxu0 0.0
    %309 = vmatpush1.msra.mxu0 0.0
    %310 = vmatprep.subr.mxu0 0.0
    %311 = vmatpush1.msra.mxu0 0.0
    %312 = vmatprep.subr.mxu0 0.0
    %313 = vmatpush1.msra.mxu0 0.0
    %314 = vmatprep.subr.mxu0 0.0
    %315 = vmatpush1.msra.mxu0 0.0
    %316 = vmatprep.subr.mxu0 0.0
    %317 = vmatpush1.msra.mxu0 0.0
    %318 = vmatprep.subr.mxu0 0.0
    %319 = vmatpush1.msra.mxu0 0.0
    %320 = vmatprep.subr.mxu0 0.0
    %321 = vmatpush1.msra.mxu0 0.0
    %322 = vmatprep.subr.mxu0 0.0
    %323 = vmatpush1.msra.mxu0 0.0
    %324 = vmatprep.subr.mxu0 0.0
    %325 = vmatpush1.msra.mxu0 0.0
    %326 = vmatprep.subr.mxu0 0.0
    %327 = vmatpush1.msra.mxu0 0.0
    %328 = vmatprep.subr.mxu0 0.0
    %329 = vmatpush1.msra.mxu0 0.0
    %330 = vmatprep.subr.mxu0 0.0
    %331 = vmatpush1.msra.mxu0 0.0
    %332 = vmatprep.subr.mxu0 0.0
    %333 = vmatpush1.msra.mxu0 0.0
    %334 = vmatprep.subr.mxu0 0.0
    %335 = vmatpush1.msra.mxu0 0.0
    %336 = vmatprep.subr.mxu0 0.0
    %337 = vmatpush1.msra.mxu0 0.0
    %338 = vmatprep.subr.mxu0 0.0
    %339 = vmatpush1.msra.mxu0 0.0
    %340 = vmatprep.mubr.f32.mxu0 0.0
    %v341 = vand.u32 %v228, 4294901760
    %v342 = vsub.f32 %v228, %v341
    %v343 = vand.u32 %v342, 4294901760
    %v344 = vsub.f32 %v342, %v343
    %v345 = vand.u32 %v344, 4294901760
    %346 = vmatmul.mubr.f32.gmra.mrb[0].mxu0 %v345
    %v347 = vpop.f32.mrb[0].mxu0
    %v348 = vadd.f32 0.0, %v347
    %v349 = vpop.f32.mrb[0].mxu0
    %350 = vmatprep.mubr.f32.mxu0 0.0
    %v351 = vand.u32 %v229, 4294901760
    %v352 = vsub.f32 %v229, %v351
    %v353 = vand.u32 %v352, 4294901760
    %v354 = vsub.f32 %v352, %v353
    %v355 = vand.u32 %v354, 4294901760
    %356 = vmatmul.mubr.f32.gmra.mrb[0].mxu0 %v355
    %v357 = vpop.f32.mrb[0].mxu0
    %v358 = vadd.f32 0.0, %v357
    %v359 = vpop.f32.mrb[0].mxu0
    %360 = vmatprep.mubr.f32.mxu0 0.0
    %v361 = vand.u32 %v230, 4294901760
    %v362 = vsub.f32 %v230, %v361
    %v363 = vand.u32 %v362, 4294901760
    %v364 = vsub.f32 %v362, %v363
    %v365 = vand.u32 %v364, 4294901760
    %366 = vmatmul.mubr.f32.gmra.mrb[0].mxu0 %v365
    %v367 = vpop.f32.mrb[0].mxu0
    %v368 = vadd.f32 0.0, %v367
    %v369 = vpop.f32.mrb[0].mxu0
    %370 = vmatprep.mubr.f32.mxu0 0.0
    %v371 = vand.u32 %v231, 4294901760
    %v372 = vsub.f32 %v231, %v371
    %v373 = vand.u32 %v372, 4294901760
    %v374 = vsub.f32 %v372, %v373
    %v375 = vand.u32 %v374, 4294901760
    %376 = vmatmul.mubr.f32.gmra.mrb[0].mxu0 %v375
    %v377 = vpop.f32.mrb[0].mxu0
    %v378 = vadd.f32 0.0, %v377
    %v379 = vpop.f32.mrb[0].mxu0
    %380 = vmatprep.mubr.f32.mxu0 0.0
    %v381 = vand.u32 %v232, 4294901760
    %v382 = vsub.f32 %v232, %v381
    %v383 = vand.u32 %v382, 4294901760
    %v384 = vsub.f32 %v382, %v383
    %v385 = vand.u32 %v384, 4294901760
    %386 = vmatmul.mubr.f32.gmra.mrb[0].mxu0 %v385
    %v387 = vpop.f32.mrb[0].mxu0
    %v388 = vadd.f32 0.0, %v387
    %v389 = vpop.f32.mrb[0].mxu0
    %390 = vmatprep.mubr.f32.mxu0 0.0
    %v391 = vand.u32 %v233, 4294901760
    %v392 = vsub.f32 %v233, %v391
    %v393 = vand.u32 %v392, 4294901760
    %v394 = vsub.f32 %v392, %v393
    %v395 = vand.u32 %v394, 4294901760
    %396 = vmatmul.mubr.f32.gmra.mrb[0].mxu0 %v395
    %v397 = vpop.f32.mrb[0].mxu0
    %v398 = vadd.f32 0.0, %v397
    %v399 = vpop.f32.mrb[0].mxu0
    %400 = vmatprep.mubr.f32.mxu0 0.0
    %v401 = vand.u32 %v234, 4294901760
    %v402 = vsub.f32 %v234, %v401
    %v403 = vand.u32 %v402, 4294901760
    %v404 = vsub.f32 %v402, %v403
    %v405 = vand.u32 %v404, 4294901760
    %406 = vmatmul.mubr.f32.gmra.mrb[0].mxu0 %v405
    %v407 = vpop.f32.mrb[0].mxu0
    %v408 = vadd.f32 0.0, %v407
    %v409 = vpop.f32.mrb[0].mxu0
    %410 = vmatprep.mubr.f32.mxu0 0.0
    %v411 = vand.u32 %v235, 4294901760
    %v412 = vsub.f32 %v235, %v411
    %v413 = vand.u32 %v412, 4294901760
    %v414 = vsub.f32 %v412, %v413
    %v415 = vand.u32 %v414, 4294901760
    %416 = vmatmul.mubr.f32.gmra.mrb[0].mxu0 %v415
    %v417 = vpop.f32.mrb[0].mxu0
    %v418 = vadd.f32 0.0, %v417
    %v419 = vpop.f32.mrb[0].mxu0
    %420 = vmatprep.mubr.f32.mxu0 0.0
    %v421 = vand.u32 %v236, 4294901760
    %v422 = vsub.f32 %v236, %v421
    %v423 = vand.u32 %v422, 4294901760
    %v424 = vsub.f32 %v422, %v423
    %v425 = vand.u32 %v424, 4294901760
    %426 = vmatmul.mubr.f32.gmra.mrb[0].mxu0 %v425
    %v427 = vpop.f32.mrb[0].mxu0
    %v428 = vadd.f32 0.0, %v427
    %v429 = vpop.f32.mrb[0].mxu0
    %430 = vmatprep.mubr.f32.mxu0 0.0
    %v431 = vand.u32 %v237, 4294901760
    %v432 = vsub.f32 %v237, %v431
    %v433 = vand.u32 %v432, 4294901760
    %v434 = vsub.f32 %v432, %v433
    %v435 = vand.u32 %v434, 4294901760
    %436 = vmatmul.mubr.f32.gmra.mrb[0].mxu0 %v435
    %v437 = vpop.f32.mrb[0].mxu0
    %v438 = vadd.f32 0.0, %v437
    %v439 = vpop.f32.mrb[0].mxu0
    %440 = vmatprep.mubr.f32.mxu0 0.0
    %v441 = vand.u32 %v238, 4294901760
    %v442 = vsub.f32 %v238, %v441
    %v443 = vand.u32 %v442, 4294901760
    %v444 = vsub.f32 %v442, %v443
    %v445 = vand.u32 %v444, 4294901760
    %446 = vmatmul.mubr.f32.gmra.mrb[0].mxu0 %v445
    %v447 = vpop.f32.mrb[0].mxu0
    %v448 = vadd.f32 0.0, %v447
    %v449 = vpop.f32.mrb[0].mxu0
    %450 = vmatprep.mubr.f32.mxu0 0.0
    %v451 = vand.u32 %v239, 4294901760
    %v452 = vsub.f32 %v239, %v451
    %v453 = vand.u32 %v452, 4294901760
    %v454 = vsub.f32 %v452, %v453
    %v455 = vand.u32 %v454, 4294901760
    %456 = vmatmul.mubr.f32.gmra.mrb[0].mxu0 %v455
    %v457 = vpop.f32.mrb[0].mxu0
    %v458 = vadd.f32 0.0, %v457
    %v459 = vpop.f32.mrb[0].mxu0
    %460 = vmatprep.mubr.f32.mxu0 0.0
    %v461 = vand.u32 %v240, 4294901760
    %v462 = vsub.f32 %v240, %v461
    %v463 = vand.u32 %v462, 4294901760
    %v464 = vsub.f32 %v462, %v463
    %v465 = vand.u32 %v464, 4294901760
    %466 = vmatmul.mubr.f32.gmra.mrb[0].mxu0 %v465
    %v467 = vpop.f32.mrb[0].mxu0
    %v468 = vadd.f32 0.0, %v467
    %v469 = vpop.f32.mrb[0].mxu0
    %470 = vmatprep.mubr.f32.mxu0 0.0
    %v471 = vand.u32 %v241, 4294901760
    %v472 = vsub.f32 %v241, %v471
    %v473 = vand.u32 %v472, 4294901760
    %v474 = vsub.f32 %v472, %v473
    %v475 = vand.u32 %v474, 4294901760
    %476 = vmatmul.mubr.f32.gmra.mrb[0].mxu0 %v475
    %v477 = vpop.f32.mrb[0].mxu0
    %v478 = vadd.f32 0.0, %v477
    %v479 = vpop.f32.mrb[0].mxu0
    %480 = vmatprep.mubr.f32.mxu0 0.0
    %v481 = vand.u32 %v242, 4294901760
    %v482 = vsub.f32 %v242, %v481
    %v483 = vand.u32 %v482, 4294901760
    %v484 = vsub.f32 %v482, %v483
    %v485 = vand.u32 %v484, 4294901760
    %486 = vmatmul.mubr.f32.gmra.mrb[0].mxu0 %v485
    %v487 = vpop.f32.mrb[0].mxu0
    %v488 = vadd.f32 0.0, %v487
    %v489 = vpop.f32.mrb[0].mxu0
    %490 = vmatprep.mubr.f32.mxu0 0.0
    %v491 = vand.u32 %v243, 4294901760
    %v492 = vsub.f32 %v243, %v491
    %v493 = vand.u32 %v492, 4294901760
    %v494 = vsub.f32 %v492, %v493
    %v495 = vand.u32 %v494, 4294901760
    %496 = vmatmul.mubr.f32.gmra.mrb[0].mxu0 %v495
    %v497 = vpop.f32.mrb[0].mxu0
    %v498 = vadd.f32 0.0, %v497
    %v499 = vpop.f32.mrb[0].mxu0
    %500 = vdwg.mxu0
    %501 = vmatprep.subr.mxu0 0.0
    %v502 = vand.u32 %v244, 4294901760
    %v503 = vsub.f32 %v244, %v502
    %v504 = vand.u32 %v503, 4294901760
    %v505 = vsub.f32 %v503, %v504
    %v506 = vand.u32 %v505, 4294901760
    %507 = vmatpush1.msra.mxu0 %v506
    %508 = vmatprep.subr.mxu0 0.0
    %v509 = vand.u32 %v245, 4294901760
    %v510 = vsub.f32 %v245, %v509
    %v511 = vand.u32 %v510, 4294901760
    %v512 = vsub.f32 %v510, %v511
    %v513 = vand.u32 %v512, 4294901760
    %514 = vmatpush1.msra.mxu0 %v513
    %515 = vmatprep.subr.mxu0 0.0
    %v516 = vand.u32 %v246, 4294901760
    %v517 = vsub.f32 %v246, %v516
    %v518 = vand.u32 %v517, 4294901760
    %v519 = vsub.f32 %v517, %v518
    %v520 = vand.u32 %v519, 4294901760
    %521 = vmatpush1.msra.mxu0 %v520
    %522 = vmatprep.subr.mxu0 0.0
    %v523 = vand.u32 %v247, 4294901760
    %v524 = vsub.f32 %v247, %v523
    %v525 = vand.u32 %v524, 4294901760
    %v526 = vsub.f32 %v524, %v525
    %v527 = vand.u32 %v526, 4294901760
    %528 = vmatpush1.msra.mxu0 %v527
    %529 = vmatprep.subr.mxu0 0.0
    %v530 = vand.u32 %v248, 4294901760
    %v531 = vsub.f32 %v248, %v530
    %v532 = vand.u32 %v531, 4294901760
    %v533 = vsub.f32 %v531, %v532
    %v534 = vand.u32 %v533, 4294901760
    %535 = vmatpush1.msra.mxu0 %v534
    %536 = vmatprep.subr.mxu0 0.0
    %v537 = vand.u32 %v249, 4294901760
    %v538 = vsub.f32 %v249, %v537
    %v539 = vand.u32 %v538, 4294901760
    %v540 = vsub.f32 %v538, %v539
    %v541 = vand.u32 %v540, 4294901760
    %542 = vmatpush1.msra.mxu0 %v541
    %543 = vmatprep.subr.mxu0 0.0
    %v544 = vand.u32 %v250, 4294901760
    %v545 = vsub.f32 %v250, %v544
    %v546 = vand.u32 %v545, 4294901760
    %v547 = vsub.f32 %v545, %v546
    %v548 = vand.u32 %v547, 4294901760
    %549 = vmatpush1.msra.mxu0 %v548
    %550 = vmatprep.subr.mxu0 0.0
    %v551 = vand.u32 %v251, 4294901760
    %v552 = vsub.f32 %v251, %v551
    %v553 = vand.u32 %v552, 4294901760
    %v554 = vsub.f32 %v552, %v553
    %v555 = vand.u32 %v554, 4294901760
    %556 = vmatpush1.msra.mxu0 %v555
    %557 = vmatprep.subr.mxu0 0.0
    %v558 = vand.u32 %v252, 4294901760
    %v559 = vsub.f32 %v252, %v558
    %v560 = vand.u32 %v559, 4294901760
    %v561 = vsub.f32 %v559, %v560
    %v562 = vand.u32 %v561, 4294901760
    %563 = vmatpush1.msra.mxu0 %v562
    %564 = vmatprep.subr.mxu0 0.0
    %v565 = vand.u32 %v253, 4294901760
    %v566 = vsub.f32 %v253, %v565
    %v567 = vand.u32 %v566, 4294901760
    %v568 = vsub.f32 %v566, %v567
    %v569 = vand.u32 %v568, 4294901760
    %570 = vmatpush1.msra.mxu0 %v569
    %571 = vmatprep.subr.mxu0 0.0
    %v572 = vand.u32 %v254, 4294901760
    %v573 = vsub.f32 %v254, %v572
    %v574 = vand.u32 %v573, 4294901760
    %v575 = vsub.f32 %v573, %v574
    %v576 = vand.u32 %v575, 4294901760
    %577 = vmatpush1.msra.mxu0 %v576
    %578 = vmatprep.subr.mxu0 0.0
    %v579 = vand.u32 %v255, 4294901760
    %v580 = vsub.f32 %v255, %v579
    %v581 = vand.u32 %v580, 4294901760
    %v582 = vsub.f32 %v580, %v581
    %v583 = vand.u32 %v582, 4294901760
    %584 = vmatpush1.msra.mxu0 %v583
    %585 = vmatprep.subr.mxu0 0.0
    %v586 = vand.u32 %v256, 4294901760
    %v587 = vsub.f32 %v256, %v586
    %v588 = vand.u32 %v587, 4294901760
    %v589 = vsub.f32 %v587, %v588
    %v590 = vand.u32 %v589, 4294901760
    %591 = vmatpush1.msra.mxu0 %v590
    %592 = vmatprep.subr.mxu0 0.0
    %v593 = vand.u32 %v257, 4294901760
    %v594 = vsub.f32 %v257, %v593
    %v595 = vand.u32 %v594, 4294901760
    %v596 = vsub.f32 %v594, %v595
    %v597 = vand.u32 %v596, 4294901760
    %598 = vmatpush1.msra.mxu0 %v597
    %599 = vmatprep.subr.mxu0 0.0
    %v600 = vand.u32 %v258, 4294901760
    %v601 = vsub.f32 %v258, %v600
    %v602 = vand.u32 %v601, 4294901760
    %v603 = vsub.f32 %v601, %v602
    %v604 = vand.u32 %v603, 4294901760
    %605 = vmatpush1.msra.mxu0 %v604
    %606 = vmatprep.subr.mxu0 0.0
    %v607 = vand.u32 %v259, 4294901760
    %v608 = vsub.f32 %v259, %v607
    %v609 = vand.u32 %v608, 4294901760
    %v610 = vsub.f32 %v608, %v609
    %v611 = vand.u32 %v610, 4294901760
    %612 = vmatpush1.msra.mxu0 %v611
    %613 = vmatprep.subr.mxu0 0.0
    %614 = vmatpush1.msra.mxu0 0.0
    %615 = vmatprep.subr.mxu0 0.0
    %616 = vmatpush1.msra.mxu0 0.0
    %617 = vmatprep.subr.mxu0 0.0
    %618 = vmatpush1.msra.mxu0 0.0
    %619 = vmatprep.subr.mxu0 0.0
    %620 = vmatpush1.msra.mxu0 0.0
    %621 = vmatprep.subr.mxu0 0.0
    %622 = vmatpush1.msra.mxu0 0.0
    %623 = vmatprep.subr.mxu0 0.0
    %624 = vmatpush1.msra.mxu0 0.0
    %625 = vmatprep.subr.mxu0 0.0
    %626 = vmatpush1.msra.mxu0 0.0
    %627 = vmatprep.subr.mxu0 0.0
    %628 = vmatpush1.msra.mxu0 0.0
    %629 = vmatprep.subr.mxu0 0.0
    %630 = vmatpush1.msra.mxu0 0.0
    %631 = vmatprep.subr.mxu0 0.0
    %632 = vmatpush1.msra.mxu0 0.0
    %633 = vmatprep.subr.mxu0 0.0
    %634 = vmatpush1.msra.mxu0 0.0
    %635 = vmatprep.subr.mxu0 0.0
    %636 = vmatpush1.msra.mxu0 0.0
    %637 = vmatprep.subr.mxu0 0.0
    %638 = vmatpush1.msra.mxu0 0.0
    %639 = vmatprep.subr.mxu0 0.0
    %640 = vmatpush1.msra.mxu0 0.0
    %641 = vmatprep.subr.mxu0 0.0
    %642 = vmatpush1.msra.mxu0 0.0
    %643 = vmatprep.subr.mxu0 0.0
    %644 = vmatpush1.msra.mxu0 0.0
    %645 = vmatprep.mubr.f32.mxu0 0.0
    %v646 = vand.u32 %v228, 4294901760
    %647 = vmatmul.mubr.f32.gmra.mrb[0].mxu0 %v646
    %v648 = vpop.f32.mrb[0].mxu0
    %v649 = vadd.f32 %v348, %v648
    %v650 = vpop.f32.mrb[0].mxu0
    %651 = vmatprep.mubr.f32.mxu0 0.0
    %v652 = vand.u32 %v229, 4294901760
    %653 = vmatmul.mubr.f32.gmra.mrb[0].mxu0 %v652
    %v654 = vpop.f32.mrb[0].mxu0
    %v655 = vadd.f32 %v358, %v654
    %v656 = vpop.f32.mrb[0].mxu0
    %657 = vmatprep.mubr.f32.mxu0 0.0
    %v658 = vand.u32 %v230, 4294901760
    %659 = vmatmul.mubr.f32.gmra.mrb[0].mxu0 %v658
    %v660 = vpop.f32.mrb[0].mxu0
    %v661 = vadd.f32 %v368, %v660
    %v662 = vpop.f32.mrb[0].mxu0
    %663 = vmatprep.mubr.f32.mxu0 0.0
    %v664 = vand.u32 %v231, 4294901760
    %665 = vmatmul.mubr.f32.gmra.mrb[0].mxu0 %v664
    %v666 = vpop.f32.mrb[0].mxu0
    %v667 = vadd.f32 %v378, %v666
    %v668 = vpop.f32.mrb[0].mxu0
    %669 = vmatprep.mubr.f32.mxu0 0.0
    %v670 = vand.u32 %v232, 4294901760
    %671 = vmatmul.mubr.f32.gmra.mrb[0].mxu0 %v670
    %v672 = vpop.f32.mrb[0].mxu0
    %v673 = vadd.f32 %v388, %v672
    %v674 = vpop.f32.mrb[0].mxu0
    %675 = vmatprep.mubr.f32.mxu0 0.0
    %v676 = vand.u32 %v233, 4294901760
    %677 = vmatmul.mubr.f32.gmra.mrb[0].mxu0 %v676
    %v678 = vpop.f32.mrb[0].mxu0
    %v679 = vadd.f32 %v398, %v678
    %v680 = vpop.f32.mrb[0].mxu0
    %681 = vmatprep.mubr.f32.mxu0 0.0
    %v682 = vand.u32 %v234, 4294901760
    %683 = vmatmul.mubr.f32.gmra.mrb[0].mxu0 %v682
    %v684 = vpop.f32.mrb[0].mxu0
    %v685 = vadd.f32 %v408, %v684
    %v686 = vpop.f32.mrb[0].mxu0
    %687 = vmatprep.mubr.f32.mxu0 0.0
    %v688 = vand.u32 %v235, 4294901760
    %689 = vmatmul.mubr.f32.gmra.mrb[0].mxu0 %v688
    %v690 = vpop.f32.mrb[0].mxu0
    %v691 = vadd.f32 %v418, %v690
    %v692 = vpop.f32.mrb[0].mxu0
    %693 = vmatprep.mubr.f32.mxu0 0.0
    %v694 = vand.u32 %v236, 4294901760
    %695 = vmatmul.mubr.f32.gmra.mrb[0].mxu0 %v694
    %v696 = vpop.f32.mrb[0].mxu0
    %v697 = vadd.f32 %v428, %v696
    %v698 = vpop.f32.mrb[0].mxu0
    %699 = vmatprep.mubr.f32.mxu0 0.0
    %v700 = vand.u32 %v237, 4294901760
    %701 = vmatmul.mubr.f32.gmra.mrb[0].mxu0 %v700
    %v702 = vpop.f32.mrb[0].mxu0
    %v703 = vadd.f32 %v438, %v702
    %v704 = vpop.f32.mrb[0].mxu0
    %705 = vmatprep.mubr.f32.mxu0 0.0
    %v706 = vand.u32 %v238, 4294901760
    %707 = vmatmul.mubr.f32.gmra.mrb[0].mxu0 %v706
    %v708 = vpop.f32.mrb[0].mxu0
    %v709 = vadd.f32 %v448, %v708
    %v710 = vpop.f32.mrb[0].mxu0
    %711 = vmatprep.mubr.f32.mxu0 0.0
    %v712 = vand.u32 %v239, 4294901760
    %713 = vmatmul.mubr.f32.gmra.mrb[0].mxu0 %v712
    %v714 = vpop.f32.mrb[0].mxu0
    %v715 = vadd.f32 %v458, %v714
    %v716 = vpop.f32.mrb[0].mxu0
    %717 = vmatprep.mubr.f32.mxu0 0.0
    %v718 = vand.u32 %v240, 4294901760
    %719 = vmatmul.mubr.f32.gmra.mrb[0].mxu0 %v718
    %v720 = vpop.f32.mrb[0].mxu0
    %v721 = vadd.f32 %v468, %v720
    %v722 = vpop.f32.mrb[0].mxu0
    %723 = vmatprep.mubr.f32.mxu0 0.0
    %v724 = vand.u32 %v241, 4294901760
    %725 = vmatmul.mubr.f32.gmra.mrb[0].mxu0 %v724
    %v726 = vpop.f32.mrb[0].mxu0
    %v727 = vadd.f32 %v478, %v726
    %v728 = vpop.f32.mrb[0].mxu0
    %729 = vmatprep.mubr.f32.mxu0 0.0
    %v730 = vand.u32 %v242, 4294901760
    %731 = vmatmul.mubr.f32.gmra.mrb[0].mxu0 %v730
    %v732 = vpop.f32.mrb[0].mxu0
    %v733 = vadd.f32 %v488, %v732
    %v734 = vpop.f32.mrb[0].mxu0
    %735 = vmatprep.mubr.f32.mxu0 0.0
    %v736 = vand.u32 %v243, 4294901760
    %737 = vmatmul.mubr.f32.gmra.mrb[0].mxu0 %v736
    %v738 = vpop.f32.mrb[0].mxu0
    %v739 = vadd.f32 %v498, %v738
    %v740 = vpop.f32.mrb[0].mxu0
    %741 = vdwg.mxu0
    %742 = vmatprep.subr.mxu0 0.0
    %v743 = vand.u32 %v244, 4294901760
    %v744 = vsub.f32 %v244, %v743
    %745 = vmatpush1.msra.mxu0 %v744
    %746 = vmatprep.subr.mxu0 0.0
    %v747 = vand.u32 %v245, 4294901760
    %v748 = vsub.f32 %v245, %v747
    %749 = vmatpush1.msra.mxu0 %v748
    %750 = vmatprep.subr.mxu0 0.0
    %v751 = vand.u32 %v246, 4294901760
    %v752 = vsub.f32 %v246, %v751
    %753 = vmatpush1.msra.mxu0 %v752
    %754 = vmatprep.subr.mxu0 0.0
    %v755 = vand.u32 %v247, 4294901760
    %v756 = vsub.f32 %v247, %v755
    %757 = vmatpush1.msra.mxu0 %v756
    %758 = vmatprep.subr.mxu0 0.0
    %v759 = vand.u32 %v248, 4294901760
    %v760 = vsub.f32 %v248, %v759
    %761 = vmatpush1.msra.mxu0 %v760
    %762 = vmatprep.subr.mxu0 0.0
    %v763 = vand.u32 %v249, 4294901760
    %v764 = vsub.f32 %v249, %v763
    %765 = vmatpush1.msra.mxu0 %v764
    %766 = vmatprep.subr.mxu0 0.0
    %v767 = vand.u32 %v250, 4294901760
    %v768 = vsub.f32 %v250, %v767
    %769 = vmatpush1.msra.mxu0 %v768
    %770 = vmatprep.subr.mxu0 0.0
    %v771 = vand.u32 %v251, 4294901760
    %v772 = vsub.f32 %v251, %v771
    %773 = vmatpush1.msra.mxu0 %v772
    %774 = vmatprep.subr.mxu0 0.0
    %v775 = vand.u32 %v252, 4294901760
    %v776 = vsub.f32 %v252, %v775
    %777 = vmatpush1.msra.mxu0 %v776
    %778 = vmatprep.subr.mxu0 0.0
    %v779 = vand.u32 %v253, 4294901760
    %v780 = vsub.f32 %v253, %v779
    %781 = vmatpush1.msra.mxu0 %v780
    %782 = vmatprep.subr.mxu0 0.0
    %v783 = vand.u32 %v254, 4294901760
    %v784 = vsub.f32 %v254, %v783
    %785 = vmatpush1.msra.mxu0 %v784
    %786 = vmatprep.subr.mxu0 0.0
    %v787 = vand.u32 %v255, 4294901760
    %v788 = vsub.f32 %v255, %v787
    %789 = vmatpush1.msra.mxu0 %v788
    %790 = vmatprep.subr.mxu0 0.0
    %v791 = vand.u32 %v256, 4294901760
    %v792 = vsub.f32 %v256, %v791
    %793 = vmatpush1.msra.mxu0 %v792
    %794 = vmatprep.subr.mxu0 0.0
    %v795 = vand.u32 %v257, 4294901760
    %v796 = vsub.f32 %v257, %v795
    %797 = vmatpush1.msra.mxu0 %v796
    %798 = vmatprep.subr.mxu0 0.0
    %v799 = vand.u32 %v258, 4294901760
    %v800 = vsub.f32 %v258, %v799
    %801 = vmatpush1.msra.mxu0 %v800
    %802 = vmatprep.subr.mxu0 0.0
    %v803 = vand.u32 %v259, 4294901760
    %v804 = vsub.f32 %v259, %v803
    %805 = vmatpush1.msra.mxu0 %v804
    %806 = vmatprep.subr.mxu0 0.0
    %807 = vmatpush1.msra.mxu0 0.0
    %808 = vmatprep.subr.mxu0 0.0
    %809 = vmatpush1.msra.mxu0 0.0
    %810 = vmatprep.subr.mxu0 0.0
    %811 = vmatpush1.msra.mxu0 0.0
    %812 = vmatprep.subr.mxu0 0.0
    %813 = vmatpush1.msra.mxu0 0.0
    %814 = vmatprep.subr.mxu0 0.0
    %815 = vmatpush1.msra.mxu0 0.0
    %816 = vmatprep.subr.mxu0 0.0
    %817 = vmatpush1.msra.mxu0 0.0
    %818 = vmatprep.subr.mxu0 0.0
    %819 = vmatpush1.msra.mxu0 0.0
    %820 = vmatprep.subr.mxu0 0.0
    %821 = vmatpush1.msra.mxu0 0.0
    %822 = vmatprep.subr.mxu0 0.0
    %823 = vmatpush1.msra.mxu0 0.0
    %824 = vmatprep.subr.mxu0 0.0
    %825 = vmatpush1.msra.mxu0 0.0
    %826 = vmatprep.subr.mxu0 0.0
    %827 = vmatpush1.msra.mxu0 0.0
    %828 = vmatprep.subr.mxu0 0.0
    %829 = vmatpush1.msra.mxu0 0.0
    %830 = vmatprep.subr.mxu0 0.0
    %831 = vmatpush1.msra.mxu0 0.0
    %832 = vmatprep.subr.mxu0 0.0
    %833 = vmatpush1.msra.mxu0 0.0
    %834 = vmatprep.subr.mxu0 0.0
    %835 = vmatpush1.msra.mxu0 0.0
    %836 = vmatprep.subr.mxu0 0.0
    %837 = vmatpush1.msra.mxu0 0.0
    %838 = vmatprep.mubr.f32.mxu0 0.0
    %v839 = vand.u32 %v228, 4294901760
    %v840 = vsub.f32 %v228, %v839
    %841 = vmatmul.mubr.f32.gmra.mrb[0].mxu0 %v840
    %v842 = vpop.f32.mrb[0].mxu0
    %v843 = vadd.f32 %v649, %v842
    %v844 = vpop.f32.mrb[0].mxu0
    %845 = vmatprep.mubr.f32.mxu0 0.0
    %v846 = vand.u32 %v229, 4294901760
    %v847 = vsub.f32 %v229, %v846
    %848 = vmatmul.mubr.f32.gmra.mrb[0].mxu0 %v847
    %v849 = vpop.f32.mrb[0].mxu0
    %v850 = vadd.f32 %v655, %v849
    %v851 = vpop.f32.mrb[0].mxu0
    %852 = vmatprep.mubr.f32.mxu0 0.0
    %v853 = vand.u32 %v230, 4294901760
    %v854 = vsub.f32 %v230, %v853
    %855 = vmatmul.mubr.f32.gmra.mrb[0].mxu0 %v854
    %v856 = vpop.f32.mrb[0].mxu0
    %v857 = vadd.f32 %v661, %v856
    %v858 = vpop.f32.mrb[0].mxu0
    %859 = vmatprep.mubr.f32.mxu0 0.0
    %v860 = vand.u32 %v231, 4294901760
    %v861 = vsub.f32 %v231, %v860
    %862 = vmatmul.mubr.f32.gmra.mrb[0].mxu0 %v861
    %v863 = vpop.f32.mrb[0].mxu0
    %v864 = vadd.f32 %v667, %v863
    %v865 = vpop.f32.mrb[0].mxu0
    %866 = vmatprep.mubr.f32.mxu0 0.0
    %v867 = vand.u32 %v232, 4294901760
    %v868 = vsub.f32 %v232, %v867
    %869 = vmatmul.mubr.f32.gmra.mrb[0].mxu0 %v868
    %v870 = vpop.f32.mrb[0].mxu0
    %v871 = vadd.f32 %v673, %v870
    %v872 = vpop.f32.mrb[0].mxu0
    %873 = vmatprep.mubr.f32.mxu0 0.0
    %v874 = vand.u32 %v233, 4294901760
    %v875 = vsub.f32 %v233, %v874
    %876 = vmatmul.mubr.f32.gmra.mrb[0].mxu0 %v875
    %v877 = vpop.f32.mrb[0].mxu0
    %v878 = vadd.f32 %v679, %v877
    %v879 = vpop.f32.mrb[0].mxu0
    %880 = vmatprep.mubr.f32.mxu0 0.0
    %v881 = vand.u32 %v234, 4294901760
    %v882 = vsub.f32 %v234, %v881
    %883 = vmatmul.mubr.f32.gmra.mrb[0].mxu0 %v882
    %v884 = vpop.f32.mrb[0].mxu0
    %v885 = vadd.f32 %v685, %v884
    %v886 = vpop.f32.mrb[0].mxu0
    %887 = vmatprep.mubr.f32.mxu0 0.0
    %v888 = vand.u32 %v235, 4294901760
    %v889 = vsub.f32 %v235, %v888
    %890 = vmatmul.mubr.f32.gmra.mrb[0].mxu0 %v889
    %v891 = vpop.f32.mrb[0].mxu0
    %v892 = vadd.f32 %v691, %v891
    %v893 = vpop.f32.mrb[0].mxu0
    %894 = vmatprep.mubr.f32.mxu0 0.0
    %v895 = vand.u32 %v236, 4294901760
    %v896 = vsub.f32 %v236, %v895
    %897 = vmatmul.mubr.f32.gmra.mrb[0].mxu0 %v896
    %v898 = vpop.f32.mrb[0].mxu0
    %v899 = vadd.f32 %v697, %v898
    %v900 = vpop.f32.mrb[0].mxu0
    %901 = vmatprep.mubr.f32.mxu0 0.0
    %v902 = vand.u32 %v237, 4294901760
    %v903 = vsub.f32 %v237, %v902
    %904 = vmatmul.mubr.f32.gmra.mrb[0].mxu0 %v903
    %v905 = vpop.f32.mrb[0].mxu0
    %v906 = vadd.f32 %v703, %v905
    %v907 = vpop.f32.mrb[0].mxu0
    %908 = vmatprep.mubr.f32.mxu0 0.0
    %v909 = vand.u32 %v238, 4294901760
    %v910 = vsub.f32 %v238, %v909
    %911 = vmatmul.mubr.f32.gmra.mrb[0].mxu0 %v910
    %v912 = vpop.f32.mrb[0].mxu0
    %v913 = vadd.f32 %v709, %v912
    %v914 = vpop.f32.mrb[0].mxu0
    %915 = vmatprep.mubr.f32.mxu0 0.0
    %v916 = vand.u32 %v239, 4294901760
    %v917 = vsub.f32 %v239, %v916
    %918 = vmatmul.mubr.f32.gmra.mrb[0].mxu0 %v917
    %v919 = vpop.f32.mrb[0].mxu0
    %v920 = vadd.f32 %v715, %v919
    %v921 = vpop.f32.mrb[0].mxu0
    %922 = vmatprep.mubr.f32.mxu0 0.0
    %v923 = vand.u32 %v240, 4294901760
    %v924 = vsub.f32 %v240, %v923
    %925 = vmatmul.mubr.f32.gmra.mrb[0].mxu0 %v924
    %v926 = vpop.f32.mrb[0].mxu0
    %v927 = vadd.f32 %v721, %v926
    %v928 = vpop.f32.mrb[0].mxu0
    %929 = vmatprep.mubr.f32.mxu0 0.0
    %v930 = vand.u32 %v241, 4294901760
    %v931 = vsub.f32 %v241, %v930
    %932 = vmatmul.mubr.f32.gmra.mrb[0].mxu0 %v931
    %v933 = vpop.f32.mrb[0].mxu0
    %v934 = vadd.f32 %v727, %v933
    %v935 = vpop.f32.mrb[0].mxu0
    %936 = vmatprep.mubr.f32.mxu0 0.0
    %v937 = vand.u32 %v242, 4294901760
    %v938 = vsub.f32 %v242, %v937
    %939 = vmatmul.mubr.f32.gmra.mrb[0].mxu0 %v938
    %v940 = vpop.f32.mrb[0].mxu0
    %v941 = vadd.f32 %v733, %v940
    %v942 = vpop.f32.mrb[0].mxu0
    %943 = vmatprep.mubr.f32.mxu0 0.0
    %v944 = vand.u32 %v243, 4294901760
    %v945 = vsub.f32 %v243, %v944
    %946 = vmatmul.mubr.f32.gmra.mrb[0].mxu0 %v945
    %v947 = vpop.f32.mrb[0].mxu0
    %v948 = vadd.f32 %v739, %v947
    %v949 = vpop.f32.mrb[0].mxu0
    %950 = vdwg.mxu0
    %951 = vmatprep.subr.mxu0 0.0
    %v952 = vand.u32 %v244, 4294901760
    %953 = vmatpush1.msra.mxu0 %v952
    %954 = vmatprep.subr.mxu0 0.0
    %v955 = vand.u32 %v245, 4294901760
    %956 = vmatpush1.msra.mxu0 %v955
    %957 = vmatprep.subr.mxu0 0.0
    %v958 = vand.u32 %v246, 4294901760
    %959 = vmatpush1.msra.mxu0 %v958
    %960 = vmatprep.subr.mxu0 0.0
    %v961 = vand.u32 %v247, 4294901760
    %962 = vmatpush1.msra.mxu0 %v961
    %963 = vmatprep.subr.mxu0 0.0
    %v964 = vand.u32 %v248, 4294901760
    %965 = vmatpush1.msra.mxu0 %v964
    %966 = vmatprep.subr.mxu0 0.0
    %v967 = vand.u32 %v249, 4294901760
    %968 = vmatpush1.msra.mxu0 %v967
    %969 = vmatprep.subr.mxu0 0.0
    %v970 = vand.u32 %v250, 4294901760
    %971 = vmatpush1.msra.mxu0 %v970
    %972 = vmatprep.subr.mxu0 0.0
    %v973 = vand.u32 %v251, 4294901760
    %974 = vmatpush1.msra.mxu0 %v973
    %975 = vmatprep.subr.mxu0 0.0
    %v976 = vand.u32 %v252, 4294901760
    %977 = vmatpush1.msra.mxu0 %v976
    %978 = vmatprep.subr.mxu0 0.0
    %v979 = vand.u32 %v253, 4294901760
    %980 = vmatpush1.msra.mxu0 %v979
    %981 = vmatprep.subr.mxu0 0.0
    %v982 = vand.u32 %v254, 4294901760
    %983 = vmatpush1.msra.mxu0 %v982
    %984 = vmatprep.subr.mxu0 0.0
    %v985 = vand.u32 %v255, 4294901760
    %986 = vmatpush1.msra.mxu0 %v985
    %987 = vmatprep.subr.mxu0 0.0
    %v988 = vand.u32 %v256, 4294901760
    %989 = vmatpush1.msra.mxu0 %v988
    %990 = vmatprep.subr.mxu0 0.0
    %v991 = vand.u32 %v257, 4294901760
    %992 = vmatpush1.msra.mxu0 %v991
    %993 = vmatprep.subr.mxu0 0.0
    %v994 = vand.u32 %v258, 4294901760
    %995 = vmatpush1.msra.mxu0 %v994
    %996 = vmatprep.subr.mxu0 0.0
    %v997 = vand.u32 %v259, 4294901760
    %998 = vmatpush1.msra.mxu0 %v997
    %999 = vmatprep.subr.mxu0 0.0
    %1000 = vmatpush1.msra.mxu0 0.0
    %1001 = vmatprep.subr.mxu0 0.0
    %1002 = vmatpush1.msra.mxu0 0.0
    %1003 = vmatprep.subr.mxu0 0.0
    %1004 = vmatpush1.msra.mxu0 0.0
    %1005 = vmatprep.subr.mxu0 0.0
    %1006 = vmatpush1.msra.mxu0 0.0
    %1007 = vmatprep.subr.mxu0 0.0
    %1008 = vmatpush1.msra.mxu0 0.0
    %1009 = vmatprep.subr.mxu0 0.0
    %1010 = vmatpush1.msra.mxu0 0.0
    %1011 = vmatprep.subr.mxu0 0.0
    %1012 = vmatpush1.msra.mxu0 0.0
    %1013 = vmatprep.subr.mxu0 0.0
    %1014 = vmatpush1.msra.mxu0 0.0
    %1015 = vmatprep.subr.mxu0 0.0
    %1016 = vmatpush1.msra.mxu0 0.0
    %1017 = vmatprep.subr.mxu0 0.0
    %1018 = vmatpush1.msra.mxu0 0.0
    %1019 = vmatprep.subr.mxu0 0.0
    %1020 = vmatpush1.msra.mxu0 0.0
    %1021 = vmatprep.subr.mxu0 0.0
    %1022 = vmatpush1.msra.mxu0 0.0
    %1023 = vmatprep.subr.mxu0 0.0
    %1024 = vmatpush1.msra.mxu0 0.0
    %1025 = vmatprep.subr.mxu0 0.0
    %1026 = vmatpush1.msra.mxu0 0.0
    %1027 = vmatprep.subr.mxu0 0.0
    %1028 = vmatpush1.msra.mxu0 0.0
    %1029 = vmatprep.subr.mxu0 0.0
    %1030 = vmatpush1.msra.mxu0 0.0
    %1031 = vmatprep.mubr.f32.mxu0 0.0
    %v1032 = vand.u32 %v228, 4294901760
    %v1033 = vsub.f32 %v228, %v1032
    %v1034 = vand.u32 %v1033, 4294901760
    %1035 = vmatmul.mubr.f32.gmra.mrb[0].mxu0 %v1034
    %v1036 = vpop.f32.mrb[0].mxu0
    %v1037 = vadd.f32 %v843, %v1036
    %v1038 = vpop.f32.mrb[0].mxu0
    %1039 = vmatprep.mubr.f32.mxu0 0.0
    %v1040 = vand.u32 %v229, 4294901760
    %v1041 = vsub.f32 %v229, %v1040
    %v1042 = vand.u32 %v1041, 4294901760
    %1043 = vmatmul.mubr.f32.gmra.mrb[0].mxu0 %v1042
    %v1044 = vpop.f32.mrb[0].mxu0
    %v1045 = vadd.f32 %v850, %v1044
    %v1046 = vpop.f32.mrb[0].mxu0
    %1047 = vmatprep.mubr.f32.mxu0 0.0
    %v1048 = vand.u32 %v230, 4294901760
    %v1049 = vsub.f32 %v230, %v1048
    %v1050 = vand.u32 %v1049, 4294901760
    %1051 = vmatmul.mubr.f32.gmra.mrb[0].mxu0 %v1050
    %v1052 = vpop.f32.mrb[0].mxu0
    %v1053 = vadd.f32 %v857, %v1052
    %v1054 = vpop.f32.mrb[0].mxu0
    %1055 = vmatprep.mubr.f32.mxu0 0.0
    %v1056 = vand.u32 %v231, 4294901760
    %v1057 = vsub.f32 %v231, %v1056
    %v1058 = vand.u32 %v1057, 4294901760
    %1059 = vmatmul.mubr.f32.gmra.mrb[0].mxu0 %v1058
    %v1060 = vpop.f32.mrb[0].mxu0
    %v1061 = vadd.f32 %v864, %v1060
    %v1062 = vpop.f32.mrb[0].mxu0
    %1063 = vmatprep.mubr.f32.mxu0 0.0
    %v1064 = vand.u32 %v232, 4294901760
    %v1065 = vsub.f32 %v232, %v1064
    %v1066 = vand.u32 %v1065, 4294901760
    %1067 = vmatmul.mubr.f32.gmra.mrb[0].mxu0 %v1066
    %v1068 = vpop.f32.mrb[0].mxu0
    %v1069 = vadd.f32 %v871, %v1068
    %v1070 = vpop.f32.mrb[0].mxu0
    %1071 = vmatprep.mubr.f32.mxu0 0.0
    %v1072 = vand.u32 %v233, 4294901760
    %v1073 = vsub.f32 %v233, %v1072
    %v1074 = vand.u32 %v1073, 4294901760
    %1075 = vmatmul.mubr.f32.gmra.mrb[0].mxu0 %v1074
    %v1076 = vpop.f32.mrb[0].mxu0
    %v1077 = vadd.f32 %v878, %v1076
    %v1078 = vpop.f32.mrb[0].mxu0
    %1079 = vmatprep.mubr.f32.mxu0 0.0
    %v1080 = vand.u32 %v234, 4294901760
    %v1081 = vsub.f32 %v234, %v1080
    %v1082 = vand.u32 %v1081, 4294901760
    %1083 = vmatmul.mubr.f32.gmra.mrb[0].mxu0 %v1082
    %v1084 = vpop.f32.mrb[0].mxu0
    %v1085 = vadd.f32 %v885, %v1084
    %v1086 = vpop.f32.mrb[0].mxu0
    %1087 = vmatprep.mubr.f32.mxu0 0.0
    %v1088 = vand.u32 %v235, 4294901760
    %v1089 = vsub.f32 %v235, %v1088
    %v1090 = vand.u32 %v1089, 4294901760
    %1091 = vmatmul.mubr.f32.gmra.mrb[0].mxu0 %v1090
    %v1092 = vpop.f32.mrb[0].mxu0
    %v1093 = vadd.f32 %v892, %v1092
    %v1094 = vpop.f32.mrb[0].mxu0
    %1095 = vmatprep.mubr.f32.mxu0 0.0
    %v1096 = vand.u32 %v236, 4294901760
    %v1097 = vsub.f32 %v236, %v1096
    %v1098 = vand.u32 %v1097, 4294901760
    %1099 = vmatmul.mubr.f32.gmra.mrb[0].mxu0 %v1098
    %v1100 = vpop.f32.mrb[0].mxu0
    %v1101 = vadd.f32 %v899, %v1100
    %v1102 = vpop.f32.mrb[0].mxu0
    %1103 = vmatprep.mubr.f32.mxu0 0.0
    %v1104 = vand.u32 %v237, 4294901760
    %v1105 = vsub.f32 %v237, %v1104
    %v1106 = vand.u32 %v1105, 4294901760
    %1107 = vmatmul.mubr.f32.gmra.mrb[0].mxu0 %v1106
    %v1108 = vpop.f32.mrb[0].mxu0
    %v1109 = vadd.f32 %v906, %v1108
    %v1110 = vpop.f32.mrb[0].mxu0
    %1111 = vmatprep.mubr.f32.mxu0 0.0
    %v1112 = vand.u32 %v238, 4294901760
    %v1113 = vsub.f32 %v238, %v1112
    %v1114 = vand.u32 %v1113, 4294901760
    %1115 = vmatmul.mubr.f32.gmra.mrb[0].mxu0 %v1114
    %v1116 = vpop.f32.mrb[0].mxu0
    %v1117 = vadd.f32 %v913, %v1116
    %v1118 = vpop.f32.mrb[0].mxu0
    %1119 = vmatprep.mubr.f32.mxu0 0.0
    %v1120 = vand.u32 %v239, 4294901760
    %v1121 = vsub.f32 %v239, %v1120
    %v1122 = vand.u32 %v1121, 4294901760
    %1123 = vmatmul.mubr.f32.gmra.mrb[0].mxu0 %v1122
    %v1124 = vpop.f32.mrb[0].mxu0
    %v1125 = vadd.f32 %v920, %v1124
    %v1126 = vpop.f32.mrb[0].mxu0
    %1127 = vmatprep.mubr.f32.mxu0 0.0
    %v1128 = vand.u32 %v240, 4294901760
    %v1129 = vsub.f32 %v240, %v1128
    %v1130 = vand.u32 %v1129, 4294901760
    %1131 = vmatmul.mubr.f32.gmra.mrb[0].mxu0 %v1130
    %v1132 = vpop.f32.mrb[0].mxu0
    %v1133 = vadd.f32 %v927, %v1132
    %v1134 = vpop.f32.mrb[0].mxu0
    %1135 = vmatprep.mubr.f32.mxu0 0.0
    %v1136 = vand.u32 %v241, 4294901760
    %v1137 = vsub.f32 %v241, %v1136
    %v1138 = vand.u32 %v1137, 4294901760
    %1139 = vmatmul.mubr.f32.gmra.mrb[0].mxu0 %v1138
    %v1140 = vpop.f32.mrb[0].mxu0
    %v1141 = vadd.f32 %v934, %v1140
    %v1142 = vpop.f32.mrb[0].mxu0
    %1143 = vmatprep.mubr.f32.mxu0 0.0
    %v1144 = vand.u32 %v242, 4294901760
    %v1145 = vsub.f32 %v242, %v1144
    %v1146 = vand.u32 %v1145, 4294901760
    %1147 = vmatmul.mubr.f32.gmra.mrb[0].mxu0 %v1146
    %v1148 = vpop.f32.mrb[0].mxu0
    %v1149 = vadd.f32 %v941, %v1148
    %v1150 = vpop.f32.mrb[0].mxu0
    %1151 = vmatprep.mubr.f32.mxu0 0.0
    %v1152 = vand.u32 %v243, 4294901760
    %v1153 = vsub.f32 %v243, %v1152
    %v1154 = vand.u32 %v1153, 4294901760
    %1155 = vmatmul.mubr.f32.gmra.mrb[0].mxu0 %v1154
    %v1156 = vpop.f32.mrb[0].mxu0
    %v1157 = vadd.f32 %v948, %v1156
    %v1158 = vpop.f32.mrb[0].mxu0
    %1159 = vdwg.mxu0
    %1160 = vmatprep.subr.mxu0 0.0
    %v1161 = vand.u32 %v244, 4294901760
    %v1162 = vsub.f32 %v244, %v1161
    %v1163 = vand.u32 %v1162, 4294901760
    %1164 = vmatpush1.msra.mxu0 %v1163
    %1165 = vmatprep.subr.mxu0 0.0
    %v1166 = vand.u32 %v245, 4294901760
    %v1167 = vsub.f32 %v245, %v1166
    %v1168 = vand.u32 %v1167, 4294901760
    %1169 = vmatpush1.msra.mxu0 %v1168
    %1170 = vmatprep.subr.mxu0 0.0
    %v1171 = vand.u32 %v246, 4294901760
    %v1172 = vsub.f32 %v246, %v1171
    %v1173 = vand.u32 %v1172, 4294901760
    %1174 = vmatpush1.msra.mxu0 %v1173
    %1175 = vmatprep.subr.mxu0 0.0
    %v1176 = vand.u32 %v247, 4294901760
    %v1177 = vsub.f32 %v247, %v1176
    %v1178 = vand.u32 %v1177, 4294901760
    %1179 = vmatpush1.msra.mxu0 %v1178
    %1180 = vmatprep.subr.mxu0 0.0
    %v1181 = vand.u32 %v248, 4294901760
    %v1182 = vsub.f32 %v248, %v1181
    %v1183 = vand.u32 %v1182, 4294901760
    %1184 = vmatpush1.msra.mxu0 %v1183
    %1185 = vmatprep.subr.mxu0 0.0
    %v1186 = vand.u32 %v249, 4294901760
    %v1187 = vsub.f32 %v249, %v1186
    %v1188 = vand.u32 %v1187, 4294901760
    %1189 = vmatpush1.msra.mxu0 %v1188
    %1190 = vmatprep.subr.mxu0 0.0
    %v1191 = vand.u32 %v250, 4294901760
    %v1192 = vsub.f32 %v250, %v1191
    %v1193 = vand.u32 %v1192, 4294901760
    %1194 = vmatpush1.msra.mxu0 %v1193
    %1195 = vmatprep.subr.mxu0 0.0
    %v1196 = vand.u32 %v251, 4294901760
    %v1197 = vsub.f32 %v251, %v1196
    %v1198 = vand.u32 %v1197, 4294901760
    %1199 = vmatpush1.msra.mxu0 %v1198
    %1200 = vmatprep.subr.mxu0 0.0
    %v1201 = vand.u32 %v252, 4294901760
    %v1202 = vsub.f32 %v252, %v1201
    %v1203 = vand.u32 %v1202, 4294901760
    %1204 = vmatpush1.msra.mxu0 %v1203
    %1205 = vmatprep.subr.mxu0 0.0
    %v1206 = vand.u32 %v253, 4294901760
    %v1207 = vsub.f32 %v253, %v1206
    %v1208 = vand.u32 %v1207, 4294901760
    %1209 = vmatpush1.msra.mxu0 %v1208
    %1210 = vmatprep.subr.mxu0 0.0
    %v1211 = vand.u32 %v254, 4294901760
    %v1212 = vsub.f32 %v254, %v1211
    %v1213 = vand.u32 %v1212, 4294901760
    %1214 = vmatpush1.msra.mxu0 %v1213
    %1215 = vmatprep.subr.mxu0 0.0
    %v1216 = vand.u32 %v255, 4294901760
    %v1217 = vsub.f32 %v255, %v1216
    %v1218 = vand.u32 %v1217, 4294901760
    %1219 = vmatpush1.msra.mxu0 %v1218
    %1220 = vmatprep.subr.mxu0 0.0
    %v1221 = vand.u32 %v256, 4294901760
    %v1222 = vsub.f32 %v256, %v1221
    %v1223 = vand.u32 %v1222, 4294901760
    %1224 = vmatpush1.msra.mxu0 %v1223
    %1225 = vmatprep.subr.mxu0 0.0
    %v1226 = vand.u32 %v257, 4294901760
    %v1227 = vsub.f32 %v257, %v1226
    %v1228 = vand.u32 %v1227, 4294901760
    %1229 = vmatpush1.msra.mxu0 %v1228
    %1230 = vmatprep.subr.mxu0 0.0
    %v1231 = vand.u32 %v258, 4294901760
    %v1232 = vsub.f32 %v258, %v1231
    %v1233 = vand.u32 %v1232, 4294901760
    %1234 = vmatpush1.msra.mxu0 %v1233
    %1235 = vmatprep.subr.mxu0 0.0
    %v1236 = vand.u32 %v259, 4294901760
    %v1237 = vsub.f32 %v259, %v1236
    %v1238 = vand.u32 %v1237, 4294901760
    %1239 = vmatpush1.msra.mxu0 %v1238
    %1240 = vmatprep.subr.mxu0 0.0
    %1241 = vmatpush1.msra.mxu0 0.0
    %1242 = vmatprep.subr.mxu0 0.0
    %1243 = vmatpush1.msra.mxu0 0.0
    %1244 = vmatprep.subr.mxu0 0.0
    %1245 = vmatpush1.msra.mxu0 0.0
    %1246 = vmatprep.subr.mxu0 0.0
    %1247 = vmatpush1.msra.mxu0 0.0
    %1248 = vmatprep.subr.mxu0 0.0
    %1249 = vmatpush1.msra.mxu0 0.0
    %1250 = vmatprep.subr.mxu0 0.0
    %1251 = vmatpush1.msra.mxu0 0.0
    %1252 = vmatprep.subr.mxu0 0.0
    %1253 = vmatpush1.msra.mxu0 0.0
    %1254 = vmatprep.subr.mxu0 0.0
    %1255 = vmatpush1.msra.mxu0 0.0
    %1256 = vmatprep.subr.mxu0 0.0
    %1257 = vmatpush1.msra.mxu0 0.0
    %1258 = vmatprep.subr.mxu0 0.0
    %1259 = vmatpush1.msra.mxu0 0.0
    %1260 = vmatprep.subr.mxu0 0.0
    %1261 = vmatpush1.msra.mxu0 0.0
    %1262 = vmatprep.subr.mxu0 0.0
    %1263 = vmatpush1.msra.mxu0 0.0
    %1264 = vmatprep.subr.mxu0 0.0
    %1265 = vmatpush1.msra.mxu0 0.0
    %1266 = vmatprep.subr.mxu0 0.0
    %1267 = vmatpush1.msra.mxu0 0.0
    %1268 = vmatprep.subr.mxu0 0.0
    %1269 = vmatpush1.msra.mxu0 0.0
    %1270 = vmatprep.subr.mxu0 0.0
    %1271 = vmatpush1.msra.mxu0 0.0
    %1272 = vmatprep.mubr.f32.mxu0 0.0
    %v1273 = vand.u32 %v228, 4294901760
    %1274 = vmatmul.mubr.f32.gmra.mrb[0].mxu0 %v1273
    %v1275 = vpop.f32.mrb[0].mxu0
    %v1276 = vadd.f32 %v1037, %v1275
    %v1277 = vpop.f32.mrb[0].mxu0
    %1278 = vmatprep.mubr.f32.mxu0 0.0
    %v1279 = vand.u32 %v229, 4294901760
    %1280 = vmatmul.mubr.f32.gmra.mrb[0].mxu0 %v1279
    %v1281 = vpop.f32.mrb[0].mxu0
    %v1282 = vadd.f32 %v1045, %v1281
    %v1283 = vpop.f32.mrb[0].mxu0
    %1284 = vmatprep.mubr.f32.mxu0 0.0
    %v1285 = vand.u32 %v230, 4294901760
    %1286 = vmatmul.mubr.f32.gmra.mrb[0].mxu0 %v1285
    %v1287 = vpop.f32.mrb[0].mxu0
    %v1288 = vadd.f32 %v1053, %v1287
    %v1289 = vpop.f32.mrb[0].mxu0
    %1290 = vmatprep.mubr.f32.mxu0 0.0
    %v1291 = vand.u32 %v231, 4294901760
    %1292 = vmatmul.mubr.f32.gmra.mrb[0].mxu0 %v1291
    %v1293 = vpop.f32.mrb[0].mxu0
    %v1294 = vadd.f32 %v1061, %v1293
    %v1295 = vpop.f32.mrb[0].mxu0
    %1296 = vmatprep.mubr.f32.mxu0 0.0
    %v1297 = vand.u32 %v232, 4294901760
    %1298 = vmatmul.mubr.f32.gmra.mrb[0].mxu0 %v1297
    %v1299 = vpop.f32.mrb[0].mxu0
    %v1300 = vadd.f32 %v1069, %v1299
    %v1301 = vpop.f32.mrb[0].mxu0
    %1302 = vmatprep.mubr.f32.mxu0 0.0
    %v1303 = vand.u32 %v233, 4294901760
    %1304 = vmatmul.mubr.f32.gmra.mrb[0].mxu0 %v1303
    %v1305 = vpop.f32.mrb[0].mxu0
    %v1306 = vadd.f32 %v1077, %v1305
    %v1307 = vpop.f32.mrb[0].mxu0
    %1308 = vmatprep.mubr.f32.mxu0 0.0
    %v1309 = vand.u32 %v234, 4294901760
    %1310 = vmatmul.mubr.f32.gmra.mrb[0].mxu0 %v1309
    %v1311 = vpop.f32.mrb[0].mxu0
    %v1312 = vadd.f32 %v1085, %v1311
    %v1313 = vpop.f32.mrb[0].mxu0
    %1314 = vmatprep.mubr.f32.mxu0 0.0
    %v1315 = vand.u32 %v235, 4294901760
    %1316 = vmatmul.mubr.f32.gmra.mrb[0].mxu0 %v1315
    %v1317 = vpop.f32.mrb[0].mxu0
    %v1318 = vadd.f32 %v1093, %v1317
    %v1319 = vpop.f32.mrb[0].mxu0
    %1320 = vmatprep.mubr.f32.mxu0 0.0
    %v1321 = vand.u32 %v236, 4294901760
    %1322 = vmatmul.mubr.f32.gmra.mrb[0].mxu0 %v1321
    %v1323 = vpop.f32.mrb[0].mxu0
    %v1324 = vadd.f32 %v1101, %v1323
    %v1325 = vpop.f32.mrb[0].mxu0
    %1326 = vmatprep.mubr.f32.mxu0 0.0
    %v1327 = vand.u32 %v237, 4294901760
    %1328 = vmatmul.mubr.f32.gmra.mrb[0].mxu0 %v1327
    %v1329 = vpop.f32.mrb[0].mxu0
    %v1330 = vadd.f32 %v1109, %v1329
    %v1331 = vpop.f32.mrb[0].mxu0
    %1332 = vmatprep.mubr.f32.mxu0 0.0
    %v1333 = vand.u32 %v238, 4294901760
    %1334 = vmatmul.mubr.f32.gmra.mrb[0].mxu0 %v1333
    %v1335 = vpop.f32.mrb[0].mxu0
    %v1336 = vadd.f32 %v1117, %v1335
    %v1337 = vpop.f32.mrb[0].mxu0
    %1338 = vmatprep.mubr.f32.mxu0 0.0
    %v1339 = vand.u32 %v239, 4294901760
    %1340 = vmatmul.mubr.f32.gmra.mrb[0].mxu0 %v1339
    %v1341 = vpop.f32.mrb[0].mxu0
    %v1342 = vadd.f32 %v1125, %v1341
    %v1343 = vpop.f32.mrb[0].mxu0
    %1344 = vmatprep.mubr.f32.mxu0 0.0
    %v1345 = vand.u32 %v240, 4294901760
    %1346 = vmatmul.mubr.f32.gmra.mrb[0].mxu0 %v1345
    %v1347 = vpop.f32.mrb[0].mxu0
    %v1348 = vadd.f32 %v1133, %v1347
    %v1349 = vpop.f32.mrb[0].mxu0
    %1350 = vmatprep.mubr.f32.mxu0 0.0
    %v1351 = vand.u32 %v241, 4294901760
    %1352 = vmatmul.mubr.f32.gmra.mrb[0].mxu0 %v1351
    %v1353 = vpop.f32.mrb[0].mxu0
    %v1354 = vadd.f32 %v1141, %v1353
    %v1355 = vpop.f32.mrb[0].mxu0
    %1356 = vmatprep.mubr.f32.mxu0 0.0
    %v1357 = vand.u32 %v242, 4294901760
    %1358 = vmatmul.mubr.f32.gmra.mrb[0].mxu0 %v1357
    %v1359 = vpop.f32.mrb[0].mxu0
    %v1360 = vadd.f32 %v1149, %v1359
    %v1361 = vpop.f32.mrb[0].mxu0
    %1362 = vmatprep.mubr.f32.mxu0 0.0
    %v1363 = vand.u32 %v243, 4294901760
    %1364 = vmatmul.mubr.f32.gmra.mrb[0].mxu0 %v1363
    %v1365 = vpop.f32.mrb[0].mxu0
    %v1366 = vadd.f32 %v1157, %v1365
    %v1367 = vpop.f32.mrb[0].mxu0
    %1368 = vdwg.mxu0
    %1369 = vmatprep.subr.mxu0 0.0
    %v1370 = vand.u32 %v244, 4294901760
    %1371 = vmatpush1.msra.mxu0 %v1370
    %1372 = vmatprep.subr.mxu0 0.0
    %v1373 = vand.u32 %v245, 4294901760
    %1374 = vmatpush1.msra.mxu0 %v1373
    %1375 = vmatprep.subr.mxu0 0.0
    %v1376 = vand.u32 %v246, 4294901760
    %1377 = vmatpush1.msra.mxu0 %v1376
    %1378 = vmatprep.subr.mxu0 0.0
    %v1379 = vand.u32 %v247, 4294901760
    %1380 = vmatpush1.msra.mxu0 %v1379
    %1381 = vmatprep.subr.mxu0 0.0
    %v1382 = vand.u32 %v248, 4294901760
    %1383 = vmatpush1.msra.mxu0 %v1382
    %1384 = vmatprep.subr.mxu0 0.0
    %v1385 = vand.u32 %v249, 4294901760
    %1386 = vmatpush1.msra.mxu0 %v1385
    %1387 = vmatprep.subr.mxu0 0.0
    %v1388 = vand.u32 %v250, 4294901760
    %1389 = vmatpush1.msra.mxu0 %v1388
    %1390 = vmatprep.subr.mxu0 0.0
    %v1391 = vand.u32 %v251, 4294901760
    %1392 = vmatpush1.msra.mxu0 %v1391
    %1393 = vmatprep.subr.mxu0 0.0
    %v1394 = vand.u32 %v252, 4294901760
    %1395 = vmatpush1.msra.mxu0 %v1394
    %1396 = vmatprep.subr.mxu0 0.0
    %v1397 = vand.u32 %v253, 4294901760
    %1398 = vmatpush1.msra.mxu0 %v1397
    %1399 = vmatprep.subr.mxu0 0.0
    %v1400 = vand.u32 %v254, 4294901760
    %1401 = vmatpush1.msra.mxu0 %v1400
    %1402 = vmatprep.subr.mxu0 0.0
    %v1403 = vand.u32 %v255, 4294901760
    %1404 = vmatpush1.msra.mxu0 %v1403
    %1405 = vmatprep.subr.mxu0 0.0
    %v1406 = vand.u32 %v256, 4294901760
    %1407 = vmatpush1.msra.mxu0 %v1406
    %1408 = vmatprep.subr.mxu0 0.0
    %v1409 = vand.u32 %v257, 4294901760
    %1410 = vmatpush1.msra.mxu0 %v1409
    %1411 = vmatprep.subr.mxu0 0.0
    %v1412 = vand.u32 %v258, 4294901760
    %1413 = vmatpush1.msra.mxu0 %v1412
    %1414 = vmatprep.subr.mxu0 0.0
    %v1415 = vand.u32 %v259, 4294901760
    %1416 = vmatpush1.msra.mxu0 %v1415
    %1417 = vmatprep.subr.mxu0 0.0
    %1418 = vmatpush1.msra.mxu0 0.0
    %1419 = vmatprep.subr.mxu0 0.0
    %1420 = vmatpush1.msra.mxu0 0.0
    %1421 = vmatprep.subr.mxu0 0.0
    %1422 = vmatpush1.msra.mxu0 0.0
    %1423 = vmatprep.subr.mxu0 0.0
    %1424 = vmatpush1.msra.mxu0 0.0
    %1425 = vmatprep.subr.mxu0 0.0
    %1426 = vmatpush1.msra.mxu0 0.0
    %1427 = vmatprep.subr.mxu0 0.0
    %1428 = vmatpush1.msra.mxu0 0.0
    %1429 = vmatprep.subr.mxu0 0.0
    %1430 = vmatpush1.msra.mxu0 0.0
    %1431 = vmatprep.subr.mxu0 0.0
    %1432 = vmatpush1.msra.mxu0 0.0
    %1433 = vmatprep.subr.mxu0 0.0
    %1434 = vmatpush1.msra.mxu0 0.0
    %1435 = vmatprep.subr.mxu0 0.0
    %1436 = vmatpush1.msra.mxu0 0.0
    %1437 = vmatprep.subr.mxu0 0.0
    %1438 = vmatpush1.msra.mxu0 0.0
    %1439 = vmatprep.subr.mxu0 0.0
    %1440 = vmatpush1.msra.mxu0 0.0
    %1441 = vmatprep.subr.mxu0 0.0
    %1442 = vmatpush1.msra.mxu0 0.0
    %1443 = vmatprep.subr.mxu0 0.0
    %1444 = vmatpush1.msra.mxu0 0.0
    %1445 = vmatprep.subr.mxu0 0.0
    %1446 = vmatpush1.msra.mxu0 0.0
    %1447 = vmatprep.subr.mxu0 0.0
    %1448 = vmatpush1.msra.mxu0 0.0
    %1449 = vmatprep.mubr.f32.mxu0 0.0
    %v1450 = vand.u32 %v228, 4294901760
    %1451 = vmatmul.mubr.f32.gmra.mrb[0].mxu0 %v1450
    %v1452 = vpop.f32.mrb[0].mxu0
    %v1453 = vadd.f32 %v1276, %v1452
    %v1454 = vpop.f32.mrb[0].mxu0
    %1455 = vmatprep.mubr.f32.mxu0 0.0
    %v1456 = vand.u32 %v229, 4294901760
    %1457 = vmatmul.mubr.f32.gmra.mrb[0].mxu0 %v1456
    %v1458 = vpop.f32.mrb[0].mxu0
    %v1459 = vadd.f32 %v1282, %v1458
    %v1460 = vpop.f32.mrb[0].mxu0
    %1461 = vmatprep.mubr.f32.mxu0 0.0
    %v1462 = vand.u32 %v230, 4294901760
    %1463 = vmatmul.mubr.f32.gmra.mrb[0].mxu0 %v1462
    %v1464 = vpop.f32.mrb[0].mxu0
    %v1465 = vadd.f32 %v1288, %v1464
    %v1466 = vpop.f32.mrb[0].mxu0
    %1467 = vmatprep.mubr.f32.mxu0 0.0
    %v1468 = vand.u32 %v231, 4294901760
    %1469 = vmatmul.mubr.f32.gmra.mrb[0].mxu0 %v1468
    %v1470 = vpop.f32.mrb[0].mxu0
    %v1471 = vadd.f32 %v1294, %v1470
    %v1472 = vpop.f32.mrb[0].mxu0
    %1473 = vmatprep.mubr.f32.mxu0 0.0
    %v1474 = vand.u32 %v232, 4294901760
    %1475 = vmatmul.mubr.f32.gmra.mrb[0].mxu0 %v1474
    %v1476 = vpop.f32.mrb[0].mxu0
    %v1477 = vadd.f32 %v1300, %v1476
    %v1478 = vpop.f32.mrb[0].mxu0
    %1479 = vmatprep.mubr.f32.mxu0 0.0
    %v1480 = vand.u32 %v233, 4294901760
    %1481 = vmatmul.mubr.f32.gmra.mrb[0].mxu0 %v1480
    %v1482 = vpop.f32.mrb[0].mxu0
    %v1483 = vadd.f32 %v1306, %v1482
    %v1484 = vpop.f32.mrb[0].mxu0
    %1485 = vmatprep.mubr.f32.mxu0 0.0
    %v1486 = vand.u32 %v234, 4294901760
    %1487 = vmatmul.mubr.f32.gmra.mrb[0].mxu0 %v1486
    %v1488 = vpop.f32.mrb[0].mxu0
    %v1489 = vadd.f32 %v1312, %v1488
    %v1490 = vpop.f32.mrb[0].mxu0
    %1491 = vmatprep.mubr.f32.mxu0 0.0
    %v1492 = vand.u32 %v235, 4294901760
    %1493 = vmatmul.mubr.f32.gmra.mrb[0].mxu0 %v1492
    %v1494 = vpop.f32.mrb[0].mxu0
    %v1495 = vadd.f32 %v1318, %v1494
    %v1496 = vpop.f32.mrb[0].mxu0
    %1497 = vmatprep.mubr.f32.mxu0 0.0
    %v1498 = vand.u32 %v236, 4294901760
    %1499 = vmatmul.mubr.f32.gmra.mrb[0].mxu0 %v1498
    %v1500 = vpop.f32.mrb[0].mxu0
    %v1501 = vadd.f32 %v1324, %v1500
    %v1502 = vpop.f32.mrb[0].mxu0
    %1503 = vmatprep.mubr.f32.mxu0 0.0
    %v1504 = vand.u32 %v237, 4294901760
    %1505 = vmatmul.mubr.f32.gmra.mrb[0].mxu0 %v1504
    %v1506 = vpop.f32.mrb[0].mxu0
    %v1507 = vadd.f32 %v1330, %v1506
    %v1508 = vpop.f32.mrb[0].mxu0
    %1509 = vmatprep.mubr.f32.mxu0 0.0
    %v1510 = vand.u32 %v238, 4294901760
    %1511 = vmatmul.mubr.f32.gmra.mrb[0].mxu0 %v1510
    %v1512 = vpop.f32.mrb[0].mxu0
    %v1513 = vadd.f32 %v1336, %v1512
    %v1514 = vpop.f32.mrb[0].mxu0
    %1515 = vmatprep.mubr.f32.mxu0 0.0
    %v1516 = vand.u32 %v239, 4294901760
    %1517 = vmatmul.mubr.f32.gmra.mrb[0].mxu0 %v1516
    %v1518 = vpop.f32.mrb[0].mxu0
    %v1519 = vadd.f32 %v1342, %v1518
    %v1520 = vpop.f32.mrb[0].mxu0
    %1521 = vmatprep.mubr.f32.mxu0 0.0
    %v1522 = vand.u32 %v240, 4294901760
    %1523 = vmatmul.mubr.f32.gmra.mrb[0].mxu0 %v1522
    %v1524 = vpop.f32.mrb[0].mxu0
    %v1525 = vadd.f32 %v1348, %v1524
    %v1526 = vpop.f32.mrb[0].mxu0
    %1527 = vmatprep.mubr.f32.mxu0 0.0
    %v1528 = vand.u32 %v241, 4294901760
    %1529 = vmatmul.mubr.f32.gmra.mrb[0].mxu0 %v1528
    %v1530 = vpop.f32.mrb[0].mxu0
    %v1531 = vadd.f32 %v1354, %v1530
    %v1532 = vpop.f32.mrb[0].mxu0
    %1533 = vmatprep.mubr.f32.mxu0 0.0
    %v1534 = vand.u32 %v242, 4294901760
    %1535 = vmatmul.mubr.f32.gmra.mrb[0].mxu0 %v1534
    %v1536 = vpop.f32.mrb[0].mxu0
    %v1537 = vadd.f32 %v1360, %v1536
    %v1538 = vpop.f32.mrb[0].mxu0
    %1539 = vmatprep.mubr.f32.mxu0 0.0
    %v1540 = vand.u32 %v243, 4294901760
    %1541 = vmatmul.mubr.f32.gmra.mrb[0].mxu0 %v1540
    %v1542 = vpop.f32.mrb[0].mxu0
    %v1543 = vadd.f32 %v1366, %v1542
    %v1544 = vpop.f32.mrb[0].mxu0
    %1545 = vdwg.mxu0
    %1546 = vmax.xlane.f32.xlu0 %v1453
    %v1547 = vpop.xlane.xlu0 %1546
    %1548 = vmax.xlane.f32.xlu0 %v1459
    %v1549 = vpop.xlane.xlu0 %1548
    %1550 = vmax.xlane.f32.xlu0 %v1465
    %v1551 = vpop.xlane.xlu0 %1550
    %1552 = vmax.xlane.f32.xlu0 %v1471
    %v1553 = vpop.xlane.xlu0 %1552
    %1554 = vmax.xlane.f32.xlu0 %v1477
    %v1555 = vpop.xlane.xlu0 %1554
    %1556 = vmax.xlane.f32.xlu0 %v1483
    %v1557 = vpop.xlane.xlu0 %1556
    %1558 = vmax.xlane.f32.xlu0 %v1489
    %v1559 = vpop.xlane.xlu0 %1558
    %1560 = vmax.xlane.f32.xlu0 %v1495
    %v1561 = vpop.xlane.xlu0 %1560
    %1562 = vmax.xlane.f32.xlu0 %v1501
    %v1563 = vpop.xlane.xlu0 %1562
    %1564 = vmax.xlane.f32.xlu0 %v1507
    %v1565 = vpop.xlane.xlu0 %1564
    %1566 = vmax.xlane.f32.xlu0 %v1513
    %v1567 = vpop.xlane.xlu0 %1566
    %1568 = vmax.xlane.f32.xlu0 %v1519
    %v1569 = vpop.xlane.xlu0 %1568
    %1570 = vmax.xlane.f32.xlu0 %v1525
    %v1571 = vpop.xlane.xlu0 %1570
    %1572 = vmax.xlane.f32.xlu0 %v1531
    %v1573 = vpop.xlane.xlu0 %1572
    %1574 = vmax.xlane.f32.xlu0 %v1537
    %v1575 = vpop.xlane.xlu0 %1574
    %1576 = vmax.xlane.f32.xlu0 %v1543
    %v1577 = vpop.xlane.xlu0 %1576
    %v1578 = vld [vmem:[#allocation2] sm:$0xff]
    %v1579 = vld [vmem:[#allocation2 + $0x8] sm:$0xff]
    %v1580 = vld [vmem:[#allocation2 + $0x10] sm:$0xff]
    %v1581 = vld [vmem:[#allocation2 + $0x18] sm:$0xff]
    %v1582 = vld [vmem:[#allocation2 + $0x20] sm:$0xff]
    %v1583 = vld [vmem:[#allocation2 + $0x28] sm:$0xff]
    %v1584 = vld [vmem:[#allocation2 + $0x30] sm:$0xff]
    %v1585 = vld [vmem:[#allocation2 + $0x38] sm:$0xff]
    %v1586 = vld [vmem:[#allocation2 + $0x40] sm:$0xff]
    %v1587 = vld [vmem:[#allocation2 + $0x48] sm:$0xff]
    %v1588 = vld [vmem:[#allocation2 + $0x50] sm:$0xff]
    %v1589 = vld [vmem:[#allocation2 + $0x58] sm:$0xff]
    %v1590 = vld [vmem:[#allocation2 + $0x60] sm:$0xff]
    %v1591 = vld [vmem:[#allocation2 + $0x68] sm:$0xff]
    %v1592 = vld [vmem:[#allocation2 + $0x70] sm:$0xff]
    %v1593 = vld [vmem:[#allocation2 + $0x78] sm:$0xff]
    %v1594 = vmax.f32 %v1578, %v1547
    %v1595 = vmax.f32 %v1579, %v1549
    %v1596 = vmax.f32 %v1580, %v1551
    %v1597 = vmax.f32 %v1581, %v1553
    %v1598 = vmax.f32 %v1582, %v1555
    %v1599 = vmax.f32 %v1583, %v1557
    %v1600 = vmax.f32 %v1584, %v1559
    %v1601 = vmax.f32 %v1585, %v1561
    %v1602 = vmax.f32 %v1586, %v1563
    %v1603 = vmax.f32 %v1587, %v1565
    %v1604 = vmax.f32 %v1588, %v1567
    %v1605 = vmax.f32 %v1589, %v1569
    %v1606 = vmax.f32 %v1590, %v1571
    %v1607 = vmax.f32 %v1591, %v1573
    %v1608 = vmax.f32 %v1592, %v1575
    %v1609 = vmax.f32 %v1593, %v1577
    %v1610 = vsub.f32 %v1578, %v1594
    %v1611 = vsub.f32 %v1579, %v1595
    %v1612 = vsub.f32 %v1580, %v1596
    %v1613 = vsub.f32 %v1581, %v1597
    %v1614 = vsub.f32 %v1582, %v1598
    %v1615 = vsub.f32 %v1583, %v1599
    %v1616 = vsub.f32 %v1584, %v1600
    %v1617 = vsub.f32 %v1585, %v1601
    %v1618 = vsub.f32 %v1586, %v1602
    %v1619 = vsub.f32 %v1587, %v1603
    %v1620 = vsub.f32 %v1588, %v1604
    %v1621 = vsub.f32 %v1589, %v1605
    %v1622 = vsub.f32 %v1590, %v1606
    %v1623 = vsub.f32 %v1591, %v1607
    %v1624 = vsub.f32 %v1592, %v1608
    %v1625 = vsub.f32 %v1593, %v1609
    %v1626 = vmul.f32 %v1610, 1.442695
    %v1627 = vpow.pop %v1626
    %v1628 = vmul.f32 %v1611, 1.442695
    %v1629 = vpow.pop %v1628
    %v1630 = vmul.f32 %v1612, 1.442695
    %v1631 = vpow.pop %v1630
    %v1632 = vmul.f32 %v1613, 1.442695
    %v1633 = vpow.pop %v1632
    %v1634 = vmul.f32 %v1614, 1.442695
    %v1635 = vpow.pop %v1634
    %v1636 = vmul.f32 %v1615, 1.442695
    %v1637 = vpow.pop %v1636
    %v1638 = vmul.f32 %v1616, 1.442695
    %v1639 = vpow.pop %v1638
    %v1640 = vmul.f32 %v1617, 1.442695
    %v1641 = vpow.pop %v1640
    %v1642 = vmul.f32 %v1618, 1.442695
    %v1643 = vpow.pop %v1642
    %v1644 = vmul.f32 %v1619, 1.442695
    %v1645 = vpow.pop %v1644
    %v1646 = vmul.f32 %v1620, 1.442695
    %v1647 = vpow.pop %v1646
    %v1648 = vmul.f32 %v1621, 1.442695
    %v1649 = vpow.pop %v1648
    %v1650 = vmul.f32 %v1622, 1.442695
    %v1651 = vpow.pop %v1650
    %v1652 = vmul.f32 %v1623, 1.442695
    %v1653 = vpow.pop %v1652
    %v1654 = vmul.f32 %v1624, 1.442695
    %v1655 = vpow.pop %v1654
    %v1656 = vmul.f32 %v1625, 1.442695
    %v1657 = vpow.pop %v1656
    %1659 = vset.pattern.permute.xlu0 0
    %1660 = vperm.xlu0 %1659, %v1594
    %v1661 = vpop.permute.xlu0 %1660
    %1664 = vset.pattern.permute.xlu0 0
    %1665 = vperm.xlu0 %1664, %v1595
    %v1666 = vpop.permute.xlu0 %1665
    %1669 = vset.pattern.permute.xlu0 0
    %1670 = vperm.xlu0 %1669, %v1596
    %v1671 = vpop.permute.xlu0 %1670
    %1674 = vset.pattern.permute.xlu0 0
    %1675 = vperm.xlu0 %1674, %v1597
    %v1676 = vpop.permute.xlu0 %1675
    %1679 = vset.pattern.permute.xlu0 0
    %1680 = vperm.xlu0 %1679, %v1598
    %v1681 = vpop.permute.xlu0 %1680
    %1684 = vset.pattern.permute.xlu0 0
    %1685 = vperm.xlu0 %1684, %v1599
    %v1686 = vpop.permute.xlu0 %1685
    %1689 = vset.pattern.permute.xlu0 0
    %1690 = vperm.xlu0 %1689, %v1600
    %v1691 = vpop.permute.xlu0 %1690
    %1694 = vset.pattern.permute.xlu0 0
    %1695 = vperm.xlu0 %1694, %v1601
    %v1696 = vpop.permute.xlu0 %1695
    %1699 = vset.pattern.permute.xlu0 0
    %1700 = vperm.xlu0 %1699, %v1602
    %v1701 = vpop.permute.xlu0 %1700
    %1704 = vset.pattern.permute.xlu0 0
    %1705 = vperm.xlu0 %1704, %v1603
    %v1706 = vpop.permute.xlu0 %1705
    %1709 = vset.pattern.permute.xlu0 0
    %1710 = vperm.xlu0 %1709, %v1604
    %v1711 = vpop.permute.xlu0 %1710
    %1714 = vset.pattern.permute.xlu0 0
    %1715 = vperm.xlu0 %1714, %v1605
    %v1716 = vpop.permute.xlu0 %1715
    %1719 = vset.pattern.permute.xlu0 0
    %1720 = vperm.xlu0 %1719, %v1606
    %v1721 = vpop.permute.xlu0 %1720
    %1724 = vset.pattern.permute.xlu0 0
    %1725 = vperm.xlu0 %1724, %v1607
    %v1726 = vpop.permute.xlu0 %1725
    %1729 = vset.pattern.permute.xlu0 0
    %1730 = vperm.xlu0 %1729, %v1608
    %v1731 = vpop.permute.xlu0 %1730
    %1734 = vset.pattern.permute.xlu0 0
    %1735 = vperm.xlu0 %1734, %v1609
    %v1736 = vpop.permute.xlu0 %1735
    %v1738 = vsub.f32 %v1453, %v1661
    %v1739 = vsub.f32 %v1459, %v1666
    %v1740 = vsub.f32 %v1465, %v1671
    %v1741 = vsub.f32 %v1471, %v1676
    %v1742 = vsub.f32 %v1477, %v1681
    %v1743 = vsub.f32 %v1483, %v1686
    %v1744 = vsub.f32 %v1489, %v1691
    %v1745 = vsub.f32 %v1495, %v1696
    %v1746 = vsub.f32 %v1501, %v1701
    %v1747 = vsub.f32 %v1507, %v1706
    %v1748 = vsub.f32 %v1513, %v1711
    %v1749 = vsub.f32 %v1519, %v1716
    %v1750 = vsub.f32 %v1525, %v1721
    %v1751 = vsub.f32 %v1531, %v1726
    %v1752 = vsub.f32 %v1537, %v1731
    %v1753 = vsub.f32 %v1543, %v1736
    %v1754 = vmul.f32 %v1738, 1.442695
    %v1755 = vpow.pop %v1754
    %v1756 = vmul.f32 %v1739, 1.442695
    %v1757 = vpow.pop %v1756
    %v1758 = vmul.f32 %v1740, 1.442695
    %v1759 = vpow.pop %v1758
    %v1760 = vmul.f32 %v1741, 1.442695
    %v1761 = vpow.pop %v1760
    %v1762 = vmul.f32 %v1742, 1.442695
    %v1763 = vpow.pop %v1762
    %v1764 = vmul.f32 %v1743, 1.442695
    %v1765 = vpow.pop %v1764
    %v1766 = vmul.f32 %v1744, 1.442695
    %v1767 = vpow.pop %v1766
    %v1768 = vmul.f32 %v1745, 1.442695
    %v1769 = vpow.pop %v1768
    %v1770 = vmul.f32 %v1746, 1.442695
    %v1771 = vpow.pop %v1770
    %v1772 = vmul.f32 %v1747, 1.442695
    %v1773 = vpow.pop %v1772
    %v1774 = vmul.f32 %v1748, 1.442695
    %v1775 = vpow.pop %v1774
    %v1776 = vmul.f32 %v1749, 1.442695
    %v1777 = vpow.pop %v1776
    %v1778 = vmul.f32 %v1750, 1.442695
    %v1779 = vpow.pop %v1778
    %v1780 = vmul.f32 %v1751, 1.442695
    %v1781 = vpow.pop %v1780
    %v1782 = vmul.f32 %v1752, 1.442695
    %v1783 = vpow.pop %v1782
    %v1784 = vmul.f32 %v1753, 1.442695
    %v1785 = vpow.pop %v1784
    %v1786 = vld [vmem:[#allocation3] sm:$0xff]
    %v1787 = vld [vmem:[#allocation3 + $0x8] sm:$0xff]
    %v1788 = vld [vmem:[#allocation3 + $0x10] sm:$0xff]
    %v1789 = vld [vmem:[#allocation3 + $0x18] sm:$0xff]
    %v1790 = vld [vmem:[#allocation3 + $0x20] sm:$0xff]
    %v1791 = vld [vmem:[#allocation3 + $0x28] sm:$0xff]
    %v1792 = vld [vmem:[#allocation3 + $0x30] sm:$0xff]
    %v1793 = vld [vmem:[#allocation3 + $0x38] sm:$0xff]
    %v1794 = vld [vmem:[#allocation3 + $0x40] sm:$0xff]
    %v1795 = vld [vmem:[#allocation3 + $0x48] sm:$0xff]
    %v1796 = vld [vmem:[#allocation3 + $0x50] sm:$0xff]
    %v1797 = vld [vmem:[#allocation3 + $0x58] sm:$0xff]
    %v1798 = vld [vmem:[#allocation3 + $0x60] sm:$0xff]
    %v1799 = vld [vmem:[#allocation3 + $0x68] sm:$0xff]
    %v1800 = vld [vmem:[#allocation3 + $0x70] sm:$0xff]
    %v1801 = vld [vmem:[#allocation3 + $0x78] sm:$0xff]
    %1803 = vset.pattern.permute.xlu0 0
    %1804 = vperm.xlu0 %1803, %v1627
    %v1805 = vpop.permute.xlu0 %1804
    %1808 = vset.pattern.permute.xlu0 0
    %1809 = vperm.xlu0 %1808, %v1629
    %v1810 = vpop.permute.xlu0 %1809
    %1813 = vset.pattern.permute.xlu0 0
    %1814 = vperm.xlu0 %1813, %v1631
    %v1815 = vpop.permute.xlu0 %1814
    %1818 = vset.pattern.permute.xlu0 0
    %1819 = vperm.xlu0 %1818, %v1633
    %v1820 = vpop.permute.xlu0 %1819
    %1823 = vset.pattern.permute.xlu0 0
    %1824 = vperm.xlu0 %1823, %v1635
    %v1825 = vpop.permute.xlu0 %1824
    %1828 = vset.pattern.permute.xlu0 0
    %1829 = vperm.xlu0 %1828, %v1637
    %v1830 = vpop.permute.xlu0 %1829
    %1833 = vset.pattern.permute.xlu0 0
    %1834 = vperm.xlu0 %1833, %v1639
    %v1835 = vpop.permute.xlu0 %1834
    %1838 = vset.pattern.permute.xlu0 0
    %1839 = vperm.xlu0 %1838, %v1641
    %v1840 = vpop.permute.xlu0 %1839
    %1843 = vset.pattern.permute.xlu0 0
    %1844 = vperm.xlu0 %1843, %v1643
    %v1845 = vpop.permute.xlu0 %1844
    %1848 = vset.pattern.permute.xlu0 0
    %1849 = vperm.xlu0 %1848, %v1645
    %v1850 = vpop.permute.xlu0 %1849
    %1853 = vset.pattern.permute.xlu0 0
    %1854 = vperm.xlu0 %1853, %v1647
    %v1855 = vpop.permute.xlu0 %1854
    %1858 = vset.pattern.permute.xlu0 0
    %1859 = vperm.xlu0 %1858, %v1649
    %v1860 = vpop.permute.xlu0 %1859
    %1863 = vset.pattern.permute.xlu0 0
    %1864 = vperm.xlu0 %1863, %v1651
    %v1865 = vpop.permute.xlu0 %1864
    %1868 = vset.pattern.permute.xlu0 0
    %1869 = vperm.xlu0 %1868, %v1653
    %v1870 = vpop.permute.xlu0 %1869
    %1873 = vset.pattern.permute.xlu0 0
    %1874 = vperm.xlu0 %1873, %v1655
    %v1875 = vpop.permute.xlu0 %1874
    %1878 = vset.pattern.permute.xlu0 0
    %1879 = vperm.xlu0 %1878, %v1657
    %v1880 = vpop.permute.xlu0 %1879
    %v1882 = vmul.f32 %v1805, %v1786
    %v1883 = vmul.f32 %v1810, %v1787
    %v1884 = vmul.f32 %v1815, %v1788
    %v1885 = vmul.f32 %v1820, %v1789
    %v1886 = vmul.f32 %v1825, %v1790
    %v1887 = vmul.f32 %v1830, %v1791
    %v1888 = vmul.f32 %v1835, %v1792
    %v1889 = vmul.f32 %v1840, %v1793
    %v1890 = vmul.f32 %v1845, %v1794
    %v1891 = vmul.f32 %v1850, %v1795
    %v1892 = vmul.f32 %v1855, %v1796
    %v1893 = vmul.f32 %v1860, %v1797
    %v1894 = vmul.f32 %v1865, %v1798
    %v1895 = vmul.f32 %v1870, %v1799
    %v1896 = vmul.f32 %v1875, %v1800
    %v1897 = vmul.f32 %v1880, %v1801
    %v1898 = vld [vmem:[#allocation10] sm:$0xff]
    %v1899 = vld [vmem:[#allocation10 + $0x8] sm:$0xff]
    %v1900 = vld [vmem:[#allocation10 + $0x10] sm:$0xff]
    %v1901 = vld [vmem:[#allocation10 + $0x18] sm:$0xff]
    %v1902 = vld [vmem:[#allocation10 + $0x20] sm:$0xff]
    %v1903 = vld [vmem:[#allocation10 + $0x28] sm:$0xff]
    %v1904 = vld [vmem:[#allocation10 + $0x30] sm:$0xff]
    %v1905 = vld [vmem:[#allocation10 + $0x38] sm:$0xff]
    %v1906 = vld [vmem:[#allocation10 + $0x40] sm:$0xff]
    %v1907 = vld [vmem:[#allocation10 + $0x48] sm:$0xff]
    %v1908 = vld [vmem:[#allocation10 + $0x50] sm:$0xff]
    %v1909 = vld [vmem:[#allocation10 + $0x58] sm:$0xff]
    %v1910 = vld [vmem:[#allocation10 + $0x60] sm:$0xff]
    %v1911 = vld [vmem:[#allocation10 + $0x68] sm:$0xff]
    %v1912 = vld [vmem:[#allocation10 + $0x70] sm:$0xff]
    %v1913 = vld [vmem:[#allocation10 + $0x78] sm:$0xff]
    %1914 = vmatprep.subr.mxu0 0.0
    %v1915 = vand.u32 %v1898, 4294901760
    %1916 = vmatpush1.msra.mxu0 %v1915
    %1917 = vmatprep.subr.mxu0 0.0
    %v1918 = vand.u32 %v1899, 4294901760
    %1919 = vmatpush1.msra.mxu0 %v1918
    %1920 = vmatprep.subr.mxu0 0.0
    %v1921 = vand.u32 %v1900, 4294901760
    %1922 = vmatpush1.msra.mxu0 %v1921
    %1923 = vmatprep.subr.mxu0 0.0
    %v1924 = vand.u32 %v1901, 4294901760
    %1925 = vmatpush1.msra.mxu0 %v1924
    %1926 = vmatprep.subr.mxu0 0.0
    %v1927 = vand.u32 %v1902, 4294901760
    %1928 = vmatpush1.msra.mxu0 %v1927
    %1929 = vmatprep.subr.mxu0 0.0
    %v1930 = vand.u32 %v1903, 4294901760
    %1931 = vmatpush1.msra.mxu0 %v1930
    %1932 = vmatprep.subr.mxu0 0.0
    %v1933 = vand.u32 %v1904, 4294901760
    %1934 = vmatpush1.msra.mxu0 %v1933
    %1935 = vmatprep.subr.mxu0 0.0
    %v1936 = vand.u32 %v1905, 4294901760
    %1937 = vmatpush1.msra.mxu0 %v1936
    %1938 = vmatprep.subr.mxu0 0.0
    %v1939 = vand.u32 %v1906, 4294901760
    %1940 = vmatpush1.msra.mxu0 %v1939
    %1941 = vmatprep.subr.mxu0 0.0
    %v1942 = vand.u32 %v1907, 4294901760
    %1943 = vmatpush1.msra.mxu0 %v1942
    %1944 = vmatprep.subr.mxu0 0.0
    %v1945 = vand.u32 %v1908, 4294901760
    %1946 = vmatpush1.msra.mxu0 %v1945
    %1947 = vmatprep.subr.mxu0 0.0
    %v1948 = vand.u32 %v1909, 4294901760
    %1949 = vmatpush1.msra.mxu0 %v1948
    %1950 = vmatprep.subr.mxu0 0.0
    %v1951 = vand.u32 %v1910, 4294901760
    %1952 = vmatpush1.msra.mxu0 %v1951
    %1953 = vmatprep.subr.mxu0 0.0
    %v1954 = vand.u32 %v1911, 4294901760
    %1955 = vmatpush1.msra.mxu0 %v1954
    %1956 = vmatprep.subr.mxu0 0.0
    %v1957 = vand.u32 %v1912, 4294901760
    %1958 = vmatpush1.msra.mxu0 %v1957
    %1959 = vmatprep.subr.mxu0 0.0
    %v1960 = vand.u32 %v1913, 4294901760
    %1961 = vmatpush1.msra.mxu0 %v1960
    %1962 = vmatprep.subr.mxu0 0.0
    %1963 = vmatpush1.msra.mxu0 0.0
    %1964 = vmatprep.subr.mxu0 0.0
    %1965 = vmatpush1.msra.mxu0 0.0
    %1966 = vmatprep.subr.mxu0 0.0
    %1967 = vmatpush1.msra.mxu0 0.0
    %1968 = vmatprep.subr.mxu0 0.0
    %1969 = vmatpush1.msra.mxu0 0.0
    %1970 = vmatprep.subr.mxu0 0.0
    %1971 = vmatpush1.msra.mxu0 0.0
    %1972 = vmatprep.subr.mxu0 0.0
    %1973 = vmatpush1.msra.mxu0 0.0
    %1974 = vmatprep.subr.mxu0 0.0
    %1975 = vmatpush1.msra.mxu0 0.0
    %1976 = vmatprep.subr.mxu0 0.0
    %1977 = vmatpush1.msra.mxu0 0.0
    %1978 = vmatprep.subr.mxu0 0.0
    %1979 = vmatpush1.msra.mxu0 0.0
    %1980 = vmatprep.subr.mxu0 0.0
    %1981 = vmatpush1.msra.mxu0 0.0
    %1982 = vmatprep.subr.mxu0 0.0
    %1983 = vmatpush1.msra.mxu0 0.0
    %1984 = vmatprep.subr.mxu0 0.0
    %1985 = vmatpush1.msra.mxu0 0.0
    %1986 = vmatprep.subr.mxu0 0.0
    %1987 = vmatpush1.msra.mxu0 0.0
    %1988 = vmatprep.subr.mxu0 0.0
    %1989 = vmatpush1.msra.mxu0 0.0
    %1990 = vmatprep.subr.mxu0 0.0
    %1991 = vmatpush1.msra.mxu0 0.0
    %1992 = vmatprep.subr.mxu0 0.0
    %1993 = vmatpush1.msra.mxu0 0.0
    %1994 = vmatprep.mubr.f32.mxu0 0.0
    %v1995 = vand.u32 %v1755, 4294901760
    %v1996 = vsub.f32 %v1755, %v1995
    %v1997 = vand.u32 %v1996, 4294901760
    %v1998 = vsub.f32 %v1996, %v1997
    %v1999 = vand.u32 %v1998, 4294901760
    %2000 = vmatmul.mubr.f32.gmra.mrb[0].mxu0 %v1999
    %v2001 = vpop.f32.mrb[0].mxu0
    %v2002 = vadd.f32 0.0, %v2001
    %v2003 = vpop.f32.mrb[0].mxu0
    %2004 = vmatprep.mubr.f32.mxu0 0.0
    %v2005 = vand.u32 %v1757, 4294901760
    %v2006 = vsub.f32 %v1757, %v2005
    %v2007 = vand.u32 %v2006, 4294901760
    %v2008 = vsub.f32 %v2006, %v2007
    %v2009 = vand.u32 %v2008, 4294901760
    %2010 = vmatmul.mubr.f32.gmra.mrb[0].mxu0 %v2009
    %v2011 = vpop.f32.mrb[0].mxu0
    %v2012 = vadd.f32 0.0, %v2011
    %v2013 = vpop.f32.mrb[0].mxu0
    %2014 = vmatprep.mubr.f32.mxu0 0.0
    %v2015 = vand.u32 %v1759, 4294901760
    %v2016 = vsub.f32 %v1759, %v2015
    %v2017 = vand.u32 %v2016, 4294901760
    %v2018 = vsub.f32 %v2016, %v2017
    %v2019 = vand.u32 %v2018, 4294901760
    %2020 = vmatmul.mubr.f32.gmra.mrb[0].mxu0 %v2019
    %v2021 = vpop.f32.mrb[0].mxu0
    %v2022 = vadd.f32 0.0, %v2021
    %v2023 = vpop.f32.mrb[0].mxu0
    %2024 = vmatprep.mubr.f32.mxu0 0.0
    %v2025 = vand.u32 %v1761, 4294901760
    %v2026 = vsub.f32 %v1761, %v2025
    %v2027 = vand.u32 %v2026, 4294901760
    %v2028 = vsub.f32 %v2026, %v2027
    %v2029 = vand.u32 %v2028, 4294901760
    %2030 = vmatmul.mubr.f32.gmra.mrb[0].mxu0 %v2029
    %v2031 = vpop.f32.mrb[0].mxu0
    %v2032 = vadd.f32 0.0, %v2031
    %v2033 = vpop.f32.mrb[0].mxu0
    %2034 = vmatprep.mubr.f32.mxu0 0.0
    %v2035 = vand.u32 %v1763, 4294901760
    %v2036 = vsub.f32 %v1763, %v2035
    %v2037 = vand.u32 %v2036, 4294901760
    %v2038 = vsub.f32 %v2036, %v2037
    %v2039 = vand.u32 %v2038, 4294901760
    %2040 = vmatmul.mubr.f32.gmra.mrb[0].mxu0 %v2039
    %v2041 = vpop.f32.mrb[0].mxu0
    %v2042 = vadd.f32 0.0, %v2041
    %v2043 = vpop.f32.mrb[0].mxu0
    %2044 = vmatprep.mubr.f32.mxu0 0.0
    %v2045 = vand.u32 %v1765, 4294901760
    %v2046 = vsub.f32 %v1765, %v2045
    %v2047 = vand.u32 %v2046, 4294901760
    %v2048 = vsub.f32 %v2046, %v2047
    %v2049 = vand.u32 %v2048, 4294901760
    %2050 = vmatmul.mubr.f32.gmra.mrb[0].mxu0 %v2049
    %v2051 = vpop.f32.mrb[0].mxu0
    %v2052 = vadd.f32 0.0, %v2051
    %v2053 = vpop.f32.mrb[0].mxu0
    %2054 = vmatprep.mubr.f32.mxu0 0.0
    %v2055 = vand.u32 %v1767, 4294901760
    %v2056 = vsub.f32 %v1767, %v2055
    %v2057 = vand.u32 %v2056, 4294901760
    %v2058 = vsub.f32 %v2056, %v2057
    %v2059 = vand.u32 %v2058, 4294901760
    %2060 = vmatmul.mubr.f32.gmra.mrb[0].mxu0 %v2059
    %v2061 = vpop.f32.mrb[0].mxu0
    %v2062 = vadd.f32 0.0, %v2061
    %v2063 = vpop.f32.mrb[0].mxu0
    %2064 = vmatprep.mubr.f32.mxu0 0.0
    %v2065 = vand.u32 %v1769, 4294901760
    %v2066 = vsub.f32 %v1769, %v2065
    %v2067 = vand.u32 %v2066, 4294901760
    %v2068 = vsub.f32 %v2066, %v2067
    %v2069 = vand.u32 %v2068, 4294901760
    %2070 = vmatmul.mubr.f32.gmra.mrb[0].mxu0 %v2069
    %v2071 = vpop.f32.mrb[0].mxu0
    %v2072 = vadd.f32 0.0, %v2071
    %v2073 = vpop.f32.mrb[0].mxu0
    %2074 = vmatprep.mubr.f32.mxu0 0.0
    %v2075 = vand.u32 %v1771, 4294901760
    %v2076 = vsub.f32 %v1771, %v2075
    %v2077 = vand.u32 %v2076, 4294901760
    %v2078 = vsub.f32 %v2076, %v2077
    %v2079 = vand.u32 %v2078, 4294901760
    %2080 = vmatmul.mubr.f32.gmra.mrb[0].mxu0 %v2079
    %v2081 = vpop.f32.mrb[0].mxu0
    %v2082 = vadd.f32 0.0, %v2081
    %v2083 = vpop.f32.mrb[0].mxu0
    %2084 = vmatprep.mubr.f32.mxu0 0.0
    %v2085 = vand.u32 %v1773, 4294901760
    %v2086 = vsub.f32 %v1773, %v2085
    %v2087 = vand.u32 %v2086, 4294901760
    %v2088 = vsub.f32 %v2086, %v2087
    %v2089 = vand.u32 %v2088, 4294901760
    %2090 = vmatmul.mubr.f32.gmra.mrb[0].mxu0 %v2089
    %v2091 = vpop.f32.mrb[0].mxu0
    %v2092 = vadd.f32 0.0, %v2091
    %v2093 = vpop.f32.mrb[0].mxu0
    %2094 = vmatprep.mubr.f32.mxu0 0.0
    %v2095 = vand.u32 %v1775, 4294901760
    %v2096 = vsub.f32 %v1775, %v2095
    %v2097 = vand.u32 %v2096, 4294901760
    %v2098 = vsub.f32 %v2096, %v2097
    %v2099 = vand.u32 %v2098, 4294901760
    %2100 = vmatmul.mubr.f32.gmra.mrb[0].mxu0 %v2099
    %v2101 = vpop.f32.mrb[0].mxu0
    %v2102 = vadd.f32 0.0, %v2101
    %v2103 = vpop.f32.mrb[0].mxu0
    %2104 = vmatprep.mubr.f32.mxu0 0.0
    %v2105 = vand.u32 %v1777, 4294901760
    %v2106 = vsub.f32 %v1777, %v2105
    %v2107 = vand.u32 %v2106, 4294901760
    %v2108 = vsub.f32 %v2106, %v2107
    %v2109 = vand.u32 %v2108, 4294901760
    %2110 = vmatmul.mubr.f32.gmra.mrb[0].mxu0 %v2109
    %v2111 = vpop.f32.mrb[0].mxu0
    %v2112 = vadd.f32 0.0, %v2111
    %v2113 = vpop.f32.mrb[0].mxu0
    %2114 = vmatprep.mubr.f32.mxu0 0.0
    %v2115 = vand.u32 %v1779, 4294901760
    %v2116 = vsub.f32 %v1779, %v2115
    %v2117 = vand.u32 %v2116, 4294901760
    %v2118 = vsub.f32 %v2116, %v2117
    %v2119 = vand.u32 %v2118, 4294901760
    %2120 = vmatmul.mubr.f32.gmra.mrb[0].mxu0 %v2119
    %v2121 = vpop.f32.mrb[0].mxu0
    %v2122 = vadd.f32 0.0, %v2121
    %v2123 = vpop.f32.mrb[0].mxu0
    %2124 = vmatprep.mubr.f32.mxu0 0.0
    %v2125 = vand.u32 %v1781, 4294901760
    %v2126 = vsub.f32 %v1781, %v2125
    %v2127 = vand.u32 %v2126, 4294901760
    %v2128 = vsub.f32 %v2126, %v2127
    %v2129 = vand.u32 %v2128, 4294901760
    %2130 = vmatmul.mubr.f32.gmra.mrb[0].mxu0 %v2129
    %v2131 = vpop.f32.mrb[0].mxu0
    %v2132 = vadd.f32 0.0, %v2131
    %v2133 = vpop.f32.mrb[0].mxu0
    %2134 = vmatprep.mubr.f32.mxu0 0.0
    %v2135 = vand.u32 %v1783, 4294901760
    %v2136 = vsub.f32 %v1783, %v2135
    %v2137 = vand.u32 %v2136, 4294901760
    %v2138 = vsub.f32 %v2136, %v2137
    %v2139 = vand.u32 %v2138, 4294901760
    %2140 = vmatmul.mubr.f32.gmra.mrb[0].mxu0 %v2139
    %v2141 = vpop.f32.mrb[0].mxu0
    %v2142 = vadd.f32 0.0, %v2141
    %v2143 = vpop.f32.mrb[0].mxu0
    %2144 = vmatprep.mubr.f32.mxu0 0.0
    %v2145 = vand.u32 %v1785, 4294901760
    %v2146 = vsub.f32 %v1785, %v2145
    %v2147 = vand.u32 %v2146, 4294901760
    %v2148 = vsub.f32 %v2146, %v2147
    %v2149 = vand.u32 %v2148, 4294901760
    %2150 = vmatmul.mubr.f32.gmra.mrb[0].mxu0 %v2149
    %v2151 = vpop.f32.mrb[0].mxu0
    %v2152 = vadd.f32 0.0, %v2151
    %v2153 = vpop.f32.mrb[0].mxu0
    %2154 = vdwg.mxu0
    %2155 = vmatprep.subr.mxu0 0.0
    %v2156 = vand.u32 %v1898, 4294901760
    %v2157 = vsub.f32 %v1898, %v2156
    %v2158 = vand.u32 %v2157, 4294901760
    %v2159 = vsub.f32 %v2157, %v2158
    %v2160 = vand.u32 %v2159, 4294901760
    %2161 = vmatpush1.msra.mxu0 %v2160
    %2162 = vmatprep.subr.mxu0 0.0
    %v2163 = vand.u32 %v1899, 4294901760
    %v2164 = vsub.f32 %v1899, %v2163
    %v2165 = vand.u32 %v2164, 4294901760
    %v2166 = vsub.f32 %v2164, %v2165
    %v2167 = vand.u32 %v2166, 4294901760
    %2168 = vmatpush1.msra.mxu0 %v2167
    %2169 = vmatprep.subr.mxu0 0.0
    %v2170 = vand.u32 %v1900, 4294901760
    %v2171 = vsub.f32 %v1900, %v2170
    %v2172 = vand.u32 %v2171, 4294901760
    %v2173 = vsub.f32 %v2171, %v2172
    %v2174 = vand.u32 %v2173, 4294901760
    %2175 = vmatpush1.msra.mxu0 %v2174
    %2176 = vmatprep.subr.mxu0 0.0
    %v2177 = vand.u32 %v1901, 4294901760
    %v2178 = vsub.f32 %v1901, %v2177
    %v2179 = vand.u32 %v2178, 4294901760
    %v2180 = vsub.f32 %v2178, %v2179
    %v2181 = vand.u32 %v2180, 4294901760
    %2182 = vmatpush1.msra.mxu0 %v2181
    %2183 = vmatprep.subr.mxu0 0.0
    %v2184 = vand.u32 %v1902, 4294901760
    %v2185 = vsub.f32 %v1902, %v2184
    %v2186 = vand.u32 %v2185, 4294901760
    %v2187 = vsub.f32 %v2185, %v2186
    %v2188 = vand.u32 %v2187, 4294901760
    %2189 = vmatpush1.msra.mxu0 %v2188
    %2190 = vmatprep.subr.mxu0 0.0
    %v2191 = vand.u32 %v1903, 4294901760
    %v2192 = vsub.f32 %v1903, %v2191
    %v2193 = vand.u32 %v2192, 4294901760
    %v2194 = vsub.f32 %v2192, %v2193
    %v2195 = vand.u32 %v2194, 4294901760
    %2196 = vmatpush1.msra.mxu0 %v2195
    %2197 = vmatprep.subr.mxu0 0.0
    %v2198 = vand.u32 %v1904, 4294901760
    %v2199 = vsub.f32 %v1904, %v2198
    %v2200 = vand.u32 %v2199, 4294901760
    %v2201 = vsub.f32 %v2199, %v2200
    %v2202 = vand.u32 %v2201, 4294901760
    %2203 = vmatpush1.msra.mxu0 %v2202
    %2204 = vmatprep.subr.mxu0 0.0
    %v2205 = vand.u32 %v1905, 4294901760
    %v2206 = vsub.f32 %v1905, %v2205
    %v2207 = vand.u32 %v2206, 4294901760
    %v2208 = vsub.f32 %v2206, %v2207
    %v2209 = vand.u32 %v2208, 4294901760
    %2210 = vmatpush1.msra.mxu0 %v2209
    %2211 = vmatprep.subr.mxu0 0.0
    %v2212 = vand.u32 %v1906, 4294901760
    %v2213 = vsub.f32 %v1906, %v2212
    %v2214 = vand.u32 %v2213, 4294901760
    %v2215 = vsub.f32 %v2213, %v2214
    %v2216 = vand.u32 %v2215, 4294901760
    %2217 = vmatpush1.msra.mxu0 %v2216
    %2218 = vmatprep.subr.mxu0 0.0
    %v2219 = vand.u32 %v1907, 4294901760
    %v2220 = vsub.f32 %v1907, %v2219
    %v2221 = vand.u32 %v2220, 4294901760
    %v2222 = vsub.f32 %v2220, %v2221
    %v2223 = vand.u32 %v2222, 4294901760
    %2224 = vmatpush1.msra.mxu0 %v2223
    %2225 = vmatprep.subr.mxu0 0.0
    %v2226 = vand.u32 %v1908, 4294901760
    %v2227 = vsub.f32 %v1908, %v2226
    %v2228 = vand.u32 %v2227, 4294901760
    %v2229 = vsub.f32 %v2227, %v2228
    %v2230 = vand.u32 %v2229, 4294901760
    %2231 = vmatpush1.msra.mxu0 %v2230
    %2232 = vmatprep.subr.mxu0 0.0
    %v2233 = vand.u32 %v1909, 4294901760
    %v2234 = vsub.f32 %v1909, %v2233
    %v2235 = vand.u32 %v2234, 4294901760
    %v2236 = vsub.f32 %v2234, %v2235
    %v2237 = vand.u32 %v2236, 4294901760
    %2238 = vmatpush1.msra.mxu0 %v2237
    %2239 = vmatprep.subr.mxu0 0.0
    %v2240 = vand.u32 %v1910, 4294901760
    %v2241 = vsub.f32 %v1910, %v2240
    %v2242 = vand.u32 %v2241, 4294901760
    %v2243 = vsub.f32 %v2241, %v2242
    %v2244 = vand.u32 %v2243, 4294901760
    %2245 = vmatpush1.msra.mxu0 %v2244
    %2246 = vmatprep.subr.mxu0 0.0
    %v2247 = vand.u32 %v1911, 4294901760
    %v2248 = vsub.f32 %v1911, %v2247
    %v2249 = vand.u32 %v2248, 4294901760
    %v2250 = vsub.f32 %v2248, %v2249
    %v2251 = vand.u32 %v2250, 4294901760
    %2252 = vmatpush1.msra.mxu0 %v2251
    %2253 = vmatprep.subr.mxu0 0.0
    %v2254 = vand.u32 %v1912, 4294901760
    %v2255 = vsub.f32 %v1912, %v2254
    %v2256 = vand.u32 %v2255, 4294901760
    %v2257 = vsub.f32 %v2255, %v2256
    %v2258 = vand.u32 %v2257, 4294901760
    %2259 = vmatpush1.msra.mxu0 %v2258
    %2260 = vmatprep.subr.mxu0 0.0
    %v2261 = vand.u32 %v1913, 4294901760
    %v2262 = vsub.f32 %v1913, %v2261
    %v2263 = vand.u32 %v2262, 4294901760
    %v2264 = vsub.f32 %v2262, %v2263
    %v2265 = vand.u32 %v2264, 4294901760
    %2266 = vmatpush1.msra.mxu0 %v2265
    %2267 = vmatprep.subr.mxu0 0.0
    %2268 = vmatpush1.msra.mxu0 0.0
    %2269 = vmatprep.subr.mxu0 0.0
    %2270 = vmatpush1.msra.mxu0 0.0
    %2271 = vmatprep.subr.mxu0 0.0
    %2272 = vmatpush1.msra.mxu0 0.0
    %2273 = vmatprep.subr.mxu0 0.0
    %2274 = vmatpush1.msra.mxu0 0.0
    %2275 = vmatprep.subr.mxu0 0.0
    %2276 = vmatpush1.msra.mxu0 0.0
    %2277 = vmatprep.subr.mxu0 0.0
    %2278 = vmatpush1.msra.mxu0 0.0
    %2279 = vmatprep.subr.mxu0 0.0
    %2280 = vmatpush1.msra.mxu0 0.0
    %2281 = vmatprep.subr.mxu0 0.0
    %2282 = vmatpush1.msra.mxu0 0.0
    %2283 = vmatprep.subr.mxu0 0.0
    %2284 = vmatpush1.msra.mxu0 0.0
    %2285 = vmatprep.subr.mxu0 0.0
    %2286 = vmatpush1.msra.mxu0 0.0
    %2287 = vmatprep.subr.mxu0 0.0
    %2288 = vmatpush1.msra.mxu0 0.0
    %2289 = vmatprep.subr.mxu0 0.0
    %2290 = vmatpush1.msra.mxu0 0.0
    %2291 = vmatprep.subr.mxu0 0.0
    %2292 = vmatpush1.msra.mxu0 0.0
    %2293 = vmatprep.subr.mxu0 0.0
    %2294 = vmatpush1.msra.mxu0 0.0
    %2295 = vmatprep.subr.mxu0 0.0
    %2296 = vmatpush1.msra.mxu0 0.0
    %2297 = vmatprep.subr.mxu0 0.0
    %2298 = vmatpush1.msra.mxu0 0.0
    %2299 = vmatprep.mubr.f32.mxu0 0.0
    %v2300 = vand.u32 %v1755, 4294901760
    %2301 = vmatmul.mubr.f32.gmra.mrb[0].mxu0 %v2300
    %v2302 = vpop.f32.mrb[0].mxu0
    %v2303 = vadd.f32 %v2002, %v2302
    %v2304 = vpop.f32.mrb[0].mxu0
    %2305 = vmatprep.mubr.f32.mxu0 0.0
    %v2306 = vand.u32 %v1757, 4294901760
    %2307 = vmatmul.mubr.f32.gmra.mrb[0].mxu0 %v2306
    %v2308 = vpop.f32.mrb[0].mxu0
    %v2309 = vadd.f32 %v2012, %v2308
    %v2310 = vpop.f32.mrb[0].mxu0
    %2311 = vmatprep.mubr.f32.mxu0 0.0
    %v2312 = vand.u32 %v1759, 4294901760
    %2313 = vmatmul.mubr.f32.gmra.mrb[0].mxu0 %v2312
    %v2314 = vpop.f32.mrb[0].mxu0
    %v2315 = vadd.f32 %v2022, %v2314
    %v2316 = vpop.f32.mrb[0].mxu0
    %2317 = vmatprep.mubr.f32.mxu0 0.0
    %v2318 = vand.u32 %v1761, 4294901760
    %2319 = vmatmul.mubr.f32.gmra.mrb[0].mxu0 %v2318
    %v2320 = vpop.f32.mrb[0].mxu0
    %v2321 = vadd.f32 %v2032, %v2320
    %v2322 = vpop.f32.mrb[0].mxu0
    %2323 = vmatprep.mubr.f32.mxu0 0.0
    %v2324 = vand.u32 %v1763, 4294901760
    %2325 = vmatmul.mubr.f32.gmra.mrb[0].mxu0 %v2324
    %v2326 = vpop.f32.mrb[0].mxu0
    %v2327 = vadd.f32 %v2042, %v2326
    %v2328 = vpop.f32.mrb[0].mxu0
    %2329 = vmatprep.mubr.f32.mxu0 0.0
    %v2330 = vand.u32 %v1765, 4294901760
    %2331 = vmatmul.mubr.f32.gmra.mrb[0].mxu0 %v2330
    %v2332 = vpop.f32.mrb[0].mxu0
    %v2333 = vadd.f32 %v2052, %v2332
    %v2334 = vpop.f32.mrb[0].mxu0
    %2335 = vmatprep.mubr.f32.mxu0 0.0
    %v2336 = vand.u32 %v1767, 4294901760
    %2337 = vmatmul.mubr.f32.gmra.mrb[0].mxu0 %v2336
    %v2338 = vpop.f32.mrb[0].mxu0
    %v2339 = vadd.f32 %v2062, %v2338
    %v2340 = vpop.f32.mrb[0].mxu0
    %2341 = vmatprep.mubr.f32.mxu0 0.0
    %v2342 = vand.u32 %v1769, 4294901760
    %2343 = vmatmul.mubr.f32.gmra.mrb[0].mxu0 %v2342
    %v2344 = vpop.f32.mrb[0].mxu0
    %v2345 = vadd.f32 %v2072, %v2344
    %v2346 = vpop.f32.mrb[0].mxu0
    %2347 = vmatprep.mubr.f32.mxu0 0.0
    %v2348 = vand.u32 %v1771, 4294901760
    %2349 = vmatmul.mubr.f32.gmra.mrb[0].mxu0 %v2348
    %v2350 = vpop.f32.mrb[0].mxu0
    %v2351 = vadd.f32 %v2082, %v2350
    %v2352 = vpop.f32.mrb[0].mxu0
    %2353 = vmatprep.mubr.f32.mxu0 0.0
    %v2354 = vand.u32 %v1773, 4294901760
    %2355 = vmatmul.mubr.f32.gmra.mrb[0].mxu0 %v2354
    %v2356 = vpop.f32.mrb[0].mxu0
    %v2357 = vadd.f32 %v2092, %v2356
    %v2358 = vpop.f32.mrb[0].mxu0
    %2359 = vmatprep.mubr.f32.mxu0 0.0
    %v2360 = vand.u32 %v1775, 4294901760
    %2361 = vmatmul.mubr.f32.gmra.mrb[0].mxu0 %v2360
    %v2362 = vpop.f32.mrb[0].mxu0
    %v2363 = vadd.f32 %v2102, %v2362
    %v2364 = vpop.f32.mrb[0].mxu0
    %2365 = vmatprep.mubr.f32.mxu0 0.0
    %v2366 = vand.u32 %v1777, 4294901760
    %2367 = vmatmul.mubr.f32.gmra.mrb[0].mxu0 %v2366
    %v2368 = vpop.f32.mrb[0].mxu0
    %v2369 = vadd.f32 %v2112, %v2368
    %v2370 = vpop.f32.mrb[0].mxu0
    %2371 = vmatprep.mubr.f32.mxu0 0.0
    %v2372 = vand.u32 %v1779, 4294901760
    %2373 = vmatmul.mubr.f32.gmra.mrb[0].mxu0 %v2372
    %v2374 = vpop.f32.mrb[0].mxu0
    %v2375 = vadd.f32 %v2122, %v2374
    %v2376 = vpop.f32.mrb[0].mxu0
    %2377 = vmatprep.mubr.f32.mxu0 0.0
    %v2378 = vand.u32 %v1781, 4294901760
    %2379 = vmatmul.mubr.f32.gmra.mrb[0].mxu0 %v2378
    %v2380 = vpop.f32.mrb[0].mxu0
    %v2381 = vadd.f32 %v2132, %v2380
    %v2382 = vpop.f32.mrb[0].mxu0
    %2383 = vmatprep.mubr.f32.mxu0 0.0
    %v2384 = vand.u32 %v1783, 4294901760
    %2385 = vmatmul.mubr.f32.gmra.mrb[0].mxu0 %v2384
    %v2386 = vpop.f32.mrb[0].mxu0
    %v2387 = vadd.f32 %v2142, %v2386
    %v2388 = vpop.f32.mrb[0].mxu0
    %2389 = vmatprep.mubr.f32.mxu0 0.0
    %v2390 = vand.u32 %v1785, 4294901760
    %2391 = vmatmul.mubr.f32.gmra.mrb[0].mxu0 %v2390
    %v2392 = vpop.f32.mrb[0].mxu0
    %v2393 = vadd.f32 %v2152, %v2392
    %v2394 = vpop.f32.mrb[0].mxu0
    %2395 = vdwg.mxu0
    %2396 = vmatprep.subr.mxu0 0.0
    %v2397 = vand.u32 %v1898, 4294901760
    %v2398 = vsub.f32 %v1898, %v2397
    %2399 = vmatpush1.msra.mxu0 %v2398
    %2400 = vmatprep.subr.mxu0 0.0
    %v2401 = vand.u32 %v1899, 4294901760
    %v2402 = vsub.f32 %v1899, %v2401
    %2403 = vmatpush1.msra.mxu0 %v2402
    %2404 = vmatprep.subr.mxu0 0.0
    %v2405 = vand.u32 %v1900, 4294901760
    %v2406 = vsub.f32 %v1900, %v2405
    %2407 = vmatpush1.msra.mxu0 %v2406
    %2408 = vmatprep.subr.mxu0 0.0
    %v2409 = vand.u32 %v1901, 4294901760
    %v2410 = vsub.f32 %v1901, %v2409
    %2411 = vmatpush1.msra.mxu0 %v2410
    %2412 = vmatprep.subr.mxu0 0.0
    %v2413 = vand.u32 %v1902, 4294901760
    %v2414 = vsub.f32 %v1902, %v2413
    %2415 = vmatpush1.msra.mxu0 %v2414
    %2416 = vmatprep.subr.mxu0 0.0
    %v2417 = vand.u32 %v1903, 4294901760
    %v2418 = vsub.f32 %v1903, %v2417
    %2419 = vmatpush1.msra.mxu0 %v2418
    %2420 = vmatprep.subr.mxu0 0.0
    %v2421 = vand.u32 %v1904, 4294901760
    %v2422 = vsub.f32 %v1904, %v2421
    %2423 = vmatpush1.msra.mxu0 %v2422
    %2424 = vmatprep.subr.mxu0 0.0
    %v2425 = vand.u32 %v1905, 4294901760
    %v2426 = vsub.f32 %v1905, %v2425
    %2427 = vmatpush1.msra.mxu0 %v2426
    %2428 = vmatprep.subr.mxu0 0.0
    %v2429 = vand.u32 %v1906, 4294901760
    %v2430 = vsub.f32 %v1906, %v2429
    %2431 = vmatpush1.msra.mxu0 %v2430
    %2432 = vmatprep.subr.mxu0 0.0
    %v2433 = vand.u32 %v1907, 4294901760
    %v2434 = vsub.f32 %v1907, %v2433
    %2435 = vmatpush1.msra.mxu0 %v2434
    %2436 = vmatprep.subr.mxu0 0.0
    %v2437 = vand.u32 %v1908, 4294901760
    %v2438 = vsub.f32 %v1908, %v2437
    %2439 = vmatpush1.msra.mxu0 %v2438
    %2440 = vmatprep.subr.mxu0 0.0
    %v2441 = vand.u32 %v1909, 4294901760
    %v2442 = vsub.f32 %v1909, %v2441
    %2443 = vmatpush1.msra.mxu0 %v2442
    %2444 = vmatprep.subr.mxu0 0.0
    %v2445 = vand.u32 %v1910, 4294901760
    %v2446 = vsub.f32 %v1910, %v2445
    %2447 = vmatpush1.msra.mxu0 %v2446
    %2448 = vmatprep.subr.mxu0 0.0
    %v2449 = vand.u32 %v1911, 4294901760
    %v2450 = vsub.f32 %v1911, %v2449
    %2451 = vmatpush1.msra.mxu0 %v2450
    %2452 = vmatprep.subr.mxu0 0.0
    %v2453 = vand.u32 %v1912, 4294901760
    %v2454 = vsub.f32 %v1912, %v2453
    %2455 = vmatpush1.msra.mxu0 %v2454
    %2456 = vmatprep.subr.mxu0 0.0
    %v2457 = vand.u32 %v1913, 4294901760
    %v2458 = vsub.f32 %v1913, %v2457
    %2459 = vmatpush1.msra.mxu0 %v2458
    %2460 = vmatprep.subr.mxu0 0.0
    %2461 = vmatpush1.msra.mxu0 0.0
    %2462 = vmatprep.subr.mxu0 0.0
    %2463 = vmatpush1.msra.mxu0 0.0
    %2464 = vmatprep.subr.mxu0 0.0
    %2465 = vmatpush1.msra.mxu0 0.0
    %2466 = vmatprep.subr.mxu0 0.0
    %2467 = vmatpush1.msra.mxu0 0.0
    %2468 = vmatprep.subr.mxu0 0.0
    %2469 = vmatpush1.msra.mxu0 0.0
    %2470 = vmatprep.subr.mxu0 0.0
    %2471 = vmatpush1.msra.mxu0 0.0
    %2472 = vmatprep.subr.mxu0 0.0
    %2473 = vmatpush1.msra.mxu0 0.0
    %2474 = vmatprep.subr.mxu0 0.0
    %2475 = vmatpush1.msra.mxu0 0.0
    %2476 = vmatprep.subr.mxu0 0.0
    %2477 = vmatpush1.msra.mxu0 0.0
    %2478 = vmatprep.subr.mxu0 0.0
    %2479 = vmatpush1.msra.mxu0 0.0
    %2480 = vmatprep.subr.mxu0 0.0
    %2481 = vmatpush1.msra.mxu0 0.0
    %2482 = vmatprep.subr.mxu0 0.0
    %2483 = vmatpush1.msra.mxu0 0.0
    %2484 = vmatprep.subr.mxu0 0.0
    %2485 = vmatpush1.msra.mxu0 0.0
    %2486 = vmatprep.subr.mxu0 0.0
    %2487 = vmatpush1.msra.mxu0 0.0
    %2488 = vmatprep.subr.mxu0 0.0
    %2489 = vmatpush1.msra.mxu0 0.0
    %2490 = vmatprep.subr.mxu0 0.0
    %2491 = vmatpush1.msra.mxu0 0.0
    %2492 = vmatprep.mubr.f32.mxu0 0.0
    %v2493 = vand.u32 %v1755, 4294901760
    %v2494 = vsub.f32 %v1755, %v2493
    %2495 = vmatmul.mubr.f32.gmra.mrb[0].mxu0 %v2494
    %v2496 = vpop.f32.mrb[0].mxu0
    %v2497 = vadd.f32 %v2303, %v2496
    %v2498 = vpop.f32.mrb[0].mxu0
    %2499 = vmatprep.mubr.f32.mxu0 0.0
    %v2500 = vand.u32 %v1757, 4294901760
    %v2501 = vsub.f32 %v1757, %v2500
    %2502 = vmatmul.mubr.f32.gmra.mrb[0].mxu0 %v2501
    %v2503 = vpop.f32.mrb[0].mxu0
    %v2504 = vadd.f32 %v2309, %v2503
    %v2505 = vpop.f32.mrb[0].mxu0
    %2506 = vmatprep.mubr.f32.mxu0 0.0
    %v2507 = vand.u32 %v1759, 4294901760
    %v2508 = vsub.f32 %v1759, %v2507
    %2509 = vmatmul.mubr.f32.gmra.mrb[0].mxu0 %v2508
    %v2510 = vpop.f32.mrb[0].mxu0
    %v2511 = vadd.f32 %v2315, %v2510
    %v2512 = vpop.f32.mrb[0].mxu0
    %2513 = vmatprep.mubr.f32.mxu0 0.0
    %v2514 = vand.u32 %v1761, 4294901760
    %v2515 = vsub.f32 %v1761, %v2514
    %2516 = vmatmul.mubr.f32.gmra.mrb[0].mxu0 %v2515
    %v2517 = vpop.f32.mrb[0].mxu0
    %v2518 = vadd.f32 %v2321, %v2517
    %v2519 = vpop.f32.mrb[0].mxu0
    %2520 = vmatprep.mubr.f32.mxu0 0.0
    %v2521 = vand.u32 %v1763, 4294901760
    %v2522 = vsub.f32 %v1763, %v2521
    %2523 = vmatmul.mubr.f32.gmra.mrb[0].mxu0 %v2522
    %v2524 = vpop.f32.mrb[0].mxu0
    %v2525 = vadd.f32 %v2327, %v2524
    %v2526 = vpop.f32.mrb[0].mxu0
    %2527 = vmatprep.mubr.f32.mxu0 0.0
    %v2528 = vand.u32 %v1765, 4294901760
    %v2529 = vsub.f32 %v1765, %v2528
    %2530 = vmatmul.mubr.f32.gmra.mrb[0].mxu0 %v2529
    %v2531 = vpop.f32.mrb[0].mxu0
    %v2532 = vadd.f32 %v2333, %v2531
    %v2533 = vpop.f32.mrb[0].mxu0
    %2534 = vmatprep.mubr.f32.mxu0 0.0
    %v2535 = vand.u32 %v1767, 4294901760
    %v2536 = vsub.f32 %v1767, %v2535
    %2537 = vmatmul.mubr.f32.gmra.mrb[0].mxu0 %v2536
    %v2538 = vpop.f32.mrb[0].mxu0
    %v2539 = vadd.f32 %v2339, %v2538
    %v2540 = vpop.f32.mrb[0].mxu0
    %2541 = vmatprep.mubr.f32.mxu0 0.0
    %v2542 = vand.u32 %v1769, 4294901760
    %v2543 = vsub.f32 %v1769, %v2542
    %2544 = vmatmul.mubr.f32.gmra.mrb[0].mxu0 %v2543
    %v2545 = vpop.f32.mrb[0].mxu0
    %v2546 = vadd.f32 %v2345, %v2545
    %v2547 = vpop.f32.mrb[0].mxu0
    %2548 = vmatprep.mubr.f32.mxu0 0.0
    %v2549 = vand.u32 %v1771, 4294901760
    %v2550 = vsub.f32 %v1771, %v2549
    %2551 = vmatmul.mubr.f32.gmra.mrb[0].mxu0 %v2550
    %v2552 = vpop.f32.mrb[0].mxu0
    %v2553 = vadd.f32 %v2351, %v2552
    %v2554 = vpop.f32.mrb[0].mxu0
    %2555 = vmatprep.mubr.f32.mxu0 0.0
    %v2556 = vand.u32 %v1773, 4294901760
    %v2557 = vsub.f32 %v1773, %v2556
    %2558 = vmatmul.mubr.f32.gmra.mrb[0].mxu0 %v2557
    %v2559 = vpop.f32.mrb[0].mxu0
    %v2560 = vadd.f32 %v2357, %v2559
    %v2561 = vpop.f32.mrb[0].mxu0
    %2562 = vmatprep.mubr.f32.mxu0 0.0
    %v2563 = vand.u32 %v1775, 4294901760
    %v2564 = vsub.f32 %v1775, %v2563
    %2565 = vmatmul.mubr.f32.gmra.mrb[0].mxu0 %v2564
    %v2566 = vpop.f32.mrb[0].mxu0
    %v2567 = vadd.f32 %v2363, %v2566
    %v2568 = vpop.f32.mrb[0].mxu0
    %2569 = vmatprep.mubr.f32.mxu0 0.0
    %v2570 = vand.u32 %v1777, 4294901760
    %v2571 = vsub.f32 %v1777, %v2570
    %2572 = vmatmul.mubr.f32.gmra.mrb[0].mxu0 %v2571
    %v2573 = vpop.f32.mrb[0].mxu0
    %v2574 = vadd.f32 %v2369, %v2573
    %v2575 = vpop.f32.mrb[0].mxu0
    %2576 = vmatprep.mubr.f32.mxu0 0.0
    %v2577 = vand.u32 %v1779, 4294901760
    %v2578 = vsub.f32 %v1779, %v2577
    %2579 = vmatmul.mubr.f32.gmra.mrb[0].mxu0 %v2578
    %v2580 = vpop.f32.mrb[0].mxu0
    %v2581 = vadd.f32 %v2375, %v2580
    %v2582 = vpop.f32.mrb[0].mxu0
    %2583 = vmatprep.mubr.f32.mxu0 0.0
    %v2584 = vand.u32 %v1781, 4294901760
    %v2585 = vsub.f32 %v1781, %v2584
    %2586 = vmatmul.mubr.f32.gmra.mrb[0].mxu0 %v2585
    %v2587 = vpop.f32.mrb[0].mxu0
    %v2588 = vadd.f32 %v2381, %v2587
    %v2589 = vpop.f32.mrb[0].mxu0
    %2590 = vmatprep.mubr.f32.mxu0 0.0
    %v2591 = vand.u32 %v1783, 4294901760
    %v2592 = vsub.f32 %v1783, %v2591
    %2593 = vmatmul.mubr.f32.gmra.mrb[0].mxu0 %v2592
    %v2594 = vpop.f32.mrb[0].mxu0
    %v2595 = vadd.f32 %v2387, %v2594
    %v2596 = vpop.f32.mrb[0].mxu0
    %2597 = vmatprep.mubr.f32.mxu0 0.0
    %v2598 = vand.u32 %v1785, 4294901760
    %v2599 = vsub.f32 %v1785, %v2598
    %2600 = vmatmul.mubr.f32.gmra.mrb[0].mxu0 %v2599
    %v2601 = vpop.f32.mrb[0].mxu0
    %v2602 = vadd.f32 %v2393, %v2601
    %v2603 = vpop.f32.mrb[0].mxu0
    %2604 = vdwg.mxu0
    %2605 = vmatprep.subr.mxu0 0.0
    %v2606 = vand.u32 %v1898, 4294901760
    %2607 = vmatpush1.msra.mxu0 %v2606
    %2608 = vmatprep.subr.mxu0 0.0
    %v2609 = vand.u32 %v1899, 4294901760
    %2610 = vmatpush1.msra.mxu0 %v2609
    %2611 = vmatprep.subr.mxu0 0.0
    %v2612 = vand.u32 %v1900, 4294901760
    %2613 = vmatpush1.msra.mxu0 %v2612
    %2614 = vmatprep.subr.mxu0 0.0
    %v2615 = vand.u32 %v1901, 4294901760
    %2616 = vmatpush1.msra.mxu0 %v2615
    %2617 = vmatprep.subr.mxu0 0.0
    %v2618 = vand.u32 %v1902, 4294901760
    %2619 = vmatpush1.msra.mxu0 %v2618
    %2620 = vmatprep.subr.mxu0 0.0
    %v2621 = vand.u32 %v1903, 4294901760
    %2622 = vmatpush1.msra.mxu0 %v2621
    %2623 = vmatprep.subr.mxu0 0.0
    %v2624 = vand.u32 %v1904, 4294901760
    %2625 = vmatpush1.msra.mxu0 %v2624
    %2626 = vmatprep.subr.mxu0 0.0
    %v2627 = vand.u32 %v1905, 4294901760
    %2628 = vmatpush1.msra.mxu0 %v2627
    %2629 = vmatprep.subr.mxu0 0.0
    %v2630 = vand.u32 %v1906, 4294901760
    %2631 = vmatpush1.msra.mxu0 %v2630
    %2632 = vmatprep.subr.mxu0 0.0
    %v2633 = vand.u32 %v1907, 4294901760
    %2634 = vmatpush1.msra.mxu0 %v2633
    %2635 = vmatprep.subr.mxu0 0.0
    %v2636 = vand.u32 %v1908, 4294901760
    %2637 = vmatpush1.msra.mxu0 %v2636
    %2638 = vmatprep.subr.mxu0 0.0
    %v2639 = vand.u32 %v1909, 4294901760
    %2640 = vmatpush1.msra.mxu0 %v2639
    %2641 = vmatprep.subr.mxu0 0.0
    %v2642 = vand.u32 %v1910, 4294901760
    %2643 = vmatpush1.msra.mxu0 %v2642
    %2644 = vmatprep.subr.mxu0 0.0
    %v2645 = vand.u32 %v1911, 4294901760
    %2646 = vmatpush1.msra.mxu0 %v2645
    %2647 = vmatprep.subr.mxu0 0.0
    %v2648 = vand.u32 %v1912, 4294901760
    %2649 = vmatpush1.msra.mxu0 %v2648
    %2650 = vmatprep.subr.mxu0 0.0
    %v2651 = vand.u32 %v1913, 4294901760
    %2652 = vmatpush1.msra.mxu0 %v2651
    %2653 = vmatprep.subr.mxu0 0.0
    %2654 = vmatpush1.msra.mxu0 0.0
    %2655 = vmatprep.subr.mxu0 0.0
    %2656 = vmatpush1.msra.mxu0 0.0
    %2657 = vmatprep.subr.mxu0 0.0
    %2658 = vmatpush1.msra.mxu0 0.0
    %2659 = vmatprep.subr.mxu0 0.0
    %2660 = vmatpush1.msra.mxu0 0.0
    %2661 = vmatprep.subr.mxu0 0.0
    %2662 = vmatpush1.msra.mxu0 0.0
    %2663 = vmatprep.subr.mxu0 0.0
    %2664 = vmatpush1.msra.mxu0 0.0
    %2665 = vmatprep.subr.mxu0 0.0
    %2666 = vmatpush1.msra.mxu0 0.0
    %2667 = vmatprep.subr.mxu0 0.0
    %2668 = vmatpush1.msra.mxu0 0.0
    %2669 = vmatprep.subr.mxu0 0.0
    %2670 = vmatpush1.msra.mxu0 0.0
    %2671 = vmatprep.subr.mxu0 0.0
    %2672 = vmatpush1.msra.mxu0 0.0
    %2673 = vmatprep.subr.mxu0 0.0
    %2674 = vmatpush1.msra.mxu0 0.0
    %2675 = vmatprep.subr.mxu0 0.0
    %2676 = vmatpush1.msra.mxu0 0.0
    %2677 = vmatprep.subr.mxu0 0.0
    %2678 = vmatpush1.msra.mxu0 0.0
    %2679 = vmatprep.subr.mxu0 0.0
    %2680 = vmatpush1.msra.mxu0 0.0
    %2681 = vmatprep.subr.mxu0 0.0
    %2682 = vmatpush1.msra.mxu0 0.0
    %2683 = vmatprep.subr.mxu0 0.0
    %2684 = vmatpush1.msra.mxu0 0.0
    %2685 = vmatprep.mubr.f32.mxu0 0.0
    %v2686 = vand.u32 %v1755, 4294901760
    %v2687 = vsub.f32 %v1755, %v2686
    %v2688 = vand.u32 %v2687, 4294901760
    %2689 = vmatmul.mubr.f32.gmra.mrb[0].mxu0 %v2688
    %v2690 = vpop.f32.mrb[0].mxu0
    %v2691 = vadd.f32 %v2497, %v2690
    %v2692 = vpop.f32.mrb[0].mxu0
    %2693 = vmatprep.mubr.f32.mxu0 0.0
    %v2694 = vand.u32 %v1757, 4294901760
    %v2695 = vsub.f32 %v1757, %v2694
    %v2696 = vand.u32 %v2695, 4294901760
    %2697 = vmatmul.mubr.f32.gmra.mrb[0].mxu0 %v2696
    %v2698 = vpop.f32.mrb[0].mxu0
    %v2699 = vadd.f32 %v2504, %v2698
    %v2700 = vpop.f32.mrb[0].mxu0
    %2701 = vmatprep.mubr.f32.mxu0 0.0
    %v2702 = vand.u32 %v1759, 4294901760
    %v2703 = vsub.f32 %v1759, %v2702
    %v2704 = vand.u32 %v2703, 4294901760
    %2705 = vmatmul.mubr.f32.gmra.mrb[0].mxu0 %v2704
    %v2706 = vpop.f32.mrb[0].mxu0
    %v2707 = vadd.f32 %v2511, %v2706
    %v2708 = vpop.f32.mrb[0].mxu0
    %2709 = vmatprep.mubr.f32.mxu0 0.0
    %v2710 = vand.u32 %v1761, 4294901760
    %v2711 = vsub.f32 %v1761, %v2710
    %v2712 = vand.u32 %v2711, 4294901760
    %2713 = vmatmul.mubr.f32.gmra.mrb[0].mxu0 %v2712
    %v2714 = vpop.f32.mrb[0].mxu0
    %v2715 = vadd.f32 %v2518, %v2714
    %v2716 = vpop.f32.mrb[0].mxu0
    %2717 = vmatprep.mubr.f32.mxu0 0.0
    %v2718 = vand.u32 %v1763, 4294901760
    %v2719 = vsub.f32 %v1763, %v2718
    %v2720 = vand.u32 %v2719, 4294901760
    %2721 = vmatmul.mubr.f32.gmra.mrb[0].mxu0 %v2720
    %v2722 = vpop.f32.mrb[0].mxu0
    %v2723 = vadd.f32 %v2525, %v2722
    %v2724 = vpop.f32.mrb[0].mxu0
    %2725 = vmatprep.mubr.f32.mxu0 0.0
    %v2726 = vand.u32 %v1765, 4294901760
    %v2727 = vsub.f32 %v1765, %v2726
    %v2728 = vand.u32 %v2727, 4294901760
    %2729 = vmatmul.mubr.f32.gmra.mrb[0].mxu0 %v2728
    %v2730 = vpop.f32.mrb[0].mxu0
    %v2731 = vadd.f32 %v2532, %v2730
    %v2732 = vpop.f32.mrb[0].mxu0
    %2733 = vmatprep.mubr.f32.mxu0 0.0
    %v2734 = vand.u32 %v1767, 4294901760
    %v2735 = vsub.f32 %v1767, %v2734
    %v2736 = vand.u32 %v2735, 4294901760
    %2737 = vmatmul.mubr.f32.gmra.mrb[0].mxu0 %v2736
    %v2738 = vpop.f32.mrb[0].mxu0
    %v2739 = vadd.f32 %v2539, %v2738
    %v2740 = vpop.f32.mrb[0].mxu0
    %2741 = vmatprep.mubr.f32.mxu0 0.0
    %v2742 = vand.u32 %v1769, 4294901760
    %v2743 = vsub.f32 %v1769, %v2742
    %v2744 = vand.u32 %v2743, 4294901760
    %2745 = vmatmul.mubr.f32.gmra.mrb[0].mxu0 %v2744
    %v2746 = vpop.f32.mrb[0].mxu0
    %v2747 = vadd.f32 %v2546, %v2746
    %v2748 = vpop.f32.mrb[0].mxu0
    %2749 = vmatprep.mubr.f32.mxu0 0.0
    %v2750 = vand.u32 %v1771, 4294901760
    %v2751 = vsub.f32 %v1771, %v2750
    %v2752 = vand.u32 %v2751, 4294901760
    %2753 = vmatmul.mubr.f32.gmra.mrb[0].mxu0 %v2752
    %v2754 = vpop.f32.mrb[0].mxu0
    %v2755 = vadd.f32 %v2553, %v2754
    %v2756 = vpop.f32.mrb[0].mxu0
    %2757 = vmatprep.mubr.f32.mxu0 0.0
    %v2758 = vand.u32 %v1773, 4294901760
    %v2759 = vsub.f32 %v1773, %v2758
    %v2760 = vand.u32 %v2759, 4294901760
    %2761 = vmatmul.mubr.f32.gmra.mrb[0].mxu0 %v2760
    %v2762 = vpop.f32.mrb[0].mxu0
    %v2763 = vadd.f32 %v2560, %v2762
    %v2764 = vpop.f32.mrb[0].mxu0
    %2765 = vmatprep.mubr.f32.mxu0 0.0
    %v2766 = vand.u32 %v1775, 4294901760
    %v2767 = vsub.f32 %v1775, %v2766
    %v2768 = vand.u32 %v2767, 4294901760
    %2769 = vmatmul.mubr.f32.gmra.mrb[0].mxu0 %v2768
    %v2770 = vpop.f32.mrb[0].mxu0
    %v2771 = vadd.f32 %v2567, %v2770
    %v2772 = vpop.f32.mrb[0].mxu0
    %2773 = vmatprep.mubr.f32.mxu0 0.0
    %v2774 = vand.u32 %v1777, 4294901760
    %v2775 = vsub.f32 %v1777, %v2774
    %v2776 = vand.u32 %v2775, 4294901760
    %2777 = vmatmul.mubr.f32.gmra.mrb[0].mxu0 %v2776
    %v2778 = vpop.f32.mrb[0].mxu0
    %v2779 = vadd.f32 %v2574, %v2778
    %v2780 = vpop.f32.mrb[0].mxu0
    %2781 = vmatprep.mubr.f32.mxu0 0.0
    %v2782 = vand.u32 %v1779, 4294901760
    %v2783 = vsub.f32 %v1779, %v2782
    %v2784 = vand.u32 %v2783, 4294901760
    %2785 = vmatmul.mubr.f32.gmra.mrb[0].mxu0 %v2784
    %v2786 = vpop.f32.mrb[0].mxu0
    %v2787 = vadd.f32 %v2581, %v2786
    %v2788 = vpop.f32.mrb[0].mxu0
    %2789 = vmatprep.mubr.f32.mxu0 0.0
    %v2790 = vand.u32 %v1781, 4294901760
    %v2791 = vsub.f32 %v1781, %v2790
    %v2792 = vand.u32 %v2791, 4294901760
    %2793 = vmatmul.mubr.f32.gmra.mrb[0].mxu0 %v2792
    %v2794 = vpop.f32.mrb[0].mxu0
    %v2795 = vadd.f32 %v2588, %v2794
    %v2796 = vpop.f32.mrb[0].mxu0
    %2797 = vmatprep.mubr.f32.mxu0 0.0
    %v2798 = vand.u32 %v1783, 4294901760
    %v2799 = vsub.f32 %v1783, %v2798
    %v2800 = vand.u32 %v2799, 4294901760
    %2801 = vmatmul.mubr.f32.gmra.mrb[0].mxu0 %v2800
    %v2802 = vpop.f32.mrb[0].mxu0
    %v2803 = vadd.f32 %v2595, %v2802
    %v2804 = vpop.f32.mrb[0].mxu0
    %2805 = vmatprep.mubr.f32.mxu0 0.0
    %v2806 = vand.u32 %v1785, 4294901760
    %v2807 = vsub.f32 %v1785, %v2806
    %v2808 = vand.u32 %v2807, 4294901760
    %2809 = vmatmul.mubr.f32.gmra.mrb[0].mxu0 %v2808
    %v2810 = vpop.f32.mrb[0].mxu0
    %v2811 = vadd.f32 %v2602, %v2810
    %v2812 = vpop.f32.mrb[0].mxu0
    %2813 = vdwg.mxu0
    %2814 = vmatprep.subr.mxu0 0.0
    %v2815 = vand.u32 %v1898, 4294901760
    %v2816 = vsub.f32 %v1898, %v2815
    %v2817 = vand.u32 %v2816, 4294901760
    %2818 = vmatpush1.msra.mxu0 %v2817
    %2819 = vmatprep.subr.mxu0 0.0
    %v2820 = vand.u32 %v1899, 4294901760
    %v2821 = vsub.f32 %v1899, %v2820
    %v2822 = vand.u32 %v2821, 4294901760
    %2823 = vmatpush1.msra.mxu0 %v2822
    %2824 = vmatprep.subr.mxu0 0.0
    %v2825 = vand.u32 %v1900, 4294901760
    %v2826 = vsub.f32 %v1900, %v2825
    %v2827 = vand.u32 %v2826, 4294901760
    %2828 = vmatpush1.msra.mxu0 %v2827
    %2829 = vmatprep.subr.mxu0 0.0
    %v2830 = vand.u32 %v1901, 4294901760
    %v2831 = vsub.f32 %v1901, %v2830
    %v2832 = vand.u32 %v2831, 4294901760
    %2833 = vmatpush1.msra.mxu0 %v2832
    %2834 = vmatprep.subr.mxu0 0.0
    %v2835 = vand.u32 %v1902, 4294901760
    %v2836 = vsub.f32 %v1902, %v2835
    %v2837 = vand.u32 %v2836, 4294901760
    %2838 = vmatpush1.msra.mxu0 %v2837
    %2839 = vmatprep.subr.mxu0 0.0
    %v2840 = vand.u32 %v1903, 4294901760
    %v2841 = vsub.f32 %v1903, %v2840
    %v2842 = vand.u32 %v2841, 4294901760
    %2843 = vmatpush1.msra.mxu0 %v2842
    %2844 = vmatprep.subr.mxu0 0.0
    %v2845 = vand.u32 %v1904, 4294901760
    %v2846 = vsub.f32 %v1904, %v2845
    %v2847 = vand.u32 %v2846, 4294901760
    %2848 = vmatpush1.msra.mxu0 %v2847
    %2849 = vmatprep.subr.mxu0 0.0
    %v2850 = vand.u32 %v1905, 4294901760
    %v2851 = vsub.f32 %v1905, %v2850
    %v2852 = vand.u32 %v2851, 4294901760
    %2853 = vmatpush1.msra.mxu0 %v2852
    %2854 = vmatprep.subr.mxu0 0.0
    %v2855 = vand.u32 %v1906, 4294901760
    %v2856 = vsub.f32 %v1906, %v2855
    %v2857 = vand.u32 %v2856, 4294901760
    %2858 = vmatpush1.msra.mxu0 %v2857
    %2859 = vmatprep.subr.mxu0 0.0
    %v2860 = vand.u32 %v1907, 4294901760
    %v2861 = vsub.f32 %v1907, %v2860
    %v2862 = vand.u32 %v2861, 4294901760
    %2863 = vmatpush1.msra.mxu0 %v2862
    %2864 = vmatprep.subr.mxu0 0.0
    %v2865 = vand.u32 %v1908, 4294901760
    %v2866 = vsub.f32 %v1908, %v2865
    %v2867 = vand.u32 %v2866, 4294901760
    %2868 = vmatpush1.msra.mxu0 %v2867
    %2869 = vmatprep.subr.mxu0 0.0
    %v2870 = vand.u32 %v1909, 4294901760
    %v2871 = vsub.f32 %v1909, %v2870
    %v2872 = vand.u32 %v2871, 4294901760
    %2873 = vmatpush1.msra.mxu0 %v2872
    %2874 = vmatprep.subr.mxu0 0.0
    %v2875 = vand.u32 %v1910, 4294901760
    %v2876 = vsub.f32 %v1910, %v2875
    %v2877 = vand.u32 %v2876, 4294901760
    %2878 = vmatpush1.msra.mxu0 %v2877
    %2879 = vmatprep.subr.mxu0 0.0
    %v2880 = vand.u32 %v1911, 4294901760
    %v2881 = vsub.f32 %v1911, %v2880
    %v2882 = vand.u32 %v2881, 4294901760
    %2883 = vmatpush1.msra.mxu0 %v2882
    %2884 = vmatprep.subr.mxu0 0.0
    %v2885 = vand.u32 %v1912, 4294901760
    %v2886 = vsub.f32 %v1912, %v2885
    %v2887 = vand.u32 %v2886, 4294901760
    %2888 = vmatpush1.msra.mxu0 %v2887
    %2889 = vmatprep.subr.mxu0 0.0
    %v2890 = vand.u32 %v1913, 4294901760
    %v2891 = vsub.f32 %v1913, %v2890
    %v2892 = vand.u32 %v2891, 4294901760
    %2893 = vmatpush1.msra.mxu0 %v2892
    %2894 = vmatprep.subr.mxu0 0.0
    %2895 = vmatpush1.msra.mxu0 0.0
    %2896 = vmatprep.subr.mxu0 0.0
    %2897 = vmatpush1.msra.mxu0 0.0
    %2898 = vmatprep.subr.mxu0 0.0
    %2899 = vmatpush1.msra.mxu0 0.0
    %2900 = vmatprep.subr.mxu0 0.0
    %2901 = vmatpush1.msra.mxu0 0.0
    %2902 = vmatprep.subr.mxu0 0.0
    %2903 = vmatpush1.msra.mxu0 0.0
    %2904 = vmatprep.subr.mxu0 0.0
    %2905 = vmatpush1.msra.mxu0 0.0
    %2906 = vmatprep.subr.mxu0 0.0
    %2907 = vmatpush1.msra.mxu0 0.0
    %2908 = vmatprep.subr.mxu0 0.0
    %2909 = vmatpush1.msra.mxu0 0.0
    %2910 = vmatprep.subr.mxu0 0.0
    %2911 = vmatpush1.msra.mxu0 0.0
    %2912 = vmatprep.subr.mxu0 0.0
    %2913 = vmatpush1.msra.mxu0 0.0
    %2914 = vmatprep.subr.mxu0 0.0
    %2915 = vmatpush1.msra.mxu0 0.0
    %2916 = vmatprep.subr.mxu0 0.0
    %2917 = vmatpush1.msra.mxu0 0.0
    %2918 = vmatprep.subr.mxu0 0.0
    %2919 = vmatpush1.msra.mxu0 0.0
    %2920 = vmatprep.subr.mxu0 0.0
    %2921 = vmatpush1.msra.mxu0 0.0
    %2922 = vmatprep.subr.mxu0 0.0
    %2923 = vmatpush1.msra.mxu0 0.0
    %2924 = vmatprep.subr.mxu0 0.0
    %2925 = vmatpush1.msra.mxu0 0.0
    %2926 = vmatprep.mubr.f32.mxu0 0.0
    %v2927 = vand.u32 %v1755, 4294901760
    %2928 = vmatmul.mubr.f32.gmra.mrb[0].mxu0 %v2927
    %v2929 = vpop.f32.mrb[0].mxu0
    %v2930 = vadd.f32 %v2691, %v2929
    %v2931 = vpop.f32.mrb[0].mxu0
    %2932 = vmatprep.mubr.f32.mxu0 0.0
    %v2933 = vand.u32 %v1757, 4294901760
    %2934 = vmatmul.mubr.f32.gmra.mrb[0].mxu0 %v2933
    %v2935 = vpop.f32.mrb[0].mxu0
    %v2936 = vadd.f32 %v2699, %v2935
    %v2937 = vpop.f32.mrb[0].mxu0
    %2938 = vmatprep.mubr.f32.mxu0 0.0
    %v2939 = vand.u32 %v1759, 4294901760
    %2940 = vmatmul.mubr.f32.gmra.mrb[0].mxu0 %v2939
    %v2941 = vpop.f32.mrb[0].mxu0
    %v2942 = vadd.f32 %v2707, %v2941
    %v2943 = vpop.f32.mrb[0].mxu0
    %2944 = vmatprep.mubr.f32.mxu0 0.0
    %v2945 = vand.u32 %v1761, 4294901760
    %2946 = vmatmul.mubr.f32.gmra.mrb[0].mxu0 %v2945
    %v2947 = vpop.f32.mrb[0].mxu0
    %v2948 = vadd.f32 %v2715, %v2947
    %v2949 = vpop.f32.mrb[0].mxu0
    %2950 = vmatprep.mubr.f32.mxu0 0.0
    %v2951 = vand.u32 %v1763, 4294901760
    %2952 = vmatmul.mubr.f32.gmra.mrb[0].mxu0 %v2951
    %v2953 = vpop.f32.mrb[0].mxu0
    %v2954 = vadd.f32 %v2723, %v2953
    %v2955 = vpop.f32.mrb[0].mxu0
    %2956 = vmatprep.mubr.f32.mxu0 0.0
    %v2957 = vand.u32 %v1765, 4294901760
    %2958 = vmatmul.mubr.f32.gmra.mrb[0].mxu0 %v2957
    %v2959 = vpop.f32.mrb[0].mxu0
    %v2960 = vadd.f32 %v2731, %v2959
    %v2961 = vpop.f32.mrb[0].mxu0
    %2962 = vmatprep.mubr.f32.mxu0 0.0
    %v2963 = vand.u32 %v1767, 4294901760
    %2964 = vmatmul.mubr.f32.gmra.mrb[0].mxu0 %v2963
    %v2965 = vpop.f32.mrb[0].mxu0
    %v2966 = vadd.f32 %v2739, %v2965
    %v2967 = vpop.f32.mrb[0].mxu0
    %2968 = vmatprep.mubr.f32.mxu0 0.0
    %v2969 = vand.u32 %v1769, 4294901760
    %2970 = vmatmul.mubr.f32.gmra.mrb[0].mxu0 %v2969
    %v2971 = vpop.f32.mrb[0].mxu0
    %v2972 = vadd.f32 %v2747, %v2971
    %v2973 = vpop.f32.mrb[0].mxu0
    %2974 = vmatprep.mubr.f32.mxu0 0.0
    %v2975 = vand.u32 %v1771, 4294901760
    %2976 = vmatmul.mubr.f32.gmra.mrb[0].mxu0 %v2975
    %v2977 = vpop.f32.mrb[0].mxu0
    %v2978 = vadd.f32 %v2755, %v2977
    %v2979 = vpop.f32.mrb[0].mxu0
    %2980 = vmatprep.mubr.f32.mxu0 0.0
    %v2981 = vand.u32 %v1773, 4294901760
    %2982 = vmatmul.mubr.f32.gmra.mrb[0].mxu0 %v2981
    %v2983 = vpop.f32.mrb[0].mxu0
    %v2984 = vadd.f32 %v2763, %v2983
    %v2985 = vpop.f32.mrb[0].mxu0
    %2986 = vmatprep.mubr.f32.mxu0 0.0
    %v2987 = vand.u32 %v1775, 4294901760
    %2988 = vmatmul.mubr.f32.gmra.mrb[0].mxu0 %v2987
    %v2989 = vpop.f32.mrb[0].mxu0
    %v2990 = vadd.f32 %v2771, %v2989
    %v2991 = vpop.f32.mrb[0].mxu0
    %2992 = vmatprep.mubr.f32.mxu0 0.0
    %v2993 = vand.u32 %v1777, 4294901760
    %2994 = vmatmul.mubr.f32.gmra.mrb[0].mxu0 %v2993
    %v2995 = vpop.f32.mrb[0].mxu0
    %v2996 = vadd.f32 %v2779, %v2995
    %v2997 = vpop.f32.mrb[0].mxu0
    %2998 = vmatprep.mubr.f32.mxu0 0.0
    %v2999 = vand.u32 %v1779, 4294901760
    %3000 = vmatmul.mubr.f32.gmra.mrb[0].mxu0 %v2999
    %v3001 = vpop.f32.mrb[0].mxu0
    %v3002 = vadd.f32 %v2787, %v3001
    %v3003 = vpop.f32.mrb[0].mxu0
    %3004 = vmatprep.mubr.f32.mxu0 0.0
    %v3005 = vand.u32 %v1781, 4294901760
    %3006 = vmatmul.mubr.f32.gmra.mrb[0].mxu0 %v3005
    %v3007 = vpop.f32.mrb[0].mxu0
    %v3008 = vadd.f32 %v2795, %v3007
    %v3009 = vpop.f32.mrb[0].mxu0
    %3010 = vmatprep.mubr.f32.mxu0 0.0
    %v3011 = vand.u32 %v1783, 4294901760
    %3012 = vmatmul.mubr.f32.gmra.mrb[0].mxu0 %v3011
    %v3013 = vpop.f32.mrb[0].mxu0
    %v3014 = vadd.f32 %v2803, %v3013
    %v3015 = vpop.f32.mrb[0].mxu0
    %3016 = vmatprep.mubr.f32.mxu0 0.0
    %v3017 = vand.u32 %v1785, 4294901760
    %3018 = vmatmul.mubr.f32.gmra.mrb[0].mxu0 %v3017
    %v3019 = vpop.f32.mrb[0].mxu0
    %v3020 = vadd.f32 %v2811, %v3019
    %v3021 = vpop.f32.mrb[0].mxu0
    %3022 = vdwg.mxu0
    %3023 = vmatprep.subr.mxu0 0.0
    %v3024 = vand.u32 %v1898, 4294901760
    %3025 = vmatpush1.msra.mxu0 %v3024
    %3026 = vmatprep.subr.mxu0 0.0
    %v3027 = vand.u32 %v1899, 4294901760
    %3028 = vmatpush1.msra.mxu0 %v3027
    %3029 = vmatprep.subr.mxu0 0.0
    %v3030 = vand.u32 %v1900, 4294901760
    %3031 = vmatpush1.msra.mxu0 %v3030
    %3032 = vmatprep.subr.mxu0 0.0
    %v3033 = vand.u32 %v1901, 4294901760
    %3034 = vmatpush1.msra.mxu0 %v3033
    %3035 = vmatprep.subr.mxu0 0.0
    %v3036 = vand.u32 %v1902, 4294901760
    %3037 = vmatpush1.msra.mxu0 %v3036
    %3038 = vmatprep.subr.mxu0 0.0
    %v3039 = vand.u32 %v1903, 4294901760
    %3040 = vmatpush1.msra.mxu0 %v3039
    %3041 = vmatprep.subr.mxu0 0.0
    %v3042 = vand.u32 %v1904, 4294901760
    %3043 = vmatpush1.msra.mxu0 %v3042
    %3044 = vmatprep.subr.mxu0 0.0
    %v3045 = vand.u32 %v1905, 4294901760
    %3046 = vmatpush1.msra.mxu0 %v3045
    %3047 = vmatprep.subr.mxu0 0.0
    %v3048 = vand.u32 %v1906, 4294901760
    %3049 = vmatpush1.msra.mxu0 %v3048
    %3050 = vmatprep.subr.mxu0 0.0
    %v3051 = vand.u32 %v1907, 4294901760
    %3052 = vmatpush1.msra.mxu0 %v3051
    %3053 = vmatprep.subr.mxu0 0.0
    %v3054 = vand.u32 %v1908, 4294901760
    %3055 = vmatpush1.msra.mxu0 %v3054
    %3056 = vmatprep.subr.mxu0 0.0
    %v3057 = vand.u32 %v1909, 4294901760
    %3058 = vmatpush1.msra.mxu0 %v3057
    %3059 = vmatprep.subr.mxu0 0.0
    %v3060 = vand.u32 %v1910, 4294901760
    %3061 = vmatpush1.msra.mxu0 %v3060
    %3062 = vmatprep.subr.mxu0 0.0
    %v3063 = vand.u32 %v1911, 4294901760
    %3064 = vmatpush1.msra.mxu0 %v3063
    %3065 = vmatprep.subr.mxu0 0.0
    %v3066 = vand.u32 %v1912, 4294901760
    %3067 = vmatpush1.msra.mxu0 %v3066
    %3068 = vmatprep.subr.mxu0 0.0
    %v3069 = vand.u32 %v1913, 4294901760
    %3070 = vmatpush1.msra.mxu0 %v3069
    %3071 = vmatprep.subr.mxu0 0.0
    %3072 = vmatpush1.msra.mxu0 0.0
    %3073 = vmatprep.subr.mxu0 0.0
    %3074 = vmatpush1.msra.mxu0 0.0
    %3075 = vmatprep.subr.mxu0 0.0
    %3076 = vmatpush1.msra.mxu0 0.0
    %3077 = vmatprep.subr.mxu0 0.0
    %3078 = vmatpush1.msra.mxu0 0.0
    %3079 = vmatprep.subr.mxu0 0.0
    %3080 = vmatpush1.msra.mxu0 0.0
    %3081 = vmatprep.subr.mxu0 0.0
    %3082 = vmatpush1.msra.mxu0 0.0
    %3083 = vmatprep.subr.mxu0 0.0
    %3084 = vmatpush1.msra.mxu0 0.0
    %3085 = vmatprep.subr.mxu0 0.0
    %3086 = vmatpush1.msra.mxu0 0.0
    %3087 = vmatprep.subr.mxu0 0.0
    %3088 = vmatpush1.msra.mxu0 0.0
    %3089 = vmatprep.subr.mxu0 0.0
    %3090 = vmatpush1.msra.mxu0 0.0
    %3091 = vmatprep.subr.mxu0 0.0
    %3092 = vmatpush1.msra.mxu0 0.0
    %3093 = vmatprep.subr.mxu0 0.0
    %3094 = vmatpush1.msra.mxu0 0.0
    %3095 = vmatprep.subr.mxu0 0.0
    %3096 = vmatpush1.msra.mxu0 0.0
    %3097 = vmatprep.subr.mxu0 0.0
    %3098 = vmatpush1.msra.mxu0 0.0
    %3099 = vmatprep.subr.mxu0 0.0
    %3100 = vmatpush1.msra.mxu0 0.0
    %3101 = vmatprep.subr.mxu0 0.0
    %3102 = vmatpush1.msra.mxu0 0.0
    %3103 = vmatprep.mubr.f32.mxu0 0.0
    %v3104 = vand.u32 %v1755, 4294901760
    %3105 = vmatmul.mubr.f32.gmra.mrb[0].mxu0 %v3104
    %v3106 = vpop.f32.mrb[0].mxu0
    %v3107 = vadd.f32 %v2930, %v3106
    %v3108 = vpop.f32.mrb[0].mxu0
    %3109 = vmatprep.mubr.f32.mxu0 0.0
    %v3110 = vand.u32 %v1757, 4294901760
    %3111 = vmatmul.mubr.f32.gmra.mrb[0].mxu0 %v3110
    %v3112 = vpop.f32.mrb[0].mxu0
    %v3113 = vadd.f32 %v2936, %v3112
    %v3114 = vpop.f32.mrb[0].mxu0
    %3115 = vmatprep.mubr.f32.mxu0 0.0
    %v3116 = vand.u32 %v1759, 4294901760
    %3117 = vmatmul.mubr.f32.gmra.mrb[0].mxu0 %v3116
    %v3118 = vpop.f32.mrb[0].mxu0
    %v3119 = vadd.f32 %v2942, %v3118
    %v3120 = vpop.f32.mrb[0].mxu0
    %3121 = vmatprep.mubr.f32.mxu0 0.0
    %v3122 = vand.u32 %v1761, 4294901760
    %3123 = vmatmul.mubr.f32.gmra.mrb[0].mxu0 %v3122
    %v3124 = vpop.f32.mrb[0].mxu0
    %v3125 = vadd.f32 %v2948, %v3124
    %v3126 = vpop.f32.mrb[0].mxu0
    %3127 = vmatprep.mubr.f32.mxu0 0.0
    %v3128 = vand.u32 %v1763, 4294901760
    %3129 = vmatmul.mubr.f32.gmra.mrb[0].mxu0 %v3128
    %v3130 = vpop.f32.mrb[0].mxu0
    %v3131 = vadd.f32 %v2954, %v3130
    %v3132 = vpop.f32.mrb[0].mxu0
    %3133 = vmatprep.mubr.f32.mxu0 0.0
    %v3134 = vand.u32 %v1765, 4294901760
    %3135 = vmatmul.mubr.f32.gmra.mrb[0].mxu0 %v3134
    %v3136 = vpop.f32.mrb[0].mxu0
    %v3137 = vadd.f32 %v2960, %v3136
    %v3138 = vpop.f32.mrb[0].mxu0
    %3139 = vmatprep.mubr.f32.mxu0 0.0
    %v3140 = vand.u32 %v1767, 4294901760
    %3141 = vmatmul.mubr.f32.gmra.mrb[0].mxu0 %v3140
    %v3142 = vpop.f32.mrb[0].mxu0
    %v3143 = vadd.f32 %v2966, %v3142
    %v3144 = vpop.f32.mrb[0].mxu0
    %3145 = vmatprep.mubr.f32.mxu0 0.0
    %v3146 = vand.u32 %v1769, 4294901760
    %3147 = vmatmul.mubr.f32.gmra.mrb[0].mxu0 %v3146
    %v3148 = vpop.f32.mrb[0].mxu0
    %v3149 = vadd.f32 %v2972, %v3148
    %v3150 = vpop.f32.mrb[0].mxu0
    %3151 = vmatprep.mubr.f32.mxu0 0.0
    %v3152 = vand.u32 %v1771, 4294901760
    %3153 = vmatmul.mubr.f32.gmra.mrb[0].mxu0 %v3152
    %v3154 = vpop.f32.mrb[0].mxu0
    %v3155 = vadd.f32 %v2978, %v3154
    %v3156 = vpop.f32.mrb[0].mxu0
    %3157 = vmatprep.mubr.f32.mxu0 0.0
    %v3158 = vand.u32 %v1773, 4294901760
    %3159 = vmatmul.mubr.f32.gmra.mrb[0].mxu0 %v3158
    %v3160 = vpop.f32.mrb[0].mxu0
    %v3161 = vadd.f32 %v2984, %v3160
    %v3162 = vpop.f32.mrb[0].mxu0
    %3163 = vmatprep.mubr.f32.mxu0 0.0
    %v3164 = vand.u32 %v1775, 4294901760
    %3165 = vmatmul.mubr.f32.gmra.mrb[0].mxu0 %v3164
    %v3166 = vpop.f32.mrb[0].mxu0
    %v3167 = vadd.f32 %v2990, %v3166
    %v3168 = vpop.f32.mrb[0].mxu0
    %3169 = vmatprep.mubr.f32.mxu0 0.0
    %v3170 = vand.u32 %v1777, 4294901760
    %3171 = vmatmul.mubr.f32.gmra.mrb[0].mxu0 %v3170
    %v3172 = vpop.f32.mrb[0].mxu0
    %v3173 = vadd.f32 %v2996, %v3172
    %v3174 = vpop.f32.mrb[0].mxu0
    %3175 = vmatprep.mubr.f32.mxu0 0.0
    %v3176 = vand.u32 %v1779, 4294901760
    %3177 = vmatmul.mubr.f32.gmra.mrb[0].mxu0 %v3176
    %v3178 = vpop.f32.mrb[0].mxu0
    %v3179 = vadd.f32 %v3002, %v3178
    %v3180 = vpop.f32.mrb[0].mxu0
    %3181 = vmatprep.mubr.f32.mxu0 0.0
    %v3182 = vand.u32 %v1781, 4294901760
    %3183 = vmatmul.mubr.f32.gmra.mrb[0].mxu0 %v3182
    %v3184 = vpop.f32.mrb[0].mxu0
    %v3185 = vadd.f32 %v3008, %v3184
    %v3186 = vpop.f32.mrb[0].mxu0
    %3187 = vmatprep.mubr.f32.mxu0 0.0
    %v3188 = vand.u32 %v1783, 4294901760
    %3189 = vmatmul.mubr.f32.gmra.mrb[0].mxu0 %v3188
    %v3190 = vpop.f32.mrb[0].mxu0
    %v3191 = vadd.f32 %v3014, %v3190
    %v3192 = vpop.f32.mrb[0].mxu0
    %3193 = vmatprep.mubr.f32.mxu0 0.0
    %v3194 = vand.u32 %v1785, 4294901760
    %3195 = vmatmul.mubr.f32.gmra.mrb[0].mxu0 %v3194
    %v3196 = vpop.f32.mrb[0].mxu0
    %v3197 = vadd.f32 %v3020, %v3196
    %v3198 = vpop.f32.mrb[0].mxu0
    %3199 = vdwg.mxu0
    %v3200 = vadd.f32 %v1882, %v3107
    %v3201 = vadd.f32 %v1883, %v3113
    %v3202 = vadd.f32 %v1884, %v3119
    %v3203 = vadd.f32 %v1885, %v3125
    %v3204 = vadd.f32 %v1886, %v3131
    %v3205 = vadd.f32 %v1887, %v3137
    %v3206 = vadd.f32 %v1888, %v3143
    %v3207 = vadd.f32 %v1889, %v3149
    %v3208 = vadd.f32 %v1890, %v3155
    %v3209 = vadd.f32 %v1891, %v3161
    %v3210 = vadd.f32 %v1892, %v3167
    %v3211 = vadd.f32 %v1893, %v3173
    %v3212 = vadd.f32 %v1894, %v3179
    %v3213 = vadd.f32 %v1895, %v3185
    %v3214 = vadd.f32 %v1896, %v3191
    %v3215 = vadd.f32 %v1897, %v3197
    %3216 = vst [vmem:[#allocation3] sm:$0xff] %v3200
    %3217 = vst [vmem:[#allocation3 + $0x8] sm:$0xff] %v3201
    %3218 = vst [vmem:[#allocation3 + $0x10] sm:$0xff] %v3202
    %3219 = vst [vmem:[#allocation3 + $0x18] sm:$0xff] %v3203
    %3220 = vst [vmem:[#allocation3 + $0x20] sm:$0xff] %v3204
    %3221 = vst [vmem:[#allocation3 + $0x28] sm:$0xff] %v3205
    %3222 = vst [vmem:[#allocation3 + $0x30] sm:$0xff] %v3206
    %3223 = vst [vmem:[#allocation3 + $0x38] sm:$0xff] %v3207
    %3224 = vst [vmem:[#allocation3 + $0x40] sm:$0xff] %v3208
    %3225 = vst [vmem:[#allocation3 + $0x48] sm:$0xff] %v3209
    %3226 = vst [vmem:[#allocation3 + $0x50] sm:$0xff] %v3210
    %3227 = vst [vmem:[#allocation3 + $0x58] sm:$0xff] %v3211
    %3228 = vst [vmem:[#allocation3 + $0x60] sm:$0xff] %v3212
    %3229 = vst [vmem:[#allocation3 + $0x68] sm:$0xff] %v3213
    %3230 = vst [vmem:[#allocation3 + $0x70] sm:$0xff] %v3214
    %3231 = vst [vmem:[#allocation3 + $0x78] sm:$0xff] %v3215
    %vm3232 = vcmask 7168
    %3233 = vst.msk [vmem:[#allocation2] sm:$0xff] %vm3232, %v1594
    %3234 = vst.msk [vmem:[#allocation2 + $0x8] sm:$0xff] %vm3232, %v1595
    %3235 = vst.msk [vmem:[#allocation2 + $0x10] sm:$0xff] %vm3232, %v1596
    %3236 = vst.msk [vmem:[#allocation2 + $0x18] sm:$0xff] %vm3232, %v1597
    %3237 = vst.msk [vmem:[#allocation2 + $0x20] sm:$0xff] %vm3232, %v1598
    %3238 = vst.msk [vmem:[#allocation2 + $0x28] sm:$0xff] %vm3232, %v1599
    %3239 = vst.msk [vmem:[#allocation2 + $0x30] sm:$0xff] %vm3232, %v1600
    %3240 = vst.msk [vmem:[#allocation2 + $0x38] sm:$0xff] %vm3232, %v1601
    %3241 = vst.msk [vmem:[#allocation2 + $0x40] sm:$0xff] %vm3232, %v1602
    %3242 = vst.msk [vmem:[#allocation2 + $0x48] sm:$0xff] %vm3232, %v1603
    %3243 = vst.msk [vmem:[#allocation2 + $0x50] sm:$0xff] %vm3232, %v1604
    %3244 = vst.msk [vmem:[#allocation2 + $0x58] sm:$0xff] %vm3232, %v1605
    %3245 = vst.msk [vmem:[#allocation2 + $0x60] sm:$0xff] %vm3232, %v1606
    %3246 = vst.msk [vmem:[#allocation2 + $0x68] sm:$0xff] %vm3232, %v1607
    %3247 = vst.msk [vmem:[#allocation2 + $0x70] sm:$0xff] %vm3232, %v1608
    %3248 = vst.msk [vmem:[#allocation2 + $0x78] sm:$0xff] %vm3232, %v1609
    // Predicated region
    $region46: #{tpu_custom_call.1} parent=1 // pred_check
      %p3249 = pneg %p79
    $region47: #{tpu_custom_call.1} parent=1 // pred_check_branch
      %3251 = sbr.rel (%p3249) target = $region49
    $region48: #{tpu_custom_call.1} parent=1 // pred_region
      %3252 = vmatprep.subr.mxu0 0.0
      %v3253 = vand.u32 %v212, 4294901760
      %3254 = vmatpush1.xpose.msra.mxu0 %v3253
      %3255 = vmatprep.subr.mxu0 0.0
      %v3256 = vand.u32 %v213, 4294901760
      %3257 = vmatpush1.xpose.msra.mxu0 %v3256
      %3258 = vmatprep.subr.mxu0 0.0
      %v3259 = vand.u32 %v214, 4294901760
      %3260 = vmatpush1.xpose.msra.mxu0 %v3259
      %3261 = vmatprep.subr.mxu0 0.0
      %v3262 = vand.u32 %v215, 4294901760
      %3263 = vmatpush1.xpose.msra.mxu0 %v3262
      %3264 = vmatprep.subr.mxu0 0.0
      %v3265 = vand.u32 %v216, 4294901760
      %3266 = vmatpush1.xpose.msra.mxu0 %v3265
      %3267 = vmatprep.subr.mxu0 0.0
      %v3268 = vand.u32 %v217, 4294901760
      %3269 = vmatpush1.xpose.msra.mxu0 %v3268
      %3270 = vmatprep.subr.mxu0 0.0
      %v3271 = vand.u32 %v218, 4294901760
      %3272 = vmatpush1.xpose.msra.mxu0 %v3271
      %3273 = vmatprep.subr.mxu0 0.0
      %v3274 = vand.u32 %v219, 4294901760
      %3275 = vmatpush1.xpose.msra.mxu0 %v3274
      %3276 = vmatprep.subr.mxu0 0.0
      %v3277 = vand.u32 %v220, 4294901760
      %3278 = vmatpush1.xpose.msra.mxu0 %v3277
      %3279 = vmatprep.subr.mxu0 0.0
      %v3280 = vand.u32 %v221, 4294901760
      %3281 = vmatpush1.xpose.msra.mxu0 %v3280
      %3282 = vmatprep.subr.mxu0 0.0
      %v3283 = vand.u32 %v222, 4294901760
      %3284 = vmatpush1.xpose.msra.mxu0 %v3283
      %3285 = vmatprep.subr.mxu0 0.0
      %v3286 = vand.u32 %v223, 4294901760
      %3287 = vmatpush1.xpose.msra.mxu0 %v3286
      %3288 = vmatprep.subr.mxu0 0.0
      %v3289 = vand.u32 %v224, 4294901760
      %3290 = vmatpush1.xpose.msra.mxu0 %v3289
      %3291 = vmatprep.subr.mxu0 0.0
      %v3292 = vand.u32 %v225, 4294901760
      %3293 = vmatpush1.xpose.msra.mxu0 %v3292
      %3294 = vmatprep.subr.mxu0 0.0
      %v3295 = vand.u32 %v226, 4294901760
      %3296 = vmatpush1.xpose.msra.mxu0 %v3295
      %3297 = vmatprep.subr.mxu0 0.0
      %v3298 = vand.u32 %v227, 4294901760
      %3299 = vmatpush1.xpose.msra.mxu0 %v3298
      %3300 = vmatprep.subr.mxu0 0.0
      %3301 = vmatpush1.xpose.msra.mxu0 0.0
      %3302 = vmatprep.subr.mxu0 0.0
      %3303 = vmatpush1.xpose.msra.mxu0 0.0
      %3304 = vmatprep.subr.mxu0 0.0
      %3305 = vmatpush1.xpose.msra.mxu0 0.0
      %3306 = vmatprep.subr.mxu0 0.0
      %3307 = vmatpush1.xpose.msra.mxu0 0.0
      %3308 = vmatprep.subr.mxu0 0.0
      %3309 = vmatpush1.xpose.msra.mxu0 0.0
      %3310 = vmatprep.subr.mxu0 0.0
      %3311 = vmatpush1.xpose.msra.mxu0 0.0
      %3312 = vmatprep.subr.mxu0 0.0
      %3313 = vmatpush1.xpose.msra.mxu0 0.0
      %3314 = vmatprep.subr.mxu0 0.0
      %3315 = vmatpush1.xpose.msra.mxu0 0.0
      %3316 = vmatprep.subr.mxu0 0.0
      %3317 = vmatpush1.xpose.msra.mxu0 0.0
      %3318 = vmatprep.subr.mxu0 0.0
      %3319 = vmatpush1.xpose.msra.mxu0 0.0
      %3320 = vmatprep.subr.mxu0 0.0
      %3321 = vmatpush1.xpose.msra.mxu0 0.0
      %3322 = vmatprep.subr.mxu0 0.0
      %3323 = vmatpush1.xpose.msra.mxu0 0.0
      %3324 = vmatprep.subr.mxu0 0.0
      %3325 = vmatpush1.xpose.msra.mxu0 0.0
      %3326 = vmatprep.subr.mxu0 0.0
      %3327 = vmatpush1.xpose.msra.mxu0 0.0
      %3328 = vmatprep.subr.mxu0 0.0
      %3329 = vmatpush1.xpose.msra.mxu0 0.0
      %3330 = vmatprep.subr.mxu0 0.0
      %3331 = vmatpush1.xpose.msra.mxu0 0.0
      %3332 = vmatprep.mubr.f32.mxu0 0.0
      %v3333 = vand.u32 %v228, 4294901760
      %v3334 = vsub.f32 %v228, %v3333
      %v3335 = vand.u32 %v3334, 4294901760
      %v3336 = vsub.f32 %v3334, %v3335
      %v3337 = vand.u32 %v3336, 4294901760
      %3338 = vmatmul.mubr.f32.gmra.mrb[0].mxu0 %v3337
      %v3339 = vpop.f32.mrb[0].mxu0
      %v3340 = vadd.f32 0.0, %v3339
      %v3341 = vpop.f32.mrb[0].mxu0
      %3342 = vmatprep.mubr.f32.mxu0 0.0
      %v3343 = vand.u32 %v229, 4294901760
      %v3344 = vsub.f32 %v229, %v3343
      %v3345 = vand.u32 %v3344, 4294901760
      %v3346 = vsub.f32 %v3344, %v3345
      %v3347 = vand.u32 %v3346, 4294901760
      %3348 = vmatmul.mubr.f32.gmra.mrb[0].mxu0 %v3347
      %v3349 = vpop.f32.mrb[0].mxu0
      %v3350 = vadd.f32 0.0, %v3349
      %v3351 = vpop.f32.mrb[0].mxu0
      %3352 = vmatprep.mubr.f32.mxu0 0.0
      %v3353 = vand.u32 %v230, 4294901760
      %v3354 = vsub.f32 %v230, %v3353
      %v3355 = vand.u32 %v3354, 4294901760
      %v3356 = vsub.f32 %v3354, %v3355
      %v3357 = vand.u32 %v3356, 4294901760
      %3358 = vmatmul.mubr.f32.gmra.mrb[0].mxu0 %v3357
      %v3359 = vpop.f32.mrb[0].mxu0
      %v3360 = vadd.f32 0.0, %v3359
      %v3361 = vpop.f32.mrb[0].mxu0
      %3362 = vmatprep.mubr.f32.mxu0 0.0
      %v3363 = vand.u32 %v231, 4294901760
      %v3364 = vsub.f32 %v231, %v3363
      %v3365 = vand.u32 %v3364, 4294901760
      %v3366 = vsub.f32 %v3364, %v3365
      %v3367 = vand.u32 %v3366, 4294901760
      %3368 = vmatmul.mubr.f32.gmra.mrb[0].mxu0 %v3367
      %v3369 = vpop.f32.mrb[0].mxu0
      %v3370 = vadd.f32 0.0, %v3369
      %v3371 = vpop.f32.mrb[0].mxu0
      %3372 = vmatprep.mubr.f32.mxu0 0.0
      %v3373 = vand.u32 %v232, 4294901760
      %v3374 = vsub.f32 %v232, %v3373
      %v3375 = vand.u32 %v3374, 4294901760
      %v3376 = vsub.f32 %v3374, %v3375
      %v3377 = vand.u32 %v3376, 4294901760
      %3378 = vmatmul.mubr.f32.gmra.mrb[0].mxu0 %v3377
      %v3379 = vpop.f32.mrb[0].mxu0
      %v3380 = vadd.f32 0.0, %v3379
      %v3381 = vpop.f32.mrb[0].mxu0
      %3382 = vmatprep.mubr.f32.mxu0 0.0
      %v3383 = vand.u32 %v233, 4294901760
      %v3384 = vsub.f32 %v233, %v3383
      %v3385 = vand.u32 %v3384, 4294901760
      %v3386 = vsub.f32 %v3384, %v3385
      %v3387 = vand.u32 %v3386, 4294901760
      %3388 = vmatmul.mubr.f32.gmra.mrb[0].mxu0 %v3387
      %v3389 = vpop.f32.mrb[0].mxu0
      %v3390 = vadd.f32 0.0, %v3389
      %v3391 = vpop.f32.mrb[0].mxu0
      %3392 = vmatprep.mubr.f32.mxu0 0.0
      %v3393 = vand.u32 %v234, 4294901760
      %v3394 = vsub.f32 %v234, %v3393
      %v3395 = vand.u32 %v3394, 4294901760
      %v3396 = vsub.f32 %v3394, %v3395
      %v3397 = vand.u32 %v3396, 4294901760
      %3398 = vmatmul.mubr.f32.gmra.mrb[0].mxu0 %v3397
      %v3399 = vpop.f32.mrb[0].mxu0
      %v3400 = vadd.f32 0.0, %v3399
      %v3401 = vpop.f32.mrb[0].mxu0
      %3402 = vmatprep.mubr.f32.mxu0 0.0
      %v3403 = vand.u32 %v235, 4294901760
      %v3404 = vsub.f32 %v235, %v3403
      %v3405 = vand.u32 %v3404, 4294901760
      %v3406 = vsub.f32 %v3404, %v3405
      %v3407 = vand.u32 %v3406, 4294901760
      %3408 = vmatmul.mubr.f32.gmra.mrb[0].mxu0 %v3407
      %v3409 = vpop.f32.mrb[0].mxu0
      %v3410 = vadd.f32 0.0, %v3409
      %v3411 = vpop.f32.mrb[0].mxu0
      %3412 = vmatprep.mubr.f32.mxu0 0.0
      %v3413 = vand.u32 %v236, 4294901760
      %v3414 = vsub.f32 %v236, %v3413
      %v3415 = vand.u32 %v3414, 4294901760
      %v3416 = vsub.f32 %v3414, %v3415
      %v3417 = vand.u32 %v3416, 4294901760
      %3418 = vmatmul.mubr.f32.gmra.mrb[0].mxu0 %v3417
      %v3419 = vpop.f32.mrb[0].mxu0
      %v3420 = vadd.f32 0.0, %v3419
      %v3421 = vpop.f32.mrb[0].mxu0
      %3422 = vmatprep.mubr.f32.mxu0 0.0
      %v3423 = vand.u32 %v237, 4294901760
      %v3424 = vsub.f32 %v237, %v3423
      %v3425 = vand.u32 %v3424, 4294901760
      %v3426 = vsub.f32 %v3424, %v3425
      %v3427 = vand.u32 %v3426, 4294901760
      %3428 = vmatmul.mubr.f32.gmra.mrb[0].mxu0 %v3427
      %v3429 = vpop.f32.mrb[0].mxu0
      %v3430 = vadd.f32 0.0, %v3429
      %v3431 = vpop.f32.mrb[0].mxu0
      %3432 = vmatprep.mubr.f32.mxu0 0.0
      %v3433 = vand.u32 %v238, 4294901760
      %v3434 = vsub.f32 %v238, %v3433
      %v3435 = vand.u32 %v3434, 4294901760
      %v3436 = vsub.f32 %v3434, %v3435
      %v3437 = vand.u32 %v3436, 4294901760
      %3438 = vmatmul.mubr.f32.gmra.mrb[0].mxu0 %v3437
      %v3439 = vpop.f32.mrb[0].mxu0
      %v3440 = vadd.f32 0.0, %v3439
      %v3441 = vpop.f32.mrb[0].mxu0
      %3442 = vmatprep.mubr.f32.mxu0 0.0
      %v3443 = vand.u32 %v239, 4294901760
      %v3444 = vsub.f32 %v239, %v3443
      %v3445 = vand.u32 %v3444, 4294901760
      %v3446 = vsub.f32 %v3444, %v3445
      %v3447 = vand.u32 %v3446, 4294901760
      %3448 = vmatmul.mubr.f32.gmra.mrb[0].mxu0 %v3447
      %v3449 = vpop.f32.mrb[0].mxu0
      %v3450 = vadd.f32 0.0, %v3449
      %v3451 = vpop.f32.mrb[0].mxu0
      %3452 = vmatprep.mubr.f32.mxu0 0.0
      %v3453 = vand.u32 %v240, 4294901760
      %v3454 = vsub.f32 %v240, %v3453
      %v3455 = vand.u32 %v3454, 4294901760
      %v3456 = vsub.f32 %v3454, %v3455
      %v3457 = vand.u32 %v3456, 4294901760
      %3458 = vmatmul.mubr.f32.gmra.mrb[0].mxu0 %v3457
      %v3459 = vpop.f32.mrb[0].mxu0
      %v3460 = vadd.f32 0.0, %v3459
      %v3461 = vpop.f32.mrb[0].mxu0
      %3462 = vmatprep.mubr.f32.mxu0 0.0
      %v3463 = vand.u32 %v241, 4294901760
      %v3464 = vsub.f32 %v241, %v3463
      %v3465 = vand.u32 %v3464, 4294901760
      %v3466 = vsub.f32 %v3464, %v3465
      %v3467 = vand.u32 %v3466, 4294901760
      %3468 = vmatmul.mubr.f32.gmra.mrb[0].mxu0 %v3467
      %v3469 = vpop.f32.mrb[0].mxu0
      %v3470 = vadd.f32 0.0, %v3469
      %v3471 = vpop.f32.mrb[0].mxu0
      %3472 = vmatprep.mubr.f32.mxu0 0.0
      %v3473 = vand.u32 %v242, 4294901760
      %v3474 = vsub.f32 %v242, %v3473
      %v3475 = vand.u32 %v3474, 4294901760
      %v3476 = vsub.f32 %v3474, %v3475
      %v3477 = vand.u32 %v3476, 4294901760
      %3478 = vmatmul.mubr.f32.gmra.mrb[0].mxu0 %v3477
      %v3479 = vpop.f32.mrb[0].mxu0
      %v3480 = vadd.f32 0.0, %v3479
      %v3481 = vpop.f32.mrb[0].mxu0
      %3482 = vmatprep.mubr.f32.mxu0 0.0
      %v3483 = vand.u32 %v243, 4294901760
      %v3484 = vsub.f32 %v243, %v3483
      %v3485 = vand.u32 %v3484, 4294901760
      %v3486 = vsub.f32 %v3484, %v3485
      %v3487 = vand.u32 %v3486, 4294901760
      %3488 = vmatmul.mubr.f32.gmra.mrb[0].mxu0 %v3487
      %v3489 = vpop.f32.mrb[0].mxu0
      %v3490 = vadd.f32 0.0, %v3489
      %v3491 = vpop.f32.mrb[0].mxu0
      %3492 = vdwg.mxu0
      %3493 = vmatprep.subr.mxu0 0.0
      %v3494 = vand.u32 %v212, 4294901760
      %v3495 = vsub.f32 %v212, %v3494
      %v3496 = vand.u32 %v3495, 4294901760
      %v3497 = vsub.f32 %v3495, %v3496
      %v3498 = vand.u32 %v3497, 4294901760
      %3499 = vmatpush1.xpose.msra.mxu0 %v3498
      %3500 = vmatprep.subr.mxu0 0.0
      %v3501 = vand.u32 %v213, 4294901760
      %v3502 = vsub.f32 %v213, %v3501
      %v3503 = vand.u32 %v3502, 4294901760
      %v3504 = vsub.f32 %v3502, %v3503
      %v3505 = vand.u32 %v3504, 4294901760
      %3506 = vmatpush1.xpose.msra.mxu0 %v3505
      %3507 = vmatprep.subr.mxu0 0.0
      %v3508 = vand.u32 %v214, 4294901760
      %v3509 = vsub.f32 %v214, %v3508
      %v3510 = vand.u32 %v3509, 4294901760
      %v3511 = vsub.f32 %v3509, %v3510
      %v3512 = vand.u32 %v3511, 4294901760
      %3513 = vmatpush1.xpose.msra.mxu0 %v3512
      %3514 = vmatprep.subr.mxu0 0.0
      %v3515 = vand.u32 %v215, 4294901760
      %v3516 = vsub.f32 %v215, %v3515
      %v3517 = vand.u32 %v3516, 4294901760
      %v3518 = vsub.f32 %v3516, %v3517
      %v3519 = vand.u32 %v3518, 4294901760
      %3520 = vmatpush1.xpose.msra.mxu0 %v3519
      %3521 = vmatprep.subr.mxu0 0.0
      %v3522 = vand.u32 %v216, 4294901760
      %v3523 = vsub.f32 %v216, %v3522
      %v3524 = vand.u32 %v3523, 4294901760
      %v3525 = vsub.f32 %v3523, %v3524
      %v3526 = vand.u32 %v3525, 4294901760
      %3527 = vmatpush1.xpose.msra.mxu0 %v3526
      %3528 = vmatprep.subr.mxu0 0.0
      %v3529 = vand.u32 %v217, 4294901760
      %v3530 = vsub.f32 %v217, %v3529
      %v3531 = vand.u32 %v3530, 4294901760
      %v3532 = vsub.f32 %v3530, %v3531
      %v3533 = vand.u32 %v3532, 4294901760
      %3534 = vmatpush1.xpose.msra.mxu0 %v3533
      %3535 = vmatprep.subr.mxu0 0.0
      %v3536 = vand.u32 %v218, 4294901760
      %v3537 = vsub.f32 %v218, %v3536
      %v3538 = vand.u32 %v3537, 4294901760
      %v3539 = vsub.f32 %v3537, %v3538
      %v3540 = vand.u32 %v3539, 4294901760
      %3541 = vmatpush1.xpose.msra.mxu0 %v3540
      %3542 = vmatprep.subr.mxu0 0.0
      %v3543 = vand.u32 %v219, 4294901760
      %v3544 = vsub.f32 %v219, %v3543
      %v3545 = vand.u32 %v3544, 4294901760
      %v3546 = vsub.f32 %v3544, %v3545
      %v3547 = vand.u32 %v3546, 4294901760
      %3548 = vmatpush1.xpose.msra.mxu0 %v3547
      %3549 = vmatprep.subr.mxu0 0.0
      %v3550 = vand.u32 %v220, 4294901760
      %v3551 = vsub.f32 %v220, %v3550
      %v3552 = vand.u32 %v3551, 4294901760
      %v3553 = vsub.f32 %v3551, %v3552
      %v3554 = vand.u32 %v3553, 4294901760
      %3555 = vmatpush1.xpose.msra.mxu0 %v3554
      %3556 = vmatprep.subr.mxu0 0.0
      %v3557 = vand.u32 %v221, 4294901760
      %v3558 = vsub.f32 %v221, %v3557
      %v3559 = vand.u32 %v3558, 4294901760
      %v3560 = vsub.f32 %v3558, %v3559
      %v3561 = vand.u32 %v3560, 4294901760
      %3562 = vmatpush1.xpose.msra.mxu0 %v3561
      %3563 = vmatprep.subr.mxu0 0.0
      %v3564 = vand.u32 %v222, 4294901760
      %v3565 = vsub.f32 %v222, %v3564
      %v3566 = vand.u32 %v3565, 4294901760
      %v3567 = vsub.f32 %v3565, %v3566
      %v3568 = vand.u32 %v3567, 4294901760
      %3569 = vmatpush1.xpose.msra.mxu0 %v3568
      %3570 = vmatprep.subr.mxu0 0.0
      %v3571 = vand.u32 %v223, 4294901760
      %v3572 = vsub.f32 %v223, %v3571
      %v3573 = vand.u32 %v3572, 4294901760
      %v3574 = vsub.f32 %v3572, %v3573
      %v3575 = vand.u32 %v3574, 4294901760
      %3576 = vmatpush1.xpose.msra.mxu0 %v3575
      %3577 = vmatprep.subr.mxu0 0.0
      %v3578 = vand.u32 %v224, 4294901760
      %v3579 = vsub.f32 %v224, %v3578
      %v3580 = vand.u32 %v3579, 4294901760
      %v3581 = vsub.f32 %v3579, %v3580
      %v3582 = vand.u32 %v3581, 4294901760
      %3583 = vmatpush1.xpose.msra.mxu0 %v3582
      %3584 = vmatprep.subr.mxu0 0.0
      %v3585 = vand.u32 %v225, 4294901760
      %v3586 = vsub.f32 %v225, %v3585
      %v3587 = vand.u32 %v3586, 4294901760
      %v3588 = vsub.f32 %v3586, %v3587
      %v3589 = vand.u32 %v3588, 4294901760
      %3590 = vmatpush1.xpose.msra.mxu0 %v3589
      %3591 = vmatprep.subr.mxu0 0.0
      %v3592 = vand.u32 %v226, 4294901760
      %v3593 = vsub.f32 %v226, %v3592
      %v3594 = vand.u32 %v3593, 4294901760
      %v3595 = vsub.f32 %v3593, %v3594
      %v3596 = vand.u32 %v3595, 4294901760
      %3597 = vmatpush1.xpose.msra.mxu0 %v3596
      %3598 = vmatprep.subr.mxu0 0.0
      %v3599 = vand.u32 %v227, 4294901760
      %v3600 = vsub.f32 %v227, %v3599
      %v3601 = vand.u32 %v3600, 4294901760
      %v3602 = vsub.f32 %v3600, %v3601
      %v3603 = vand.u32 %v3602, 4294901760
      %3604 = vmatpush1.xpose.msra.mxu0 %v3603
      %3605 = vmatprep.subr.mxu0 0.0
      %3606 = vmatpush1.xpose.msra.mxu0 0.0
      %3607 = vmatprep.subr.mxu0 0.0
      %3608 = vmatpush1.xpose.msra.mxu0 0.0
      %3609 = vmatprep.subr.mxu0 0.0
      %3610 = vmatpush1.xpose.msra.mxu0 0.0
      %3611 = vmatprep.subr.mxu0 0.0
      %3612 = vmatpush1.xpose.msra.mxu0 0.0
      %3613 = vmatprep.subr.mxu0 0.0
      %3614 = vmatpush1.xpose.msra.mxu0 0.0
      %3615 = vmatprep.subr.mxu0 0.0
      %3616 = vmatpush1.xpose.msra.mxu0 0.0
      %3617 = vmatprep.subr.mxu0 0.0
      %3618 = vmatpush1.xpose.msra.mxu0 0.0
      %3619 = vmatprep.subr.mxu0 0.0
      %3620 = vmatpush1.xpose.msra.mxu0 0.0
      %3621 = vmatprep.subr.mxu0 0.0
      %3622 = vmatpush1.xpose.msra.mxu0 0.0
      %3623 = vmatprep.subr.mxu0 0.0
      %3624 = vmatpush1.xpose.msra.mxu0 0.0
      %3625 = vmatprep.subr.mxu0 0.0
      %3626 = vmatpush1.xpose.msra.mxu0 0.0
      %3627 = vmatprep.subr.mxu0 0.0
      %3628 = vmatpush1.xpose.msra.mxu0 0.0
      %3629 = vmatprep.subr.mxu0 0.0
      %3630 = vmatpush1.xpose.msra.mxu0 0.0
      %3631 = vmatprep.subr.mxu0 0.0
      %3632 = vmatpush1.xpose.msra.mxu0 0.0
      %3633 = vmatprep.subr.mxu0 0.0
      %3634 = vmatpush1.xpose.msra.mxu0 0.0
      %3635 = vmatprep.subr.mxu0 0.0
      %3636 = vmatpush1.xpose.msra.mxu0 0.0
      %3637 = vmatprep.mubr.f32.mxu0 0.0
      %v3638 = vand.u32 %v228, 4294901760
      %3639 = vmatmul.mubr.f32.gmra.mrb[0].mxu0 %v3638
      %v3640 = vpop.f32.mrb[0].mxu0
      %v3641 = vadd.f32 %v3340, %v3640
      %v3642 = vpop.f32.mrb[0].mxu0
      %3643 = vmatprep.mubr.f32.mxu0 0.0
      %v3644 = vand.u32 %v229, 4294901760
      %3645 = vmatmul.mubr.f32.gmra.mrb[0].mxu0 %v3644
      %v3646 = vpop.f32.mrb[0].mxu0
      %v3647 = vadd.f32 %v3350, %v3646
      %v3648 = vpop.f32.mrb[0].mxu0
      %3649 = vmatprep.mubr.f32.mxu0 0.0
      %v3650 = vand.u32 %v230, 4294901760
      %3651 = vmatmul.mubr.f32.gmra.mrb[0].mxu0 %v3650
      %v3652 = vpop.f32.mrb[0].mxu0
      %v3653 = vadd.f32 %v3360, %v3652
      %v3654 = vpop.f32.mrb[0].mxu0
      %3655 = vmatprep.mubr.f32.mxu0 0.0
      %v3656 = vand.u32 %v231, 4294901760
      %3657 = vmatmul.mubr.f32.gmra.mrb[0].mxu0 %v3656
      %v3658 = vpop.f32.mrb[0].mxu0
      %v3659 = vadd.f32 %v3370, %v3658
      %v3660 = vpop.f32.mrb[0].mxu0
      %3661 = vmatprep.mubr.f32.mxu0 0.0
      %v3662 = vand.u32 %v232, 4294901760
      %3663 = vmatmul.mubr.f32.gmra.mrb[0].mxu0 %v3662
      %v3664 = vpop.f32.mrb[0].mxu0
      %v3665 = vadd.f32 %v3380, %v3664
      %v3666 = vpop.f32.mrb[0].mxu0
      %3667 = vmatprep.mubr.f32.mxu0 0.0
      %v3668 = vand.u32 %v233, 4294901760
      %3669 = vmatmul.mubr.f32.gmra.mrb[0].mxu0 %v3668
      %v3670 = vpop.f32.mrb[0].mxu0
      %v3671 = vadd.f32 %v3390, %v3670
      %v3672 = vpop.f32.mrb[0].mxu0
      %3673 = vmatprep.mubr.f32.mxu0 0.0
      %v3674 = vand.u32 %v234, 4294901760
      %3675 = vmatmul.mubr.f32.gmra.mrb[0].mxu0 %v3674
      %v3676 = vpop.f32.mrb[0].mxu0
      %v3677 = vadd.f32 %v3400, %v3676
      %v3678 = vpop.f32.mrb[0].mxu0
      %3679 = vmatprep.mubr.f32.mxu0 0.0
      %v3680 = vand.u32 %v235, 4294901760
      %3681 = vmatmul.mubr.f32.gmra.mrb[0].mxu0 %v3680
      %v3682 = vpop.f32.mrb[0].mxu0
      %v3683 = vadd.f32 %v3410, %v3682
      %v3684 = vpop.f32.mrb[0].mxu0
      %3685 = vmatprep.mubr.f32.mxu0 0.0
      %v3686 = vand.u32 %v236, 4294901760
      %3687 = vmatmul.mubr.f32.gmra.mrb[0].mxu0 %v3686
      %v3688 = vpop.f32.mrb[0].mxu0
      %v3689 = vadd.f32 %v3420, %v3688
      %v3690 = vpop.f32.mrb[0].mxu0
      %3691 = vmatprep.mubr.f32.mxu0 0.0
      %v3692 = vand.u32 %v237, 4294901760
      %3693 = vmatmul.mubr.f32.gmra.mrb[0].mxu0 %v3692
      %v3694 = vpop.f32.mrb[0].mxu0
      %v3695 = vadd.f32 %v3430, %v3694
      %v3696 = vpop.f32.mrb[0].mxu0
      %3697 = vmatprep.mubr.f32.mxu0 0.0
      %v3698 = vand.u32 %v238, 4294901760
      %3699 = vmatmul.mubr.f32.gmra.mrb[0].mxu0 %v3698
      %v3700 = vpop.f32.mrb[0].mxu0
      %v3701 = vadd.f32 %v3440, %v3700
      %v3702 = vpop.f32.mrb[0].mxu0
      %3703 = vmatprep.mubr.f32.mxu0 0.0
      %v3704 = vand.u32 %v239, 4294901760
      %3705 = vmatmul.mubr.f32.gmra.mrb[0].mxu0 %v3704
      %v3706 = vpop.f32.mrb[0].mxu0
      %v3707 = vadd.f32 %v3450, %v3706
      %v3708 = vpop.f32.mrb[0].mxu0
      %3709 = vmatprep.mubr.f32.mxu0 0.0
      %v3710 = vand.u32 %v240, 4294901760
      %3711 = vmatmul.mubr.f32.gmra.mrb[0].mxu0 %v3710
      %v3712 = vpop.f32.mrb[0].mxu0
      %v3713 = vadd.f32 %v3460, %v3712
      %v3714 = vpop.f32.mrb[0].mxu0
      %3715 = vmatprep.mubr.f32.mxu0 0.0
      %v3716 = vand.u32 %v241, 4294901760
      %3717 = vmatmul.mubr.f32.gmra.mrb[0].mxu0 %v3716
      %v3718 = vpop.f32.mrb[0].mxu0
      %v3719 = vadd.f32 %v3470, %v3718
      %v3720 = vpop.f32.mrb[0].mxu0
      %3721 = vmatprep.mubr.f32.mxu0 0.0
      %v3722 = vand.u32 %v242, 4294901760
      %3723 = vmatmul.mubr.f32.gmra.mrb[0].mxu0 %v3722
      %v3724 = vpop.f32.mrb[0].mxu0
      %v3725 = vadd.f32 %v3480, %v3724
      %v3726 = vpop.f32.mrb[0].mxu0
      %3727 = vmatprep.mubr.f32.mxu0 0.0
      %v3728 = vand.u32 %v243, 4294901760
      %3729 = vmatmul.mubr.f32.gmra.mrb[0].mxu0 %v3728
      %v3730 = vpop.f32.mrb[0].mxu0
      %v3731 = vadd.f32 %v3490, %v3730
      %v3732 = vpop.f32.mrb[0].mxu0
      %3733 = vdwg.mxu0
      %3734 = vmatprep.subr.mxu0 0.0
      %v3735 = vand.u32 %v212, 4294901760
      %v3736 = vsub.f32 %v212, %v3735
      %3737 = vmatpush1.xpose.msra.mxu0 %v3736
      %3738 = vmatprep.subr.mxu0 0.0
      %v3739 = vand.u32 %v213, 4294901760
      %v3740 = vsub.f32 %v213, %v3739
      %3741 = vmatpush1.xpose.msra.mxu0 %v3740
      %3742 = vmatprep.subr.mxu0 0.0
      %v3743 = vand.u32 %v214, 4294901760
      %v3744 = vsub.f32 %v214, %v3743
      %3745 = vmatpush1.xpose.msra.mxu0 %v3744
      %3746 = vmatprep.subr.mxu0 0.0
      %v3747 = vand.u32 %v215, 4294901760
      %v3748 = vsub.f32 %v215, %v3747
      %3749 = vmatpush1.xpose.msra.mxu0 %v3748
      %3750 = vmatprep.subr.mxu0 0.0
      %v3751 = vand.u32 %v216, 4294901760
      %v3752 = vsub.f32 %v216, %v3751
      %3753 = vmatpush1.xpose.msra.mxu0 %v3752
      %3754 = vmatprep.subr.mxu0 0.0
      %v3755 = vand.u32 %v217, 4294901760
      %v3756 = vsub.f32 %v217, %v3755
      %3757 = vmatpush1.xpose.msra.mxu0 %v3756
      %3758 = vmatprep.subr.mxu0 0.0
      %v3759 = vand.u32 %v218, 4294901760
      %v3760 = vsub.f32 %v218, %v3759
      %3761 = vmatpush1.xpose.msra.mxu0 %v3760
      %3762 = vmatprep.subr.mxu0 0.0
      %v3763 = vand.u32 %v219, 4294901760
      %v3764 = vsub.f32 %v219, %v3763
      %3765 = vmatpush1.xpose.msra.mxu0 %v3764
      %3766 = vmatprep.subr.mxu0 0.0
      %v3767 = vand.u32 %v220, 4294901760
      %v3768 = vsub.f32 %v220, %v3767
      %3769 = vmatpush1.xpose.msra.mxu0 %v3768
      %3770 = vmatprep.subr.mxu0 0.0
      %v3771 = vand.u32 %v221, 4294901760
      %v3772 = vsub.f32 %v221, %v3771
      %3773 = vmatpush1.xpose.msra.mxu0 %v3772
      %3774 = vmatprep.subr.mxu0 0.0
      %v3775 = vand.u32 %v222, 4294901760
      %v3776 = vsub.f32 %v222, %v3775
      %3777 = vmatpush1.xpose.msra.mxu0 %v3776
      %3778 = vmatprep.subr.mxu0 0.0
      %v3779 = vand.u32 %v223, 4294901760
      %v3780 = vsub.f32 %v223, %v3779
      %3781 = vmatpush1.xpose.msra.mxu0 %v3780
      %3782 = vmatprep.subr.mxu0 0.0
      %v3783 = vand.u32 %v224, 4294901760
      %v3784 = vsub.f32 %v224, %v3783
      %3785 = vmatpush1.xpose.msra.mxu0 %v3784
      %3786 = vmatprep.subr.mxu0 0.0
      %v3787 = vand.u32 %v225, 4294901760
      %v3788 = vsub.f32 %v225, %v3787
      %3789 = vmatpush1.xpose.msra.mxu0 %v3788
      %3790 = vmatprep.subr.mxu0 0.0
      %v3791 = vand.u32 %v226, 4294901760
      %v3792 = vsub.f32 %v226, %v3791
      %3793 = vmatpush1.xpose.msra.mxu0 %v3792
      %3794 = vmatprep.subr.mxu0 0.0
      %v3795 = vand.u32 %v227, 4294901760
      %v3796 = vsub.f32 %v227, %v3795
      %3797 = vmatpush1.xpose.msra.mxu0 %v3796
      %3798 = vmatprep.subr.mxu0 0.0
      %3799 = vmatpush1.xpose.msra.mxu0 0.0
      %3800 = vmatprep.subr.mxu0 0.0
      %3801 = vmatpush1.xpose.msra.mxu0 0.0
      %3802 = vmatprep.subr.mxu0 0.0
      %3803 = vmatpush1.xpose.msra.mxu0 0.0
      %3804 = vmatprep.subr.mxu0 0.0
      %3805 = vmatpush1.xpose.msra.mxu0 0.0
      %3806 = vmatprep.subr.mxu0 0.0
      %3807 = vmatpush1.xpose.msra.mxu0 0.0
      %3808 = vmatprep.subr.mxu0 0.0
      %3809 = vmatpush1.xpose.msra.mxu0 0.0
      %3810 = vmatprep.subr.mxu0 0.0
      %3811 = vmatpush1.xpose.msra.mxu0 0.0
      %3812 = vmatprep.subr.mxu0 0.0
      %3813 = vmatpush1.xpose.msra.mxu0 0.0
      %3814 = vmatprep.subr.mxu0 0.0
      %3815 = vmatpush1.xpose.msra.mxu0 0.0
      %3816 = vmatprep.subr.mxu0 0.0
      %3817 = vmatpush1.xpose.msra.mxu0 0.0
      %3818 = vmatprep.subr.mxu0 0.0
      %3819 = vmatpush1.xpose.msra.mxu0 0.0
      %3820 = vmatprep.subr.mxu0 0.0
      %3821 = vmatpush1.xpose.msra.mxu0 0.0
      %3822 = vmatprep.subr.mxu0 0.0
      %3823 = vmatpush1.xpose.msra.mxu0 0.0
      %3824 = vmatprep.subr.mxu0 0.0
      %3825 = vmatpush1.xpose.msra.mxu0 0.0
      %3826 = vmatprep.subr.mxu0 0.0
      %3827 = vmatpush1.xpose.msra.mxu0 0.0
      %3828 = vmatprep.subr.mxu0 0.0
      %3829 = vmatpush1.xpose.msra.mxu0 0.0
      %3830 = vmatprep.mubr.f32.mxu0 0.0
      %v3831 = vand.u32 %v228, 4294901760
      %v3832 = vsub.f32 %v228, %v3831
      %3833 = vmatmul.mubr.f32.gmra.mrb[0].mxu0 %v3832
      %v3834 = vpop.f32.mrb[0].mxu0
      %v3835 = vadd.f32 %v3641, %v3834
      %v3836 = vpop.f32.mrb[0].mxu0
      %3837 = vmatprep.mubr.f32.mxu0 0.0
      %v3838 = vand.u32 %v229, 4294901760
      %v3839 = vsub.f32 %v229, %v3838
      %3840 = vmatmul.mubr.f32.gmra.mrb[0].mxu0 %v3839
      %v3841 = vpop.f32.mrb[0].mxu0
      %v3842 = vadd.f32 %v3647, %v3841
      %v3843 = vpop.f32.mrb[0].mxu0
      %3844 = vmatprep.mubr.f32.mxu0 0.0
      %v3845 = vand.u32 %v230, 4294901760
      %v3846 = vsub.f32 %v230, %v3845
      %3847 = vmatmul.mubr.f32.gmra.mrb[0].mxu0 %v3846
      %v3848 = vpop.f32.mrb[0].mxu0
      %v3849 = vadd.f32 %v3653, %v3848
      %v3850 = vpop.f32.mrb[0].mxu0
      %3851 = vmatprep.mubr.f32.mxu0 0.0
      %v3852 = vand.u32 %v231, 4294901760
      %v3853 = vsub.f32 %v231, %v3852
      %3854 = vmatmul.mubr.f32.gmra.mrb[0].mxu0 %v3853
      %v3855 = vpop.f32.mrb[0].mxu0
      %v3856 = vadd.f32 %v3659, %v3855
      %v3857 = vpop.f32.mrb[0].mxu0
      %3858 = vmatprep.mubr.f32.mxu0 0.0
      %v3859 = vand.u32 %v232, 4294901760
      %v3860 = vsub.f32 %v232, %v3859
      %3861 = vmatmul.mubr.f32.gmra.mrb[0].mxu0 %v3860
      %v3862 = vpop.f32.mrb[0].mxu0
      %v3863 = vadd.f32 %v3665, %v3862
      %v3864 = vpop.f32.mrb[0].mxu0
      %3865 = vmatprep.mubr.f32.mxu0 0.0
      %v3866 = vand.u32 %v233, 4294901760
      %v3867 = vsub.f32 %v233, %v3866
      %3868 = vmatmul.mubr.f32.gmra.mrb[0].mxu0 %v3867
      %v3869 = vpop.f32.mrb[0].mxu0
      %v3870 = vadd.f32 %v3671, %v3869
      %v3871 = vpop.f32.mrb[0].mxu0
      %3872 = vmatprep.mubr.f32.mxu0 0.0
      %v3873 = vand.u32 %v234, 4294901760
      %v3874 = vsub.f32 %v234, %v3873
      %3875 = vmatmul.mubr.f32.gmra.mrb[0].mxu0 %v3874
      %v3876 = vpop.f32.mrb[0].mxu0
      %v3877 = vadd.f32 %v3677, %v3876
      %v3878 = vpop.f32.mrb[0].mxu0
      %3879 = vmatprep.mubr.f32.mxu0 0.0
      %v3880 = vand.u32 %v235, 4294901760
      %v3881 = vsub.f32 %v235, %v3880
      %3882 = vmatmul.mubr.f32.gmra.mrb[0].mxu0 %v3881
      %v3883 = vpop.f32.mrb[0].mxu0
      %v3884 = vadd.f32 %v3683, %v3883
      %v3885 = vpop.f32.mrb[0].mxu0
      %3886 = vmatprep.mubr.f32.mxu0 0.0
      %v3887 = vand.u32 %v236, 4294901760
      %v3888 = vsub.f32 %v236, %v3887
      %3889 = vmatmul.mubr.f32.gmra.mrb[0].mxu0 %v3888
      %v3890 = vpop.f32.mrb[0].mxu0
      %v3891 = vadd.f32 %v3689, %v3890
      %v3892 = vpop.f32.mrb[0].mxu0
      %3893 = vmatprep.mubr.f32.mxu0 0.0
      %v3894 = vand.u32 %v237, 4294901760
      %v3895 = vsub.f32 %v237, %v3894
      %3896 = vmatmul.mubr.f32.gmra.mrb[0].mxu0 %v3895
      %v3897 = vpop.f32.mrb[0].mxu0
      %v3898 = vadd.f32 %v3695, %v3897
      %v3899 = vpop.f32.mrb[0].mxu0
      %3900 = vmatprep.mubr.f32.mxu0 0.0
      %v3901 = vand.u32 %v238, 4294901760
      %v3902 = vsub.f32 %v238, %v3901
      %3903 = vmatmul.mubr.f32.gmra.mrb[0].mxu0 %v3902
      %v3904 = vpop.f32.mrb[0].mxu0
      %v3905 = vadd.f32 %v3701, %v3904
      %v3906 = vpop.f32.mrb[0].mxu0
      %3907 = vmatprep.mubr.f32.mxu0 0.0
      %v3908 = vand.u32 %v239, 4294901760
      %v3909 = vsub.f32 %v239, %v3908
      %3910 = vmatmul.mubr.f32.gmra.mrb[0].mxu0 %v3909
      %v3911 = vpop.f32.mrb[0].mxu0
      %v3912 = vadd.f32 %v3707, %v3911
      %v3913 = vpop.f32.mrb[0].mxu0
      %3914 = vmatprep.mubr.f32.mxu0 0.0
      %v3915 = vand.u32 %v240, 4294901760
      %v3916 = vsub.f32 %v240, %v3915
      %3917 = vmatmul.mubr.f32.gmra.mrb[0].mxu0 %v3916
      %v3918 = vpop.f32.mrb[0].mxu0
      %v3919 = vadd.f32 %v3713, %v3918
      %v3920 = vpop.f32.mrb[0].mxu0
      %3921 = vmatprep.mubr.f32.mxu0 0.0
      %v3922 = vand.u32 %v241, 4294901760
      %v3923 = vsub.f32 %v241, %v3922
      %3924 = vmatmul.mubr.f32.gmra.mrb[0].mxu0 %v3923
      %v3925 = vpop.f32.mrb[0].mxu0
      %v3926 = vadd.f32 %v3719, %v3925
      %v3927 = vpop.f32.mrb[0].mxu0
      %3928 = vmatprep.mubr.f32.mxu0 0.0
      %v3929 = vand.u32 %v242, 4294901760
      %v3930 = vsub.f32 %v242, %v3929
      %3931 = vmatmul.mubr.f32.gmra.mrb[0].mxu0 %v3930
      %v3932 = vpop.f32.mrb[0].mxu0
      %v3933 = vadd.f32 %v3725, %v3932
      %v3934 = vpop.f32.mrb[0].mxu0
      %3935 = vmatprep.mubr.f32.mxu0 0.0
      %v3936 = vand.u32 %v243, 4294901760
      %v3937 = vsub.f32 %v243, %v3936
      %3938 = vmatmul.mubr.f32.gmra.mrb[0].mxu0 %v3937
      %v3939 = vpop.f32.mrb[0].mxu0
      %v3940 = vadd.f32 %v3731, %v3939
      %v3941 = vpop.f32.mrb[0].mxu0
      %3942 = vdwg.mxu0
      %3943 = vmatprep.subr.mxu0 0.0
      %v3944 = vand.u32 %v212, 4294901760
      %3945 = vmatpush1.xpose.msra.mxu0 %v3944
      %3946 = vmatprep.subr.mxu0 0.0
      %v3947 = vand.u32 %v213, 4294901760
      %3948 = vmatpush1.xpose.msra.mxu0 %v3947
      %3949 = vmatprep.subr.mxu0 0.0
      %v3950 = vand.u32 %v214, 4294901760
      %3951 = vmatpush1.xpose.msra.mxu0 %v3950
      %3952 = vmatprep.subr.mxu0 0.0
      %v3953 = vand.u32 %v215, 4294901760
      %3954 = vmatpush1.xpose.msra.mxu0 %v3953
      %3955 = vmatprep.subr.mxu0 0.0
      %v3956 = vand.u32 %v216, 4294901760
      %3957 = vmatpush1.xpose.msra.mxu0 %v3956
      %3958 = vmatprep.subr.mxu0 0.0
      %v3959 = vand.u32 %v217, 4294901760
      %3960 = vmatpush1.xpose.msra.mxu0 %v3959
      %3961 = vmatprep.subr.mxu0 0.0
      %v3962 = vand.u32 %v218, 4294901760
      %3963 = vmatpush1.xpose.msra.mxu0 %v3962
      %3964 = vmatprep.subr.mxu0 0.0
      %v3965 = vand.u32 %v219, 4294901760
      %3966 = vmatpush1.xpose.msra.mxu0 %v3965
      %3967 = vmatprep.subr.mxu0 0.0
      %v3968 = vand.u32 %v220, 4294901760
      %3969 = vmatpush1.xpose.msra.mxu0 %v3968
      %3970 = vmatprep.subr.mxu0 0.0
      %v3971 = vand.u32 %v221, 4294901760
      %3972 = vmatpush1.xpose.msra.mxu0 %v3971
      %3973 = vmatprep.subr.mxu0 0.0
      %v3974 = vand.u32 %v222, 4294901760
      %3975 = vmatpush1.xpose.msra.mxu0 %v3974
      %3976 = vmatprep.subr.mxu0 0.0
      %v3977 = vand.u32 %v223, 4294901760
      %3978 = vmatpush1.xpose.msra.mxu0 %v3977
      %3979 = vmatprep.subr.mxu0 0.0
      %v3980 = vand.u32 %v224, 4294901760
      %3981 = vmatpush1.xpose.msra.mxu0 %v3980
      %3982 = vmatprep.subr.mxu0 0.0
      %v3983 = vand.u32 %v225, 4294901760
      %3984 = vmatpush1.xpose.msra.mxu0 %v3983
      %3985 = vmatprep.subr.mxu0 0.0
      %v3986 = vand.u32 %v226, 4294901760
      %3987 = vmatpush1.xpose.msra.mxu0 %v3986
      %3988 = vmatprep.subr.mxu0 0.0
      %v3989 = vand.u32 %v227, 4294901760
      %3990 = vmatpush1.xpose.msra.mxu0 %v3989
      %3991 = vmatprep.subr.mxu0 0.0
      %3992 = vmatpush1.xpose.msra.mxu0 0.0
      %3993 = vmatprep.subr.mxu0 0.0
      %3994 = vmatpush1.xpose.msra.mxu0 0.0
      %3995 = vmatprep.subr.mxu0 0.0
      %3996 = vmatpush1.xpose.msra.mxu0 0.0
      %3997 = vmatprep.subr.mxu0 0.0
      %3998 = vmatpush1.xpose.msra.mxu0 0.0
      %3999 = vmatprep.subr.mxu0 0.0
      %4000 = vmatpush1.xpose.msra.mxu0 0.0
      %4001 = vmatprep.subr.mxu0 0.0
      %4002 = vmatpush1.xpose.msra.mxu0 0.0
      %4003 = vmatprep.subr.mxu0 0.0
      %4004 = vmatpush1.xpose.msra.mxu0 0.0
      %4005 = vmatprep.subr.mxu0 0.0
      %4006 = vmatpush1.xpose.msra.mxu0 0.0
      %4007 = vmatprep.subr.mxu0 0.0
      %4008 = vmatpush1.xpose.msra.mxu0 0.0
      %4009 = vmatprep.subr.mxu0 0.0
      %4010 = vmatpush1.xpose.msra.mxu0 0.0
      %4011 = vmatprep.subr.mxu0 0.0
      %4012 = vmatpush1.xpose.msra.mxu0 0.0
      %4013 = vmatprep.subr.mxu0 0.0
      %4014 = vmatpush1.xpose.msra.mxu0 0.0
      %4015 = vmatprep.subr.mxu0 0.0
      %4016 = vmatpush1.xpose.msra.mxu0 0.0
      %4017 = vmatprep.subr.mxu0 0.0
      %4018 = vmatpush1.xpose.msra.mxu0 0.0
      %4019 = vmatprep.subr.mxu0 0.0
      %4020 = vmatpush1.xpose.msra.mxu0 0.0
      %4021 = vmatprep.subr.mxu0 0.0
      %4022 = vmatpush1.xpose.msra.mxu0 0.0
      %4023 = vmatprep.mubr.f32.mxu0 0.0
      %v4024 = vand.u32 %v228, 4294901760
      %v4025 = vsub.f32 %v228, %v4024
      %v4026 = vand.u32 %v4025, 4294901760
      %4027 = vmatmul.mubr.f32.gmra.mrb[0].mxu0 %v4026
      %v4028 = vpop.f32.mrb[0].mxu0
      %v4029 = vadd.f32 %v3835, %v4028
      %v4030 = vpop.f32.mrb[0].mxu0
      %4031 = vmatprep.mubr.f32.mxu0 0.0
      %v4032 = vand.u32 %v229, 4294901760
      %v4033 = vsub.f32 %v229, %v4032
      %v4034 = vand.u32 %v4033, 4294901760
      %4035 = vmatmul.mubr.f32.gmra.mrb[0].mxu0 %v4034
      %v4036 = vpop.f32.mrb[0].mxu0
      %v4037 = vadd.f32 %v3842, %v4036
      %v4038 = vpop.f32.mrb[0].mxu0
      %4039 = vmatprep.mubr.f32.mxu0 0.0
      %v4040 = vand.u32 %v230, 4294901760
      %v4041 = vsub.f32 %v230, %v4040
      %v4042 = vand.u32 %v4041, 4294901760
      %4043 = vmatmul.mubr.f32.gmra.mrb[0].mxu0 %v4042
      %v4044 = vpop.f32.mrb[0].mxu0
      %v4045 = vadd.f32 %v3849, %v4044
      %v4046 = vpop.f32.mrb[0].mxu0
      %4047 = vmatprep.mubr.f32.mxu0 0.0
      %v4048 = vand.u32 %v231, 4294901760
      %v4049 = vsub.f32 %v231, %v4048
      %v4050 = vand.u32 %v4049, 4294901760
      %4051 = vmatmul.mubr.f32.gmra.mrb[0].mxu0 %v4050
      %v4052 = vpop.f32.mrb[0].mxu0
      %v4053 = vadd.f32 %v3856, %v4052
      %v4054 = vpop.f32.mrb[0].mxu0
      %4055 = vmatprep.mubr.f32.mxu0 0.0
      %v4056 = vand.u32 %v232, 4294901760
      %v4057 = vsub.f32 %v232, %v4056
      %v4058 = vand.u32 %v4057, 4294901760
      %4059 = vmatmul.mubr.f32.gmra.mrb[0].mxu0 %v4058
      %v4060 = vpop.f32.mrb[0].mxu0
      %v4061 = vadd.f32 %v3863, %v4060
      %v4062 = vpop.f32.mrb[0].mxu0
      %4063 = vmatprep.mubr.f32.mxu0 0.0
      %v4064 = vand.u32 %v233, 4294901760
      %v4065 = vsub.f32 %v233, %v4064
      %v4066 = vand.u32 %v4065, 4294901760
      %4067 = vmatmul.mubr.f32.gmra.mrb[0].mxu0 %v4066
      %v4068 = vpop.f32.mrb[0].mxu0
      %v4069 = vadd.f32 %v3870, %v4068
      %v4070 = vpop.f32.mrb[0].mxu0
      %4071 = vmatprep.mubr.f32.mxu0 0.0
      %v4072 = vand.u32 %v234, 4294901760
      %v4073 = vsub.f32 %v234, %v4072
      %v4074 = vand.u32 %v4073, 4294901760
      %4075 = vmatmul.mubr.f32.gmra.mrb[0].mxu0 %v4074
      %v4076 = vpop.f32.mrb[0].mxu0
      %v4077 = vadd.f32 %v3877, %v4076
      %v4078 = vpop.f32.mrb[0].mxu0
      %4079 = vmatprep.mubr.f32.mxu0 0.0
      %v4080 = vand.u32 %v235, 4294901760
      %v4081 = vsub.f32 %v235, %v4080
      %v4082 = vand.u32 %v4081, 4294901760
      %4083 = vmatmul.mubr.f32.gmra.mrb[0].mxu0 %v4082
      %v4084 = vpop.f32.mrb[0].mxu0
      %v4085 = vadd.f32 %v3884, %v4084
      %v4086 = vpop.f32.mrb[0].mxu0
      %4087 = vmatprep.mubr.f32.mxu0 0.0
      %v4088 = vand.u32 %v236, 4294901760
      %v4089 = vsub.f32 %v236, %v4088
      %v4090 = vand.u32 %v4089, 4294901760
      %4091 = vmatmul.mubr.f32.gmra.mrb[0].mxu0 %v4090
      %v4092 = vpop.f32.mrb[0].mxu0
      %v4093 = vadd.f32 %v3891, %v4092
      %v4094 = vpop.f32.mrb[0].mxu0
      %4095 = vmatprep.mubr.f32.mxu0 0.0
      %v4096 = vand.u32 %v237, 4294901760
      %v4097 = vsub.f32 %v237, %v4096
      %v4098 = vand.u32 %v4097, 4294901760
      %4099 = vmatmul.mubr.f32.gmra.mrb[0].mxu0 %v4098
      %v4100 = vpop.f32.mrb[0].mxu0
      %v4101 = vadd.f32 %v3898, %v4100
      %v4102 = vpop.f32.mrb[0].mxu0
      %4103 = vmatprep.mubr.f32.mxu0 0.0
      %v4104 = vand.u32 %v238, 4294901760
      %v4105 = vsub.f32 %v238, %v4104
      %v4106 = vand.u32 %v4105, 4294901760
      %4107 = vmatmul.mubr.f32.gmra.mrb[0].mxu0 %v4106
      %v4108 = vpop.f32.mrb[0].mxu0
      %v4109 = vadd.f32 %v3905, %v4108
      %v4110 = vpop.f32.mrb[0].mxu0
      %4111 = vmatprep.mubr.f32.mxu0 0.0
      %v4112 = vand.u32 %v239, 4294901760
      %v4113 = vsub.f32 %v239, %v4112
      %v4114 = vand.u32 %v4113, 4294901760
      %4115 = vmatmul.mubr.f32.gmra.mrb[0].mxu0 %v4114
      %v4116 = vpop.f32.mrb[0].mxu0
      %v4117 = vadd.f32 %v3912, %v4116
      %v4118 = vpop.f32.mrb[0].mxu0
      %4119 = vmatprep.mubr.f32.mxu0 0.0
      %v4120 = vand.u32 %v240, 4294901760
      %v4121 = vsub.f32 %v240, %v4120
      %v4122 = vand.u32 %v4121, 4294901760
      %4123 = vmatmul.mubr.f32.gmra.mrb[0].mxu0 %v4122
      %v4124 = vpop.f32.mrb[0].mxu0
      %v4125 = vadd.f32 %v3919, %v4124
      %v4126 = vpop.f32.mrb[0].mxu0
      %4127 = vmatprep.mubr.f32.mxu0 0.0
      %v4128 = vand.u32 %v241, 4294901760
      %v4129 = vsub.f32 %v241, %v4128
      %v4130 = vand.u32 %v4129, 4294901760
      %4131 = vmatmul.mubr.f32.gmra.mrb[0].mxu0 %v4130
      %v4132 = vpop.f32.mrb[0].mxu0
      %v4133 = vadd.f32 %v3926, %v4132
      %v4134 = vpop.f32.mrb[0].mxu0
      %4135 = vmatprep.mubr.f32.mxu0 0.0
      %v4136 = vand.u32 %v242, 4294901760
      %v4137 = vsub.f32 %v242, %v4136
      %v4138 = vand.u32 %v4137, 4294901760
      %4139 = vmatmul.mubr.f32.gmra.mrb[0].mxu0 %v4138
      %v4140 = vpop.f32.mrb[0].mxu0
      %v4141 = vadd.f32 %v3933, %v4140
      %v4142 = vpop.f32.mrb[0].mxu0
      %4143 = vmatprep.mubr.f32.mxu0 0.0
      %v4144 = vand.u32 %v243, 4294901760
      %v4145 = vsub.f32 %v243, %v4144
      %v4146 = vand.u32 %v4145, 4294901760
      %4147 = vmatmul.mubr.f32.gmra.mrb[0].mxu0 %v4146
      %v4148 = vpop.f32.mrb[0].mxu0
      %v4149 = vadd.f32 %v3940, %v4148
      %v4150 = vpop.f32.mrb[0].mxu0
      %4151 = vdwg.mxu0
      %4152 = vmatprep.subr.mxu0 0.0
      %v4153 = vand.u32 %v212, 4294901760
      %v4154 = vsub.f32 %v212, %v4153
      %v4155 = vand.u32 %v4154, 4294901760
      %4156 = vmatpush1.xpose.msra.mxu0 %v4155
      %4157 = vmatprep.subr.mxu0 0.0
      %v4158 = vand.u32 %v213, 4294901760
      %v4159 = vsub.f32 %v213, %v4158
      %v4160 = vand.u32 %v4159, 4294901760
      %4161 = vmatpush1.xpose.msra.mxu0 %v4160
      %4162 = vmatprep.subr.mxu0 0.0
      %v4163 = vand.u32 %v214, 4294901760
      %v4164 = vsub.f32 %v214, %v4163
      %v4165 = vand.u32 %v4164, 4294901760
      %4166 = vmatpush1.xpose.msra.mxu0 %v4165
      %4167 = vmatprep.subr.mxu0 0.0
      %v4168 = vand.u32 %v215, 4294901760
      %v4169 = vsub.f32 %v215, %v4168
      %v4170 = vand.u32 %v4169, 4294901760
      %4171 = vmatpush1.xpose.msra.mxu0 %v4170
      %4172 = vmatprep.subr.mxu0 0.0
      %v4173 = vand.u32 %v216, 4294901760
      %v4174 = vsub.f32 %v216, %v4173
      %v4175 = vand.u32 %v4174, 4294901760
      %4176 = vmatpush1.xpose.msra.mxu0 %v4175
      %4177 = vmatprep.subr.mxu0 0.0
      %v4178 = vand.u32 %v217, 4294901760
      %v4179 = vsub.f32 %v217, %v4178
      %v4180 = vand.u32 %v4179, 4294901760
      %4181 = vmatpush1.xpose.msra.mxu0 %v4180
      %4182 = vmatprep.subr.mxu0 0.0
      %v4183 = vand.u32 %v218, 4294901760
      %v4184 = vsub.f32 %v218, %v4183
      %v4185 = vand.u32 %v4184, 4294901760
      %4186 = vmatpush1.xpose.msra.mxu0 %v4185
      %4187 = vmatprep.subr.mxu0 0.0
      %v4188 = vand.u32 %v219, 4294901760
      %v4189 = vsub.f32 %v219, %v4188
      %v4190 = vand.u32 %v4189, 4294901760
      %4191 = vmatpush1.xpose.msra.mxu0 %v4190
      %4192 = vmatprep.subr.mxu0 0.0
      %v4193 = vand.u32 %v220, 4294901760
      %v4194 = vsub.f32 %v220, %v4193
      %v4195 = vand.u32 %v4194, 4294901760
      %4196 = vmatpush1.xpose.msra.mxu0 %v4195
      %4197 = vmatprep.subr.mxu0 0.0
      %v4198 = vand.u32 %v221, 4294901760
      %v4199 = vsub.f32 %v221, %v4198
      %v4200 = vand.u32 %v4199, 4294901760
      %4201 = vmatpush1.xpose.msra.mxu0 %v4200
      %4202 = vmatprep.subr.mxu0 0.0
      %v4203 = vand.u32 %v222, 4294901760
      %v4204 = vsub.f32 %v222, %v4203
      %v4205 = vand.u32 %v4204, 4294901760
      %4206 = vmatpush1.xpose.msra.mxu0 %v4205
      %4207 = vmatprep.subr.mxu0 0.0
      %v4208 = vand.u32 %v223, 4294901760
      %v4209 = vsub.f32 %v223, %v4208
      %v4210 = vand.u32 %v4209, 4294901760
      %4211 = vmatpush1.xpose.msra.mxu0 %v4210
      %4212 = vmatprep.subr.mxu0 0.0
      %v4213 = vand.u32 %v224, 4294901760
      %v4214 = vsub.f32 %v224, %v4213
      %v4215 = vand.u32 %v4214, 4294901760
      %4216 = vmatpush1.xpose.msra.mxu0 %v4215
      %4217 = vmatprep.subr.mxu0 0.0
      %v4218 = vand.u32 %v225, 4294901760
      %v4219 = vsub.f32 %v225, %v4218
      %v4220 = vand.u32 %v4219, 4294901760
      %4221 = vmatpush1.xpose.msra.mxu0 %v4220
      %4222 = vmatprep.subr.mxu0 0.0
      %v4223 = vand.u32 %v226, 4294901760
      %v4224 = vsub.f32 %v226, %v4223
      %v4225 = vand.u32 %v4224, 4294901760
      %4226 = vmatpush1.xpose.msra.mxu0 %v4225
      %4227 = vmatprep.subr.mxu0 0.0
      %v4228 = vand.u32 %v227, 4294901760
      %v4229 = vsub.f32 %v227, %v4228
      %v4230 = vand.u32 %v4229, 4294901760
      %4231 = vmatpush1.xpose.msra.mxu0 %v4230
      %4232 = vmatprep.subr.mxu0 0.0
      %4233 = vmatpush1.xpose.msra.mxu0 0.0
      %4234 = vmatprep.subr.mxu0 0.0
      %4235 = vmatpush1.xpose.msra.mxu0 0.0
      %4236 = vmatprep.subr.mxu0 0.0
      %4237 = vmatpush1.xpose.msra.mxu0 0.0
      %4238 = vmatprep.subr.mxu0 0.0
      %4239 = vmatpush1.xpose.msra.mxu0 0.0
      %4240 = vmatprep.subr.mxu0 0.0
      %4241 = vmatpush1.xpose.msra.mxu0 0.0
      %4242 = vmatprep.subr.mxu0 0.0
      %4243 = vmatpush1.xpose.msra.mxu0 0.0
      %4244 = vmatprep.subr.mxu0 0.0
      %4245 = vmatpush1.xpose.msra.mxu0 0.0
      %4246 = vmatprep.subr.mxu0 0.0
      %4247 = vmatpush1.xpose.msra.mxu0 0.0
      %4248 = vmatprep.subr.mxu0 0.0
      %4249 = vmatpush1.xpose.msra.mxu0 0.0
      %4250 = vmatprep.subr.mxu0 0.0
      %4251 = vmatpush1.xpose.msra.mxu0 0.0
      %4252 = vmatprep.subr.mxu0 0.0
      %4253 = vmatpush1.xpose.msra.mxu0 0.0
      %4254 = vmatprep.subr.mxu0 0.0
      %4255 = vmatpush1.xpose.msra.mxu0 0.0
      %4256 = vmatprep.subr.mxu0 0.0
      %4257 = vmatpush1.xpose.msra.mxu0 0.0
      %4258 = vmatprep.subr.mxu0 0.0
      %4259 = vmatpush1.xpose.msra.mxu0 0.0
      %4260 = vmatprep.subr.mxu0 0.0
      %4261 = vmatpush1.xpose.msra.mxu0 0.0
      %4262 = vmatprep.subr.mxu0 0.0
      %4263 = vmatpush1.xpose.msra.mxu0 0.0
      %4264 = vmatprep.mubr.f32.mxu0 0.0
      %v4265 = vand.u32 %v228, 4294901760
      %4266 = vmatmul.mubr.f32.gmra.mrb[0].mxu0 %v4265
      %v4267 = vpop.f32.mrb[0].mxu0
      %v4268 = vadd.f32 %v4029, %v4267
      %v4269 = vpop.f32.mrb[0].mxu0
      %4270 = vmatprep.mubr.f32.mxu0 0.0
      %v4271 = vand.u32 %v229, 4294901760
      %4272 = vmatmul.mubr.f32.gmra.mrb[0].mxu0 %v4271
      %v4273 = vpop.f32.mrb[0].mxu0
      %v4274 = vadd.f32 %v4037, %v4273
      %v4275 = vpop.f32.mrb[0].mxu0
      %4276 = vmatprep.mubr.f32.mxu0 0.0
      %v4277 = vand.u32 %v230, 4294901760
      %4278 = vmatmul.mubr.f32.gmra.mrb[0].mxu0 %v4277
      %v4279 = vpop.f32.mrb[0].mxu0
      %v4280 = vadd.f32 %v4045, %v4279
      %v4281 = vpop.f32.mrb[0].mxu0
      %4282 = vmatprep.mubr.f32.mxu0 0.0
      %v4283 = vand.u32 %v231, 4294901760
      %4284 = vmatmul.mubr.f32.gmra.mrb[0].mxu0 %v4283
      %v4285 = vpop.f32.mrb[0].mxu0
      %v4286 = vadd.f32 %v4053, %v4285
      %v4287 = vpop.f32.mrb[0].mxu0
      %4288 = vmatprep.mubr.f32.mxu0 0.0
      %v4289 = vand.u32 %v232, 4294901760
      %4290 = vmatmul.mubr.f32.gmra.mrb[0].mxu0 %v4289
      %v4291 = vpop.f32.mrb[0].mxu0
      %v4292 = vadd.f32 %v4061, %v4291
      %v4293 = vpop.f32.mrb[0].mxu0
      %4294 = vmatprep.mubr.f32.mxu0 0.0
      %v4295 = vand.u32 %v233, 4294901760
      %4296 = vmatmul.mubr.f32.gmra.mrb[0].mxu0 %v4295
      %v4297 = vpop.f32.mrb[0].mxu0
      %v4298 = vadd.f32 %v4069, %v4297
      %v4299 = vpop.f32.mrb[0].mxu0
      %4300 = vmatprep.mubr.f32.mxu0 0.0
      %v4301 = vand.u32 %v234, 4294901760
      %4302 = vmatmul.mubr.f32.gmra.mrb[0].mxu0 %v4301
      %v4303 = vpop.f32.mrb[0].mxu0
      %v4304 = vadd.f32 %v4077, %v4303
      %v4305 = vpop.f32.mrb[0].mxu0
      %4306 = vmatprep.mubr.f32.mxu0 0.0
      %v4307 = vand.u32 %v235, 4294901760
      %4308 = vmatmul.mubr.f32.gmra.mrb[0].mxu0 %v4307
      %v4309 = vpop.f32.mrb[0].mxu0
      %v4310 = vadd.f32 %v4085, %v4309
      %v4311 = vpop.f32.mrb[0].mxu0
      %4312 = vmatprep.mubr.f32.mxu0 0.0
      %v4313 = vand.u32 %v236, 4294901760
      %4314 = vmatmul.mubr.f32.gmra.mrb[0].mxu0 %v4313
      %v4315 = vpop.f32.mrb[0].mxu0
      %v4316 = vadd.f32 %v4093, %v4315
      %v4317 = vpop.f32.mrb[0].mxu0
      %4318 = vmatprep.mubr.f32.mxu0 0.0
      %v4319 = vand.u32 %v237, 4294901760
      %4320 = vmatmul.mubr.f32.gmra.mrb[0].mxu0 %v4319
      %v4321 = vpop.f32.mrb[0].mxu0
      %v4322 = vadd.f32 %v4101, %v4321
      %v4323 = vpop.f32.mrb[0].mxu0
      %4324 = vmatprep.mubr.f32.mxu0 0.0
      %v4325 = vand.u32 %v238, 4294901760
      %4326 = vmatmul.mubr.f32.gmra.mrb[0].mxu0 %v4325
      %v4327 = vpop.f32.mrb[0].mxu0
      %v4328 = vadd.f32 %v4109, %v4327
      %v4329 = vpop.f32.mrb[0].mxu0
      %4330 = vmatprep.mubr.f32.mxu0 0.0
      %v4331 = vand.u32 %v239, 4294901760
      %4332 = vmatmul.mubr.f32.gmra.mrb[0].mxu0 %v4331
      %v4333 = vpop.f32.mrb[0].mxu0
      %v4334 = vadd.f32 %v4117, %v4333
      %v4335 = vpop.f32.mrb[0].mxu0
      %4336 = vmatprep.mubr.f32.mxu0 0.0
      %v4337 = vand.u32 %v240, 4294901760
      %4338 = vmatmul.mubr.f32.gmra.mrb[0].mxu0 %v4337
      %v4339 = vpop.f32.mrb[0].mxu0
      %v4340 = vadd.f32 %v4125, %v4339
      %v4341 = vpop.f32.mrb[0].mxu0
      %4342 = vmatprep.mubr.f32.mxu0 0.0
      %v4343 = vand.u32 %v241, 4294901760
      %4344 = vmatmul.mubr.f32.gmra.mrb[0].mxu0 %v4343
      %v4345 = vpop.f32.mrb[0].mxu0
      %v4346 = vadd.f32 %v4133, %v4345
      %v4347 = vpop.f32.mrb[0].mxu0
      %4348 = vmatprep.mubr.f32.mxu0 0.0
      %v4349 = vand.u32 %v242, 4294901760
      %4350 = vmatmul.mubr.f32.gmra.mrb[0].mxu0 %v4349
      %v4351 = vpop.f32.mrb[0].mxu0
      %v4352 = vadd.f32 %v4141, %v4351
      %v4353 = vpop.f32.mrb[0].mxu0
      %4354 = vmatprep.mubr.f32.mxu0 0.0
      %v4355 = vand.u32 %v243, 4294901760
      %4356 = vmatmul.mubr.f32.gmra.mrb[0].mxu0 %v4355
      %v4357 = vpop.f32.mrb[0].mxu0
      %v4358 = vadd.f32 %v4149, %v4357
      %v4359 = vpop.f32.mrb[0].mxu0
      %4360 = vdwg.mxu0
      %4361 = vmatprep.subr.mxu0 0.0
      %v4362 = vand.u32 %v212, 4294901760
      %4363 = vmatpush1.xpose.msra.mxu0 %v4362
      %4364 = vmatprep.subr.mxu0 0.0
      %v4365 = vand.u32 %v213, 4294901760
      %4366 = vmatpush1.xpose.msra.mxu0 %v4365
      %4367 = vmatprep.subr.mxu0 0.0
      %v4368 = vand.u32 %v214, 4294901760
      %4369 = vmatpush1.xpose.msra.mxu0 %v4368
      %4370 = vmatprep.subr.mxu0 0.0
      %v4371 = vand.u32 %v215, 4294901760
      %4372 = vmatpush1.xpose.msra.mxu0 %v4371
      %4373 = vmatprep.subr.mxu0 0.0
      %v4374 = vand.u32 %v216, 4294901760
      %4375 = vmatpush1.xpose.msra.mxu0 %v4374
      %4376 = vmatprep.subr.mxu0 0.0
      %v4377 = vand.u32 %v217, 4294901760
      %4378 = vmatpush1.xpose.msra.mxu0 %v4377
      %4379 = vmatprep.subr.mxu0 0.0
      %v4380 = vand.u32 %v218, 4294901760
      %4381 = vmatpush1.xpose.msra.mxu0 %v4380
      %4382 = vmatprep.subr.mxu0 0.0
      %v4383 = vand.u32 %v219, 4294901760
      %4384 = vmatpush1.xpose.msra.mxu0 %v4383
      %4385 = vmatprep.subr.mxu0 0.0
      %v4386 = vand.u32 %v220, 4294901760
      %4387 = vmatpush1.xpose.msra.mxu0 %v4386
      %4388 = vmatprep.subr.mxu0 0.0
      %v4389 = vand.u32 %v221, 4294901760
      %4390 = vmatpush1.xpose.msra.mxu0 %v4389
      %4391 = vmatprep.subr.mxu0 0.0
      %v4392 = vand.u32 %v222, 4294901760
      %4393 = vmatpush1.xpose.msra.mxu0 %v4392
      %4394 = vmatprep.subr.mxu0 0.0
      %v4395 = vand.u32 %v223, 4294901760
      %4396 = vmatpush1.xpose.msra.mxu0 %v4395
      %4397 = vmatprep.subr.mxu0 0.0
      %v4398 = vand.u32 %v224, 4294901760
      %4399 = vmatpush1.xpose.msra.mxu0 %v4398
      %4400 = vmatprep.subr.mxu0 0.0
      %v4401 = vand.u32 %v225, 4294901760
      %4402 = vmatpush1.xpose.msra.mxu0 %v4401
      %4403 = vmatprep.subr.mxu0 0.0
      %v4404 = vand.u32 %v226, 4294901760
      %4405 = vmatpush1.xpose.msra.mxu0 %v4404
      %4406 = vmatprep.subr.mxu0 0.0
      %v4407 = vand.u32 %v227, 4294901760
      %4408 = vmatpush1.xpose.msra.mxu0 %v4407
      %4409 = vmatprep.subr.mxu0 0.0
      %4410 = vmatpush1.xpose.msra.mxu0 0.0
      %4411 = vmatprep.subr.mxu0 0.0
      %4412 = vmatpush1.xpose.msra.mxu0 0.0
      %4413 = vmatprep.subr.mxu0 0.0
      %4414 = vmatpush1.xpose.msra.mxu0 0.0
      %4415 = vmatprep.subr.mxu0 0.0
      %4416 = vmatpush1.xpose.msra.mxu0 0.0
      %4417 = vmatprep.subr.mxu0 0.0
      %4418 = vmatpush1.xpose.msra.mxu0 0.0
      %4419 = vmatprep.subr.mxu0 0.0
      %4420 = vmatpush1.xpose.msra.mxu0 0.0
      %4421 = vmatprep.subr.mxu0 0.0
      %4422 = vmatpush1.xpose.msra.mxu0 0.0
      %4423 = vmatprep.subr.mxu0 0.0
      %4424 = vmatpush1.xpose.msra.mxu0 0.0
      %4425 = vmatprep.subr.mxu0 0.0
      %4426 = vmatpush1.xpose.msra.mxu0 0.0
      %4427 = vmatprep.subr.mxu0 0.0
      %4428 = vmatpush1.xpose.msra.mxu0 0.0
      %4429 = vmatprep.subr.mxu0 0.0
      %4430 = vmatpush1.xpose.msra.mxu0 0.0
      %4431 = vmatprep.subr.mxu0 0.0
      %4432 = vmatpush1.xpose.msra.mxu0 0.0
      %4433 = vmatprep.subr.mxu0 0.0
      %4434 = vmatpush1.xpose.msra.mxu0 0.0
      %4435 = vmatprep.subr.mxu0 0.0
      %4436 = vmatpush1.xpose.msra.mxu0 0.0
      %4437 = vmatprep.subr.mxu0 0.0
      %4438 = vmatpush1.xpose.msra.mxu0 0.0
      %4439 = vmatprep.subr.mxu0 0.0
      %4440 = vmatpush1.xpose.msra.mxu0 0.0
      %4441 = vmatprep.mubr.f32.mxu0 0.0
      %v4442 = vand.u32 %v228, 4294901760
      %4443 = vmatmul.mubr.f32.gmra.mrb[0].mxu0 %v4442
      %v4444 = vpop.f32.mrb[0].mxu0
      %v4445 = vadd.f32 %v4268, %v4444
      %v4446 = vpop.f32.mrb[0].mxu0
      %4447 = vmatprep.mubr.f32.mxu0 0.0
      %v4448 = vand.u32 %v229, 4294901760
      %4449 = vmatmul.mubr.f32.gmra.mrb[0].mxu0 %v4448
      %v4450 = vpop.f32.mrb[0].mxu0
      %v4451 = vadd.f32 %v4274, %v4450
      %v4452 = vpop.f32.mrb[0].mxu0
      %4453 = vmatprep.mubr.f32.mxu0 0.0
      %v4454 = vand.u32 %v230, 4294901760
      %4455 = vmatmul.mubr.f32.gmra.mrb[0].mxu0 %v4454
      %v4456 = vpop.f32.mrb[0].mxu0
      %v4457 = vadd.f32 %v4280, %v4456
      %v4458 = vpop.f32.mrb[0].mxu0
      %4459 = vmatprep.mubr.f32.mxu0 0.0
      %v4460 = vand.u32 %v231, 4294901760
      %4461 = vmatmul.mubr.f32.gmra.mrb[0].mxu0 %v4460
      %v4462 = vpop.f32.mrb[0].mxu0
      %v4463 = vadd.f32 %v4286, %v4462
      %v4464 = vpop.f32.mrb[0].mxu0
      %4465 = vmatprep.mubr.f32.mxu0 0.0
      %v4466 = vand.u32 %v232, 4294901760
      %4467 = vmatmul.mubr.f32.gmra.mrb[0].mxu0 %v4466
      %v4468 = vpop.f32.mrb[0].mxu0
      %v4469 = vadd.f32 %v4292, %v4468
      %v4470 = vpop.f32.mrb[0].mxu0
      %4471 = vmatprep.mubr.f32.mxu0 0.0
      %v4472 = vand.u32 %v233, 4294901760
      %4473 = vmatmul.mubr.f32.gmra.mrb[0].mxu0 %v4472
      %v4474 = vpop.f32.mrb[0].mxu0
      %v4475 = vadd.f32 %v4298, %v4474
      %v4476 = vpop.f32.mrb[0].mxu0
      %4477 = vmatprep.mubr.f32.mxu0 0.0
      %v4478 = vand.u32 %v234, 4294901760
      %4479 = vmatmul.mubr.f32.gmra.mrb[0].mxu0 %v4478
      %v4480 = vpop.f32.mrb[0].mxu0
      %v4481 = vadd.f32 %v4304, %v4480
      %v4482 = vpop.f32.mrb[0].mxu0
      %4483 = vmatprep.mubr.f32.mxu0 0.0
      %v4484 = vand.u32 %v235, 4294901760
      %4485 = vmatmul.mubr.f32.gmra.mrb[0].mxu0 %v4484
      %v4486 = vpop.f32.mrb[0].mxu0
      %v4487 = vadd.f32 %v4310, %v4486
      %v4488 = vpop.f32.mrb[0].mxu0
      %4489 = vmatprep.mubr.f32.mxu0 0.0
      %v4490 = vand.u32 %v236, 4294901760
      %4491 = vmatmul.mubr.f32.gmra.mrb[0].mxu0 %v4490
      %v4492 = vpop.f32.mrb[0].mxu0
      %v4493 = vadd.f32 %v4316, %v4492
      %v4494 = vpop.f32.mrb[0].mxu0
      %4495 = vmatprep.mubr.f32.mxu0 0.0
      %v4496 = vand.u32 %v237, 4294901760
      %4497 = vmatmul.mubr.f32.gmra.mrb[0].mxu0 %v4496
      %v4498 = vpop.f32.mrb[0].mxu0
      %v4499 = vadd.f32 %v4322, %v4498
      %v4500 = vpop.f32.mrb[0].mxu0
      %4501 = vmatprep.mubr.f32.mxu0 0.0
      %v4502 = vand.u32 %v238, 4294901760
      %4503 = vmatmul.mubr.f32.gmra.mrb[0].mxu0 %v4502
      %v4504 = vpop.f32.mrb[0].mxu0
      %v4505 = vadd.f32 %v4328, %v4504
      %v4506 = vpop.f32.mrb[0].mxu0
      %4507 = vmatprep.mubr.f32.mxu0 0.0
      %v4508 = vand.u32 %v239, 4294901760
      %4509 = vmatmul.mubr.f32.gmra.mrb[0].mxu0 %v4508
      %v4510 = vpop.f32.mrb[0].mxu0
      %v4511 = vadd.f32 %v4334, %v4510
      %v4512 = vpop.f32.mrb[0].mxu0
      %4513 = vmatprep.mubr.f32.mxu0 0.0
      %v4514 = vand.u32 %v240, 4294901760
      %4515 = vmatmul.mubr.f32.gmra.mrb[0].mxu0 %v4514
      %v4516 = vpop.f32.mrb[0].mxu0
      %v4517 = vadd.f32 %v4340, %v4516
      %v4518 = vpop.f32.mrb[0].mxu0
      %4519 = vmatprep.mubr.f32.mxu0 0.0
      %v4520 = vand.u32 %v241, 4294901760
      %4521 = vmatmul.mubr.f32.gmra.mrb[0].mxu0 %v4520
      %v4522 = vpop.f32.mrb[0].mxu0
      %v4523 = vadd.f32 %v4346, %v4522
      %v4524 = vpop.f32.mrb[0].mxu0
      %4525 = vmatprep.mubr.f32.mxu0 0.0
      %v4526 = vand.u32 %v242, 4294901760
      %4527 = vmatmul.mubr.f32.gmra.mrb[0].mxu0 %v4526
      %v4528 = vpop.f32.mrb[0].mxu0
      %v4529 = vadd.f32 %v4352, %v4528
      %v4530 = vpop.f32.mrb[0].mxu0
      %4531 = vmatprep.mubr.f32.mxu0 0.0
      %v4532 = vand.u32 %v243, 4294901760
      %4533 = vmatmul.mubr.f32.gmra.mrb[0].mxu0 %v4532
      %v4534 = vpop.f32.mrb[0].mxu0
      %v4535 = vadd.f32 %v4358, %v4534
      %v4536 = vpop.f32.mrb[0].mxu0
      %4537 = vdwg.mxu0
      %v4538 = vlaneseq
      %v4539 = vshrl.u32 %v4538, 7
      %v4540 = vadd.s32 %v4539, 8
      %v4541 = vadd.s32 %v4539, 16
      %v4542 = vadd.s32 %v4539, 24
      %v4543 = vadd.s32 %v4539, 32
      %v4544 = vadd.s32 %v4539, 40
      %v4545 = vadd.s32 %v4539, 48
      %v4546 = vadd.s32 %v4539, 56
      %v4547 = vadd.s32 %v4539, 64
      %v4548 = vadd.s32 %v4539, 72
      %v4549 = vadd.s32 %v4539, 80
      %v4550 = vadd.s32 %v4539, 88
      %v4551 = vadd.s32 %v4539, 96
      %v4552 = vadd.s32 %v4539, 104
      %v4553 = vadd.s32 %v4539, 112
      %v4554 = vadd.s32 %v4539, 120
      %v4555 = vlaneseq
      %v4556 = vand.u32 %v4555, 127
      %vm4557 = vcmp.eq.s32.totalorder %v4539, %v4556
      %vm4558 = vcmp.eq.s32.totalorder %v4540, %v4556
      %vm4559 = vcmp.eq.s32.totalorder %v4541, %v4556
      %vm4560 = vcmp.eq.s32.totalorder %v4542, %v4556
      %vm4561 = vcmp.eq.s32.totalorder %v4543, %v4556
      %vm4562 = vcmp.eq.s32.totalorder %v4544, %v4556
      %vm4563 = vcmp.eq.s32.totalorder %v4545, %v4556
      %vm4564 = vcmp.eq.s32.totalorder %v4546, %v4556
      %vm4565 = vcmp.eq.s32.totalorder %v4547, %v4556
      %vm4566 = vcmp.eq.s32.totalorder %v4548, %v4556
      %vm4567 = vcmp.eq.s32.totalorder %v4549, %v4556
      %vm4568 = vcmp.eq.s32.totalorder %v4550, %v4556
      %vm4569 = vcmp.eq.s32.totalorder %v4551, %v4556
      %vm4570 = vcmp.eq.s32.totalorder %v4552, %v4556
      %vm4571 = vcmp.eq.s32.totalorder %v4553, %v4556
      %vm4572 = vcmp.eq.s32.totalorder %v4554, %v4556
      %v4573 = vsel %vm4557, 0.0, %v4445
      %v4574 = vsel %vm4558, 0.0, %v4451
      %v4575 = vsel %vm4559, 0.0, %v4457
      %v4576 = vsel %vm4560, 0.0, %v4463
      %v4577 = vsel %vm4561, 0.0, %v4469
      %v4578 = vsel %vm4562, 0.0, %v4475
      %v4579 = vsel %vm4563, 0.0, %v4481
      %v4580 = vsel %vm4564, 0.0, %v4487
      %v4581 = vsel %vm4565, 0.0, %v4493
      %v4582 = vsel %vm4566, 0.0, %v4499
      %v4583 = vsel %vm4567, 0.0, %v4505
      %v4584 = vsel %vm4568, 0.0, %v4511
      %v4585 = vsel %vm4569, 0.0, %v4517
      %v4586 = vsel %vm4570, 0.0, %v4523
      %v4587 = vsel %vm4571, 0.0, %v4529
      %v4588 = vsel %vm4572, 0.0, %v4535
      %4589 = vmax.xlane.f32.xlu0 %v4573
      %v4590 = vpop.xlane.xlu0 %4589
      %4591 = vmax.xlane.f32.xlu0 %v4574
      %v4592 = vpop.xlane.xlu0 %4591
      %4593 = vmax.xlane.f32.xlu0 %v4575
      %v4594 = vpop.xlane.xlu0 %4593
      %4595 = vmax.xlane.f32.xlu0 %v4576
      %v4596 = vpop.xlane.xlu0 %4595
      %4597 = vmax.xlane.f32.xlu0 %v4577
      %v4598 = vpop.xlane.xlu0 %4597
      %4599 = vmax.xlane.f32.xlu0 %v4578
      %v4600 = vpop.xlane.xlu0 %4599
      %4601 = vmax.xlane.f32.xlu0 %v4579
      %v4602 = vpop.xlane.xlu0 %4601
      %4603 = vmax.xlane.f32.xlu0 %v4580
      %v4604 = vpop.xlane.xlu0 %4603
      %4605 = vmax.xlane.f32.xlu0 %v4581
      %v4606 = vpop.xlane.xlu0 %4605
      %4607 = vmax.xlane.f32.xlu0 %v4582
      %v4608 = vpop.xlane.xlu0 %4607
      %4609 = vmax.xlane.f32.xlu0 %v4583
      %v4610 = vpop.xlane.xlu0 %4609
      %4611 = vmax.xlane.f32.xlu0 %v4584
      %v4612 = vpop.xlane.xlu0 %4611
      %4613 = vmax.xlane.f32.xlu0 %v4585
      %v4614 = vpop.xlane.xlu0 %4613
      %4615 = vmax.xlane.f32.xlu0 %v4586
      %v4616 = vpop.xlane.xlu0 %4615
      %4617 = vmax.xlane.f32.xlu0 %v4587
      %v4618 = vpop.xlane.xlu0 %4617
      %4619 = vmax.xlane.f32.xlu0 %v4588
      %v4620 = vpop.xlane.xlu0 %4619
      %v4621 = vld [vmem:[#allocation2] sm:$0xff]
      %v4622 = vld [vmem:[#allocation2 + $0x8] sm:$0xff]
      %v4623 = vld [vmem:[#allocation2 + $0x10] sm:$0xff]
      %v4624 = vld [vmem:[#allocation2 + $0x18] sm:$0xff]
      %v4625 = vld [vmem:[#allocation2 + $0x20] sm:$0xff]
      %v4626 = vld [vmem:[#allocation2 + $0x28] sm:$0xff]
      %v4627 = vld [vmem:[#allocation2 + $0x30] sm:$0xff]
      %v4628 = vld [vmem:[#allocation2 + $0x38] sm:$0xff]
      %v4629 = vld [vmem:[#allocation2 + $0x40] sm:$0xff]
      %v4630 = vld [vmem:[#allocation2 + $0x48] sm:$0xff]
      %v4631 = vld [vmem:[#allocation2 + $0x50] sm:$0xff]
      %v4632 = vld [vmem:[#allocation2 + $0x58] sm:$0xff]
      %v4633 = vld [vmem:[#allocation2 + $0x60] sm:$0xff]
      %v4634 = vld [vmem:[#allocation2 + $0x68] sm:$0xff]
      %v4635 = vld [vmem:[#allocation2 + $0x70] sm:$0xff]
      %v4636 = vld [vmem:[#allocation2 + $0x78] sm:$0xff]
      %v4637 = vmax.f32 %v4621, %v4590
      %v4638 = vmax.f32 %v4622, %v4592
      %v4639 = vmax.f32 %v4623, %v4594
      %v4640 = vmax.f32 %v4624, %v4596
      %v4641 = vmax.f32 %v4625, %v4598
      %v4642 = vmax.f32 %v4626, %v4600
      %v4643 = vmax.f32 %v4627, %v4602
      %v4644 = vmax.f32 %v4628, %v4604
      %v4645 = vmax.f32 %v4629, %v4606
      %v4646 = vmax.f32 %v4630, %v4608
      %v4647 = vmax.f32 %v4631, %v4610
      %v4648 = vmax.f32 %v4632, %v4612
      %v4649 = vmax.f32 %v4633, %v4614
      %v4650 = vmax.f32 %v4634, %v4616
      %v4651 = vmax.f32 %v4635, %v4618
      %v4652 = vmax.f32 %v4636, %v4620
      %v4653 = vld [vmem:[#allocation3] sm:$0xff]
      %v4654 = vld [vmem:[#allocation3 + $0x8] sm:$0xff]
      %v4655 = vld [vmem:[#allocation3 + $0x10] sm:$0xff]
      %v4656 = vld [vmem:[#allocation3 + $0x18] sm:$0xff]
      %v4657 = vld [vmem:[#allocation3 + $0x20] sm:$0xff]
      %v4658 = vld [vmem:[#allocation3 + $0x28] sm:$0xff]
      %v4659 = vld [vmem:[#allocation3 + $0x30] sm:$0xff]
      %v4660 = vld [vmem:[#allocation3 + $0x38] sm:$0xff]
      %v4661 = vld [vmem:[#allocation3 + $0x40] sm:$0xff]
      %v4662 = vld [vmem:[#allocation3 + $0x48] sm:$0xff]
      %v4663 = vld [vmem:[#allocation3 + $0x50] sm:$0xff]
      %v4664 = vld [vmem:[#allocation3 + $0x58] sm:$0xff]
      %v4665 = vld [vmem:[#allocation3 + $0x60] sm:$0xff]
      %v4666 = vld [vmem:[#allocation3 + $0x68] sm:$0xff]
      %v4667 = vld [vmem:[#allocation3 + $0x70] sm:$0xff]
      %v4668 = vld [vmem:[#allocation3 + $0x78] sm:$0xff]
      %v4669 = vsub.f32 %v4621, %v4637
      %v4670 = vsub.f32 %v4622, %v4638
      %v4671 = vsub.f32 %v4623, %v4639
      %v4672 = vsub.f32 %v4624, %v4640
      %v4673 = vsub.f32 %v4625, %v4641
      %v4674 = vsub.f32 %v4626, %v4642
      %v4675 = vsub.f32 %v4627, %v4643
      %v4676 = vsub.f32 %v4628, %v4644
      %v4677 = vsub.f32 %v4629, %v4645
      %v4678 = vsub.f32 %v4630, %v4646
      %v4679 = vsub.f32 %v4631, %v4647
      %v4680 = vsub.f32 %v4632, %v4648
      %v4681 = vsub.f32 %v4633, %v4649
      %v4682 = vsub.f32 %v4634, %v4650
      %v4683 = vsub.f32 %v4635, %v4651
      %v4684 = vsub.f32 %v4636, %v4652
      %v4685 = vmul.f32 %v4669, 1.442695
      %v4686 = vpow.pop %v4685
      %v4687 = vmul.f32 %v4670, 1.442695
      %v4688 = vpow.pop %v4687
      %v4689 = vmul.f32 %v4671, 1.442695
      %v4690 = vpow.pop %v4689
      %v4691 = vmul.f32 %v4672, 1.442695
      %v4692 = vpow.pop %v4691
      %v4693 = vmul.f32 %v4673, 1.442695
      %v4694 = vpow.pop %v4693
      %v4695 = vmul.f32 %v4674, 1.442695
      %v4696 = vpow.pop %v4695
      %v4697 = vmul.f32 %v4675, 1.442695
      %v4698 = vpow.pop %v4697
      %v4699 = vmul.f32 %v4676, 1.442695
      %v4700 = vpow.pop %v4699
      %v4701 = vmul.f32 %v4677, 1.442695
      %v4702 = vpow.pop %v4701
      %v4703 = vmul.f32 %v4678, 1.442695
      %v4704 = vpow.pop %v4703
      %v4705 = vmul.f32 %v4679, 1.442695
      %v4706 = vpow.pop %v4705
      %v4707 = vmul.f32 %v4680, 1.442695
      %v4708 = vpow.pop %v4707
      %v4709 = vmul.f32 %v4681, 1.442695
      %v4710 = vpow.pop %v4709
      %v4711 = vmul.f32 %v4682, 1.442695
      %v4712 = vpow.pop %v4711
      %v4713 = vmul.f32 %v4683, 1.442695
      %v4714 = vpow.pop %v4713
      %v4715 = vmul.f32 %v4684, 1.442695
      %v4716 = vpow.pop %v4715
      %4718 = vset.pattern.permute.xlu0 0
      %4719 = vperm.xlu0 %4718, %v4686
      %v4720 = vpop.permute.xlu0 %4719
      %4723 = vset.pattern.permute.xlu0 0
      %4724 = vperm.xlu0 %4723, %v4688
      %v4725 = vpop.permute.xlu0 %4724
      %4728 = vset.pattern.permute.xlu0 0
      %4729 = vperm.xlu0 %4728, %v4690
      %v4730 = vpop.permute.xlu0 %4729
      %4733 = vset.pattern.permute.xlu0 0
      %4734 = vperm.xlu0 %4733, %v4692
      %v4735 = vpop.permute.xlu0 %4734
      %4738 = vset.pattern.permute.xlu0 0
      %4739 = vperm.xlu0 %4738, %v4694
      %v4740 = vpop.permute.xlu0 %4739
      %4743 = vset.pattern.permute.xlu0 0
      %4744 = vperm.xlu0 %4743, %v4696
      %v4745 = vpop.permute.xlu0 %4744
      %4748 = vset.pattern.permute.xlu0 0
      %4749 = vperm.xlu0 %4748, %v4698
      %v4750 = vpop.permute.xlu0 %4749
      %4753 = vset.pattern.permute.xlu0 0
      %4754 = vperm.xlu0 %4753, %v4700
      %v4755 = vpop.permute.xlu0 %4754
      %4758 = vset.pattern.permute.xlu0 0
      %4759 = vperm.xlu0 %4758, %v4702
      %v4760 = vpop.permute.xlu0 %4759
      %4763 = vset.pattern.permute.xlu0 0
      %4764 = vperm.xlu0 %4763, %v4704
      %v4765 = vpop.permute.xlu0 %4764
      %4768 = vset.pattern.permute.xlu0 0
      %4769 = vperm.xlu0 %4768, %v4706
      %v4770 = vpop.permute.xlu0 %4769
      %4773 = vset.pattern.permute.xlu0 0
      %4774 = vperm.xlu0 %4773, %v4708
      %v4775 = vpop.permute.xlu0 %4774
      %4778 = vset.pattern.permute.xlu0 0
      %4779 = vperm.xlu0 %4778, %v4710
      %v4780 = vpop.permute.xlu0 %4779
      %4783 = vset.pattern.permute.xlu0 0
      %4784 = vperm.xlu0 %4783, %v4712
      %v4785 = vpop.permute.xlu0 %4784
      %4788 = vset.pattern.permute.xlu0 0
      %4789 = vperm.xlu0 %4788, %v4714
      %v4790 = vpop.permute.xlu0 %4789
      %4793 = vset.pattern.permute.xlu0 0
      %4794 = vperm.xlu0 %4793, %v4716
      %v4795 = vpop.permute.xlu0 %4794
      %v4797 = vmul.f32 %v4653, %v4720
      %v4798 = vmul.f32 %v4654, %v4725
      %v4799 = vmul.f32 %v4655, %v4730
      %v4800 = vmul.f32 %v4656, %v4735
      %v4801 = vmul.f32 %v4657, %v4740
      %v4802 = vmul.f32 %v4658, %v4745
      %v4803 = vmul.f32 %v4659, %v4750
      %v4804 = vmul.f32 %v4660, %v4755
      %v4805 = vmul.f32 %v4661, %v4760
      %v4806 = vmul.f32 %v4662, %v4765
      %v4807 = vmul.f32 %v4663, %v4770
      %v4808 = vmul.f32 %v4664, %v4775
      %v4809 = vmul.f32 %v4665, %v4780
      %v4810 = vmul.f32 %v4666, %v4785
      %v4811 = vmul.f32 %v4667, %v4790
      %v4812 = vmul.f32 %v4668, %v4795
      %v4813 = vld [vmem:[#allocation9] sm:$0xff]
      %v4814 = vld [vmem:[#allocation9 + $0x8] sm:$0xff]
      %v4815 = vld [vmem:[#allocation9 + $0x10] sm:$0xff]
      %v4816 = vld [vmem:[#allocation9 + $0x18] sm:$0xff]
      %v4817 = vld [vmem:[#allocation9 + $0x20] sm:$0xff]
      %v4818 = vld [vmem:[#allocation9 + $0x28] sm:$0xff]
      %v4819 = vld [vmem:[#allocation9 + $0x30] sm:$0xff]
      %v4820 = vld [vmem:[#allocation9 + $0x38] sm:$0xff]
      %v4821 = vld [vmem:[#allocation9 + $0x40] sm:$0xff]
      %v4822 = vld [vmem:[#allocation9 + $0x48] sm:$0xff]
      %v4823 = vld [vmem:[#allocation9 + $0x50] sm:$0xff]
      %v4824 = vld [vmem:[#allocation9 + $0x58] sm:$0xff]
      %v4825 = vld [vmem:[#allocation9 + $0x60] sm:$0xff]
      %v4826 = vld [vmem:[#allocation9 + $0x68] sm:$0xff]
      %v4827 = vld [vmem:[#allocation9 + $0x70] sm:$0xff]
      %v4828 = vld [vmem:[#allocation9 + $0x78] sm:$0xff]
      %4830 = vset.pattern.permute.xlu0 0
      %4831 = vperm.xlu0 %4830, %v4637
      %v4832 = vpop.permute.xlu0 %4831
      %4835 = vset.pattern.permute.xlu0 0
      %4836 = vperm.xlu0 %4835, %v4638
      %v4837 = vpop.permute.xlu0 %4836
      %4840 = vset.pattern.permute.xlu0 0
      %4841 = vperm.xlu0 %4840, %v4639
      %v4842 = vpop.permute.xlu0 %4841
      %4845 = vset.pattern.permute.xlu0 0
      %4846 = vperm.xlu0 %4845, %v4640
      %v4847 = vpop.permute.xlu0 %4846
      %4850 = vset.pattern.permute.xlu0 0
      %4851 = vperm.xlu0 %4850, %v4641
      %v4852 = vpop.permute.xlu0 %4851
      %4855 = vset.pattern.permute.xlu0 0
      %4856 = vperm.xlu0 %4855, %v4642
      %v4857 = vpop.permute.xlu0 %4856
      %4860 = vset.pattern.permute.xlu0 0
      %4861 = vperm.xlu0 %4860, %v4643
      %v4862 = vpop.permute.xlu0 %4861
      %4865 = vset.pattern.permute.xlu0 0
      %4866 = vperm.xlu0 %4865, %v4644
      %v4867 = vpop.permute.xlu0 %4866
      %4870 = vset.pattern.permute.xlu0 0
      %4871 = vperm.xlu0 %4870, %v4645
      %v4872 = vpop.permute.xlu0 %4871
      %4875 = vset.pattern.permute.xlu0 0
      %4876 = vperm.xlu0 %4875, %v4646
      %v4877 = vpop.permute.xlu0 %4876
      %4880 = vset.pattern.permute.xlu0 0
      %4881 = vperm.xlu0 %4880, %v4647
      %v4882 = vpop.permute.xlu0 %4881
      %4885 = vset.pattern.permute.xlu0 0
      %4886 = vperm.xlu0 %4885, %v4648
      %v4887 = vpop.permute.xlu0 %4886
      %4890 = vset.pattern.permute.xlu0 0
      %4891 = vperm.xlu0 %4890, %v4649
      %v4892 = vpop.permute.xlu0 %4891
      %4895 = vset.pattern.permute.xlu0 0
      %4896 = vperm.xlu0 %4895, %v4650
      %v4897 = vpop.permute.xlu0 %4896
      %4900 = vset.pattern.permute.xlu0 0
      %4901 = vperm.xlu0 %4900, %v4651
      %v4902 = vpop.permute.xlu0 %4901
      %4905 = vset.pattern.permute.xlu0 0
      %4906 = vperm.xlu0 %4905, %v4652
      %v4907 = vpop.permute.xlu0 %4906
      %v4909 = vsub.f32 %v4573, %v4832
      %v4910 = vsub.f32 %v4574, %v4837
      %v4911 = vsub.f32 %v4575, %v4842
      %v4912 = vsub.f32 %v4576, %v4847
      %v4913 = vsub.f32 %v4577, %v4852
      %v4914 = vsub.f32 %v4578, %v4857
      %v4915 = vsub.f32 %v4579, %v4862
      %v4916 = vsub.f32 %v4580, %v4867
      %v4917 = vsub.f32 %v4581, %v4872
      %v4918 = vsub.f32 %v4582, %v4877
      %v4919 = vsub.f32 %v4583, %v4882
      %v4920 = vsub.f32 %v4584, %v4887
      %v4921 = vsub.f32 %v4585, %v4892
      %v4922 = vsub.f32 %v4586, %v4897
      %v4923 = vsub.f32 %v4587, %v4902
      %v4924 = vsub.f32 %v4588, %v4907
      %v4925 = vmul.f32 %v4909, 1.442695
      %v4926 = vpow.pop %v4925
      %v4927 = vmul.f32 %v4910, 1.442695
      %v4928 = vpow.pop %v4927
      %v4929 = vmul.f32 %v4911, 1.442695
      %v4930 = vpow.pop %v4929
      %v4931 = vmul.f32 %v4912, 1.442695
      %v4932 = vpow.pop %v4931
      %v4933 = vmul.f32 %v4913, 1.442695
      %v4934 = vpow.pop %v4933
      %v4935 = vmul.f32 %v4914, 1.442695
      %v4936 = vpow.pop %v4935
      %v4937 = vmul.f32 %v4915, 1.442695
      %v4938 = vpow.pop %v4937
      %v4939 = vmul.f32 %v4916, 1.442695
      %v4940 = vpow.pop %v4939
      %v4941 = vmul.f32 %v4917, 1.442695
      %v4942 = vpow.pop %v4941
      %v4943 = vmul.f32 %v4918, 1.442695
      %v4944 = vpow.pop %v4943
      %v4945 = vmul.f32 %v4919, 1.442695
      %v4946 = vpow.pop %v4945
      %v4947 = vmul.f32 %v4920, 1.442695
      %v4948 = vpow.pop %v4947
      %v4949 = vmul.f32 %v4921, 1.442695
      %v4950 = vpow.pop %v4949
      %v4951 = vmul.f32 %v4922, 1.442695
      %v4952 = vpow.pop %v4951
      %v4953 = vmul.f32 %v4923, 1.442695
      %v4954 = vpow.pop %v4953
      %v4955 = vmul.f32 %v4924, 1.442695
      %v4956 = vpow.pop %v4955
      %4957 = vmatprep.subr.mxu0 0.0
      %v4958 = vand.u32 %v4813, 4294901760
      %4959 = vmatpush1.msra.mxu0 %v4958
      %4960 = vmatprep.subr.mxu0 0.0
      %v4961 = vand.u32 %v4814, 4294901760
      %4962 = vmatpush1.msra.mxu0 %v4961
      %4963 = vmatprep.subr.mxu0 0.0
      %v4964 = vand.u32 %v4815, 4294901760
      %4965 = vmatpush1.msra.mxu0 %v4964
      %4966 = vmatprep.subr.mxu0 0.0
      %v4967 = vand.u32 %v4816, 4294901760
      %4968 = vmatpush1.msra.mxu0 %v4967
      %4969 = vmatprep.subr.mxu0 0.0
      %v4970 = vand.u32 %v4817, 4294901760
      %4971 = vmatpush1.msra.mxu0 %v4970
      %4972 = vmatprep.subr.mxu0 0.0
      %v4973 = vand.u32 %v4818, 4294901760
      %4974 = vmatpush1.msra.mxu0 %v4973
      %4975 = vmatprep.subr.mxu0 0.0
      %v4976 = vand.u32 %v4819, 4294901760
      %4977 = vmatpush1.msra.mxu0 %v4976
      %4978 = vmatprep.subr.mxu0 0.0
      %v4979 = vand.u32 %v4820, 4294901760
      %4980 = vmatpush1.msra.mxu0 %v4979
      %4981 = vmatprep.subr.mxu0 0.0
      %v4982 = vand.u32 %v4821, 4294901760
      %4983 = vmatpush1.msra.mxu0 %v4982
      %4984 = vmatprep.subr.mxu0 0.0
      %v4985 = vand.u32 %v4822, 4294901760
      %4986 = vmatpush1.msra.mxu0 %v4985
      %4987 = vmatprep.subr.mxu0 0.0
      %v4988 = vand.u32 %v4823, 4294901760
      %4989 = vmatpush1.msra.mxu0 %v4988
      %4990 = vmatprep.subr.mxu0 0.0
      %v4991 = vand.u32 %v4824, 4294901760
      %4992 = vmatpush1.msra.mxu0 %v4991
      %4993 = vmatprep.subr.mxu0 0.0
      %v4994 = vand.u32 %v4825, 4294901760
      %4995 = vmatpush1.msra.mxu0 %v4994
      %4996 = vmatprep.subr.mxu0 0.0
      %v4997 = vand.u32 %v4826, 4294901760
      %4998 = vmatpush1.msra.mxu0 %v4997
      %4999 = vmatprep.subr.mxu0 0.0
      %v5000 = vand.u32 %v4827, 4294901760
      %5001 = vmatpush1.msra.mxu0 %v5000
      %5002 = vmatprep.subr.mxu0 0.0
      %v5003 = vand.u32 %v4828, 4294901760
      %5004 = vmatpush1.msra.mxu0 %v5003
      %5005 = vmatprep.subr.mxu0 0.0
      %5006 = vmatpush1.msra.mxu0 0.0
      %5007 = vmatprep.subr.mxu0 0.0
      %5008 = vmatpush1.msra.mxu0 0.0
      %5009 = vmatprep.subr.mxu0 0.0
      %5010 = vmatpush1.msra.mxu0 0.0
      %5011 = vmatprep.subr.mxu0 0.0
      %5012 = vmatpush1.msra.mxu0 0.0
      %5013 = vmatprep.subr.mxu0 0.0
      %5014 = vmatpush1.msra.mxu0 0.0
      %5015 = vmatprep.subr.mxu0 0.0
      %5016 = vmatpush1.msra.mxu0 0.0
      %5017 = vmatprep.subr.mxu0 0.0
      %5018 = vmatpush1.msra.mxu0 0.0
      %5019 = vmatprep.subr.mxu0 0.0
      %5020 = vmatpush1.msra.mxu0 0.0
      %5021 = vmatprep.subr.mxu0 0.0
      %5022 = vmatpush1.msra.mxu0 0.0
      %5023 = vmatprep.subr.mxu0 0.0
      %5024 = vmatpush1.msra.mxu0 0.0
      %5025 = vmatprep.subr.mxu0 0.0
      %5026 = vmatpush1.msra.mxu0 0.0
      %5027 = vmatprep.subr.mxu0 0.0
      %5028 = vmatpush1.msra.mxu0 0.0
      %5029 = vmatprep.subr.mxu0 0.0
      %5030 = vmatpush1.msra.mxu0 0.0
      %5031 = vmatprep.subr.mxu0 0.0
      %5032 = vmatpush1.msra.mxu0 0.0
      %5033 = vmatprep.subr.mxu0 0.0
      %5034 = vmatpush1.msra.mxu0 0.0
      %5035 = vmatprep.subr.mxu0 0.0
      %5036 = vmatpush1.msra.mxu0 0.0
      %5037 = vmatprep.mubr.f32.mxu0 0.0
      %v5038 = vand.u32 %v4573, 4294901760
      %v5039 = vsub.f32 %v4573, %v5038
      %v5040 = vand.u32 %v5039, 4294901760
      %v5041 = vsub.f32 %v5039, %v5040
      %v5042 = vand.u32 %v5041, 4294901760
      %5043 = vmatmul.mubr.f32.gmra.mrb[0].mxu0 %v5042
      %v5044 = vpop.f32.mrb[0].mxu0
      %v5045 = vadd.f32 0.0, %v5044
      %v5046 = vpop.f32.mrb[0].mxu0
      %5047 = vmatprep.mubr.f32.mxu0 0.0
      %v5048 = vand.u32 %v4574, 4294901760
      %v5049 = vsub.f32 %v4574, %v5048
      %v5050 = vand.u32 %v5049, 4294901760
      %v5051 = vsub.f32 %v5049, %v5050
      %v5052 = vand.u32 %v5051, 4294901760
      %5053 = vmatmul.mubr.f32.gmra.mrb[0].mxu0 %v5052
      %v5054 = vpop.f32.mrb[0].mxu0
      %v5055 = vadd.f32 0.0, %v5054
      %v5056 = vpop.f32.mrb[0].mxu0
      %5057 = vmatprep.mubr.f32.mxu0 0.0
      %v5058 = vand.u32 %v4575, 4294901760
      %v5059 = vsub.f32 %v4575, %v5058
      %v5060 = vand.u32 %v5059, 4294901760
      %v5061 = vsub.f32 %v5059, %v5060
      %v5062 = vand.u32 %v5061, 4294901760
      %5063 = vmatmul.mubr.f32.gmra.mrb[0].mxu0 %v5062
      %v5064 = vpop.f32.mrb[0].mxu0
      %v5065 = vadd.f32 0.0, %v5064
      %v5066 = vpop.f32.mrb[0].mxu0
      %5067 = vmatprep.mubr.f32.mxu0 0.0
      %v5068 = vand.u32 %v4576, 4294901760
      %v5069 = vsub.f32 %v4576, %v5068
      %v5070 = vand.u32 %v5069, 4294901760
      %v5071 = vsub.f32 %v5069, %v5070
      %v5072 = vand.u32 %v5071, 4294901760
      %5073 = vmatmul.mubr.f32.gmra.mrb[0].mxu0 %v5072
      %v5074 = vpop.f32.mrb[0].mxu0
      %v5075 = vadd.f32 0.0, %v5074
      %v5076 = vpop.f32.mrb[0].mxu0
      %5077 = vmatprep.mubr.f32.mxu0 0.0
      %v5078 = vand.u32 %v4577, 4294901760
      %v5079 = vsub.f32 %v4577, %v5078
      %v5080 = vand.u32 %v5079, 4294901760
      %v5081 = vsub.f32 %v5079, %v5080
      %v5082 = vand.u32 %v5081, 4294901760
      %5083 = vmatmul.mubr.f32.gmra.mrb[0].mxu0 %v5082
      %v5084 = vpop.f32.mrb[0].mxu0
      %v5085 = vadd.f32 0.0, %v5084
      %v5086 = vpop.f32.mrb[0].mxu0
      %5087 = vmatprep.mubr.f32.mxu0 0.0
      %v5088 = vand.u32 %v4578, 4294901760
      %v5089 = vsub.f32 %v4578, %v5088
      %v5090 = vand.u32 %v5089, 4294901760
      %v5091 = vsub.f32 %v5089, %v5090
      %v5092 = vand.u32 %v5091, 4294901760
      %5093 = vmatmul.mubr.f32.gmra.mrb[0].mxu0 %v5092
      %v5094 = vpop.f32.mrb[0].mxu0
      %v5095 = vadd.f32 0.0, %v5094
      %v5096 = vpop.f32.mrb[0].mxu0
      %5097 = vmatprep.mubr.f32.mxu0 0.0
      %v5098 = vand.u32 %v4579, 4294901760
      %v5099 = vsub.f32 %v4579, %v5098
      %v5100 = vand.u32 %v5099, 4294901760
      %v5101 = vsub.f32 %v5099, %v5100
      %v5102 = vand.u32 %v5101, 4294901760
      %5103 = vmatmul.mubr.f32.gmra.mrb[0].mxu0 %v5102
      %v5104 = vpop.f32.mrb[0].mxu0
      %v5105 = vadd.f32 0.0, %v5104
      %v5106 = vpop.f32.mrb[0].mxu0
      %5107 = vmatprep.mubr.f32.mxu0 0.0
      %v5108 = vand.u32 %v4580, 4294901760
      %v5109 = vsub.f32 %v4580, %v5108
      %v5110 = vand.u32 %v5109, 4294901760
      %v5111 = vsub.f32 %v5109, %v5110
      %v5112 = vand.u32 %v5111, 4294901760
      %5113 = vmatmul.mubr.f32.gmra.mrb[0].mxu0 %v5112
      %v5114 = vpop.f32.mrb[0].mxu0
      %v5115 = vadd.f32 0.0, %v5114
      %v5116 = vpop.f32.mrb[0].mxu0
      %5117 = vmatprep.mubr.f32.mxu0 0.0
      %v5118 = vand.u32 %v4581, 4294901760
      %v5119 = vsub.f32 %v4581, %v5118
      %v5120 = vand.u32 %v5119, 4294901760
      %v5121 = vsub.f32 %v5119, %v5120
      %v5122 = vand.u32 %v5121, 4294901760
      %5123 = vmatmul.mubr.f32.gmra.mrb[0].mxu0 %v5122
      %v5124 = vpop.f32.mrb[0].mxu0
      %v5125 = vadd.f32 0.0, %v5124
      %v5126 = vpop.f32.mrb[0].mxu0
      %5127 = vmatprep.mubr.f32.mxu0 0.0
      %v5128 = vand.u32 %v4582, 4294901760
      %v5129 = vsub.f32 %v4582, %v5128
      %v5130 = vand.u32 %v5129, 4294901760
      %v5131 = vsub.f32 %v5129, %v5130
      %v5132 = vand.u32 %v5131, 4294901760
      %5133 = vmatmul.mubr.f32.gmra.mrb[0].mxu0 %v5132
      %v5134 = vpop.f32.mrb[0].mxu0
      %v5135 = vadd.f32 0.0, %v5134
      %v5136 = vpop.f32.mrb[0].mxu0
      %5137 = vmatprep.mubr.f32.mxu0 0.0
      %v5138 = vand.u32 %v4583, 4294901760
      %v5139 = vsub.f32 %v4583, %v5138
      %v5140 = vand.u32 %v5139, 4294901760
      %v5141 = vsub.f32 %v5139, %v5140
      %v5142 = vand.u32 %v5141, 4294901760
      %5143 = vmatmul.mubr.f32.gmra.mrb[0].mxu0 %v5142
      %v5144 = vpop.f32.mrb[0].mxu0
      %v5145 = vadd.f32 0.0, %v5144
      %v5146 = vpop.f32.mrb[0].mxu0
      %5147 = vmatprep.mubr.f32.mxu0 0.0
      %v5148 = vand.u32 %v4584, 4294901760
      %v5149 = vsub.f32 %v4584, %v5148
      %v5150 = vand.u32 %v5149, 4294901760
      %v5151 = vsub.f32 %v5149, %v5150
      %v5152 = vand.u32 %v5151, 4294901760
      %5153 = vmatmul.mubr.f32.gmra.mrb[0].mxu0 %v5152
      %v5154 = vpop.f32.mrb[0].mxu0
      %v5155 = vadd.f32 0.0, %v5154
      %v5156 = vpop.f32.mrb[0].mxu0
      %5157 = vmatprep.mubr.f32.mxu0 0.0
      %v5158 = vand.u32 %v4585, 4294901760
      %v5159 = vsub.f32 %v4585, %v5158
      %v5160 = vand.u32 %v5159, 4294901760
      %v5161 = vsub.f32 %v5159, %v5160
      %v5162 = vand.u32 %v5161, 4294901760
      %5163 = vmatmul.mubr.f32.gmra.mrb[0].mxu0 %v5162
      %v5164 = vpop.f32.mrb[0].mxu0
      %v5165 = vadd.f32 0.0, %v5164
      %v5166 = vpop.f32.mrb[0].mxu0
      %5167 = vmatprep.mubr.f32.mxu0 0.0
      %v5168 = vand.u32 %v4586, 4294901760
      %v5169 = vsub.f32 %v4586, %v5168
      %v5170 = vand.u32 %v5169, 4294901760
      %v5171 = vsub.f32 %v5169, %v5170
      %v5172 = vand.u32 %v5171, 4294901760
      %5173 = vmatmul.mubr.f32.gmra.mrb[0].mxu0 %v5172
      %v5174 = vpop.f32.mrb[0].mxu0
      %v5175 = vadd.f32 0.0, %v5174
      %v5176 = vpop.f32.mrb[0].mxu0
      %5177 = vmatprep.mubr.f32.mxu0 0.0
      %v5178 = vand.u32 %v4587, 4294901760
      %v5179 = vsub.f32 %v4587, %v5178
      %v5180 = vand.u32 %v5179, 4294901760
      %v5181 = vsub.f32 %v5179, %v5180
      %v5182 = vand.u32 %v5181, 4294901760
      %5183 = vmatmul.mubr.f32.gmra.mrb[0].mxu0 %v5182
      %v5184 = vpop.f32.mrb[0].mxu0
      %v5185 = vadd.f32 0.0, %v5184
      %v5186 = vpop.f32.mrb[0].mxu0
      %5187 = vmatprep.mubr.f32.mxu0 0.0
      %v5188 = vand.u32 %v4588, 4294901760
      %v5189 = vsub.f32 %v4588, %v5188
      %v5190 = vand.u32 %v5189, 4294901760
      %v5191 = vsub.f32 %v5189, %v5190
      %v5192 = vand.u32 %v5191, 4294901760
      %5193 = vmatmul.mubr.f32.gmra.mrb[0].mxu0 %v5192
      %v5194 = vpop.f32.mrb[0].mxu0
      %v5195 = vadd.f32 0.0, %v5194
      %v5196 = vpop.f32.mrb[0].mxu0
      %5197 = vdwg.mxu0
      %5198 = vmatprep.subr.mxu0 0.0
      %v5199 = vand.u32 %v4813, 4294901760
      %v5200 = vsub.f32 %v4813, %v5199
      %v5201 = vand.u32 %v5200, 4294901760
      %v5202 = vsub.f32 %v5200, %v5201
      %v5203 = vand.u32 %v5202, 4294901760
      %5204 = vmatpush1.msra.mxu0 %v5203
      %5205 = vmatprep.subr.mxu0 0.0
      %v5206 = vand.u32 %v4814, 4294901760
      %v5207 = vsub.f32 %v4814, %v5206
      %v5208 = vand.u32 %v5207, 4294901760
      %v5209 = vsub.f32 %v5207, %v5208
      %v5210 = vand.u32 %v5209, 4294901760
      %5211 = vmatpush1.msra.mxu0 %v5210
      %5212 = vmatprep.subr.mxu0 0.0
      %v5213 = vand.u32 %v4815, 4294901760
      %v5214 = vsub.f32 %v4815, %v5213
      %v5215 = vand.u32 %v5214, 4294901760
      %v5216 = vsub.f32 %v5214, %v5215
      %v5217 = vand.u32 %v5216, 4294901760
      %5218 = vmatpush1.msra.mxu0 %v5217
      %5219 = vmatprep.subr.mxu0 0.0
      %v5220 = vand.u32 %v4816, 4294901760
      %v5221 = vsub.f32 %v4816, %v5220
      %v5222 = vand.u32 %v5221, 4294901760
      %v5223 = vsub.f32 %v5221, %v5222
      %v5224 = vand.u32 %v5223, 4294901760
      %5225 = vmatpush1.msra.mxu0 %v5224
      %5226 = vmatprep.subr.mxu0 0.0
      %v5227 = vand.u32 %v4817, 4294901760
      %v5228 = vsub.f32 %v4817, %v5227
      %v5229 = vand.u32 %v5228, 4294901760
      %v5230 = vsub.f32 %v5228, %v5229
      %v5231 = vand.u32 %v5230, 4294901760
      %5232 = vmatpush1.msra.mxu0 %v5231
      %5233 = vmatprep.subr.mxu0 0.0
      %v5234 = vand.u32 %v4818, 4294901760
      %v5235 = vsub.f32 %v4818, %v5234
      %v5236 = vand.u32 %v5235, 4294901760
      %v5237 = vsub.f32 %v5235, %v5236
      %v5238 = vand.u32 %v5237, 4294901760
      %5239 = vmatpush1.msra.mxu0 %v5238
      %5240 = vmatprep.subr.mxu0 0.0
      %v5241 = vand.u32 %v4819, 4294901760
      %v5242 = vsub.f32 %v4819, %v5241
      %v5243 = vand.u32 %v5242, 4294901760
      %v5244 = vsub.f32 %v5242, %v5243
      %v5245 = vand.u32 %v5244, 4294901760
      %5246 = vmatpush1.msra.mxu0 %v5245
      %5247 = vmatprep.subr.mxu0 0.0
      %v5248 = vand.u32 %v4820, 4294901760
      %v5249 = vsub.f32 %v4820, %v5248
      %v5250 = vand.u32 %v5249, 4294901760
      %v5251 = vsub.f32 %v5249, %v5250
      %v5252 = vand.u32 %v5251, 4294901760
      %5253 = vmatpush1.msra.mxu0 %v5252
      %5254 = vmatprep.subr.mxu0 0.0
      %v5255 = vand.u32 %v4821, 4294901760
      %v5256 = vsub.f32 %v4821, %v5255
      %v5257 = vand.u32 %v5256, 4294901760
      %v5258 = vsub.f32 %v5256, %v5257
      %v5259 = vand.u32 %v5258, 4294901760
      %5260 = vmatpush1.msra.mxu0 %v5259
      %5261 = vmatprep.subr.mxu0 0.0
      %v5262 = vand.u32 %v4822, 4294901760
      %v5263 = vsub.f32 %v4822, %v5262
      %v5264 = vand.u32 %v5263, 4294901760
      %v5265 = vsub.f32 %v5263, %v5264
      %v5266 = vand.u32 %v5265, 4294901760
      %5267 = vmatpush1.msra.mxu0 %v5266
      %5268 = vmatprep.subr.mxu0 0.0
      %v5269 = vand.u32 %v4823, 4294901760
      %v5270 = vsub.f32 %v4823, %v5269
      %v5271 = vand.u32 %v5270, 4294901760
      %v5272 = vsub.f32 %v5270, %v5271
      %v5273 = vand.u32 %v5272, 4294901760
      %5274 = vmatpush1.msra.mxu0 %v5273
      %5275 = vmatprep.subr.mxu0 0.0
      %v5276 = vand.u32 %v4824, 4294901760
      %v5277 = vsub.f32 %v4824, %v5276
      %v5278 = vand.u32 %v5277, 4294901760
      %v5279 = vsub.f32 %v5277, %v5278
      %v5280 = vand.u32 %v5279, 4294901760
      %5281 = vmatpush1.msra.mxu0 %v5280
      %5282 = vmatprep.subr.mxu0 0.0
      %v5283 = vand.u32 %v4825, 4294901760
      %v5284 = vsub.f32 %v4825, %v5283
      %v5285 = vand.u32 %v5284, 4294901760
      %v5286 = vsub.f32 %v5284, %v5285
      %v5287 = vand.u32 %v5286, 4294901760
      %5288 = vmatpush1.msra.mxu0 %v5287
      %5289 = vmatprep.subr.mxu0 0.0
      %v5290 = vand.u32 %v4826, 4294901760
      %v5291 = vsub.f32 %v4826, %v5290
      %v5292 = vand.u32 %v5291, 4294901760
      %v5293 = vsub.f32 %v5291, %v5292
      %v5294 = vand.u32 %v5293, 4294901760
      %5295 = vmatpush1.msra.mxu0 %v5294
      %5296 = vmatprep.subr.mxu0 0.0
      %v5297 = vand.u32 %v4827, 4294901760
      %v5298 = vsub.f32 %v4827, %v5297
      %v5299 = vand.u32 %v5298, 4294901760
      %v5300 = vsub.f32 %v5298, %v5299
      %v5301 = vand.u32 %v5300, 4294901760
      %5302 = vmatpush1.msra.mxu0 %v5301
      %5303 = vmatprep.subr.mxu0 0.0
      %v5304 = vand.u32 %v4828, 4294901760
      %v5305 = vsub.f32 %v4828, %v5304
      %v5306 = vand.u32 %v5305, 4294901760
      %v5307 = vsub.f32 %v5305, %v5306
      %v5308 = vand.u32 %v5307, 4294901760
      %5309 = vmatpush1.msra.mxu0 %v5308
      %5310 = vmatprep.subr.mxu0 0.0
      %5311 = vmatpush1.msra.mxu0 0.0
      %5312 = vmatprep.subr.mxu0 0.0
      %5313 = vmatpush1.msra.mxu0 0.0
      %5314 = vmatprep.subr.mxu0 0.0
      %5315 = vmatpush1.msra.mxu0 0.0
      %5316 = vmatprep.subr.mxu0 0.0
      %5317 = vmatpush1.msra.mxu0 0.0
      %5318 = vmatprep.subr.mxu0 0.0
      %5319 = vmatpush1.msra.mxu0 0.0
      %5320 = vmatprep.subr.mxu0 0.0
      %5321 = vmatpush1.msra.mxu0 0.0
      %5322 = vmatprep.subr.mxu0 0.0
      %5323 = vmatpush1.msra.mxu0 0.0
      %5324 = vmatprep.subr.mxu0 0.0
      %5325 = vmatpush1.msra.mxu0 0.0
      %5326 = vmatprep.subr.mxu0 0.0
      %5327 = vmatpush1.msra.mxu0 0.0
      %5328 = vmatprep.subr.mxu0 0.0
      %5329 = vmatpush1.msra.mxu0 0.0
      %5330 = vmatprep.subr.mxu0 0.0
      %5331 = vmatpush1.msra.mxu0 0.0
      %5332 = vmatprep.subr.mxu0 0.0
      %5333 = vmatpush1.msra.mxu0 0.0
      %5334 = vmatprep.subr.mxu0 0.0
      %5335 = vmatpush1.msra.mxu0 0.0
      %5336 = vmatprep.subr.mxu0 0.0
      %5337 = vmatpush1.msra.mxu0 0.0
      %5338 = vmatprep.subr.mxu0 0.0
      %5339 = vmatpush1.msra.mxu0 0.0
      %5340 = vmatprep.subr.mxu0 0.0
      %5341 = vmatpush1.msra.mxu0 0.0
      %5342 = vmatprep.mubr.f32.mxu0 0.0
      %v5343 = vand.u32 %v4573, 4294901760
      %5344 = vmatmul.mubr.f32.gmra.mrb[0].mxu0 %v5343
      %v5345 = vpop.f32.mrb[0].mxu0
      %v5346 = vadd.f32 %v5045, %v5345
      %v5347 = vpop.f32.mrb[0].mxu0
      %5348 = vmatprep.mubr.f32.mxu0 0.0
      %v5349 = vand.u32 %v4574, 4294901760
      %5350 = vmatmul.mubr.f32.gmra.mrb[0].mxu0 %v5349
      %v5351 = vpop.f32.mrb[0].mxu0
      %v5352 = vadd.f32 %v5055, %v5351
      %v5353 = vpop.f32.mrb[0].mxu0
      %5354 = vmatprep.mubr.f32.mxu0 0.0
      %v5355 = vand.u32 %v4575, 4294901760
      %5356 = vmatmul.mubr.f32.gmra.mrb[0].mxu0 %v5355
      %v5357 = vpop.f32.mrb[0].mxu0
      %v5358 = vadd.f32 %v5065, %v5357
      %v5359 = vpop.f32.mrb[0].mxu0
      %5360 = vmatprep.mubr.f32.mxu0 0.0
      %v5361 = vand.u32 %v4576, 4294901760
      %5362 = vmatmul.mubr.f32.gmra.mrb[0].mxu0 %v5361
      %v5363 = vpop.f32.mrb[0].mxu0
      %v5364 = vadd.f32 %v5075, %v5363
      %v5365 = vpop.f32.mrb[0].mxu0
      %5366 = vmatprep.mubr.f32.mxu0 0.0
      %v5367 = vand.u32 %v4577, 4294901760
      %5368 = vmatmul.mubr.f32.gmra.mrb[0].mxu0 %v5367
      %v5369 = vpop.f32.mrb[0].mxu0
      %v5370 = vadd.f32 %v5085, %v5369
      %v5371 = vpop.f32.mrb[0].mxu0
      %5372 = vmatprep.mubr.f32.mxu0 0.0
      %v5373 = vand.u32 %v4578, 4294901760
      %5374 = vmatmul.mubr.f32.gmra.mrb[0].mxu0 %v5373
      %v5375 = vpop.f32.mrb[0].mxu0
      %v5376 = vadd.f32 %v5095, %v5375
      %v5377 = vpop.f32.mrb[0].mxu0
      %5378 = vmatprep.mubr.f32.mxu0 0.0
      %v5379 = vand.u32 %v4579, 4294901760
      %5380 = vmatmul.mubr.f32.gmra.mrb[0].mxu0 %v5379
      %v5381 = vpop.f32.mrb[0].mxu0
      %v5382 = vadd.f32 %v5105, %v5381
      %v5383 = vpop.f32.mrb[0].mxu0
      %5384 = vmatprep.mubr.f32.mxu0 0.0
      %v5385 = vand.u32 %v4580, 4294901760
      %5386 = vmatmul.mubr.f32.gmra.mrb[0].mxu0 %v5385
      %v5387 = vpop.f32.mrb[0].mxu0
      %v5388 = vadd.f32 %v5115, %v5387
      %v5389 = vpop.f32.mrb[0].mxu0
      %5390 = vmatprep.mubr.f32.mxu0 0.0
      %v5391 = vand.u32 %v4581, 4294901760
      %5392 = vmatmul.mubr.f32.gmra.mrb[0].mxu0 %v5391
      %v5393 = vpop.f32.mrb[0].mxu0
      %v5394 = vadd.f32 %v5125, %v5393
      %v5395 = vpop.f32.mrb[0].mxu0
      %5396 = vmatprep.mubr.f32.mxu0 0.0
      %v5397 = vand.u32 %v4582, 4294901760
      %5398 = vmatmul.mubr.f32.gmra.mrb[0].mxu0 %v5397
      %v5399 = vpop.f32.mrb[0].mxu0
      %v5400 = vadd.f32 %v5135, %v5399
      %v5401 = vpop.f32.mrb[0].mxu0
      %5402 = vmatprep.mubr.f32.mxu0 0.0
      %v5403 = vand.u32 %v4583, 4294901760
      %5404 = vmatmul.mubr.f32.gmra.mrb[0].mxu0 %v5403
      %v5405 = vpop.f32.mrb[0].mxu0
      %v5406 = vadd.f32 %v5145, %v5405
      %v5407 = vpop.f32.mrb[0].mxu0
      %5408 = vmatprep.mubr.f32.mxu0 0.0
      %v5409 = vand.u32 %v4584, 4294901760
      %5410 = vmatmul.mubr.f32.gmra.mrb[0].mxu0 %v5409
      %v5411 = vpop.f32.mrb[0].mxu0
      %v5412 = vadd.f32 %v5155, %v5411
      %v5413 = vpop.f32.mrb[0].mxu0
      %5414 = vmatprep.mubr.f32.mxu0 0.0
      %v5415 = vand.u32 %v4585, 4294901760
      %5416 = vmatmul.mubr.f32.gmra.mrb[0].mxu0 %v5415
      %v5417 = vpop.f32.mrb[0].mxu0
      %v5418 = vadd.f32 %v5165, %v5417
      %v5419 = vpop.f32.mrb[0].mxu0
      %5420 = vmatprep.mubr.f32.mxu0 0.0
      %v5421 = vand.u32 %v4586, 4294901760
      %5422 = vmatmul.mubr.f32.gmra.mrb[0].mxu0 %v5421
      %v5423 = vpop.f32.mrb[0].mxu0
      %v5424 = vadd.f32 %v5175, %v5423
      %v5425 = vpop.f32.mrb[0].mxu0
      %5426 = vmatprep.mubr.f32.mxu0 0.0
      %v5427 = vand.u32 %v4587, 4294901760
      %5428 = vmatmul.mubr.f32.gmra.mrb[0].mxu0 %v5427
      %v5429 = vpop.f32.mrb[0].mxu0
      %v5430 = vadd.f32 %v5185, %v5429
      %v5431 = vpop.f32.mrb[0].mxu0
      %5432 = vmatprep.mubr.f32.mxu0 0.0
      %v5433 = vand.u32 %v4588, 4294901760
      %5434 = vmatmul.mubr.f32.gmra.mrb[0].mxu0 %v5433
      %v5435 = vpop.f32.mrb[0].mxu0
      %v5436 = vadd.f32 %v5195, %v5435
      %v5437 = vpop.f32.mrb[0].mxu0
      %5438 = vdwg.mxu0
      %5439 = vmatprep.subr.mxu0 0.0
      %v5440 = vand.u32 %v4813, 4294901760
      %v5441 = vsub.f32 %v4813, %v5440
      %5442 = vmatpush1.msra.mxu0 %v5441
      %5443 = vmatprep.subr.mxu0 0.0
      %v5444 = vand.u32 %v4814, 4294901760
      %v5445 = vsub.f32 %v4814, %v5444
      %5446 = vmatpush1.msra.mxu0 %v5445
      %5447 = vmatprep.subr.mxu0 0.0
      %v5448 = vand.u32 %v4815, 4294901760
      %v5449 = vsub.f32 %v4815, %v5448
      %5450 = vmatpush1.msra.mxu0 %v5449
      %5451 = vmatprep.subr.mxu0 0.0
      %v5452 = vand.u32 %v4816, 4294901760
      %v5453 = vsub.f32 %v4816, %v5452
      %5454 = vmatpush1.msra.mxu0 %v5453
      %5455 = vmatprep.subr.mxu0 0.0
      %v5456 = vand.u32 %v4817, 4294901760
      %v5457 = vsub.f32 %v4817, %v5456
      %5458 = vmatpush1.msra.mxu0 %v5457
      %5459 = vmatprep.subr.mxu0 0.0
      %v5460 = vand.u32 %v4818, 4294901760
      %v5461 = vsub.f32 %v4818, %v5460
      %5462 = vmatpush1.msra.mxu0 %v5461
      %5463 = vmatprep.subr.mxu0 0.0
      %v5464 = vand.u32 %v4819, 4294901760
      %v5465 = vsub.f32 %v4819, %v5464
      %5466 = vmatpush1.msra.mxu0 %v5465
      %5467 = vmatprep.subr.mxu0 0.0
      %v5468 = vand.u32 %v4820, 4294901760
      %v5469 = vsub.f32 %v4820, %v5468
      %5470 = vmatpush1.msra.mxu0 %v5469
      %5471 = vmatprep.subr.mxu0 0.0
      %v5472 = vand.u32 %v4821, 4294901760
      %v5473 = vsub.f32 %v4821, %v5472
      %5474 = vmatpush1.msra.mxu0 %v5473
      %5475 = vmatprep.subr.mxu0 0.0
      %v5476 = vand.u32 %v4822, 4294901760
      %v5477 = vsub.f32 %v4822, %v5476
      %5478 = vmatpush1.msra.mxu0 %v5477
      %5479 = vmatprep.subr.mxu0 0.0
      %v5480 = vand.u32 %v4823, 4294901760
      %v5481 = vsub.f32 %v4823, %v5480
      %5482 = vmatpush1.msra.mxu0 %v5481
      %5483 = vmatprep.subr.mxu0 0.0
      %v5484 = vand.u32 %v4824, 4294901760
      %v5485 = vsub.f32 %v4824, %v5484
      %5486 = vmatpush1.msra.mxu0 %v5485
      %5487 = vmatprep.subr.mxu0 0.0
      %v5488 = vand.u32 %v4825, 4294901760
      %v5489 = vsub.f32 %v4825, %v5488
      %5490 = vmatpush1.msra.mxu0 %v5489
      %5491 = vmatprep.subr.mxu0 0.0
      %v5492 = vand.u32 %v4826, 4294901760
      %v5493 = vsub.f32 %v4826, %v5492
      %5494 = vmatpush1.msra.mxu0 %v5493
      %5495 = vmatprep.subr.mxu0 0.0
      %v5496 = vand.u32 %v4827, 4294901760
      %v5497 = vsub.f32 %v4827, %v5496
      %5498 = vmatpush1.msra.mxu0 %v5497
      %5499 = vmatprep.subr.mxu0 0.0
      %v5500 = vand.u32 %v4828, 4294901760
      %v5501 = vsub.f32 %v4828, %v5500
      %5502 = vmatpush1.msra.mxu0 %v5501
      %5503 = vmatprep.subr.mxu0 0.0
      %5504 = vmatpush1.msra.mxu0 0.0
      %5505 = vmatprep.subr.mxu0 0.0
      %5506 = vmatpush1.msra.mxu0 0.0
      %5507 = vmatprep.subr.mxu0 0.0
      %5508 = vmatpush1.msra.mxu0 0.0
      %5509 = vmatprep.subr.mxu0 0.0
      %5510 = vmatpush1.msra.mxu0 0.0
      %5511 = vmatprep.subr.mxu0 0.0
      %5512 = vmatpush1.msra.mxu0 0.0
      %5513 = vmatprep.subr.mxu0 0.0
      %5514 = vmatpush1.msra.mxu0 0.0
      %5515 = vmatprep.subr.mxu0 0.0
      %5516 = vmatpush1.msra.mxu0 0.0
      %5517 = vmatprep.subr.mxu0 0.0
      %5518 = vmatpush1.msra.mxu0 0.0
      %5519 = vmatprep.subr.mxu0 0.0
      %5520 = vmatpush1.msra.mxu0 0.0
      %5521 = vmatprep.subr.mxu0 0.0
      %5522 = vmatpush1.msra.mxu0 0.0
      %5523 = vmatprep.subr.mxu0 0.0
      %5524 = vmatpush1.msra.mxu0 0.0
      %5525 = vmatprep.subr.mxu0 0.0
      %5526 = vmatpush1.msra.mxu0 0.0
      %5527 = vmatprep.subr.mxu0 0.0
      %5528 = vmatpush1.msra.mxu0 0.0
      %5529 = vmatprep.subr.mxu0 0.0
      %5530 = vmatpush1.msra.mxu0 0.0
      %5531 = vmatprep.subr.mxu0 0.0
      %5532 = vmatpush1.msra.mxu0 0.0
      %5533 = vmatprep.subr.mxu0 0.0
      %5534 = vmatpush1.msra.mxu0 0.0
      %5535 = vmatprep.mubr.f32.mxu0 0.0
      %v5536 = vand.u32 %v4573, 4294901760
      %v5537 = vsub.f32 %v4573, %v5536
      %5538 = vmatmul.mubr.f32.gmra.mrb[0].mxu0 %v5537
      %v5539 = vpop.f32.mrb[0].mxu0
      %v5540 = vadd.f32 %v5346, %v5539
      %v5541 = vpop.f32.mrb[0].mxu0
      %5542 = vmatprep.mubr.f32.mxu0 0.0
      %v5543 = vand.u32 %v4574, 4294901760
      %v5544 = vsub.f32 %v4574, %v5543
      %5545 = vmatmul.mubr.f32.gmra.mrb[0].mxu0 %v5544
      %v5546 = vpop.f32.mrb[0].mxu0
      %v5547 = vadd.f32 %v5352, %v5546
      %v5548 = vpop.f32.mrb[0].mxu0
      %5549 = vmatprep.mubr.f32.mxu0 0.0
      %v5550 = vand.u32 %v4575, 4294901760
      %v5551 = vsub.f32 %v4575, %v5550
      %5552 = vmatmul.mubr.f32.gmra.mrb[0].mxu0 %v5551
      %v5553 = vpop.f32.mrb[0].mxu0
      %v5554 = vadd.f32 %v5358, %v5553
      %v5555 = vpop.f32.mrb[0].mxu0
      %5556 = vmatprep.mubr.f32.mxu0 0.0
      %v5557 = vand.u32 %v4576, 4294901760
      %v5558 = vsub.f32 %v4576, %v5557
      %5559 = vmatmul.mubr.f32.gmra.mrb[0].mxu0 %v5558
      %v5560 = vpop.f32.mrb[0].mxu0
      %v5561 = vadd.f32 %v5364, %v5560
      %v5562 = vpop.f32.mrb[0].mxu0
      %5563 = vmatprep.mubr.f32.mxu0 0.0
      %v5564 = vand.u32 %v4577, 4294901760
      %v5565 = vsub.f32 %v4577, %v5564
      %5566 = vmatmul.mubr.f32.gmra.mrb[0].mxu0 %v5565
      %v5567 = vpop.f32.mrb[0].mxu0
      %v5568 = vadd.f32 %v5370, %v5567
      %v5569 = vpop.f32.mrb[0].mxu0
      %5570 = vmatprep.mubr.f32.mxu0 0.0
      %v5571 = vand.u32 %v4578, 4294901760
      %v5572 = vsub.f32 %v4578, %v5571
      %5573 = vmatmul.mubr.f32.gmra.mrb[0].mxu0 %v5572
      %v5574 = vpop.f32.mrb[0].mxu0
      %v5575 = vadd.f32 %v5376, %v5574
      %v5576 = vpop.f32.mrb[0].mxu0
      %5577 = vmatprep.mubr.f32.mxu0 0.0
      %v5578 = vand.u32 %v4579, 4294901760
      %v5579 = vsub.f32 %v4579, %v5578
      %5580 = vmatmul.mubr.f32.gmra.mrb[0].mxu0 %v5579
      %v5581 = vpop.f32.mrb[0].mxu0
      %v5582 = vadd.f32 %v5382, %v5581
      %v5583 = vpop.f32.mrb[0].mxu0
      %5584 = vmatprep.mubr.f32.mxu0 0.0
      %v5585 = vand.u32 %v4580, 4294901760
      %v5586 = vsub.f32 %v4580, %v5585
      %5587 = vmatmul.mubr.f32.gmra.mrb[0].mxu0 %v5586
      %v5588 = vpop.f32.mrb[0].mxu0
      %v5589 = vadd.f32 %v5388, %v5588
      %v5590 = vpop.f32.mrb[0].mxu0
      %5591 = vmatprep.mubr.f32.mxu0 0.0
      %v5592 = vand.u32 %v4581, 4294901760
      %v5593 = vsub.f32 %v4581, %v5592
      %5594 = vmatmul.mubr.f32.gmra.mrb[0].mxu0 %v5593
      %v5595 = vpop.f32.mrb[0].mxu0
      %v5596 = vadd.f32 %v5394, %v5595
      %v5597 = vpop.f32.mrb[0].mxu0
      %5598 = vmatprep.mubr.f32.mxu0 0.0
      %v5599 = vand.u32 %v4582, 4294901760
      %v5600 = vsub.f32 %v4582, %v5599
      %5601 = vmatmul.mubr.f32.gmra.mrb[0].mxu0 %v5600
      %v5602 = vpop.f32.mrb[0].mxu0
      %v5603 = vadd.f32 %v5400, %v5602
      %v5604 = vpop.f32.mrb[0].mxu0
      %5605 = vmatprep.mubr.f32.mxu0 0.0
      %v5606 = vand.u32 %v4583, 4294901760
      %v5607 = vsub.f32 %v4583, %v5606
      %5608 = vmatmul.mubr.f32.gmra.mrb[0].mxu0 %v5607
      %v5609 = vpop.f32.mrb[0].mxu0
      %v5610 = vadd.f32 %v5406, %v5609
      %v5611 = vpop.f32.mrb[0].mxu0
      %5612 = vmatprep.mubr.f32.mxu0 0.0
      %v5613 = vand.u32 %v4584, 4294901760
      %v5614 = vsub.f32 %v4584, %v5613
      %5615 = vmatmul.mubr.f32.gmra.mrb[0].mxu0 %v5614
      %v5616 = vpop.f32.mrb[0].mxu0
      %v5617 = vadd.f32 %v5412, %v5616
      %v5618 = vpop.f32.mrb[0].mxu0
      %5619 = vmatprep.mubr.f32.mxu0 0.0
      %v5620 = vand.u32 %v4585, 4294901760
      %v5621 = vsub.f32 %v4585, %v5620
      %5622 = vmatmul.mubr.f32.gmra.mrb[0].mxu0 %v5621
      %v5623 = vpop.f32.mrb[0].mxu0
      %v5624 = vadd.f32 %v5418, %v5623
      %v5625 = vpop.f32.mrb[0].mxu0
      %5626 = vmatprep.mubr.f32.mxu0 0.0
      %v5627 = vand.u32 %v4586, 4294901760
      %v5628 = vsub.f32 %v4586, %v5627
      %5629 = vmatmul.mubr.f32.gmra.mrb[0].mxu0 %v5628
      %v5630 = vpop.f32.mrb[0].mxu0
      %v5631 = vadd.f32 %v5424, %v5630
      %v5632 = vpop.f32.mrb[0].mxu0
      %5633 = vmatprep.mubr.f32.mxu0 0.0
      %v5634 = vand.u32 %v4587, 4294901760
      %v5635 = vsub.f32 %v4587, %v5634
      %5636 = vmatmul.mubr.f32.gmra.mrb[0].mxu0 %v5635
      %v5637 = vpop.f32.mrb[0].mxu0
      %v5638 = vadd.f32 %v5430, %v5637
      %v5639 = vpop.f32.mrb[0].mxu0
      %5640 = vmatprep.mubr.f32.mxu0 0.0
      %v5641 = vand.u32 %v4588, 4294901760
      %v5642 = vsub.f32 %v4588, %v5641
      %5643 = vmatmul.mubr.f32.gmra.mrb[0].mxu0 %v5642
      %v5644 = vpop.f32.mrb[0].mxu0
      %v5645 = vadd.f32 %v5436, %v5644
      %v5646 = vpop.f32.mrb[0].mxu0
      %5647 = vdwg.mxu0
      %5648 = vmatprep.subr.mxu0 0.0
      %v5649 = vand.u32 %v4813, 4294901760
      %5650 = vmatpush1.msra.mxu0 %v5649
      %5651 = vmatprep.subr.mxu0 0.0
      %v5652 = vand.u32 %v4814, 4294901760
      %5653 = vmatpush1.msra.mxu0 %v5652
      %5654 = vmatprep.subr.mxu0 0.0
      %v5655 = vand.u32 %v4815, 4294901760
      %5656 = vmatpush1.msra.mxu0 %v5655
      %5657 = vmatprep.subr.mxu0 0.0
      %v5658 = vand.u32 %v4816, 4294901760
      %5659 = vmatpush1.msra.mxu0 %v5658
      %5660 = vmatprep.subr.mxu0 0.0
      %v5661 = vand.u32 %v4817, 4294901760
      %5662 = vmatpush1.msra.mxu0 %v5661
      %5663 = vmatprep.subr.mxu0 0.0
      %v5664 = vand.u32 %v4818, 4294901760
      %5665 = vmatpush1.msra.mxu0 %v5664
      %5666 = vmatprep.subr.mxu0 0.0
      %v5667 = vand.u32 %v4819, 4294901760
      %5668 = vmatpush1.msra.mxu0 %v5667
      %5669 = vmatprep.subr.mxu0 0.0
      %v5670 = vand.u32 %v4820, 4294901760
      %5671 = vmatpush1.msra.mxu0 %v5670
      %5672 = vmatprep.subr.mxu0 0.0
      %v5673 = vand.u32 %v4821, 4294901760
      %5674 = vmatpush1.msra.mxu0 %v5673
      %5675 = vmatprep.subr.mxu0 0.0
      %v5676 = vand.u32 %v4822, 4294901760
      %5677 = vmatpush1.msra.mxu0 %v5676
      %5678 = vmatprep.subr.mxu0 0.0
      %v5679 = vand.u32 %v4823, 4294901760
      %5680 = vmatpush1.msra.mxu0 %v5679
      %5681 = vmatprep.subr.mxu0 0.0
      %v5682 = vand.u32 %v4824, 4294901760
      %5683 = vmatpush1.msra.mxu0 %v5682
      %5684 = vmatprep.subr.mxu0 0.0
      %v5685 = vand.u32 %v4825, 4294901760
      %5686 = vmatpush1.msra.mxu0 %v5685
      %5687 = vmatprep.subr.mxu0 0.0
      %v5688 = vand.u32 %v4826, 4294901760
      %5689 = vmatpush1.msra.mxu0 %v5688
      %5690 = vmatprep.subr.mxu0 0.0
      %v5691 = vand.u32 %v4827, 4294901760
      %5692 = vmatpush1.msra.mxu0 %v5691
      %5693 = vmatprep.subr.mxu0 0.0
      %v5694 = vand.u32 %v4828, 4294901760
      %5695 = vmatpush1.msra.mxu0 %v5694
      %5696 = vmatprep.subr.mxu0 0.0
      %5697 = vmatpush1.msra.mxu0 0.0
      %5698 = vmatprep.subr.mxu0 0.0
      %5699 = vmatpush1.msra.mxu0 0.0
      %5700 = vmatprep.subr.mxu0 0.0
      %5701 = vmatpush1.msra.mxu0 0.0
      %5702 = vmatprep.subr.mxu0 0.0
      %5703 = vmatpush1.msra.mxu0 0.0
      %5704 = vmatprep.subr.mxu0 0.0
      %5705 = vmatpush1.msra.mxu0 0.0
      %5706 = vmatprep.subr.mxu0 0.0
      %5707 = vmatpush1.msra.mxu0 0.0
      %5708 = vmatprep.subr.mxu0 0.0
      %5709 = vmatpush1.msra.mxu0 0.0
      %5710 = vmatprep.subr.mxu0 0.0
      %5711 = vmatpush1.msra.mxu0 0.0
      %5712 = vmatprep.subr.mxu0 0.0
      %5713 = vmatpush1.msra.mxu0 0.0
      %5714 = vmatprep.subr.mxu0 0.0
      %5715 = vmatpush1.msra.mxu0 0.0
      %5716 = vmatprep.subr.mxu0 0.0
      %5717 = vmatpush1.msra.mxu0 0.0
      %5718 = vmatprep.subr.mxu0 0.0
      %5719 = vmatpush1.msra.mxu0 0.0
      %5720 = vmatprep.subr.mxu0 0.0
      %5721 = vmatpush1.msra.mxu0 0.0
      %5722 = vmatprep.subr.mxu0 0.0
      %5723 = vmatpush1.msra.mxu0 0.0
      %5724 = vmatprep.subr.mxu0 0.0
      %5725 = vmatpush1.msra.mxu0 0.0
      %5726 = vmatprep.subr.mxu0 0.0
      %5727 = vmatpush1.msra.mxu0 0.0
      %5728 = vmatprep.mubr.f32.mxu0 0.0
      %v5729 = vand.u32 %v4573, 4294901760
      %v5730 = vsub.f32 %v4573, %v5729
      %v5731 = vand.u32 %v5730, 4294901760
      %5732 = vmatmul.mubr.f32.gmra.mrb[0].mxu0 %v5731
      %v5733 = vpop.f32.mrb[0].mxu0
      %v5734 = vadd.f32 %v5540, %v5733
      %v5735 = vpop.f32.mrb[0].mxu0
      %5736 = vmatprep.mubr.f32.mxu0 0.0
      %v5737 = vand.u32 %v4574, 4294901760
      %v5738 = vsub.f32 %v4574, %v5737
      %v5739 = vand.u32 %v5738, 4294901760
      %5740 = vmatmul.mubr.f32.gmra.mrb[0].mxu0 %v5739
      %v5741 = vpop.f32.mrb[0].mxu0
      %v5742 = vadd.f32 %v5547, %v5741
      %v5743 = vpop.f32.mrb[0].mxu0
      %5744 = vmatprep.mubr.f32.mxu0 0.0
      %v5745 = vand.u32 %v4575, 4294901760
      %v5746 = vsub.f32 %v4575, %v5745
      %v5747 = vand.u32 %v5746, 4294901760
      %5748 = vmatmul.mubr.f32.gmra.mrb[0].mxu0 %v5747
      %v5749 = vpop.f32.mrb[0].mxu0
      %v5750 = vadd.f32 %v5554, %v5749
      %v5751 = vpop.f32.mrb[0].mxu0
      %5752 = vmatprep.mubr.f32.mxu0 0.0
      %v5753 = vand.u32 %v4576, 4294901760
      %v5754 = vsub.f32 %v4576, %v5753
      %v5755 = vand.u32 %v5754, 4294901760
      %5756 = vmatmul.mubr.f32.gmra.mrb[0].mxu0 %v5755
      %v5757 = vpop.f32.mrb[0].mxu0
      %v5758 = vadd.f32 %v5561, %v5757
      %v5759 = vpop.f32.mrb[0].mxu0
      %5760 = vmatprep.mubr.f32.mxu0 0.0
      %v5761 = vand.u32 %v4577, 4294901760
      %v5762 = vsub.f32 %v4577, %v5761
      %v5763 = vand.u32 %v5762, 4294901760
      %5764 = vmatmul.mubr.f32.gmra.mrb[0].mxu0 %v5763
      %v5765 = vpop.f32.mrb[0].mxu0
      %v5766 = vadd.f32 %v5568, %v5765
      %v5767 = vpop.f32.mrb[0].mxu0
      %5768 = vmatprep.mubr.f32.mxu0 0.0
      %v5769 = vand.u32 %v4578, 4294901760
      %v5770 = vsub.f32 %v4578, %v5769
      %v5771 = vand.u32 %v5770, 4294901760
      %5772 = vmatmul.mubr.f32.gmra.mrb[0].mxu0 %v5771
      %v5773 = vpop.f32.mrb[0].mxu0
      %v5774 = vadd.f32 %v5575, %v5773
      %v5775 = vpop.f32.mrb[0].mxu0
      %5776 = vmatprep.mubr.f32.mxu0 0.0
      %v5777 = vand.u32 %v4579, 4294901760
      %v5778 = vsub.f32 %v4579, %v5777
      %v5779 = vand.u32 %v5778, 4294901760
      %5780 = vmatmul.mubr.f32.gmra.mrb[0].mxu0 %v5779
      %v5781 = vpop.f32.mrb[0].mxu0
      %v5782 = vadd.f32 %v5582, %v5781
      %v5783 = vpop.f32.mrb[0].mxu0
      %5784 = vmatprep.mubr.f32.mxu0 0.0
      %v5785 = vand.u32 %v4580, 4294901760
      %v5786 = vsub.f32 %v4580, %v5785
      %v5787 = vand.u32 %v5786, 4294901760
      %5788 = vmatmul.mubr.f32.gmra.mrb[0].mxu0 %v5787
      %v5789 = vpop.f32.mrb[0].mxu0
      %v5790 = vadd.f32 %v5589, %v5789
      %v5791 = vpop.f32.mrb[0].mxu0
      %5792 = vmatprep.mubr.f32.mxu0 0.0
      %v5793 = vand.u32 %v4581, 4294901760
      %v5794 = vsub.f32 %v4581, %v5793
      %v5795 = vand.u32 %v5794, 4294901760
      %5796 = vmatmul.mubr.f32.gmra.mrb[0].mxu0 %v5795
      %v5797 = vpop.f32.mrb[0].mxu0
      %v5798 = vadd.f32 %v5596, %v5797
      %v5799 = vpop.f32.mrb[0].mxu0
      %5800 = vmatprep.mubr.f32.mxu0 0.0
      %v5801 = vand.u32 %v4582, 4294901760
      %v5802 = vsub.f32 %v4582, %v5801
      %v5803 = vand.u32 %v5802, 4294901760
      %5804 = vmatmul.mubr.f32.gmra.mrb[0].mxu0 %v5803
      %v5805 = vpop.f32.mrb[0].mxu0
      %v5806 = vadd.f32 %v5603, %v5805
      %v5807 = vpop.f32.mrb[0].mxu0
      %5808 = vmatprep.mubr.f32.mxu0 0.0
      %v5809 = vand.u32 %v4583, 4294901760
      %v5810 = vsub.f32 %v4583, %v5809
      %v5811 = vand.u32 %v5810, 4294901760
      %5812 = vmatmul.mubr.f32.gmra.mrb[0].mxu0 %v5811
      %v5813 = vpop.f32.mrb[0].mxu0
      %v5814 = vadd.f32 %v5610, %v5813
      %v5815 = vpop.f32.mrb[0].mxu0
      %5816 = vmatprep.mubr.f32.mxu0 0.0
      %v5817 = vand.u32 %v4584, 4294901760
      %v5818 = vsub.f32 %v4584, %v5817
      %v5819 = vand.u32 %v5818, 4294901760
      %5820 = vmatmul.mubr.f32.gmra.mrb[0].mxu0 %v5819
      %v5821 = vpop.f32.mrb[0].mxu0
      %v5822 = vadd.f32 %v5617, %v5821
      %v5823 = vpop.f32.mrb[0].mxu0
      %5824 = vmatprep.mubr.f32.mxu0 0.0
      %v5825 = vand.u32 %v4585, 4294901760
      %v5826 = vsub.f32 %v4585, %v5825
      %v5827 = vand.u32 %v5826, 4294901760
      %5828 = vmatmul.mubr.f32.gmra.mrb[0].mxu0 %v5827
      %v5829 = vpop.f32.mrb[0].mxu0
      %v5830 = vadd.f32 %v5624, %v5829
      %v5831 = vpop.f32.mrb[0].mxu0
      %5832 = vmatprep.mubr.f32.mxu0 0.0
      %v5833 = vand.u32 %v4586, 4294901760
      %v5834 = vsub.f32 %v4586, %v5833
      %v5835 = vand.u32 %v5834, 4294901760
      %5836 = vmatmul.mubr.f32.gmra.mrb[0].mxu0 %v5835
      %v5837 = vpop.f32.mrb[0].mxu0
      %v5838 = vadd.f32 %v5631, %v5837
      %v5839 = vpop.f32.mrb[0].mxu0
      %5840 = vmatprep.mubr.f32.mxu0 0.0
      %v5841 = vand.u32 %v4587, 4294901760
      %v5842 = vsub.f32 %v4587, %v5841
      %v5843 = vand.u32 %v5842, 4294901760
      %5844 = vmatmul.mubr.f32.gmra.mrb[0].mxu0 %v5843
      %v5845 = vpop.f32.mrb[0].mxu0
      %v5846 = vadd.f32 %v5638, %v5845
      %v5847 = vpop.f32.mrb[0].mxu0
      %5848 = vmatprep.mubr.f32.mxu0 0.0
      %v5849 = vand.u32 %v4588, 4294901760
      %v5850 = vsub.f32 %v4588, %v5849
      %v5851 = vand.u32 %v5850, 4294901760
      %5852 = vmatmul.mubr.f32.gmra.mrb[0].mxu0 %v5851
      %v5853 = vpop.f32.mrb[0].mxu0
      %v5854 = vadd.f32 %v5645, %v5853
      %v5855 = vpop.f32.mrb[0].mxu0
      %5856 = vdwg.mxu0
      %5857 = vmatprep.subr.mxu0 0.0
      %v5858 = vand.u32 %v4813, 4294901760
      %v5859 = vsub.f32 %v4813, %v5858
      %v5860 = vand.u32 %v5859, 4294901760
      %5861 = vmatpush1.msra.mxu0 %v5860
      %5862 = vmatprep.subr.mxu0 0.0
      %v5863 = vand.u32 %v4814, 4294901760
      %v5864 = vsub.f32 %v4814, %v5863
      %v5865 = vand.u32 %v5864, 4294901760
      %5866 = vmatpush1.msra.mxu0 %v5865
      %5867 = vmatprep.subr.mxu0 0.0
      %v5868 = vand.u32 %v4815, 4294901760
      %v5869 = vsub.f32 %v4815, %v5868
      %v5870 = vand.u32 %v5869, 4294901760
      %5871 = vmatpush1.msra.mxu0 %v5870
      %5872 = vmatprep.subr.mxu0 0.0
      %v5873 = vand.u32 %v4816, 4294901760
      %v5874 = vsub.f32 %v4816, %v5873
      %v5875 = vand.u32 %v5874, 4294901760
      %5876 = vmatpush1.msra.mxu0 %v5875
      %5877 = vmatprep.subr.mxu0 0.0
      %v5878 = vand.u32 %v4817, 4294901760
      %v5879 = vsub.f32 %v4817, %v5878
      %v5880 = vand.u32 %v5879, 4294901760
      %5881 = vmatpush1.msra.mxu0 %v5880
      %5882 = vmatprep.subr.mxu0 0.0
      %v5883 = vand.u32 %v4818, 4294901760
      %v5884 = vsub.f32 %v4818, %v5883
      %v5885 = vand.u32 %v5884, 4294901760
      %5886 = vmatpush1.msra.mxu0 %v5885
      %5887 = vmatprep.subr.mxu0 0.0
      %v5888 = vand.u32 %v4819, 4294901760
      %v5889 = vsub.f32 %v4819, %v5888
      %v5890 = vand.u32 %v5889, 4294901760
      %5891 = vmatpush1.msra.mxu0 %v5890
      %5892 = vmatprep.subr.mxu0 0.0
      %v5893 = vand.u32 %v4820, 4294901760
      %v5894 = vsub.f32 %v4820, %v5893
      %v5895 = vand.u32 %v5894, 4294901760
      %5896 = vmatpush1.msra.mxu0 %v5895
      %5897 = vmatprep.subr.mxu0 0.0
      %v5898 = vand.u32 %v4821, 4294901760
      %v5899 = vsub.f32 %v4821, %v5898
      %v5900 = vand.u32 %v5899, 4294901760
      %5901 = vmatpush1.msra.mxu0 %v5900
      %5902 = vmatprep.subr.mxu0 0.0
      %v5903 = vand.u32 %v4822, 4294901760
      %v5904 = vsub.f32 %v4822, %v5903
      %v5905 = vand.u32 %v5904, 4294901760
      %5906 = vmatpush1.msra.mxu0 %v5905
      %5907 = vmatprep.subr.mxu0 0.0
      %v5908 = vand.u32 %v4823, 4294901760
      %v5909 = vsub.f32 %v4823, %v5908
      %v5910 = vand.u32 %v5909, 4294901760
      %5911 = vmatpush1.msra.mxu0 %v5910
      %5912 = vmatprep.subr.mxu0 0.0
      %v5913 = vand.u32 %v4824, 4294901760
      %v5914 = vsub.f32 %v4824, %v5913
      %v5915 = vand.u32 %v5914, 4294901760
      %5916 = vmatpush1.msra.mxu0 %v5915
      %5917 = vmatprep.subr.mxu0 0.0
      %v5918 = vand.u32 %v4825, 4294901760
      %v5919 = vsub.f32 %v4825, %v5918
      %v5920 = vand.u32 %v5919, 4294901760
      %5921 = vmatpush1.msra.mxu0 %v5920
      %5922 = vmatprep.subr.mxu0 0.0
      %v5923 = vand.u32 %v4826, 4294901760
      %v5924 = vsub.f32 %v4826, %v5923
      %v5925 = vand.u32 %v5924, 4294901760
      %5926 = vmatpush1.msra.mxu0 %v5925
      %5927 = vmatprep.subr.mxu0 0.0
      %v5928 = vand.u32 %v4827, 4294901760
      %v5929 = vsub.f32 %v4827, %v5928
      %v5930 = vand.u32 %v5929, 4294901760
      %5931 = vmatpush1.msra.mxu0 %v5930
      %5932 = vmatprep.subr.mxu0 0.0
      %v5933 = vand.u32 %v4828, 4294901760
      %v5934 = vsub.f32 %v4828, %v5933
      %v5935 = vand.u32 %v5934, 4294901760
      %5936 = vmatpush1.msra.mxu0 %v5935
      %5937 = vmatprep.subr.mxu0 0.0
      %5938 = vmatpush1.msra.mxu0 0.0
      %5939 = vmatprep.subr.mxu0 0.0
      %5940 = vmatpush1.msra.mxu0 0.0
      %5941 = vmatprep.subr.mxu0 0.0
      %5942 = vmatpush1.msra.mxu0 0.0
      %5943 = vmatprep.subr.mxu0 0.0
      %5944 = vmatpush1.msra.mxu0 0.0
      %5945 = vmatprep.subr.mxu0 0.0
      %5946 = vmatpush1.msra.mxu0 0.0
      %5947 = vmatprep.subr.mxu0 0.0
      %5948 = vmatpush1.msra.mxu0 0.0
      %5949 = vmatprep.subr.mxu0 0.0
      %5950 = vmatpush1.msra.mxu0 0.0
      %5951 = vmatprep.subr.mxu0 0.0
      %5952 = vmatpush1.msra.mxu0 0.0
      %5953 = vmatprep.subr.mxu0 0.0
      %5954 = vmatpush1.msra.mxu0 0.0
      %5955 = vmatprep.subr.mxu0 0.0
      %5956 = vmatpush1.msra.mxu0 0.0
      %5957 = vmatprep.subr.mxu0 0.0
      %5958 = vmatpush1.msra.mxu0 0.0
      %5959 = vmatprep.subr.mxu0 0.0
      %5960 = vmatpush1.msra.mxu0 0.0
      %5961 = vmatprep.subr.mxu0 0.0
      %5962 = vmatpush1.msra.mxu0 0.0
      %5963 = vmatprep.subr.mxu0 0.0
      %5964 = vmatpush1.msra.mxu0 0.0
      %5965 = vmatprep.subr.mxu0 0.0
      %5966 = vmatpush1.msra.mxu0 0.0
      %5967 = vmatprep.subr.mxu0 0.0
      %5968 = vmatpush1.msra.mxu0 0.0
      %5969 = vmatprep.mubr.f32.mxu0 0.0
      %v5970 = vand.u32 %v4573, 4294901760
      %5971 = vmatmul.mubr.f32.gmra.mrb[0].mxu0 %v5970
      %v5972 = vpop.f32.mrb[0].mxu0
      %v5973 = vadd.f32 %v5734, %v5972
      %v5974 = vpop.f32.mrb[0].mxu0
      %5975 = vmatprep.mubr.f32.mxu0 0.0
      %v5976 = vand.u32 %v4574, 4294901760
      %5977 = vmatmul.mubr.f32.gmra.mrb[0].mxu0 %v5976
      %v5978 = vpop.f32.mrb[0].mxu0
      %v5979 = vadd.f32 %v5742, %v5978
      %v5980 = vpop.f32.mrb[0].mxu0
      %5981 = vmatprep.mubr.f32.mxu0 0.0
      %v5982 = vand.u32 %v4575, 4294901760
      %5983 = vmatmul.mubr.f32.gmra.mrb[0].mxu0 %v5982
      %v5984 = vpop.f32.mrb[0].mxu0
      %v5985 = vadd.f32 %v5750, %v5984
      %v5986 = vpop.f32.mrb[0].mxu0
      %5987 = vmatprep.mubr.f32.mxu0 0.0
      %v5988 = vand.u32 %v4576, 4294901760
      %5989 = vmatmul.mubr.f32.gmra.mrb[0].mxu0 %v5988
      %v5990 = vpop.f32.mrb[0].mxu0
      %v5991 = vadd.f32 %v5758, %v5990
      %v5992 = vpop.f32.mrb[0].mxu0
      %5993 = vmatprep.mubr.f32.mxu0 0.0
      %v5994 = vand.u32 %v4577, 4294901760
      %5995 = vmatmul.mubr.f32.gmra.mrb[0].mxu0 %v5994
      %v5996 = vpop.f32.mrb[0].mxu0
      %v5997 = vadd.f32 %v5766, %v5996
      %v5998 = vpop.f32.mrb[0].mxu0
      %5999 = vmatprep.mubr.f32.mxu0 0.0
      %v6000 = vand.u32 %v4578, 4294901760
      %6001 = vmatmul.mubr.f32.gmra.mrb[0].mxu0 %v6000
      %v6002 = vpop.f32.mrb[0].mxu0
      %v6003 = vadd.f32 %v5774, %v6002
      %v6004 = vpop.f32.mrb[0].mxu0
      %6005 = vmatprep.mubr.f32.mxu0 0.0
      %v6006 = vand.u32 %v4579, 4294901760
      %6007 = vmatmul.mubr.f32.gmra.mrb[0].mxu0 %v6006
      %v6008 = vpop.f32.mrb[0].mxu0
      %v6009 = vadd.f32 %v5782, %v6008
      %v6010 = vpop.f32.mrb[0].mxu0
      %6011 = vmatprep.mubr.f32.mxu0 0.0
      %v6012 = vand.u32 %v4580, 4294901760
      %6013 = vmatmul.mubr.f32.gmra.mrb[0].mxu0 %v6012
      %v6014 = vpop.f32.mrb[0].mxu0
      %v6015 = vadd.f32 %v5790, %v6014
      %v6016 = vpop.f32.mrb[0].mxu0
      %6017 = vmatprep.mubr.f32.mxu0 0.0
      %v6018 = vand.u32 %v4581, 4294901760
      %6019 = vmatmul.mubr.f32.gmra.mrb[0].mxu0 %v6018
      %v6020 = vpop.f32.mrb[0].mxu0
      %v6021 = vadd.f32 %v5798, %v6020
      %v6022 = vpop.f32.mrb[0].mxu0
      %6023 = vmatprep.mubr.f32.mxu0 0.0
      %v6024 = vand.u32 %v4582, 4294901760
      %6025 = vmatmul.mubr.f32.gmra.mrb[0].mxu0 %v6024
      %v6026 = vpop.f32.mrb[0].mxu0
      %v6027 = vadd.f32 %v5806, %v6026
      %v6028 = vpop.f32.mrb[0].mxu0
      %6029 = vmatprep.mubr.f32.mxu0 0.0
      %v6030 = vand.u32 %v4583, 4294901760
      %6031 = vmatmul.mubr.f32.gmra.mrb[0].mxu0 %v6030
      %v6032 = vpop.f32.mrb[0].mxu0
      %v6033 = vadd.f32 %v5814, %v6032
      %v6034 = vpop.f32.mrb[0].mxu0
      %6035 = vmatprep.mubr.f32.mxu0 0.0
      %v6036 = vand.u32 %v4584, 4294901760
      %6037 = vmatmul.mubr.f32.gmra.mrb[0].mxu0 %v6036
      %v6038 = vpop.f32.mrb[0].mxu0
      %v6039 = vadd.f32 %v5822, %v6038
      %v6040 = vpop.f32.mrb[0].mxu0
      %6041 = vmatprep.mubr.f32.mxu0 0.0
      %v6042 = vand.u32 %v4585, 4294901760
      %6043 = vmatmul.mubr.f32.gmra.mrb[0].mxu0 %v6042
      %v6044 = vpop.f32.mrb[0].mxu0
      %v6045 = vadd.f32 %v5830, %v6044
      %v6046 = vpop.f32.mrb[0].mxu0
      %6047 = vmatprep.mubr.f32.mxu0 0.0
      %v6048 = vand.u32 %v4586, 4294901760
      %6049 = vmatmul.mubr.f32.gmra.mrb[0].mxu0 %v6048
      %v6050 = vpop.f32.mrb[0].mxu0
      %v6051 = vadd.f32 %v5838, %v6050
      %v6052 = vpop.f32.mrb[0].mxu0
      %6053 = vmatprep.mubr.f32.mxu0 0.0
      %v6054 = vand.u32 %v4587, 4294901760
      %6055 = vmatmul.mubr.f32.gmra.mrb[0].mxu0 %v6054
      %v6056 = vpop.f32.mrb[0].mxu0
      %v6057 = vadd.f32 %v5846, %v6056
      %v6058 = vpop.f32.mrb[0].mxu0
      %6059 = vmatprep.mubr.f32.mxu0 0.0
      %v6060 = vand.u32 %v4588, 4294901760
      %6061 = vmatmul.mubr.f32.gmra.mrb[0].mxu0 %v6060
      %v6062 = vpop.f32.mrb[0].mxu0
      %v6063 = vadd.f32 %v5854, %v6062
      %v6064 = vpop.f32.mrb[0].mxu0
      %6065 = vdwg.mxu0
      %6066 = vmatprep.subr.mxu0 0.0
      %v6067 = vand.u32 %v4813, 4294901760
      %6068 = vmatpush1.msra.mxu0 %v6067
      %6069 = vmatprep.subr.mxu0 0.0
      %v6070 = vand.u32 %v4814, 4294901760
      %6071 = vmatpush1.msra.mxu0 %v6070
      %6072 = vmatprep.subr.mxu0 0.0
      %v6073 = vand.u32 %v4815, 4294901760
      %6074 = vmatpush1.msra.mxu0 %v6073
      %6075 = vmatprep.subr.mxu0 0.0
      %v6076 = vand.u32 %v4816, 4294901760
      %6077 = vmatpush1.msra.mxu0 %v6076
      %6078 = vmatprep.subr.mxu0 0.0
      %v6079 = vand.u32 %v4817, 4294901760
      %6080 = vmatpush1.msra.mxu0 %v6079
      %6081 = vmatprep.subr.mxu0 0.0
      %v6082 = vand.u32 %v4818, 4294901760
      %6083 = vmatpush1.msra.mxu0 %v6082
      %6084 = vmatprep.subr.mxu0 0.0
      %v6085 = vand.u32 %v4819, 4294901760
      %6086 = vmatpush1.msra.mxu0 %v6085
      %6087 = vmatprep.subr.mxu0 0.0
      %v6088 = vand.u32 %v4820, 4294901760
      %6089 = vmatpush1.msra.mxu0 %v6088
      %6090 = vmatprep.subr.mxu0 0.0
      %v6091 = vand.u32 %v4821, 4294901760
      %6092 = vmatpush1.msra.mxu0 %v6091
      %6093 = vmatprep.subr.mxu0 0.0
      %v6094 = vand.u32 %v4822, 4294901760
      %6095 = vmatpush1.msra.mxu0 %v6094
      %6096 = vmatprep.subr.mxu0 0.0
      %v6097 = vand.u32 %v4823, 4294901760
      %6098 = vmatpush1.msra.mxu0 %v6097
      %6099 = vmatprep.subr.mxu0 0.0
      %v6100 = vand.u32 %v4824, 4294901760
      %6101 = vmatpush1.msra.mxu0 %v6100
      %6102 = vmatprep.subr.mxu0 0.0
      %v6103 = vand.u32 %v4825, 4294901760
      %6104 = vmatpush1.msra.mxu0 %v6103
      %6105 = vmatprep.subr.mxu0 0.0
      %v6106 = vand.u32 %v4826, 4294901760
      %6107 = vmatpush1.msra.mxu0 %v6106
      %6108 = vmatprep.subr.mxu0 0.0
      %v6109 = vand.u32 %v4827, 4294901760
      %6110 = vmatpush1.msra.mxu0 %v6109
      %6111 = vmatprep.subr.mxu0 0.0
      %v6112 = vand.u32 %v4828, 4294901760
      %6113 = vmatpush1.msra.mxu0 %v6112
      %6114 = vmatprep.subr.mxu0 0.0
      %6115 = vmatpush1.msra.mxu0 0.0
      %6116 = vmatprep.subr.mxu0 0.0
      %6117 = vmatpush1.msra.mxu0 0.0
      %6118 = vmatprep.subr.mxu0 0.0
      %6119 = vmatpush1.msra.mxu0 0.0
      %6120 = vmatprep.subr.mxu0 0.0
      %6121 = vmatpush1.msra.mxu0 0.0
      %6122 = vmatprep.subr.mxu0 0.0
      %6123 = vmatpush1.msra.mxu0 0.0
      %6124 = vmatprep.subr.mxu0 0.0
      %6125 = vmatpush1.msra.mxu0 0.0
      %6126 = vmatprep.subr.mxu0 0.0
      %6127 = vmatpush1.msra.mxu0 0.0
      %6128 = vmatprep.subr.mxu0 0.0
      %6129 = vmatpush1.msra.mxu0 0.0
      %6130 = vmatprep.subr.mxu0 0.0
      %6131 = vmatpush1.msra.mxu0 0.0
      %6132 = vmatprep.subr.mxu0 0.0
      %6133 = vmatpush1.msra.mxu0 0.0
      %6134 = vmatprep.subr.mxu0 0.0
      %6135 = vmatpush1.msra.mxu0 0.0
      %6136 = vmatprep.subr.mxu0 0.0
      %6137 = vmatpush1.msra.mxu0 0.0
      %6138 = vmatprep.subr.mxu0 0.0
      %6139 = vmatpush1.msra.mxu0 0.0
      %6140 = vmatprep.subr.mxu0 0.0
      %6141 = vmatpush1.msra.mxu0 0.0
      %6142 = vmatprep.subr.mxu0 0.0
      %6143 = vmatpush1.msra.mxu0 0.0
      %6144 = vmatprep.subr.mxu0 0.0
      %6145 = vmatpush1.msra.mxu0 0.0
      %6146 = vmatprep.mubr.f32.mxu0 0.0
      %v6147 = vand.u32 %v4573, 4294901760
      %6148 = vmatmul.mubr.f32.gmra.mrb[0].mxu0 %v6147
      %v6149 = vpop.f32.mrb[0].mxu0
      %v6150 = vadd.f32 %v5973, %v6149
      %v6151 = vpop.f32.mrb[0].mxu0
      %6152 = vmatprep.mubr.f32.mxu0 0.0
      %v6153 = vand.u32 %v4574, 4294901760
      %6154 = vmatmul.mubr.f32.gmra.mrb[0].mxu0 %v6153
      %v6155 = vpop.f32.mrb[0].mxu0
      %v6156 = vadd.f32 %v5979, %v6155
      %v6157 = vpop.f32.mrb[0].mxu0
      %6158 = vmatprep.mubr.f32.mxu0 0.0
      %v6159 = vand.u32 %v4575, 4294901760
      %6160 = vmatmul.mubr.f32.gmra.mrb[0].mxu0 %v6159
      %v6161 = vpop.f32.mrb[0].mxu0
      %v6162 = vadd.f32 %v5985, %v6161
      %v6163 = vpop.f32.mrb[0].mxu0
      %6164 = vmatprep.mubr.f32.mxu0 0.0
      %v6165 = vand.u32 %v4576, 4294901760
      %6166 = vmatmul.mubr.f32.gmra.mrb[0].mxu0 %v6165
      %v6167 = vpop.f32.mrb[0].mxu0
      %v6168 = vadd.f32 %v5991, %v6167
      %v6169 = vpop.f32.mrb[0].mxu0
      %6170 = vmatprep.mubr.f32.mxu0 0.0
      %v6171 = vand.u32 %v4577, 4294901760
      %6172 = vmatmul.mubr.f32.gmra.mrb[0].mxu0 %v6171
      %v6173 = vpop.f32.mrb[0].mxu0
      %v6174 = vadd.f32 %v5997, %v6173
      %v6175 = vpop.f32.mrb[0].mxu0
      %6176 = vmatprep.mubr.f32.mxu0 0.0
      %v6177 = vand.u32 %v4578, 4294901760
      %6178 = vmatmul.mubr.f32.gmra.mrb[0].mxu0 %v6177
      %v6179 = vpop.f32.mrb[0].mxu0
      %v6180 = vadd.f32 %v6003, %v6179
      %v6181 = vpop.f32.mrb[0].mxu0
      %6182 = vmatprep.mubr.f32.mxu0 0.0
      %v6183 = vand.u32 %v4579, 4294901760
      %6184 = vmatmul.mubr.f32.gmra.mrb[0].mxu0 %v6183
      %v6185 = vpop.f32.mrb[0].mxu0
      %v6186 = vadd.f32 %v6009, %v6185
      %v6187 = vpop.f32.mrb[0].mxu0
      %6188 = vmatprep.mubr.f32.mxu0 0.0
      %v6189 = vand.u32 %v4580, 4294901760
      %6190 = vmatmul.mubr.f32.gmra.mrb[0].mxu0 %v6189
      %v6191 = vpop.f32.mrb[0].mxu0
      %v6192 = vadd.f32 %v6015, %v6191
      %v6193 = vpop.f32.mrb[0].mxu0
      %6194 = vmatprep.mubr.f32.mxu0 0.0
      %v6195 = vand.u32 %v4581, 4294901760
      %6196 = vmatmul.mubr.f32.gmra.mrb[0].mxu0 %v6195
      %v6197 = vpop.f32.mrb[0].mxu0
      %v6198 = vadd.f32 %v6021, %v6197
      %v6199 = vpop.f32.mrb[0].mxu0
      %6200 = vmatprep.mubr.f32.mxu0 0.0
      %v6201 = vand.u32 %v4582, 4294901760
      %6202 = vmatmul.mubr.f32.gmra.mrb[0].mxu0 %v6201
      %v6203 = vpop.f32.mrb[0].mxu0
      %v6204 = vadd.f32 %v6027, %v6203
      %v6205 = vpop.f32.mrb[0].mxu0
      %6206 = vmatprep.mubr.f32.mxu0 0.0
      %v6207 = vand.u32 %v4583, 4294901760
      %6208 = vmatmul.mubr.f32.gmra.mrb[0].mxu0 %v6207
      %v6209 = vpop.f32.mrb[0].mxu0
      %v6210 = vadd.f32 %v6033, %v6209
      %v6211 = vpop.f32.mrb[0].mxu0
      %6212 = vmatprep.mubr.f32.mxu0 0.0
      %v6213 = vand.u32 %v4584, 4294901760
      %6214 = vmatmul.mubr.f32.gmra.mrb[0].mxu0 %v6213
      %v6215 = vpop.f32.mrb[0].mxu0
      %v6216 = vadd.f32 %v6039, %v6215
      %v6217 = vpop.f32.mrb[0].mxu0
      %6218 = vmatprep.mubr.f32.mxu0 0.0
      %v6219 = vand.u32 %v4585, 4294901760
      %6220 = vmatmul.mubr.f32.gmra.mrb[0].mxu0 %v6219
      %v6221 = vpop.f32.mrb[0].mxu0
      %v6222 = vadd.f32 %v6045, %v6221
      %v6223 = vpop.f32.mrb[0].mxu0
      %6224 = vmatprep.mubr.f32.mxu0 0.0
      %v6225 = vand.u32 %v4586, 4294901760
      %6226 = vmatmul.mubr.f32.gmra.mrb[0].mxu0 %v6225
      %v6227 = vpop.f32.mrb[0].mxu0
      %v6228 = vadd.f32 %v6051, %v6227
      %v6229 = vpop.f32.mrb[0].mxu0
      %6230 = vmatprep.mubr.f32.mxu0 0.0
      %v6231 = vand.u32 %v4587, 4294901760
      %6232 = vmatmul.mubr.f32.gmra.mrb[0].mxu0 %v6231
      %v6233 = vpop.f32.mrb[0].mxu0
      %v6234 = vadd.f32 %v6057, %v6233
      %v6235 = vpop.f32.mrb[0].mxu0
      %6236 = vmatprep.mubr.f32.mxu0 0.0
      %v6237 = vand.u32 %v4588, 4294901760
      %6238 = vmatmul.mubr.f32.gmra.mrb[0].mxu0 %v6237
      %v6239 = vpop.f32.mrb[0].mxu0
      %v6240 = vadd.f32 %v6063, %v6239
      %v6241 = vpop.f32.mrb[0].mxu0
      %6242 = vdwg.mxu0
      %6243 = vmatprep.subr.mxu0 0.0
      %v6244 = vand.u32 %v4813, 4294901760
      %6245 = vmatpush1.msra.mxu0 %v6244
      %6246 = vmatprep.subr.mxu0 0.0
      %v6247 = vand.u32 %v4814, 4294901760
      %6248 = vmatpush1.msra.mxu0 %v6247
      %6249 = vmatprep.subr.mxu0 0.0
      %v6250 = vand.u32 %v4815, 4294901760
      %6251 = vmatpush1.msra.mxu0 %v6250
      %6252 = vmatprep.subr.mxu0 0.0
      %v6253 = vand.u32 %v4816, 4294901760
      %6254 = vmatpush1.msra.mxu0 %v6253
      %6255 = vmatprep.subr.mxu0 0.0
      %v6256 = vand.u32 %v4817, 4294901760
      %6257 = vmatpush1.msra.mxu0 %v6256
      %6258 = vmatprep.subr.mxu0 0.0
      %v6259 = vand.u32 %v4818, 4294901760
      %6260 = vmatpush1.msra.mxu0 %v6259
      %6261 = vmatprep.subr.mxu0 0.0
      %v6262 = vand.u32 %v4819, 4294901760
      %6263 = vmatpush1.msra.mxu0 %v6262
      %6264 = vmatprep.subr.mxu0 0.0
      %v6265 = vand.u32 %v4820, 4294901760
      %6266 = vmatpush1.msra.mxu0 %v6265
      %6267 = vmatprep.subr.mxu0 0.0
      %v6268 = vand.u32 %v4821, 4294901760
      %6269 = vmatpush1.msra.mxu0 %v6268
      %6270 = vmatprep.subr.mxu0 0.0
      %v6271 = vand.u32 %v4822, 4294901760
      %6272 = vmatpush1.msra.mxu0 %v6271
      %6273 = vmatprep.subr.mxu0 0.0
      %v6274 = vand.u32 %v4823, 4294901760
      %6275 = vmatpush1.msra.mxu0 %v6274
      %6276 = vmatprep.subr.mxu0 0.0
      %v6277 = vand.u32 %v4824, 4294901760
      %6278 = vmatpush1.msra.mxu0 %v6277
      %6279 = vmatprep.subr.mxu0 0.0
      %v6280 = vand.u32 %v4825, 4294901760
      %6281 = vmatpush1.msra.mxu0 %v6280
      %6282 = vmatprep.subr.mxu0 0.0
      %v6283 = vand.u32 %v4826, 4294901760
      %6284 = vmatpush1.msra.mxu0 %v6283
      %6285 = vmatprep.subr.mxu0 0.0
      %v6286 = vand.u32 %v4827, 4294901760
      %6287 = vmatpush1.msra.mxu0 %v6286
      %6288 = vmatprep.subr.mxu0 0.0
      %v6289 = vand.u32 %v4828, 4294901760
      %6290 = vmatpush1.msra.mxu0 %v6289
      %6291 = vmatprep.subr.mxu0 0.0
      %6292 = vmatpush1.msra.mxu0 0.0
      %6293 = vmatprep.subr.mxu0 0.0
      %6294 = vmatpush1.msra.mxu0 0.0
      %6295 = vmatprep.subr.mxu0 0.0
      %6296 = vmatpush1.msra.mxu0 0.0
      %6297 = vmatprep.subr.mxu0 0.0
      %6298 = vmatpush1.msra.mxu0 0.0
      %6299 = vmatprep.subr.mxu0 0.0
      %6300 = vmatpush1.msra.mxu0 0.0
      %6301 = vmatprep.subr.mxu0 0.0
      %6302 = vmatpush1.msra.mxu0 0.0
      %6303 = vmatprep.subr.mxu0 0.0
      %6304 = vmatpush1.msra.mxu0 0.0
      %6305 = vmatprep.subr.mxu0 0.0
      %6306 = vmatpush1.msra.mxu0 0.0
      %6307 = vmatprep.subr.mxu0 0.0
      %6308 = vmatpush1.msra.mxu0 0.0
      %6309 = vmatprep.subr.mxu0 0.0
      %6310 = vmatpush1.msra.mxu0 0.0
      %6311 = vmatprep.subr.mxu0 0.0
      %6312 = vmatpush1.msra.mxu0 0.0
      %6313 = vmatprep.subr.mxu0 0.0
      %6314 = vmatpush1.msra.mxu0 0.0
      %6315 = vmatprep.subr.mxu0 0.0
      %6316 = vmatpush1.msra.mxu0 0.0
      %6317 = vmatprep.subr.mxu0 0.0
      %6318 = vmatpush1.msra.mxu0 0.0
      %6319 = vmatprep.subr.mxu0 0.0
      %6320 = vmatpush1.msra.mxu0 0.0
      %6321 = vmatprep.subr.mxu0 0.0
      %6322 = vmatpush1.msra.mxu0 0.0
      %6323 = vmatprep.mubr.f32.mxu0 0.0
      %v6324 = vand.u32 %v4926, 4294901760
      %v6325 = vsub.f32 %v4926, %v6324
      %v6326 = vand.u32 %v6325, 4294901760
      %v6327 = vsub.f32 %v6325, %v6326
      %v6328 = vand.u32 %v6327, 4294901760
      %6329 = vmatmul.mubr.f32.gmra.mrb[0].mxu0 %v6328
      %v6330 = vpop.f32.mrb[0].mxu0
      %v6331 = vadd.f32 %v4797, %v6330
      %v6332 = vpop.f32.mrb[0].mxu0
      %6333 = vmatprep.mubr.f32.mxu0 0.0
      %v6334 = vand.u32 %v4928, 4294901760
      %v6335 = vsub.f32 %v4928, %v6334
      %v6336 = vand.u32 %v6335, 4294901760
      %v6337 = vsub.f32 %v6335, %v6336
      %v6338 = vand.u32 %v6337, 4294901760
      %6339 = vmatmul.mubr.f32.gmra.mrb[0].mxu0 %v6338
      %v6340 = vpop.f32.mrb[0].mxu0
      %v6341 = vadd.f32 %v4798, %v6340
      %v6342 = vpop.f32.mrb[0].mxu0
      %6343 = vmatprep.mubr.f32.mxu0 0.0
      %v6344 = vand.u32 %v4930, 4294901760
      %v6345 = vsub.f32 %v4930, %v6344
      %v6346 = vand.u32 %v6345, 4294901760
      %v6347 = vsub.f32 %v6345, %v6346
      %v6348 = vand.u32 %v6347, 4294901760
      %6349 = vmatmul.mubr.f32.gmra.mrb[0].mxu0 %v6348
      %v6350 = vpop.f32.mrb[0].mxu0
      %v6351 = vadd.f32 %v4799, %v6350
      %v6352 = vpop.f32.mrb[0].mxu0
      %6353 = vmatprep.mubr.f32.mxu0 0.0
      %v6354 = vand.u32 %v4932, 4294901760
      %v6355 = vsub.f32 %v4932, %v6354
      %v6356 = vand.u32 %v6355, 4294901760
      %v6357 = vsub.f32 %v6355, %v6356
      %v6358 = vand.u32 %v6357, 4294901760
      %6359 = vmatmul.mubr.f32.gmra.mrb[0].mxu0 %v6358
      %v6360 = vpop.f32.mrb[0].mxu0
      %v6361 = vadd.f32 %v4800, %v6360
      %v6362 = vpop.f32.mrb[0].mxu0
      %6363 = vmatprep.mubr.f32.mxu0 0.0
      %v6364 = vand.u32 %v4934, 4294901760
      %v6365 = vsub.f32 %v4934, %v6364
      %v6366 = vand.u32 %v6365, 4294901760
      %v6367 = vsub.f32 %v6365, %v6366
      %v6368 = vand.u32 %v6367, 4294901760
      %6369 = vmatmul.mubr.f32.gmra.mrb[0].mxu0 %v6368
      %v6370 = vpop.f32.mrb[0].mxu0
      %v6371 = vadd.f32 %v4801, %v6370
      %v6372 = vpop.f32.mrb[0].mxu0
      %6373 = vmatprep.mubr.f32.mxu0 0.0
      %v6374 = vand.u32 %v4936, 4294901760
      %v6375 = vsub.f32 %v4936, %v6374
      %v6376 = vand.u32 %v6375, 4294901760
      %v6377 = vsub.f32 %v6375, %v6376
      %v6378 = vand.u32 %v6377, 4294901760
      %6379 = vmatmul.mubr.f32.gmra.mrb[0].mxu0 %v6378
      %v6380 = vpop.f32.mrb[0].mxu0
      %v6381 = vadd.f32 %v4802, %v6380
      %v6382 = vpop.f32.mrb[0].mxu0
      %6383 = vmatprep.mubr.f32.mxu0 0.0
      %v6384 = vand.u32 %v4938, 4294901760
      %v6385 = vsub.f32 %v4938, %v6384
      %v6386 = vand.u32 %v6385, 4294901760
      %v6387 = vsub.f32 %v6385, %v6386
      %v6388 = vand.u32 %v6387, 4294901760
      %6389 = vmatmul.mubr.f32.gmra.mrb[0].mxu0 %v6388
      %v6390 = vpop.f32.mrb[0].mxu0
      %v6391 = vadd.f32 %v4803, %v6390
      %v6392 = vpop.f32.mrb[0].mxu0
      %6393 = vmatprep.mubr.f32.mxu0 0.0
      %v6394 = vand.u32 %v4940, 4294901760
      %v6395 = vsub.f32 %v4940, %v6394
      %v6396 = vand.u32 %v6395, 4294901760
      %v6397 = vsub.f32 %v6395, %v6396
      %v6398 = vand.u32 %v6397, 4294901760
      %6399 = vmatmul.mubr.f32.gmra.mrb[0].mxu0 %v6398
      %v6400 = vpop.f32.mrb[0].mxu0
      %v6401 = vadd.f32 %v4804, %v6400
      %v6402 = vpop.f32.mrb[0].mxu0
      %6403 = vmatprep.mubr.f32.mxu0 0.0
      %v6404 = vand.u32 %v4942, 4294901760
      %v6405 = vsub.f32 %v4942, %v6404
      %v6406 = vand.u32 %v6405, 4294901760
      %v6407 = vsub.f32 %v6405, %v6406
      %v6408 = vand.u32 %v6407, 4294901760
      %6409 = vmatmul.mubr.f32.gmra.mrb[0].mxu0 %v6408
      %v6410 = vpop.f32.mrb[0].mxu0
      %v6411 = vadd.f32 %v4805, %v6410
      %v6412 = vpop.f32.mrb[0].mxu0
      %6413 = vmatprep.mubr.f32.mxu0 0.0
      %v6414 = vand.u32 %v4944, 4294901760
      %v6415 = vsub.f32 %v4944, %v6414
      %v6416 = vand.u32 %v6415, 4294901760
      %v6417 = vsub.f32 %v6415, %v6416
      %v6418 = vand.u32 %v6417, 4294901760
      %6419 = vmatmul.mubr.f32.gmra.mrb[0].mxu0 %v6418
      %v6420 = vpop.f32.mrb[0].mxu0
      %v6421 = vadd.f32 %v4806, %v6420
      %v6422 = vpop.f32.mrb[0].mxu0
      %6423 = vmatprep.mubr.f32.mxu0 0.0
      %v6424 = vand.u32 %v4946, 4294901760
      %v6425 = vsub.f32 %v4946, %v6424
      %v6426 = vand.u32 %v6425, 4294901760
      %v6427 = vsub.f32 %v6425, %v6426
      %v6428 = vand.u32 %v6427, 4294901760
      %6429 = vmatmul.mubr.f32.gmra.mrb[0].mxu0 %v6428
      %v6430 = vpop.f32.mrb[0].mxu0
      %v6431 = vadd.f32 %v4807, %v6430
      %v6432 = vpop.f32.mrb[0].mxu0
      %6433 = vmatprep.mubr.f32.mxu0 0.0
      %v6434 = vand.u32 %v4948, 4294901760
      %v6435 = vsub.f32 %v4948, %v6434
      %v6436 = vand.u32 %v6435, 4294901760
      %v6437 = vsub.f32 %v6435, %v6436
      %v6438 = vand.u32 %v6437, 4294901760
      %6439 = vmatmul.mubr.f32.gmra.mrb[0].mxu0 %v6438
      %v6440 = vpop.f32.mrb[0].mxu0
      %v6441 = vadd.f32 %v4808, %v6440
      %v6442 = vpop.f32.mrb[0].mxu0
      %6443 = vmatprep.mubr.f32.mxu0 0.0
      %v6444 = vand.u32 %v4950, 4294901760
      %v6445 = vsub.f32 %v4950, %v6444
      %v6446 = vand.u32 %v6445, 4294901760
      %v6447 = vsub.f32 %v6445, %v6446
      %v6448 = vand.u32 %v6447, 4294901760
      %6449 = vmatmul.mubr.f32.gmra.mrb[0].mxu0 %v6448
      %v6450 = vpop.f32.mrb[0].mxu0
      %v6451 = vadd.f32 %v4809, %v6450
      %v6452 = vpop.f32.mrb[0].mxu0
      %6453 = vmatprep.mubr.f32.mxu0 0.0
      %v6454 = vand.u32 %v4952, 4294901760
      %v6455 = vsub.f32 %v4952, %v6454
      %v6456 = vand.u32 %v6455, 4294901760
      %v6457 = vsub.f32 %v6455, %v6456
      %v6458 = vand.u32 %v6457, 4294901760
      %6459 = vmatmul.mubr.f32.gmra.mrb[0].mxu0 %v6458
      %v6460 = vpop.f32.mrb[0].mxu0
      %v6461 = vadd.f32 %v4810, %v6460
      %v6462 = vpop.f32.mrb[0].mxu0
      %6463 = vmatprep.mubr.f32.mxu0 0.0
      %v6464 = vand.u32 %v4954, 4294901760
      %v6465 = vsub.f32 %v4954, %v6464
      %v6466 = vand.u32 %v6465, 4294901760
      %v6467 = vsub.f32 %v6465, %v6466
      %v6468 = vand.u32 %v6467, 4294901760
      %6469 = vmatmul.mubr.f32.gmra.mrb[0].mxu0 %v6468
      %v6470 = vpop.f32.mrb[0].mxu0
      %v6471 = vadd.f32 %v4811, %v6470
      %v6472 = vpop.f32.mrb[0].mxu0
      %6473 = vmatprep.mubr.f32.mxu0 0.0
      %v6474 = vand.u32 %v4956, 4294901760
      %v6475 = vsub.f32 %v4956, %v6474
      %v6476 = vand.u32 %v6475, 4294901760
      %v6477 = vsub.f32 %v6475, %v6476
      %v6478 = vand.u32 %v6477, 4294901760
      %6479 = vmatmul.mubr.f32.gmra.mrb[0].mxu0 %v6478
      %v6480 = vpop.f32.mrb[0].mxu0
      %v6481 = vadd.f32 %v4812, %v6480
      %v6482 = vpop.f32.mrb[0].mxu0
      %6483 = vdwg.mxu0
      %6484 = vmatprep.subr.mxu0 0.0
      %v6485 = vand.u32 %v4813, 4294901760
      %v6486 = vsub.f32 %v4813, %v6485
      %v6487 = vand.u32 %v6486, 4294901760
      %v6488 = vsub.f32 %v6486, %v6487
      %v6489 = vand.u32 %v6488, 4294901760
      %6490 = vmatpush1.msra.mxu0 %v6489
      %6491 = vmatprep.subr.mxu0 0.0
      %v6492 = vand.u32 %v4814, 4294901760
      %v6493 = vsub.f32 %v4814, %v6492
      %v6494 = vand.u32 %v6493, 4294901760
      %v6495 = vsub.f32 %v6493, %v6494
      %v6496 = vand.u32 %v6495, 4294901760
      %6497 = vmatpush1.msra.mxu0 %v6496
      %6498 = vmatprep.subr.mxu0 0.0
      %v6499 = vand.u32 %v4815, 4294901760
      %v6500 = vsub.f32 %v4815, %v6499
      %v6501 = vand.u32 %v6500, 4294901760
      %v6502 = vsub.f32 %v6500, %v6501
      %v6503 = vand.u32 %v6502, 4294901760
      %6504 = vmatpush1.msra.mxu0 %v6503
      %6505 = vmatprep.subr.mxu0 0.0
      %v6506 = vand.u32 %v4816, 4294901760
      %v6507 = vsub.f32 %v4816, %v6506
      %v6508 = vand.u32 %v6507, 4294901760
      %v6509 = vsub.f32 %v6507, %v6508
      %v6510 = vand.u32 %v6509, 4294901760
      %6511 = vmatpush1.msra.mxu0 %v6510
      %6512 = vmatprep.subr.mxu0 0.0
      %v6513 = vand.u32 %v4817, 4294901760
      %v6514 = vsub.f32 %v4817, %v6513
      %v6515 = vand.u32 %v6514, 4294901760
      %v6516 = vsub.f32 %v6514, %v6515
      %v6517 = vand.u32 %v6516, 4294901760
      %6518 = vmatpush1.msra.mxu0 %v6517
      %6519 = vmatprep.subr.mxu0 0.0
      %v6520 = vand.u32 %v4818, 4294901760
      %v6521 = vsub.f32 %v4818, %v6520
      %v6522 = vand.u32 %v6521, 4294901760
      %v6523 = vsub.f32 %v6521, %v6522
      %v6524 = vand.u32 %v6523, 4294901760
      %6525 = vmatpush1.msra.mxu0 %v6524
      %6526 = vmatprep.subr.mxu0 0.0
      %v6527 = vand.u32 %v4819, 4294901760
      %v6528 = vsub.f32 %v4819, %v6527
      %v6529 = vand.u32 %v6528, 4294901760
      %v6530 = vsub.f32 %v6528, %v6529
      %v6531 = vand.u32 %v6530, 4294901760
      %6532 = vmatpush1.msra.mxu0 %v6531
      %6533 = vmatprep.subr.mxu0 0.0
      %v6534 = vand.u32 %v4820, 4294901760
      %v6535 = vsub.f32 %v4820, %v6534
      %v6536 = vand.u32 %v6535, 4294901760
      %v6537 = vsub.f32 %v6535, %v6536
      %v6538 = vand.u32 %v6537, 4294901760
      %6539 = vmatpush1.msra.mxu0 %v6538
      %6540 = vmatprep.subr.mxu0 0.0
      %v6541 = vand.u32 %v4821, 4294901760
      %v6542 = vsub.f32 %v4821, %v6541
      %v6543 = vand.u32 %v6542, 4294901760
      %v6544 = vsub.f32 %v6542, %v6543
      %v6545 = vand.u32 %v6544, 4294901760
      %6546 = vmatpush1.msra.mxu0 %v6545
      %6547 = vmatprep.subr.mxu0 0.0
      %v6548 = vand.u32 %v4822, 4294901760
      %v6549 = vsub.f32 %v4822, %v6548
      %v6550 = vand.u32 %v6549, 4294901760
      %v6551 = vsub.f32 %v6549, %v6550
      %v6552 = vand.u32 %v6551, 4294901760
      %6553 = vmatpush1.msra.mxu0 %v6552
      %6554 = vmatprep.subr.mxu0 0.0
      %v6555 = vand.u32 %v4823, 4294901760
      %v6556 = vsub.f32 %v4823, %v6555
      %v6557 = vand.u32 %v6556, 4294901760
      %v6558 = vsub.f32 %v6556, %v6557
      %v6559 = vand.u32 %v6558, 4294901760
      %6560 = vmatpush1.msra.mxu0 %v6559
      %6561 = vmatprep.subr.mxu0 0.0
      %v6562 = vand.u32 %v4824, 4294901760
      %v6563 = vsub.f32 %v4824, %v6562
      %v6564 = vand.u32 %v6563, 4294901760
      %v6565 = vsub.f32 %v6563, %v6564
      %v6566 = vand.u32 %v6565, 4294901760
      %6567 = vmatpush1.msra.mxu0 %v6566
      %6568 = vmatprep.subr.mxu0 0.0
      %v6569 = vand.u32 %v4825, 4294901760
      %v6570 = vsub.f32 %v4825, %v6569
      %v6571 = vand.u32 %v6570, 4294901760
      %v6572 = vsub.f32 %v6570, %v6571
      %v6573 = vand.u32 %v6572, 4294901760
      %6574 = vmatpush1.msra.mxu0 %v6573
      %6575 = vmatprep.subr.mxu0 0.0
      %v6576 = vand.u32 %v4826, 4294901760
      %v6577 = vsub.f32 %v4826, %v6576
      %v6578 = vand.u32 %v6577, 4294901760
      %v6579 = vsub.f32 %v6577, %v6578
      %v6580 = vand.u32 %v6579, 4294901760
      %6581 = vmatpush1.msra.mxu0 %v6580
      %6582 = vmatprep.subr.mxu0 0.0
      %v6583 = vand.u32 %v4827, 4294901760
      %v6584 = vsub.f32 %v4827, %v6583
      %v6585 = vand.u32 %v6584, 4294901760
      %v6586 = vsub.f32 %v6584, %v6585
      %v6587 = vand.u32 %v6586, 4294901760
      %6588 = vmatpush1.msra.mxu0 %v6587
      %6589 = vmatprep.subr.mxu0 0.0
      %v6590 = vand.u32 %v4828, 4294901760
      %v6591 = vsub.f32 %v4828, %v6590
      %v6592 = vand.u32 %v6591, 4294901760
      %v6593 = vsub.f32 %v6591, %v6592
      %v6594 = vand.u32 %v6593, 4294901760
      %6595 = vmatpush1.msra.mxu0 %v6594
      %6596 = vmatprep.subr.mxu0 0.0
      %6597 = vmatpush1.msra.mxu0 0.0
      %6598 = vmatprep.subr.mxu0 0.0
      %6599 = vmatpush1.msra.mxu0 0.0
      %6600 = vmatprep.subr.mxu0 0.0
      %6601 = vmatpush1.msra.mxu0 0.0
      %6602 = vmatprep.subr.mxu0 0.0
      %6603 = vmatpush1.msra.mxu0 0.0
      %6604 = vmatprep.subr.mxu0 0.0
      %6605 = vmatpush1.msra.mxu0 0.0
      %6606 = vmatprep.subr.mxu0 0.0
      %6607 = vmatpush1.msra.mxu0 0.0
      %6608 = vmatprep.subr.mxu0 0.0
      %6609 = vmatpush1.msra.mxu0 0.0
      %6610 = vmatprep.subr.mxu0 0.0
      %6611 = vmatpush1.msra.mxu0 0.0
      %6612 = vmatprep.subr.mxu0 0.0
      %6613 = vmatpush1.msra.mxu0 0.0
      %6614 = vmatprep.subr.mxu0 0.0
      %6615 = vmatpush1.msra.mxu0 0.0
      %6616 = vmatprep.subr.mxu0 0.0
      %6617 = vmatpush1.msra.mxu0 0.0
      %6618 = vmatprep.subr.mxu0 0.0
      %6619 = vmatpush1.msra.mxu0 0.0
      %6620 = vmatprep.subr.mxu0 0.0
      %6621 = vmatpush1.msra.mxu0 0.0
      %6622 = vmatprep.subr.mxu0 0.0
      %6623 = vmatpush1.msra.mxu0 0.0
      %6624 = vmatprep.subr.mxu0 0.0
      %6625 = vmatpush1.msra.mxu0 0.0
      %6626 = vmatprep.subr.mxu0 0.0
      %6627 = vmatpush1.msra.mxu0 0.0
      %6628 = vmatprep.mubr.f32.mxu0 0.0
      %v6629 = vand.u32 %v4926, 4294901760
      %6630 = vmatmul.mubr.f32.gmra.mrb[0].mxu0 %v6629
      %v6631 = vpop.f32.mrb[0].mxu0
      %v6632 = vadd.f32 %v6331, %v6631
      %v6633 = vpop.f32.mrb[0].mxu0
      %6634 = vmatprep.mubr.f32.mxu0 0.0
      %v6635 = vand.u32 %v4928, 4294901760
      %6636 = vmatmul.mubr.f32.gmra.mrb[0].mxu0 %v6635
      %v6637 = vpop.f32.mrb[0].mxu0
      %v6638 = vadd.f32 %v6341, %v6637
      %v6639 = vpop.f32.mrb[0].mxu0
      %6640 = vmatprep.mubr.f32.mxu0 0.0
      %v6641 = vand.u32 %v4930, 4294901760
      %6642 = vmatmul.mubr.f32.gmra.mrb[0].mxu0 %v6641
      %v6643 = vpop.f32.mrb[0].mxu0
      %v6644 = vadd.f32 %v6351, %v6643
      %v6645 = vpop.f32.mrb[0].mxu0
      %6646 = vmatprep.mubr.f32.mxu0 0.0
      %v6647 = vand.u32 %v4932, 4294901760
      %6648 = vmatmul.mubr.f32.gmra.mrb[0].mxu0 %v6647
      %v6649 = vpop.f32.mrb[0].mxu0
      %v6650 = vadd.f32 %v6361, %v6649
      %v6651 = vpop.f32.mrb[0].mxu0
      %6652 = vmatprep.mubr.f32.mxu0 0.0
      %v6653 = vand.u32 %v4934, 4294901760
      %6654 = vmatmul.mubr.f32.gmra.mrb[0].mxu0 %v6653
      %v6655 = vpop.f32.mrb[0].mxu0
      %v6656 = vadd.f32 %v6371, %v6655
      %v6657 = vpop.f32.mrb[0].mxu0
      %6658 = vmatprep.mubr.f32.mxu0 0.0
      %v6659 = vand.u32 %v4936, 4294901760
      %6660 = vmatmul.mubr.f32.gmra.mrb[0].mxu0 %v6659
      %v6661 = vpop.f32.mrb[0].mxu0
      %v6662 = vadd.f32 %v6381, %v6661
      %v6663 = vpop.f32.mrb[0].mxu0
      %6664 = vmatprep.mubr.f32.mxu0 0.0
      %v6665 = vand.u32 %v4938, 4294901760
      %6666 = vmatmul.mubr.f32.gmra.mrb[0].mxu0 %v6665
      %v6667 = vpop.f32.mrb[0].mxu0
      %v6668 = vadd.f32 %v6391, %v6667
      %v6669 = vpop.f32.mrb[0].mxu0
      %6670 = vmatprep.mubr.f32.mxu0 0.0
      %v6671 = vand.u32 %v4940, 4294901760
      %6672 = vmatmul.mubr.f32.gmra.mrb[0].mxu0 %v6671
      %v6673 = vpop.f32.mrb[0].mxu0
      %v6674 = vadd.f32 %v6401, %v6673
      %v6675 = vpop.f32.mrb[0].mxu0
      %6676 = vmatprep.mubr.f32.mxu0 0.0
      %v6677 = vand.u32 %v4942, 4294901760
      %6678 = vmatmul.mubr.f32.gmra.mrb[0].mxu0 %v6677
      %v6679 = vpop.f32.mrb[0].mxu0
      %v6680 = vadd.f32 %v6411, %v6679
      %v6681 = vpop.f32.mrb[0].mxu0
      %6682 = vmatprep.mubr.f32.mxu0 0.0
      %v6683 = vand.u32 %v4944, 4294901760
      %6684 = vmatmul.mubr.f32.gmra.mrb[0].mxu0 %v6683
      %v6685 = vpop.f32.mrb[0].mxu0
      %v6686 = vadd.f32 %v6421, %v6685
      %v6687 = vpop.f32.mrb[0].mxu0
      %6688 = vmatprep.mubr.f32.mxu0 0.0
      %v6689 = vand.u32 %v4946, 4294901760
      %6690 = vmatmul.mubr.f32.gmra.mrb[0].mxu0 %v6689
      %v6691 = vpop.f32.mrb[0].mxu0
      %v6692 = vadd.f32 %v6431, %v6691
      %v6693 = vpop.f32.mrb[0].mxu0
      %6694 = vmatprep.mubr.f32.mxu0 0.0
      %v6695 = vand.u32 %v4948, 4294901760
      %6696 = vmatmul.mubr.f32.gmra.mrb[0].mxu0 %v6695
      %v6697 = vpop.f32.mrb[0].mxu0
      %v6698 = vadd.f32 %v6441, %v6697
      %v6699 = vpop.f32.mrb[0].mxu0
      %6700 = vmatprep.mubr.f32.mxu0 0.0
      %v6701 = vand.u32 %v4950, 4294901760
      %6702 = vmatmul.mubr.f32.gmra.mrb[0].mxu0 %v6701
      %v6703 = vpop.f32.mrb[0].mxu0
      %v6704 = vadd.f32 %v6451, %v6703
      %v6705 = vpop.f32.mrb[0].mxu0
      %6706 = vmatprep.mubr.f32.mxu0 0.0
      %v6707 = vand.u32 %v4952, 4294901760
      %6708 = vmatmul.mubr.f32.gmra.mrb[0].mxu0 %v6707
      %v6709 = vpop.f32.mrb[0].mxu0
      %v6710 = vadd.f32 %v6461, %v6709
      %v6711 = vpop.f32.mrb[0].mxu0
      %6712 = vmatprep.mubr.f32.mxu0 0.0
      %v6713 = vand.u32 %v4954, 4294901760
      %6714 = vmatmul.mubr.f32.gmra.mrb[0].mxu0 %v6713
      %v6715 = vpop.f32.mrb[0].mxu0
      %v6716 = vadd.f32 %v6471, %v6715
      %v6717 = vpop.f32.mrb[0].mxu0
      %6718 = vmatprep.mubr.f32.mxu0 0.0
      %v6719 = vand.u32 %v4956, 4294901760
      %6720 = vmatmul.mubr.f32.gmra.mrb[0].mxu0 %v6719
      %v6721 = vpop.f32.mrb[0].mxu0
      %v6722 = vadd.f32 %v6481, %v6721
      %v6723 = vpop.f32.mrb[0].mxu0
      %6724 = vdwg.mxu0
      %6725 = vmatprep.subr.mxu0 0.0
      %v6726 = vand.u32 %v4813, 4294901760
      %v6727 = vsub.f32 %v4813, %v6726
      %6728 = vmatpush1.msra.mxu0 %v6727
      %6729 = vmatprep.subr.mxu0 0.0
      %v6730 = vand.u32 %v4814, 4294901760
      %v6731 = vsub.f32 %v4814, %v6730
      %6732 = vmatpush1.msra.mxu0 %v6731
      %6733 = vmatprep.subr.mxu0 0.0
      %v6734 = vand.u32 %v4815, 4294901760
      %v6735 = vsub.f32 %v4815, %v6734
      %6736 = vmatpush1.msra.mxu0 %v6735
      %6737 = vmatprep.subr.mxu0 0.0
      %v6738 = vand.u32 %v4816, 4294901760
      %v6739 = vsub.f32 %v4816, %v6738
      %6740 = vmatpush1.msra.mxu0 %v6739
      %6741 = vmatprep.subr.mxu0 0.0
      %v6742 = vand.u32 %v4817, 4294901760
      %v6743 = vsub.f32 %v4817, %v6742
      %6744 = vmatpush1.msra.mxu0 %v6743
      %6745 = vmatprep.subr.mxu0 0.0
      %v6746 = vand.u32 %v4818, 4294901760
      %v6747 = vsub.f32 %v4818, %v6746
      %6748 = vmatpush1.msra.mxu0 %v6747
      %6749 = vmatprep.subr.mxu0 0.0
      %v6750 = vand.u32 %v4819, 4294901760
      %v6751 = vsub.f32 %v4819, %v6750
      %6752 = vmatpush1.msra.mxu0 %v6751
      %6753 = vmatprep.subr.mxu0 0.0
      %v6754 = vand.u32 %v4820, 4294901760
      %v6755 = vsub.f32 %v4820, %v6754
      %6756 = vmatpush1.msra.mxu0 %v6755
      %6757 = vmatprep.subr.mxu0 0.0
      %v6758 = vand.u32 %v4821, 4294901760
      %v6759 = vsub.f32 %v4821, %v6758
      %6760 = vmatpush1.msra.mxu0 %v6759
      %6761 = vmatprep.subr.mxu0 0.0
      %v6762 = vand.u32 %v4822, 4294901760
      %v6763 = vsub.f32 %v4822, %v6762
      %6764 = vmatpush1.msra.mxu0 %v6763
      %6765 = vmatprep.subr.mxu0 0.0
      %v6766 = vand.u32 %v4823, 4294901760
      %v6767 = vsub.f32 %v4823, %v6766
      %6768 = vmatpush1.msra.mxu0 %v6767
      %6769 = vmatprep.subr.mxu0 0.0
      %v6770 = vand.u32 %v4824, 4294901760
      %v6771 = vsub.f32 %v4824, %v6770
      %6772 = vmatpush1.msra.mxu0 %v6771
      %6773 = vmatprep.subr.mxu0 0.0
      %v6774 = vand.u32 %v4825, 4294901760
      %v6775 = vsub.f32 %v4825, %v6774
      %6776 = vmatpush1.msra.mxu0 %v6775
      %6777 = vmatprep.subr.mxu0 0.0
      %v6778 = vand.u32 %v4826, 4294901760
      %v6779 = vsub.f32 %v4826, %v6778
      %6780 = vmatpush1.msra.mxu0 %v6779
      %6781 = vmatprep.subr.mxu0 0.0
      %v6782 = vand.u32 %v4827, 4294901760
      %v6783 = vsub.f32 %v4827, %v6782
      %6784 = vmatpush1.msra.mxu0 %v6783
      %6785 = vmatprep.subr.mxu0 0.0
      %v6786 = vand.u32 %v4828, 4294901760
      %v6787 = vsub.f32 %v4828, %v6786
      %6788 = vmatpush1.msra.mxu0 %v6787
      %6789 = vmatprep.subr.mxu0 0.0
      %6790 = vmatpush1.msra.mxu0 0.0
      %6791 = vmatprep.subr.mxu0 0.0
      %6792 = vmatpush1.msra.mxu0 0.0
      %6793 = vmatprep.subr.mxu0 0.0
      %6794 = vmatpush1.msra.mxu0 0.0
      %6795 = vmatprep.subr.mxu0 0.0
      %6796 = vmatpush1.msra.mxu0 0.0
      %6797 = vmatprep.subr.mxu0 0.0
      %6798 = vmatpush1.msra.mxu0 0.0
      %6799 = vmatprep.subr.mxu0 0.0
      %6800 = vmatpush1.msra.mxu0 0.0
      %6801 = vmatprep.subr.mxu0 0.0
      %6802 = vmatpush1.msra.mxu0 0.0
      %6803 = vmatprep.subr.mxu0 0.0
      %6804 = vmatpush1.msra.mxu0 0.0
      %6805 = vmatprep.subr.mxu0 0.0
      %6806 = vmatpush1.msra.mxu0 0.0
      %6807 = vmatprep.subr.mxu0 0.0
      %6808 = vmatpush1.msra.mxu0 0.0
      %6809 = vmatprep.subr.mxu0 0.0
      %6810 = vmatpush1.msra.mxu0 0.0
      %6811 = vmatprep.subr.mxu0 0.0
      %6812 = vmatpush1.msra.mxu0 0.0
      %6813 = vmatprep.subr.mxu0 0.0
      %6814 = vmatpush1.msra.mxu0 0.0
      %6815 = vmatprep.subr.mxu0 0.0
      %6816 = vmatpush1.msra.mxu0 0.0
      %6817 = vmatprep.subr.mxu0 0.0
      %6818 = vmatpush1.msra.mxu0 0.0
      %6819 = vmatprep.subr.mxu0 0.0
      %6820 = vmatpush1.msra.mxu0 0.0
      %6821 = vmatprep.mubr.f32.mxu0 0.0
      %v6822 = vand.u32 %v4926, 4294901760
      %v6823 = vsub.f32 %v4926, %v6822
      %6824 = vmatmul.mubr.f32.gmra.mrb[0].mxu0 %v6823
      %v6825 = vpop.f32.mrb[0].mxu0
      %v6826 = vadd.f32 %v6632, %v6825
      %v6827 = vpop.f32.mrb[0].mxu0
      %6828 = vmatprep.mubr.f32.mxu0 0.0
      %v6829 = vand.u32 %v4928, 4294901760
      %v6830 = vsub.f32 %v4928, %v6829
      %6831 = vmatmul.mubr.f32.gmra.mrb[0].mxu0 %v6830
      %v6832 = vpop.f32.mrb[0].mxu0
      %v6833 = vadd.f32 %v6638, %v6832
      %v6834 = vpop.f32.mrb[0].mxu0
      %6835 = vmatprep.mubr.f32.mxu0 0.0
      %v6836 = vand.u32 %v4930, 4294901760
      %v6837 = vsub.f32 %v4930, %v6836
      %6838 = vmatmul.mubr.f32.gmra.mrb[0].mxu0 %v6837
      %v6839 = vpop.f32.mrb[0].mxu0
      %v6840 = vadd.f32 %v6644, %v6839
      %v6841 = vpop.f32.mrb[0].mxu0
      %6842 = vmatprep.mubr.f32.mxu0 0.0
      %v6843 = vand.u32 %v4932, 4294901760
      %v6844 = vsub.f32 %v4932, %v6843
      %6845 = vmatmul.mubr.f32.gmra.mrb[0].mxu0 %v6844
      %v6846 = vpop.f32.mrb[0].mxu0
      %v6847 = vadd.f32 %v6650, %v6846
      %v6848 = vpop.f32.mrb[0].mxu0
      %6849 = vmatprep.mubr.f32.mxu0 0.0
      %v6850 = vand.u32 %v4934, 4294901760
      %v6851 = vsub.f32 %v4934, %v6850
      %6852 = vmatmul.mubr.f32.gmra.mrb[0].mxu0 %v6851
      %v6853 = vpop.f32.mrb[0].mxu0
      %v6854 = vadd.f32 %v6656, %v6853
      %v6855 = vpop.f32.mrb[0].mxu0
      %6856 = vmatprep.mubr.f32.mxu0 0.0
      %v6857 = vand.u32 %v4936, 4294901760
      %v6858 = vsub.f32 %v4936, %v6857
      %6859 = vmatmul.mubr.f32.gmra.mrb[0].mxu0 %v6858
      %v6860 = vpop.f32.mrb[0].mxu0
      %v6861 = vadd.f32 %v6662, %v6860
      %v6862 = vpop.f32.mrb[0].mxu0
      %6863 = vmatprep.mubr.f32.mxu0 0.0
      %v6864 = vand.u32 %v4938, 4294901760
      %v6865 = vsub.f32 %v4938, %v6864
      %6866 = vmatmul.mubr.f32.gmra.mrb[0].mxu0 %v6865
      %v6867 = vpop.f32.mrb[0].mxu0
      %v6868 = vadd.f32 %v6668, %v6867
      %v6869 = vpop.f32.mrb[0].mxu0
      %6870 = vmatprep.mubr.f32.mxu0 0.0
      %v6871 = vand.u32 %v4940, 4294901760
      %v6872 = vsub.f32 %v4940, %v6871
      %6873 = vmatmul.mubr.f32.gmra.mrb[0].mxu0 %v6872
      %v6874 = vpop.f32.mrb[0].mxu0
      %v6875 = vadd.f32 %v6674, %v6874
      %v6876 = vpop.f32.mrb[0].mxu0
      %6877 = vmatprep.mubr.f32.mxu0 0.0
      %v6878 = vand.u32 %v4942, 4294901760
      %v6879 = vsub.f32 %v4942, %v6878
      %6880 = vmatmul.mubr.f32.gmra.mrb[0].mxu0 %v6879
      %v6881 = vpop.f32.mrb[0].mxu0
      %v6882 = vadd.f32 %v6680, %v6881
      %v6883 = vpop.f32.mrb[0].mxu0
      %6884 = vmatprep.mubr.f32.mxu0 0.0
      %v6885 = vand.u32 %v4944, 4294901760
      %v6886 = vsub.f32 %v4944, %v6885
      %6887 = vmatmul.mubr.f32.gmra.mrb[0].mxu0 %v6886
      %v6888 = vpop.f32.mrb[0].mxu0
      %v6889 = vadd.f32 %v6686, %v6888
      %v6890 = vpop.f32.mrb[0].mxu0
      %6891 = vmatprep.mubr.f32.mxu0 0.0
      %v6892 = vand.u32 %v4946, 4294901760
      %v6893 = vsub.f32 %v4946, %v6892
      %6894 = vmatmul.mubr.f32.gmra.mrb[0].mxu0 %v6893
      %v6895 = vpop.f32.mrb[0].mxu0
      %v6896 = vadd.f32 %v6692, %v6895
      %v6897 = vpop.f32.mrb[0].mxu0
      %6898 = vmatprep.mubr.f32.mxu0 0.0
      %v6899 = vand.u32 %v4948, 4294901760
      %v6900 = vsub.f32 %v4948, %v6899
      %6901 = vmatmul.mubr.f32.gmra.mrb[0].mxu0 %v6900
      %v6902 = vpop.f32.mrb[0].mxu0
      %v6903 = vadd.f32 %v6698, %v6902
      %v6904 = vpop.f32.mrb[0].mxu0
      %6905 = vmatprep.mubr.f32.mxu0 0.0
      %v6906 = vand.u32 %v4950, 4294901760
      %v6907 = vsub.f32 %v4950, %v6906
      %6908 = vmatmul.mubr.f32.gmra.mrb[0].mxu0 %v6907
      %v6909 = vpop.f32.mrb[0].mxu0
      %v6910 = vadd.f32 %v6704, %v6909
      %v6911 = vpop.f32.mrb[0].mxu0
      %6912 = vmatprep.mubr.f32.mxu0 0.0
      %v6913 = vand.u32 %v4952, 4294901760
      %v6914 = vsub.f32 %v4952, %v6913
      %6915 = vmatmul.mubr.f32.gmra.mrb[0].mxu0 %v6914
      %v6916 = vpop.f32.mrb[0].mxu0
      %v6917 = vadd.f32 %v6710, %v6916
      %v6918 = vpop.f32.mrb[0].mxu0
      %6919 = vmatprep.mubr.f32.mxu0 0.0
      %v6920 = vand.u32 %v4954, 4294901760
      %v6921 = vsub.f32 %v4954, %v6920
      %6922 = vmatmul.mubr.f32.gmra.mrb[0].mxu0 %v6921
      %v6923 = vpop.f32.mrb[0].mxu0
      %v6924 = vadd.f32 %v6716, %v6923
      %v6925 = vpop.f32.mrb[0].mxu0
      %6926 = vmatprep.mubr.f32.mxu0 0.0
      %v6927 = vand.u32 %v4956, 4294901760
      %v6928 = vsub.f32 %v4956, %v6927
      %6929 = vmatmul.mubr.f32.gmra.mrb[0].mxu0 %v6928
      %v6930 = vpop.f32.mrb[0].mxu0
      %v6931 = vadd.f32 %v6722, %v6930
      %v6932 = vpop.f32.mrb[0].mxu0
      %6933 = vdwg.mxu0
      %6934 = vmatprep.subr.mxu0 0.0
      %v6935 = vand.u32 %v4813, 4294901760
      %6936 = vmatpush1.msra.mxu0 %v6935
      %6937 = vmatprep.subr.mxu0 0.0
      %v6938 = vand.u32 %v4814, 4294901760
      %6939 = vmatpush1.msra.mxu0 %v6938
      %6940 = vmatprep.subr.mxu0 0.0
      %v6941 = vand.u32 %v4815, 4294901760
      %6942 = vmatpush1.msra.mxu0 %v6941
      %6943 = vmatprep.subr.mxu0 0.0
      %v6944 = vand.u32 %v4816, 4294901760
      %6945 = vmatpush1.msra.mxu0 %v6944
      %6946 = vmatprep.subr.mxu0 0.0
      %v6947 = vand.u32 %v4817, 4294901760
      %6948 = vmatpush1.msra.mxu0 %v6947
      %6949 = vmatprep.subr.mxu0 0.0
      %v6950 = vand.u32 %v4818, 4294901760
      %6951 = vmatpush1.msra.mxu0 %v6950
      %6952 = vmatprep.subr.mxu0 0.0
      %v6953 = vand.u32 %v4819, 4294901760
      %6954 = vmatpush1.msra.mxu0 %v6953
      %6955 = vmatprep.subr.mxu0 0.0
      %v6956 = vand.u32 %v4820, 4294901760
      %6957 = vmatpush1.msra.mxu0 %v6956
      %6958 = vmatprep.subr.mxu0 0.0
      %v6959 = vand.u32 %v4821, 4294901760
      %6960 = vmatpush1.msra.mxu0 %v6959
      %6961 = vmatprep.subr.mxu0 0.0
      %v6962 = vand.u32 %v4822, 4294901760
      %6963 = vmatpush1.msra.mxu0 %v6962
      %6964 = vmatprep.subr.mxu0 0.0
      %v6965 = vand.u32 %v4823, 4294901760
      %6966 = vmatpush1.msra.mxu0 %v6965
      %6967 = vmatprep.subr.mxu0 0.0
      %v6968 = vand.u32 %v4824, 4294901760
      %6969 = vmatpush1.msra.mxu0 %v6968
      %6970 = vmatprep.subr.mxu0 0.0
      %v6971 = vand.u32 %v4825, 4294901760
      %6972 = vmatpush1.msra.mxu0 %v6971
      %6973 = vmatprep.subr.mxu0 0.0
      %v6974 = vand.u32 %v4826, 4294901760
      %6975 = vmatpush1.msra.mxu0 %v6974
      %6976 = vmatprep.subr.mxu0 0.0
      %v6977 = vand.u32 %v4827, 4294901760
      %6978 = vmatpush1.msra.mxu0 %v6977
      %6979 = vmatprep.subr.mxu0 0.0
      %v6980 = vand.u32 %v4828, 4294901760
      %6981 = vmatpush1.msra.mxu0 %v6980
      %6982 = vmatprep.subr.mxu0 0.0
      %6983 = vmatpush1.msra.mxu0 0.0
      %6984 = vmatprep.subr.mxu0 0.0
      %6985 = vmatpush1.msra.mxu0 0.0
      %6986 = vmatprep.subr.mxu0 0.0
      %6987 = vmatpush1.msra.mxu0 0.0
      %6988 = vmatprep.subr.mxu0 0.0
      %6989 = vmatpush1.msra.mxu0 0.0
      %6990 = vmatprep.subr.mxu0 0.0
      %6991 = vmatpush1.msra.mxu0 0.0
      %6992 = vmatprep.subr.mxu0 0.0
      %6993 = vmatpush1.msra.mxu0 0.0
      %6994 = vmatprep.subr.mxu0 0.0
      %6995 = vmatpush1.msra.mxu0 0.0
      %6996 = vmatprep.subr.mxu0 0.0
      %6997 = vmatpush1.msra.mxu0 0.0
      %6998 = vmatprep.subr.mxu0 0.0
      %6999 = vmatpush1.msra.mxu0 0.0
      %7000 = vmatprep.subr.mxu0 0.0
      %7001 = vmatpush1.msra.mxu0 0.0
      %7002 = vmatprep.subr.mxu0 0.0
      %7003 = vmatpush1.msra.mxu0 0.0
      %7004 = vmatprep.subr.mxu0 0.0
      %7005 = vmatpush1.msra.mxu0 0.0
      %7006 = vmatprep.subr.mxu0 0.0
      %7007 = vmatpush1.msra.mxu0 0.0
      %7008 = vmatprep.subr.mxu0 0.0
      %7009 = vmatpush1.msra.mxu0 0.0
      %7010 = vmatprep.subr.mxu0 0.0
      %7011 = vmatpush1.msra.mxu0 0.0
      %7012 = vmatprep.subr.mxu0 0.0
      %7013 = vmatpush1.msra.mxu0 0.0
      %7014 = vmatprep.mubr.f32.mxu0 0.0
      %v7015 = vand.u32 %v4926, 4294901760
      %v7016 = vsub.f32 %v4926, %v7015
      %v7017 = vand.u32 %v7016, 4294901760
      %7018 = vmatmul.mubr.f32.gmra.mrb[0].mxu0 %v7017
      %v7019 = vpop.f32.mrb[0].mxu0
      %v7020 = vadd.f32 %v6826, %v7019
      %v7021 = vpop.f32.mrb[0].mxu0
      %7022 = vmatprep.mubr.f32.mxu0 0.0
      %v7023 = vand.u32 %v4928, 4294901760
      %v7024 = vsub.f32 %v4928, %v7023
      %v7025 = vand.u32 %v7024, 4294901760
      %7026 = vmatmul.mubr.f32.gmra.mrb[0].mxu0 %v7025
      %v7027 = vpop.f32.mrb[0].mxu0
      %v7028 = vadd.f32 %v6833, %v7027
      %v7029 = vpop.f32.mrb[0].mxu0
      %7030 = vmatprep.mubr.f32.mxu0 0.0
      %v7031 = vand.u32 %v4930, 4294901760
      %v7032 = vsub.f32 %v4930, %v7031
      %v7033 = vand.u32 %v7032, 4294901760
      %7034 = vmatmul.mubr.f32.gmra.mrb[0].mxu0 %v7033
      %v7035 = vpop.f32.mrb[0].mxu0
      %v7036 = vadd.f32 %v6840, %v7035
      %v7037 = vpop.f32.mrb[0].mxu0
      %7038 = vmatprep.mubr.f32.mxu0 0.0
      %v7039 = vand.u32 %v4932, 4294901760
      %v7040 = vsub.f32 %v4932, %v7039
      %v7041 = vand.u32 %v7040, 4294901760
      %7042 = vmatmul.mubr.f32.gmra.mrb[0].mxu0 %v7041
      %v7043 = vpop.f32.mrb[0].mxu0
      %v7044 = vadd.f32 %v6847, %v7043
      %v7045 = vpop.f32.mrb[0].mxu0
      %7046 = vmatprep.mubr.f32.mxu0 0.0
      %v7047 = vand.u32 %v4934, 4294901760
      %v7048 = vsub.f32 %v4934, %v7047
      %v7049 = vand.u32 %v7048, 4294901760
      %7050 = vmatmul.mubr.f32.gmra.mrb[0].mxu0 %v7049
      %v7051 = vpop.f32.mrb[0].mxu0
      %v7052 = vadd.f32 %v6854, %v7051
      %v7053 = vpop.f32.mrb[0].mxu0
      %7054 = vmatprep.mubr.f32.mxu0 0.0
      %v7055 = vand.u32 %v4936, 4294901760
      %v7056 = vsub.f32 %v4936, %v7055
      %v7057 = vand.u32 %v7056, 4294901760
      %7058 = vmatmul.mubr.f32.gmra.mrb[0].mxu0 %v7057
      %v7059 = vpop.f32.mrb[0].mxu0
      %v7060 = vadd.f32 %v6861, %v7059
      %v7061 = vpop.f32.mrb[0].mxu0
      %7062 = vmatprep.mubr.f32.mxu0 0.0
      %v7063 = vand.u32 %v4938, 4294901760
      %v7064 = vsub.f32 %v4938, %v7063
      %v7065 = vand.u32 %v7064, 4294901760
      %7066 = vmatmul.mubr.f32.gmra.mrb[0].mxu0 %v7065
      %v7067 = vpop.f32.mrb[0].mxu0
      %v7068 = vadd.f32 %v6868, %v7067
      %v7069 = vpop.f32.mrb[0].mxu0
      %7070 = vmatprep.mubr.f32.mxu0 0.0
      %v7071 = vand.u32 %v4940, 4294901760
      %v7072 = vsub.f32 %v4940, %v7071
      %v7073 = vand.u32 %v7072, 4294901760
      %7074 = vmatmul.mubr.f32.gmra.mrb[0].mxu0 %v7073
      %v7075 = vpop.f32.mrb[0].mxu0
      %v7076 = vadd.f32 %v6875, %v7075
      %v7077 = vpop.f32.mrb[0].mxu0
      %7078 = vmatprep.mubr.f32.mxu0 0.0
      %v7079 = vand.u32 %v4942, 4294901760
      %v7080 = vsub.f32 %v4942, %v7079
      %v7081 = vand.u32 %v7080, 4294901760
      %7082 = vmatmul.mubr.f32.gmra.mrb[0].mxu0 %v7081
      %v7083 = vpop.f32.mrb[0].mxu0
      %v7084 = vadd.f32 %v6882, %v7083
      %v7085 = vpop.f32.mrb[0].mxu0
      %7086 = vmatprep.mubr.f32.mxu0 0.0
      %v7087 = vand.u32 %v4944, 4294901760
      %v7088 = vsub.f32 %v4944, %v7087
      %v7089 = vand.u32 %v7088, 4294901760
      %7090 = vmatmul.mubr.f32.gmra.mrb[0].mxu0 %v7089
      %v7091 = vpop.f32.mrb[0].mxu0
      %v7092 = vadd.f32 %v6889, %v7091
      %v7093 = vpop.f32.mrb[0].mxu0
      %7094 = vmatprep.mubr.f32.mxu0 0.0
      %v7095 = vand.u32 %v4946, 4294901760
      %v7096 = vsub.f32 %v4946, %v7095
      %v7097 = vand.u32 %v7096, 4294901760
      %7098 = vmatmul.mubr.f32.gmra.mrb[0].mxu0 %v7097
      %v7099 = vpop.f32.mrb[0].mxu0
      %v7100 = vadd.f32 %v6896, %v7099
      %v7101 = vpop.f32.mrb[0].mxu0
      %7102 = vmatprep.mubr.f32.mxu0 0.0
      %v7103 = vand.u32 %v4948, 4294901760
      %v7104 = vsub.f32 %v4948, %v7103
      %v7105 = vand.u32 %v7104, 4294901760
      %7106 = vmatmul.mubr.f32.gmra.mrb[0].mxu0 %v7105
      %v7107 = vpop.f32.mrb[0].mxu0
      %v7108 = vadd.f32 %v6903, %v7107
      %v7109 = vpop.f32.mrb[0].mxu0
      %7110 = vmatprep.mubr.f32.mxu0 0.0
      %v7111 = vand.u32 %v4950, 4294901760
      %v7112 = vsub.f32 %v4950, %v7111
      %v7113 = vand.u32 %v7112, 4294901760
      %7114 = vmatmul.mubr.f32.gmra.mrb[0].mxu0 %v7113
      %v7115 = vpop.f32.mrb[0].mxu0
      %v7116 = vadd.f32 %v6910, %v7115
      %v7117 = vpop.f32.mrb[0].mxu0
      %7118 = vmatprep.mubr.f32.mxu0 0.0
      %v7119 = vand.u32 %v4952, 4294901760
      %v7120 = vsub.f32 %v4952, %v7119
      %v7121 = vand.u32 %v7120, 4294901760
      %7122 = vmatmul.mubr.f32.gmra.mrb[0].mxu0 %v7121
      %v7123 = vpop.f32.mrb[0].mxu0
      %v7124 = vadd.f32 %v6917, %v7123
      %v7125 = vpop.f32.mrb[0].mxu0
      %7126 = vmatprep.mubr.f32.mxu0 0.0
      %v7127 = vand.u32 %v4954, 4294901760
      %v7128 = vsub.f32 %v4954, %v7127
      %v7129 = vand.u32 %v7128, 4294901760
      %7130 = vmatmul.mubr.f32.gmra.mrb[0].mxu0 %v7129
      %v7131 = vpop.f32.mrb[0].mxu0
      %v7132 = vadd.f32 %v6924, %v7131
      %v7133 = vpop.f32.mrb[0].mxu0
      %7134 = vmatprep.mubr.f32.mxu0 0.0
      %v7135 = vand.u32 %v4956, 4294901760
      %v7136 = vsub.f32 %v4956, %v7135
      %v7137 = vand.u32 %v7136, 4294901760
      %7138 = vmatmul.mubr.f32.gmra.mrb[0].mxu0 %v7137
      %v7139 = vpop.f32.mrb[0].mxu0
      %v7140 = vadd.f32 %v6931, %v7139
      %v7141 = vpop.f32.mrb[0].mxu0
      %7142 = vdwg.mxu0
      %7143 = vmatprep.subr.mxu0 0.0
      %v7144 = vand.u32 %v4813, 4294901760
      %v7145 = vsub.f32 %v4813, %v7144
      %v7146 = vand.u32 %v7145, 4294901760
      %7147 = vmatpush1.msra.mxu0 %v7146
      %7148 = vmatprep.subr.mxu0 0.0
      %v7149 = vand.u32 %v4814, 4294901760
      %v7150 = vsub.f32 %v4814, %v7149
      %v7151 = vand.u32 %v7150, 4294901760
      %7152 = vmatpush1.msra.mxu0 %v7151
      %7153 = vmatprep.subr.mxu0 0.0
      %v7154 = vand.u32 %v4815, 4294901760
      %v7155 = vsub.f32 %v4815, %v7154
      %v7156 = vand.u32 %v7155, 4294901760
      %7157 = vmatpush1.msra.mxu0 %v7156
      %7158 = vmatprep.subr.mxu0 0.0
      %v7159 = vand.u32 %v4816, 4294901760
      %v7160 = vsub.f32 %v4816, %v7159
      %v7161 = vand.u32 %v7160, 4294901760
      %7162 = vmatpush1.msra.mxu0 %v7161
      %7163 = vmatprep.subr.mxu0 0.0
      %v7164 = vand.u32 %v4817, 4294901760
      %v7165 = vsub.f32 %v4817, %v7164
      %v7166 = vand.u32 %v7165, 4294901760
      %7167 = vmatpush1.msra.mxu0 %v7166
      %7168 = vmatprep.subr.mxu0 0.0
      %v7169 = vand.u32 %v4818, 4294901760
      %v7170 = vsub.f32 %v4818, %v7169
      %v7171 = vand.u32 %v7170, 4294901760
      %7172 = vmatpush1.msra.mxu0 %v7171
      %7173 = vmatprep.subr.mxu0 0.0
      %v7174 = vand.u32 %v4819, 4294901760
      %v7175 = vsub.f32 %v4819, %v7174
      %v7176 = vand.u32 %v7175, 4294901760
      %7177 = vmatpush1.msra.mxu0 %v7176
      %7178 = vmatprep.subr.mxu0 0.0
      %v7179 = vand.u32 %v4820, 4294901760
      %v7180 = vsub.f32 %v4820, %v7179
      %v7181 = vand.u32 %v7180, 4294901760
      %7182 = vmatpush1.msra.mxu0 %v7181
      %7183 = vmatprep.subr.mxu0 0.0
      %v7184 = vand.u32 %v4821, 4294901760
      %v7185 = vsub.f32 %v4821, %v7184
      %v7186 = vand.u32 %v7185, 4294901760
      %7187 = vmatpush1.msra.mxu0 %v7186
      %7188 = vmatprep.subr.mxu0 0.0
      %v7189 = vand.u32 %v4822, 4294901760
      %v7190 = vsub.f32 %v4822, %v7189
      %v7191 = vand.u32 %v7190, 4294901760
      %7192 = vmatpush1.msra.mxu0 %v7191
      %7193 = vmatprep.subr.mxu0 0.0
      %v7194 = vand.u32 %v4823, 4294901760
      %v7195 = vsub.f32 %v4823, %v7194
      %v7196 = vand.u32 %v7195, 4294901760
      %7197 = vmatpush1.msra.mxu0 %v7196
      %7198 = vmatprep.subr.mxu0 0.0
      %v7199 = vand.u32 %v4824, 4294901760
      %v7200 = vsub.f32 %v4824, %v7199
      %v7201 = vand.u32 %v7200, 4294901760
      %7202 = vmatpush1.msra.mxu0 %v7201
      %7203 = vmatprep.subr.mxu0 0.0
      %v7204 = vand.u32 %v4825, 4294901760
      %v7205 = vsub.f32 %v4825, %v7204
      %v7206 = vand.u32 %v7205, 4294901760
      %7207 = vmatpush1.msra.mxu0 %v7206
      %7208 = vmatprep.subr.mxu0 0.0
      %v7209 = vand.u32 %v4826, 4294901760
      %v7210 = vsub.f32 %v4826, %v7209
      %v7211 = vand.u32 %v7210, 4294901760
      %7212 = vmatpush1.msra.mxu0 %v7211
      %7213 = vmatprep.subr.mxu0 0.0
      %v7214 = vand.u32 %v4827, 4294901760
      %v7215 = vsub.f32 %v4827, %v7214
      %v7216 = vand.u32 %v7215, 4294901760
      %7217 = vmatpush1.msra.mxu0 %v7216
      %7218 = vmatprep.subr.mxu0 0.0
      %v7219 = vand.u32 %v4828, 4294901760
      %v7220 = vsub.f32 %v4828, %v7219
      %v7221 = vand.u32 %v7220, 4294901760
      %7222 = vmatpush1.msra.mxu0 %v7221
      %7223 = vmatprep.subr.mxu0 0.0
      %7224 = vmatpush1.msra.mxu0 0.0
      %7225 = vmatprep.subr.mxu0 0.0
      %7226 = vmatpush1.msra.mxu0 0.0
      %7227 = vmatprep.subr.mxu0 0.0
      %7228 = vmatpush1.msra.mxu0 0.0
      %7229 = vmatprep.subr.mxu0 0.0
      %7230 = vmatpush1.msra.mxu0 0.0
      %7231 = vmatprep.subr.mxu0 0.0
      %7232 = vmatpush1.msra.mxu0 0.0
      %7233 = vmatprep.subr.mxu0 0.0
      %7234 = vmatpush1.msra.mxu0 0.0
      %7235 = vmatprep.subr.mxu0 0.0
      %7236 = vmatpush1.msra.mxu0 0.0
      %7237 = vmatprep.subr.mxu0 0.0
      %7238 = vmatpush1.msra.mxu0 0.0
      %7239 = vmatprep.subr.mxu0 0.0
      %7240 = vmatpush1.msra.mxu0 0.0
      %7241 = vmatprep.subr.mxu0 0.0
      %7242 = vmatpush1.msra.mxu0 0.0
      %7243 = vmatprep.subr.mxu0 0.0
      %7244 = vmatpush1.msra.mxu0 0.0
      %7245 = vmatprep.subr.mxu0 0.0
      %7246 = vmatpush1.msra.mxu0 0.0
      %7247 = vmatprep.subr.mxu0 0.0
      %7248 = vmatpush1.msra.mxu0 0.0
      %7249 = vmatprep.subr.mxu0 0.0
      %7250 = vmatpush1.msra.mxu0 0.0
      %7251 = vmatprep.subr.mxu0 0.0
      %7252 = vmatpush1.msra.mxu0 0.0
      %7253 = vmatprep.subr.mxu0 0.0
      %7254 = vmatpush1.msra.mxu0 0.0
      %7255 = vmatprep.mubr.f32.mxu0 0.0
      %v7256 = vand.u32 %v4926, 4294901760
      %7257 = vmatmul.mubr.f32.gmra.mrb[0].mxu0 %v7256
      %v7258 = vpop.f32.mrb[0].mxu0
      %v7259 = vadd.f32 %v7020, %v7258
      %v7260 = vpop.f32.mrb[0].mxu0
      %7261 = vmatprep.mubr.f32.mxu0 0.0
      %v7262 = vand.u32 %v4928, 4294901760
      %7263 = vmatmul.mubr.f32.gmra.mrb[0].mxu0 %v7262
      %v7264 = vpop.f32.mrb[0].mxu0
      %v7265 = vadd.f32 %v7028, %v7264
      %v7266 = vpop.f32.mrb[0].mxu0
      %7267 = vmatprep.mubr.f32.mxu0 0.0
      %v7268 = vand.u32 %v4930, 4294901760
      %7269 = vmatmul.mubr.f32.gmra.mrb[0].mxu0 %v7268
      %v7270 = vpop.f32.mrb[0].mxu0
      %v7271 = vadd.f32 %v7036, %v7270
      %v7272 = vpop.f32.mrb[0].mxu0
      %7273 = vmatprep.mubr.f32.mxu0 0.0
      %v7274 = vand.u32 %v4932, 4294901760
      %7275 = vmatmul.mubr.f32.gmra.mrb[0].mxu0 %v7274
      %v7276 = vpop.f32.mrb[0].mxu0
      %v7277 = vadd.f32 %v7044, %v7276
      %v7278 = vpop.f32.mrb[0].mxu0
      %7279 = vmatprep.mubr.f32.mxu0 0.0
      %v7280 = vand.u32 %v4934, 4294901760
      %7281 = vmatmul.mubr.f32.gmra.mrb[0].mxu0 %v7280
      %v7282 = vpop.f32.mrb[0].mxu0
      %v7283 = vadd.f32 %v7052, %v7282
      %v7284 = vpop.f32.mrb[0].mxu0
      %7285 = vmatprep.mubr.f32.mxu0 0.0
      %v7286 = vand.u32 %v4936, 4294901760
      %7287 = vmatmul.mubr.f32.gmra.mrb[0].mxu0 %v7286
      %v7288 = vpop.f32.mrb[0].mxu0
      %v7289 = vadd.f32 %v7060, %v7288
      %v7290 = vpop.f32.mrb[0].mxu0
      %7291 = vmatprep.mubr.f32.mxu0 0.0
      %v7292 = vand.u32 %v4938, 4294901760
      %7293 = vmatmul.mubr.f32.gmra.mrb[0].mxu0 %v7292
      %v7294 = vpop.f32.mrb[0].mxu0
      %v7295 = vadd.f32 %v7068, %v7294
      %v7296 = vpop.f32.mrb[0].mxu0
      %7297 = vmatprep.mubr.f32.mxu0 0.0
      %v7298 = vand.u32 %v4940, 4294901760
      %7299 = vmatmul.mubr.f32.gmra.mrb[0].mxu0 %v7298
      %v7300 = vpop.f32.mrb[0].mxu0
      %v7301 = vadd.f32 %v7076, %v7300
      %v7302 = vpop.f32.mrb[0].mxu0
      %7303 = vmatprep.mubr.f32.mxu0 0.0
      %v7304 = vand.u32 %v4942, 4294901760
      %7305 = vmatmul.mubr.f32.gmra.mrb[0].mxu0 %v7304
      %v7306 = vpop.f32.mrb[0].mxu0
      %v7307 = vadd.f32 %v7084, %v7306
      %v7308 = vpop.f32.mrb[0].mxu0
      %7309 = vmatprep.mubr.f32.mxu0 0.0
      %v7310 = vand.u32 %v4944, 4294901760
      %7311 = vmatmul.mubr.f32.gmra.mrb[0].mxu0 %v7310
      %v7312 = vpop.f32.mrb[0].mxu0
      %v7313 = vadd.f32 %v7092, %v7312
      %v7314 = vpop.f32.mrb[0].mxu0
      %7315 = vmatprep.mubr.f32.mxu0 0.0
      %v7316 = vand.u32 %v4946, 4294901760
      %7317 = vmatmul.mubr.f32.gmra.mrb[0].mxu0 %v7316
      %v7318 = vpop.f32.mrb[0].mxu0
      %v7319 = vadd.f32 %v7100, %v7318
      %v7320 = vpop.f32.mrb[0].mxu0
      %7321 = vmatprep.mubr.f32.mxu0 0.0
      %v7322 = vand.u32 %v4948, 4294901760
      %7323 = vmatmul.mubr.f32.gmra.mrb[0].mxu0 %v7322
      %v7324 = vpop.f32.mrb[0].mxu0
      %v7325 = vadd.f32 %v7108, %v7324
      %v7326 = vpop.f32.mrb[0].mxu0
      %7327 = vmatprep.mubr.f32.mxu0 0.0
      %v7328 = vand.u32 %v4950, 4294901760
      %7329 = vmatmul.mubr.f32.gmra.mrb[0].mxu0 %v7328
      %v7330 = vpop.f32.mrb[0].mxu0
      %v7331 = vadd.f32 %v7116, %v7330
      %v7332 = vpop.f32.mrb[0].mxu0
      %7333 = vmatprep.mubr.f32.mxu0 0.0
      %v7334 = vand.u32 %v4952, 4294901760
      %7335 = vmatmul.mubr.f32.gmra.mrb[0].mxu0 %v7334
      %v7336 = vpop.f32.mrb[0].mxu0
      %v7337 = vadd.f32 %v7124, %v7336
      %v7338 = vpop.f32.mrb[0].mxu0
      %7339 = vmatprep.mubr.f32.mxu0 0.0
      %v7340 = vand.u32 %v4954, 4294901760
      %7341 = vmatmul.mubr.f32.gmra.mrb[0].mxu0 %v7340
      %v7342 = vpop.f32.mrb[0].mxu0
      %v7343 = vadd.f32 %v7132, %v7342
      %v7344 = vpop.f32.mrb[0].mxu0
      %7345 = vmatprep.mubr.f32.mxu0 0.0
      %v7346 = vand.u32 %v4956, 4294901760
      %7347 = vmatmul.mubr.f32.gmra.mrb[0].mxu0 %v7346
      %v7348 = vpop.f32.mrb[0].mxu0
      %v7349 = vadd.f32 %v7140, %v7348
      %v7350 = vpop.f32.mrb[0].mxu0
      %7351 = vdwg.mxu0
      %7352 = vmatprep.subr.mxu0 0.0
      %v7353 = vand.u32 %v4813, 4294901760
      %7354 = vmatpush1.msra.mxu0 %v7353
      %7355 = vmatprep.subr.mxu0 0.0
      %v7356 = vand.u32 %v4814, 4294901760
      %7357 = vmatpush1.msra.mxu0 %v7356
      %7358 = vmatprep.subr.mxu0 0.0
      %v7359 = vand.u32 %v4815, 4294901760
      %7360 = vmatpush1.msra.mxu0 %v7359
      %7361 = vmatprep.subr.mxu0 0.0
      %v7362 = vand.u32 %v4816, 4294901760
      %7363 = vmatpush1.msra.mxu0 %v7362
      %7364 = vmatprep.subr.mxu0 0.0
      %v7365 = vand.u32 %v4817, 4294901760
      %7366 = vmatpush1.msra.mxu0 %v7365
      %7367 = vmatprep.subr.mxu0 0.0
      %v7368 = vand.u32 %v4818, 4294901760
      %7369 = vmatpush1.msra.mxu0 %v7368
      %7370 = vmatprep.subr.mxu0 0.0
      %v7371 = vand.u32 %v4819, 4294901760
      %7372 = vmatpush1.msra.mxu0 %v7371
      %7373 = vmatprep.subr.mxu0 0.0
      %v7374 = vand.u32 %v4820, 4294901760
      %7375 = vmatpush1.msra.mxu0 %v7374
      %7376 = vmatprep.subr.mxu0 0.0
      %v7377 = vand.u32 %v4821, 4294901760
      %7378 = vmatpush1.msra.mxu0 %v7377
      %7379 = vmatprep.subr.mxu0 0.0
      %v7380 = vand.u32 %v4822, 4294901760
      %7381 = vmatpush1.msra.mxu0 %v7380
      %7382 = vmatprep.subr.mxu0 0.0
      %v7383 = vand.u32 %v4823, 4294901760
      %7384 = vmatpush1.msra.mxu0 %v7383
      %7385 = vmatprep.subr.mxu0 0.0
      %v7386 = vand.u32 %v4824, 4294901760
      %7387 = vmatpush1.msra.mxu0 %v7386
      %7388 = vmatprep.subr.mxu0 0.0
      %v7389 = vand.u32 %v4825, 4294901760
      %7390 = vmatpush1.msra.mxu0 %v7389
      %7391 = vmatprep.subr.mxu0 0.0
      %v7392 = vand.u32 %v4826, 4294901760
      %7393 = vmatpush1.msra.mxu0 %v7392
      %7394 = vmatprep.subr.mxu0 0.0
      %v7395 = vand.u32 %v4827, 4294901760
      %7396 = vmatpush1.msra.mxu0 %v7395
      %7397 = vmatprep.subr.mxu0 0.0
      %v7398 = vand.u32 %v4828, 4294901760
      %7399 = vmatpush1.msra.mxu0 %v7398
      %7400 = vmatprep.subr.mxu0 0.0
      %7401 = vmatpush1.msra.mxu0 0.0
      %7402 = vmatprep.subr.mxu0 0.0
      %7403 = vmatpush1.msra.mxu0 0.0
      %7404 = vmatprep.subr.mxu0 0.0
      %7405 = vmatpush1.msra.mxu0 0.0
      %7406 = vmatprep.subr.mxu0 0.0
      %7407 = vmatpush1.msra.mxu0 0.0
      %7408 = vmatprep.subr.mxu0 0.0
      %7409 = vmatpush1.msra.mxu0 0.0
      %7410 = vmatprep.subr.mxu0 0.0
      %7411 = vmatpush1.msra.mxu0 0.0
      %7412 = vmatprep.subr.mxu0 0.0
      %7413 = vmatpush1.msra.mxu0 0.0
      %7414 = vmatprep.subr.mxu0 0.0
      %7415 = vmatpush1.msra.mxu0 0.0
      %7416 = vmatprep.subr.mxu0 0.0
      %7417 = vmatpush1.msra.mxu0 0.0
      %7418 = vmatprep.subr.mxu0 0.0
      %7419 = vmatpush1.msra.mxu0 0.0
      %7420 = vmatprep.subr.mxu0 0.0
      %7421 = vmatpush1.msra.mxu0 0.0
      %7422 = vmatprep.subr.mxu0 0.0
      %7423 = vmatpush1.msra.mxu0 0.0
      %7424 = vmatprep.subr.mxu0 0.0
      %7425 = vmatpush1.msra.mxu0 0.0
      %7426 = vmatprep.subr.mxu0 0.0
      %7427 = vmatpush1.msra.mxu0 0.0
      %7428 = vmatprep.subr.mxu0 0.0
      %7429 = vmatpush1.msra.mxu0 0.0
      %7430 = vmatprep.subr.mxu0 0.0
      %7431 = vmatpush1.msra.mxu0 0.0
      %7432 = vmatprep.mubr.f32.mxu0 0.0
      %v7433 = vand.u32 %v4926, 4294901760
      %7434 = vmatmul.mubr.f32.gmra.mrb[0].mxu0 %v7433
      %v7435 = vpop.f32.mrb[0].mxu0
      %v7436 = vadd.f32 %v7259, %v7435
      %v7437 = vpop.f32.mrb[0].mxu0
      %7438 = vmatprep.mubr.f32.mxu0 0.0
      %v7439 = vand.u32 %v4928, 4294901760
      %7440 = vmatmul.mubr.f32.gmra.mrb[0].mxu0 %v7439
      %v7441 = vpop.f32.mrb[0].mxu0
      %v7442 = vadd.f32 %v7265, %v7441
      %v7443 = vpop.f32.mrb[0].mxu0
      %7444 = vmatprep.mubr.f32.mxu0 0.0
      %v7445 = vand.u32 %v4930, 4294901760
      %7446 = vmatmul.mubr.f32.gmra.mrb[0].mxu0 %v7445
      %v7447 = vpop.f32.mrb[0].mxu0
      %v7448 = vadd.f32 %v7271, %v7447
      %v7449 = vpop.f32.mrb[0].mxu0
      %7450 = vmatprep.mubr.f32.mxu0 0.0
      %v7451 = vand.u32 %v4932, 4294901760
      %7452 = vmatmul.mubr.f32.gmra.mrb[0].mxu0 %v7451
      %v7453 = vpop.f32.mrb[0].mxu0
      %v7454 = vadd.f32 %v7277, %v7453
      %v7455 = vpop.f32.mrb[0].mxu0
      %7456 = vmatprep.mubr.f32.mxu0 0.0
      %v7457 = vand.u32 %v4934, 4294901760
      %7458 = vmatmul.mubr.f32.gmra.mrb[0].mxu0 %v7457
      %v7459 = vpop.f32.mrb[0].mxu0
      %v7460 = vadd.f32 %v7283, %v7459
      %v7461 = vpop.f32.mrb[0].mxu0
      %7462 = vmatprep.mubr.f32.mxu0 0.0
      %v7463 = vand.u32 %v4936, 4294901760
      %7464 = vmatmul.mubr.f32.gmra.mrb[0].mxu0 %v7463
      %v7465 = vpop.f32.mrb[0].mxu0
      %v7466 = vadd.f32 %v7289, %v7465
      %v7467 = vpop.f32.mrb[0].mxu0
      %7468 = vmatprep.mubr.f32.mxu0 0.0
      %v7469 = vand.u32 %v4938, 4294901760
      %7470 = vmatmul.mubr.f32.gmra.mrb[0].mxu0 %v7469
      %v7471 = vpop.f32.mrb[0].mxu0
      %v7472 = vadd.f32 %v7295, %v7471
      %v7473 = vpop.f32.mrb[0].mxu0
      %7474 = vmatprep.mubr.f32.mxu0 0.0
      %v7475 = vand.u32 %v4940, 4294901760
      %7476 = vmatmul.mubr.f32.gmra.mrb[0].mxu0 %v7475
      %v7477 = vpop.f32.mrb[0].mxu0
      %v7478 = vadd.f32 %v7301, %v7477
      %v7479 = vpop.f32.mrb[0].mxu0
      %7480 = vmatprep.mubr.f32.mxu0 0.0
      %v7481 = vand.u32 %v4942, 4294901760
      %7482 = vmatmul.mubr.f32.gmra.mrb[0].mxu0 %v7481
      %v7483 = vpop.f32.mrb[0].mxu0
      %v7484 = vadd.f32 %v7307, %v7483
      %v7485 = vpop.f32.mrb[0].mxu0
      %7486 = vmatprep.mubr.f32.mxu0 0.0
      %v7487 = vand.u32 %v4944, 4294901760
      %7488 = vmatmul.mubr.f32.gmra.mrb[0].mxu0 %v7487
      %v7489 = vpop.f32.mrb[0].mxu0
      %v7490 = vadd.f32 %v7313, %v7489
      %v7491 = vpop.f32.mrb[0].mxu0
      %7492 = vmatprep.mubr.f32.mxu0 0.0
      %v7493 = vand.u32 %v4946, 4294901760
      %7494 = vmatmul.mubr.f32.gmra.mrb[0].mxu0 %v7493
      %v7495 = vpop.f32.mrb[0].mxu0
      %v7496 = vadd.f32 %v7319, %v7495
      %v7497 = vpop.f32.mrb[0].mxu0
      %7498 = vmatprep.mubr.f32.mxu0 0.0
      %v7499 = vand.u32 %v4948, 4294901760
      %7500 = vmatmul.mubr.f32.gmra.mrb[0].mxu0 %v7499
      %v7501 = vpop.f32.mrb[0].mxu0
      %v7502 = vadd.f32 %v7325, %v7501
      %v7503 = vpop.f32.mrb[0].mxu0
      %7504 = vmatprep.mubr.f32.mxu0 0.0
      %v7505 = vand.u32 %v4950, 4294901760
      %7506 = vmatmul.mubr.f32.gmra.mrb[0].mxu0 %v7505
      %v7507 = vpop.f32.mrb[0].mxu0
      %v7508 = vadd.f32 %v7331, %v7507
      %v7509 = vpop.f32.mrb[0].mxu0
      %7510 = vmatprep.mubr.f32.mxu0 0.0
      %v7511 = vand.u32 %v4952, 4294901760
      %7512 = vmatmul.mubr.f32.gmra.mrb[0].mxu0 %v7511
      %v7513 = vpop.f32.mrb[0].mxu0
      %v7514 = vadd.f32 %v7337, %v7513
      %v7515 = vpop.f32.mrb[0].mxu0
      %7516 = vmatprep.mubr.f32.mxu0 0.0
      %v7517 = vand.u32 %v4954, 4294901760
      %7518 = vmatmul.mubr.f32.gmra.mrb[0].mxu0 %v7517
      %v7519 = vpop.f32.mrb[0].mxu0
      %v7520 = vadd.f32 %v7343, %v7519
      %v7521 = vpop.f32.mrb[0].mxu0
      %7522 = vmatprep.mubr.f32.mxu0 0.0
      %v7523 = vand.u32 %v4956, 4294901760
      %7524 = vmatmul.mubr.f32.gmra.mrb[0].mxu0 %v7523
      %v7525 = vpop.f32.mrb[0].mxu0
      %v7526 = vadd.f32 %v7349, %v7525
      %v7527 = vpop.f32.mrb[0].mxu0
      %7528 = vdwg.mxu0
      %v7529 = vmax.f32 %v7436, 1e-30
      %v7530 = vmax.f32 %v7442, 1e-30
      %v7531 = vmax.f32 %v7448, 1e-30
      %v7532 = vmax.f32 %v7454, 1e-30
      %v7533 = vmax.f32 %v7460, 1e-30
      %v7534 = vmax.f32 %v7466, 1e-30
      %v7535 = vmax.f32 %v7472, 1e-30
      %v7536 = vmax.f32 %v7478, 1e-30
      %v7537 = vmax.f32 %v7484, 1e-30
      %v7538 = vmax.f32 %v7490, 1e-30
      %v7539 = vmax.f32 %v7496, 1e-30
      %v7540 = vmax.f32 %v7502, 1e-30
      %v7541 = vmax.f32 %v7508, 1e-30
      %v7542 = vmax.f32 %v7514, 1e-30
      %v7543 = vmax.f32 %v7520, 1e-30
      %v7544 = vmax.f32 %v7526, 1e-30
      %v7545 = vlog2.pop %v7529
      %v7546 = vmul.f32 %v7545, 0.6931472
      %v7547 = vlog2.pop %v7530
      %v7548 = vmul.f32 %v7547, 0.6931472
      %v7549 = vlog2.pop %v7531
      %v7550 = vmul.f32 %v7549, 0.6931472
      %v7551 = vlog2.pop %v7532
      %v7552 = vmul.f32 %v7551, 0.6931472
      %v7553 = vlog2.pop %v7533
      %v7554 = vmul.f32 %v7553, 0.6931472
      %v7555 = vlog2.pop %v7534
      %v7556 = vmul.f32 %v7555, 0.6931472
      %v7557 = vlog2.pop %v7535
      %v7558 = vmul.f32 %v7557, 0.6931472
      %v7559 = vlog2.pop %v7536
      %v7560 = vmul.f32 %v7559, 0.6931472
      %v7561 = vlog2.pop %v7537
      %v7562 = vmul.f32 %v7561, 0.6931472
      %v7563 = vlog2.pop %v7538
      %v7564 = vmul.f32 %v7563, 0.6931472
      %v7565 = vlog2.pop %v7539
      %v7566 = vmul.f32 %v7565, 0.6931472
      %v7567 = vlog2.pop %v7540
      %v7568 = vmul.f32 %v7567, 0.6931472
      %v7569 = vlog2.pop %v7541
      %v7570 = vmul.f32 %v7569, 0.6931472
      %v7571 = vlog2.pop %v7542
      %v7572 = vmul.f32 %v7571, 0.6931472
      %v7573 = vlog2.pop %v7543
      %v7574 = vmul.f32 %v7573, 0.6931472
      %v7575 = vlog2.pop %v7544
      %v7576 = vmul.f32 %v7575, 0.6931472
      %v7577 = vadd.f32 %v4832, %v7546
      %v7578 = vadd.f32 %v4837, %v7548
      %v7579 = vadd.f32 %v4842, %v7550
      %v7580 = vadd.f32 %v4847, %v7552
      %v7581 = vadd.f32 %v4852, %v7554
      %v7582 = vadd.f32 %v4857, %v7556
      %v7583 = vadd.f32 %v4862, %v7558
      %v7584 = vadd.f32 %v4867, %v7560
      %v7585 = vadd.f32 %v4872, %v7562
      %v7586 = vadd.f32 %v4877, %v7564
      %v7587 = vadd.f32 %v4882, %v7566
      %v7588 = vadd.f32 %v4887, %v7568
      %v7589 = vadd.f32 %v4892, %v7570
      %v7590 = vadd.f32 %v4897, %v7572
      %v7591 = vadd.f32 %v4902, %v7574
      %v7592 = vadd.f32 %v4907, %v7576
      %v7593 = vld [vmem:[%s4] sm:$0x1]
      %v7595 = vlaneseq
      %v7596 = vshrl.u32 %v7595, 7
      %v7597 = vsub.s32 0, %v7596
      %v7598 = vrot.slane %v7593, %v7597
      %v7600 = vsub.f32 %v7598, %v4813
      %v7601 = vsub.f32 %v7598, %v4814
      %v7602 = vsub.f32 %v7598, %v4815
      %v7603 = vsub.f32 %v7598, %v4816
      %v7604 = vsub.f32 %v7598, %v4817
      %v7605 = vsub.f32 %v7598, %v4818
      %v7606 = vsub.f32 %v7598, %v4819
      %v7607 = vsub.f32 %v7598, %v4820
      %v7608 = vsub.f32 %v7598, %v4821
      %v7609 = vsub.f32 %v7598, %v4822
      %v7610 = vsub.f32 %v7598, %v4823
      %v7611 = vsub.f32 %v7598, %v4824
      %v7612 = vsub.f32 %v7598, %v4825
      %v7613 = vsub.f32 %v7598, %v4826
      %v7614 = vsub.f32 %v7598, %v4827
      %v7615 = vsub.f32 %v7598, %v4828
      %v7616 = vmax.f32 %v7600, 1.0
      %v7617 = vmax.f32 %v7601, 1.0
      %v7618 = vmax.f32 %v7602, 1.0
      %v7619 = vmax.f32 %v7603, 1.0
      %v7620 = vmax.f32 %v7604, 1.0
      %v7621 = vmax.f32 %v7605, 1.0
      %v7622 = vmax.f32 %v7606, 1.0
      %v7623 = vmax.f32 %v7607, 1.0
      %v7624 = vmax.f32 %v7608, 1.0
      %v7625 = vmax.f32 %v7609, 1.0
      %v7626 = vmax.f32 %v7610, 1.0
      %v7627 = vmax.f32 %v7611, 1.0
      %v7628 = vmax.f32 %v7612, 1.0
      %v7629 = vmax.f32 %v7613, 1.0
      %v7630 = vmax.f32 %v7614, 1.0
      %v7631 = vmax.f32 %v7615, 1.0
      %v7632 = vrcp.pop %v7616
      %v7633 = vmul.f32 %v6150, %v7632
      %v7634 = vrcp.pop %v7617
      %v7635 = vmul.f32 %v6156, %v7634
      %v7636 = vrcp.pop %v7618
      %v7637 = vmul.f32 %v6162, %v7636
      %v7638 = vrcp.pop %v7619
      %v7639 = vmul.f32 %v6168, %v7638
      %v7640 = vrcp.pop %v7620
      %v7641 = vmul.f32 %v6174, %v7640
      %v7642 = vrcp.pop %v7621
      %v7643 = vmul.f32 %v6180, %v7642
      %v7644 = vrcp.pop %v7622
      %v7645 = vmul.f32 %v6186, %v7644
      %v7646 = vrcp.pop %v7623
      %v7647 = vmul.f32 %v6192, %v7646
      %v7648 = vrcp.pop %v7624
      %v7649 = vmul.f32 %v6198, %v7648
      %v7650 = vrcp.pop %v7625
      %v7651 = vmul.f32 %v6204, %v7650
      %v7652 = vrcp.pop %v7626
      %v7653 = vmul.f32 %v6210, %v7652
      %v7654 = vrcp.pop %v7627
      %v7655 = vmul.f32 %v6216, %v7654
      %v7656 = vrcp.pop %v7628
      %v7657 = vmul.f32 %v6222, %v7656
      %v7658 = vrcp.pop %v7629
      %v7659 = vmul.f32 %v6228, %v7658
      %v7660 = vrcp.pop %v7630
      %v7661 = vmul.f32 %v6234, %v7660
      %v7662 = vrcp.pop %v7631
      %v7663 = vmul.f32 %v6240, %v7662
      %v7664 = vsub.f32 %v7633, %v7577
      %v7665 = vsub.f32 %v7635, %v7578
      %v7666 = vsub.f32 %v7637, %v7579
      %v7667 = vsub.f32 %v7639, %v7580
      %v7668 = vsub.f32 %v7641, %v7581
      %v7669 = vsub.f32 %v7643, %v7582
      %v7670 = vsub.f32 %v7645, %v7583
      %v7671 = vsub.f32 %v7647, %v7584
      %v7672 = vsub.f32 %v7649, %v7585
      %v7673 = vsub.f32 %v7651, %v7586
      %v7674 = vsub.f32 %v7653, %v7587
      %v7675 = vsub.f32 %v7655, %v7588
      %v7676 = vsub.f32 %v7657, %v7589
      %v7677 = vsub.f32 %v7659, %v7590
      %v7678 = vsub.f32 %v7661, %v7591
      %v7679 = vsub.f32 %v7663, %v7592
      %v7680 = vld [vmem:[%s5] sm:$0x1]
      %v7682 = vlaneseq
      %v7683 = vshrl.u32 %v7682, 7
      %v7684 = vsub.s32 0, %v7683
      %v7685 = vrot.slane %v7680, %v7684
      %v7687 = vmul.f32 %v4813, %v7685
      %v7688 = vmul.f32 %v4814, %v7685
      %v7689 = vmul.f32 %v4815, %v7685
      %v7690 = vmul.f32 %v4816, %v7685
      %v7691 = vmul.f32 %v4817, %v7685
      %v7692 = vmul.f32 %v4818, %v7685
      %v7693 = vmul.f32 %v4819, %v7685
      %v7694 = vmul.f32 %v4820, %v7685
      %v7695 = vmul.f32 %v4821, %v7685
      %v7696 = vmul.f32 %v4822, %v7685
      %v7697 = vmul.f32 %v4823, %v7685
      %v7698 = vmul.f32 %v4824, %v7685
      %v7699 = vmul.f32 %v4825, %v7685
      %v7700 = vmul.f32 %v4826, %v7685
      %v7701 = vmul.f32 %v4827, %v7685
      %v7702 = vmul.f32 %v4828, %v7685
      %v7703 = vmul.f32 %v7687, %v7664
      %v7704 = vmul.f32 %v7688, %v7665
      %v7705 = vmul.f32 %v7689, %v7666
      %v7706 = vmul.f32 %v7690, %v7667
      %v7707 = vmul.f32 %v7691, %v7668
      %v7708 = vmul.f32 %v7692, %v7669
      %v7709 = vmul.f32 %v7693, %v7670
      %v7710 = vmul.f32 %v7694, %v7671
      %v7711 = vmul.f32 %v7695, %v7672
      %v7712 = vmul.f32 %v7696, %v7673
      %v7713 = vmul.f32 %v7697, %v7674
      %v7714 = vmul.f32 %v7698, %v7675
      %v7715 = vmul.f32 %v7699, %v7676
      %v7716 = vmul.f32 %v7700, %v7677
      %v7717 = vmul.f32 %v7701, %v7678
      %v7718 = vmul.f32 %v7702, %v7679
      %v7719 = vadd.f32 %v7703, %v7704
      %v7720 = vadd.f32 %v7719, %v7705
      %v7721 = vadd.f32 %v7720, %v7706
      %v7722 = vadd.f32 %v7721, %v7707
      %v7723 = vadd.f32 %v7722, %v7708
      %v7724 = vadd.f32 %v7723, %v7709
      %v7725 = vadd.f32 %v7724, %v7710
      %v7726 = vadd.f32 %v7725, %v7711
      %v7727 = vadd.f32 %v7726, %v7712
      %v7728 = vadd.f32 %v7727, %v7713
      %v7729 = vadd.f32 %v7728, %v7714
      %v7730 = vadd.f32 %v7729, %v7715
      %v7731 = vadd.f32 %v7730, %v7716
      %v7732 = vadd.f32 %v7731, %v7717
      %v7733 = vadd.f32 %v7732, %v7718
      %7734 = vadd.xlane.f32.xlu0 %v7733
      %v7735 = vpop.xlane.xlu0 %7734
      %v7736 = vrot.slane %v7735, 4
      %v7737 = vadd.f32 %v7735, %v7736
      %v7738 = vrot.slane %v7737, 2
      %v7739 = vadd.f32 %v7737, %v7738
      %v7740 = vrot.slane %v7739, 1
      %v7741 = vadd.f32 %v7739, %v7740
      %s7742 = vtos %v7741
      %v7743 = vstv %s7742
      %vm7744 = vcmask 0
      %7745 = vst.msk [vmem:[#allocation12] sm:$0x1] %vm7744, %v7743
    $region49: #{tpu_custom_call.1} parent=1 // pred_fallthru
      _
    // Predicated region
    $region50: #{tpu_custom_call.1} parent=1 // pred_check
      _
    $region51: #{tpu_custom_call.1} parent=1 // pred_check_branch
      %7747 = sbr.rel (0) target = $region53
    $region52: #{tpu_custom_call.1} parent=1 // pred_region
      %s7749 = ssub.s32 16, 16
      %7750 = vsyncadd [#allocation6], %s7749
      %s7752 = sshll.u32 [#allocation12], 4
      %s7753 = int_to_ptr.vmem [resolvable:$true] %s7752
      %7755 = dma.vmem_to_hbm [thread:$0]  %s7753, 16, %s6, [#allocation6]
    $region53: #{tpu_custom_call.1} parent=1 // pred_fallthru
      _
    // Predicated region
    $region54: #{tpu_custom_call.1} parent=1 // pred_check
      _
    $region55: #{tpu_custom_call.1} parent=1 // pred_check_branch
      %7757 = sbr.rel (0) target = $region57
    $region56: #{tpu_custom_call.1} parent=1 // pred_region
      %7758 = dma.done [#allocation6], 16
    $region57: #{tpu_custom_call.1} parent=1 // pred_fallthru
      _
    %7759 = vsyncpa [#allocation5], 1
    %7760 = vsyncpa [#allocation8], 1
    %7761 = vsyncpa [#allocation11], 1
    %7762 = vsyncpa [#allocation6], 1

</llo_original>
